<compile_context>
chip_gen: v7x
topology: tpu7x:2x2x1
jax: 0.10.0
libtpu: 0.0.40
codegen_flags: <defaults>
</compile_context>

<pallas_src>
import jax
import jax.numpy as jnp
from jax import lax
from jax.experimental import pallas as pl
from jax.experimental.pallas import tpu as pltpu

LANE = 128
SUB = 8
PADW = 16      # zero-border width (sublanes) in the conv2 scratch; bf16-tile aligned


def _round_up(x, m):
    return (x + m - 1) // m * m


def _divisors(n):
    return [d for d in range(1, n + 1) if n % d == 0]


def _vmem_budget_bytes():
    """Per-generation VMEM budget: ~3/4 of physical, capped at 96 MiB."""
    cap = 64 * 1024 * 1024            # conservative default (v7x per-core)
    try:
        cap = int(pltpu.get_tpu_info().vmem_capacity_bytes)
    except Exception:
        pass
    return min(cap * 3 // 4, 96 * 1024 * 1024)


def _step_vmem_bytes(nb, th, Wp, Cp, Pp):
    """Rough per-grid-step VMEM working-set estimate (double-buffered tiles)."""
    bf = 2
    x_tile = nb * th * Wp * Cp * bf
    o_tile = nb * th * Wp * Cp * bf
    halo_t = nb * 2 * Wp * Cp * bf
    weights = (Cp * Pp + 9 * Pp * Pp + Pp * Cp) * bf + 8 * (Cp + Pp) * 4
    scratch = nb * (th + 2) * (Wp + 2 * PADW) * Pp * bf
    live = nb * th * Wp * (4 * Pp + 2 * Pp + 4 * Pp + 2 * Pp + 4 * Cp + 4 * Cp)
    return 2 * (x_tile + o_tile + halo_t) + 2 * weights + scratch + live


def _pick_tiling(N, H, Wp, Cp, Pp, budget):
    """Choose (batch_block, tile_h): fit the budget, prefer >=2 grid steps
    (v7x dual TC), then large M = nb*th*Wp, then tall tiles (less halo
    recompute), then fewer grid steps."""
    best = None
    for th in _divisors(H):
        for nb in _divisors(N):
            if _step_vmem_bytes(nb, th, Wp, Cp, Pp) > budget:
                continue
            steps = (N // nb) * (H // th)
            m_rows = nb * th * Wp
            key = (steps >= 2, min(m_rows, 2048), th, -steps)
            if best is None or key > best[1]:
                best = ((nb, th), key)
    if best is None:
        return 1, 1
    return best[0]


def _make_kernel(nb, TH, Wp, W, Cp, Pp, out_dtype):
    M = nb * TH * Wp
    f32, bf16 = jnp.float32, jnp.bfloat16

    def kernel(x_ref, halo_ref,
               w1_ref, s1_ref, b1_ref,
               w2_ref, s2_ref, b2_ref,
               w3_ref, s3_ref, b3_ref,
               o_ref, h1_s):
        j = pl.program_id(1)
        nj = pl.num_programs(1)

        # Column-validity mask (only traced when W was padded up to Wp): the
        # padded columns must be exactly zero after BN+ReLU so conv2's true
        # right-border column stays correct.
        if Wp != W:
            col_ok = (lax.broadcasted_iota(jnp.int32, (1, 1, Wp, 1), 2)
                      < W).astype(f32)
        else:
            col_ok = None

        def conv1_bn_relu(rows2d):
            h = jnp.dot(rows2d, w1_ref[...], preferred_element_type=f32)
            return jnp.maximum(h * s1_ref[...] + b1_ref[...], 0.0)

        # ---- conv1 (1x1) + bn1 + relu : core rows (no concat with halo) ----
        h1c = conv1_bn_relu(x_ref[...].reshape(M, Cp)).reshape(nb, TH, Wp, Pp)
        if col_ok is not None:
            h1c = h1c * col_ok
        h1c = h1c.astype(bf16)

        # ---- conv1 + bn1 + relu : the two halo rows; image-border rows are
        # zeroed by folding scalar masks into this same elementwise pass ------
        h1h = conv1_bn_relu(halo_ref[...].reshape(nb * 2 * Wp, Cp))
        h1h = h1h.reshape(nb, 2, Wp, Pp)
        top = h1h[:, 0:1] * (j > 0).astype(f32)
        bot = h1h[:, 1:2] * (j < nj - 1).astype(f32)
        if col_ok is not None:
            top = top * col_ok
            bot = bot * col_ok
        top = top.astype(bf16)
        bot = bot.astype(bf16)

        # ---- stage conv2's input in a zero-bordered VMEM scratch ------------
        # Data occupies sublane columns [PADW, PADW+Wp); the 16-wide zero
        # borders keep every store aligned and provide the 3x3 conv's
        # x-direction zero padding.
        zb = jnp.zeros((nb, TH + 2, PADW, Pp), bf16)
        h1_s[:, :, 0:PADW, :] = zb
        h1_s[:, :, PADW + Wp:PADW + Wp + PADW, :] = zb
        h1_s[:, 1:TH + 1, PADW:PADW + Wp, :] = h1c
        h1_s[:, 0:1, PADW:PADW + Wp, :] = top
        h1_s[:, TH + 1:TH + 2, PADW:PADW + Wp, :] = bot

        # ---- conv2 (3x3, stride 1, pad 1) + bn2 + relu ----------------------
        # Nine accumulating K=Pp dots over shifted windows of the scratch; no
        # im2col patch buffer is materialized.
        acc = jnp.zeros((M, Pp), f32)
        for dy in range(3):
            for dx in range(3):
                off = PADW - 1 + dx
                tap = h1_s[:, dy:dy + TH, off:off + Wp, :]
                t = dy * 3 + dx
                w_t = w2_ref[t * Pp:(t + 1) * Pp, :]
                acc = acc + jnp.dot(tap.reshape(M, Pp), w_t,
                                    preferred_element_type=f32)
        h2 = jnp.maximum(acc * s2_ref[...] + b2_ref[...], 0.0).astype(bf16)

        # ---- conv3 (1x1) + bn3 + identity residual + relu -------------------
        h3 = jnp.dot(h2, w3_ref[...], preferred_element_type=f32)
        h3 = h3 * s3_ref[...] + b3_ref[...]
        residual = x_ref[...].astype(f32).reshape(M, Cp)     # re-read late
        out = jnp.maximum(h3 + residual, 0.0)
        o_ref[...] = out.reshape(nb, TH, Wp, Cp).astype(out_dtype)

    return kernel


def bottleneck_pallas(x_nhwc, params, *, tile_h=None, batch_block=None,
                      out_dtype=jnp.bfloat16, vmem_limit_bytes=None):
    """ResNet Bottleneck forward (eval-mode BN), stride=1, identity residual."""
    N, H, W, C = x_nhwc.shape
    P = params["w1"].shape[1]
    assert C == 4 * P, "identity residual requires inplanes == planes * 4"
    # TODO(synk): stride>1 / downsample branch not implemented.

    f32, bf16 = jnp.float32, jnp.bfloat16
    Cp = _round_up(C, LANE)
    Pp = _round_up(P, LANE)
    Wp = _round_up(W, SUB)

    if vmem_limit_bytes is None:
        vmem_limit_bytes = _vmem_budget_bytes()
    tile_budget = int(vmem_limit_bytes * 0.85)

    auto_nb, auto_th = _pick_tiling(N, H, Wp, Cp, Pp, tile_budget)
    th = tile_h if tile_h is not None else auto_th
    nb = batch_block if batch_block is not None else auto_nb
    assert H % th == 0 and N % nb == 0, "tile_h / batch_block must divide H / N"
    T = H // th

    # --- activations: NHWC, lane-dense channel pad + 8-aligned width pad -----
    xp = jnp.pad(x_nhwc, ((0, 0), (0, 0), (0, Wp - W), (0, Cp - C))).astype(bf16)

    # --- one-row halos above/below every row tile (zero at image borders) ----
    zrow = jnp.zeros((N, 1, Wp, Cp), bf16)
    if T > 1:
        tops = xp[:, th - 1:H - 1:th]          # rows j*th - 1   (j = 1..T-1)
        bots = xp[:, th::th]                   # rows (j+1)*th   (j = 0..T-2)
        top_halo = jnp.concatenate([zrow, tops], axis=1)
        bot_halo = jnp.concatenate([bots, zrow], axis=1)
    else:
        top_halo, bot_halo = zrow, zrow
    halo = jnp.stack([top_halo, bot_halo], axis=2)        # (N, T, 2, Wp, Cp)

    # --- weights / folded BN, zero-padded so padded channels stay zero -------
    w1 = jnp.pad(params["w1"], ((0, Cp - C), (0, Pp - P))).astype(bf16)
    w2 = jnp.pad(params["w2"], ((0, 0), (0, 0), (0, Pp - P), (0, Pp - P)))
    w2 = w2.reshape(9 * Pp, Pp).astype(bf16)               # rows ordered (dy,dx,cin)
    w3 = jnp.pad(params["w3"], ((0, Pp - P), (0, Cp - C))).astype(bf16)

    def pad_vec(v, n):
        return jnp.pad(v.reshape(1, -1), ((0, 0), (0, n - v.size))).astype(f32)

    s1, b1 = pad_vec(params["s1"], Pp), pad_vec(params["b1"], Pp)
    s2, b2 = pad_vec(params["s2"], Pp), pad_vec(params["b2"], Pp)
    s3, b3 = pad_vec(params["s3"], Cp), pad_vec(params["b3"], Cp)

    kernel = _make_kernel(nb, th, Wp, W, Cp, Pp, out_dtype)

    x_spec = pl.BlockSpec((nb, th, Wp, Cp), lambda n, j: (n, j, 0, 0))
    halo_spec = pl.BlockSpec((nb, 1, 2, Wp, Cp), lambda n, j: (n, j, 0, 0, 0))
    out_spec = pl.BlockSpec((nb, th, Wp, Cp), lambda n, j: (n, j, 0, 0))

    flops = 2 * N * Wp * ((H + 2 * T) * Cp * Pp + H * 9 * Pp * Pp + H * Pp * Cp)
    bytes_accessed = ((xp.size + halo.size + w1.size + w2.size + w3.size) * 2
                      + (s1.size + b1.size + s2.size + b2.size
                         + s3.size + b3.size) * 4
                      + N * H * Wp * Cp * jnp.dtype(out_dtype).itemsize)

    def _call(single_buffer_weights):
        def const(shape):
            idx = lambda n, j: (0,) * len(shape)
            if single_buffer_weights:
                return pl.BlockSpec(shape, idx, pipeline_mode=pl.Buffered(1))
            return pl.BlockSpec(shape, idx)

        in_specs = [
            x_spec, halo_spec,
            const((Cp, Pp)), const((1, Pp)), const((1, Pp)),
            const((9 * Pp, Pp)), const((1, Pp)), const((1, Pp)),
            const((Pp, Cp)), const((1, Cp)), const((1, Cp)),
        ]
        return pl.pallas_call(
            kernel,
            out_shape=jax.ShapeDtypeStruct((N, H, Wp, Cp), out_dtype),
            grid=(N // nb, T),
            in_specs=in_specs,
            out_specs=out_spec,
            scratch_shapes=[pltpu.VMEM((nb, th + 2, Wp + 2 * PADW, Pp), bf16)],
            compiler_params=pltpu.CompilerParams(
                dimension_semantics=("parallel", "parallel"),
                vmem_limit_bytes=int(vmem_limit_bytes)),
            cost_estimate=pl.CostEstimate(flops=int(flops), transcendentals=0,
                                          bytes_accessed=int(bytes_accessed)),
        )(xp, halo, w1, s1, b1, w2, s2, b2, w3, s3, b3)

    try:
        out = _call(True)            # single-buffered resident weights
    except Exception:
        out = _call(False)           # fallback: default (double) buffering

    if Wp != W or Cp != C:
        out = out[:, :, :W, :C]
    return out


# ----------------------------- test scaffolding ------------------------------

def fold_bn(gamma, beta, mean, var, eps=1e-5):
    scale = gamma / jnp.sqrt(var + eps)
    bias = beta - mean * scale
    return scale, bias


def make_params(key, inplanes, planes):
    expansion = 4
    ks = jax.random.split(key, 15)
    w1 = 0.1 * jax.random.normal(ks[0], (inplanes, planes), jnp.float32)
    w2 = 0.1 * jax.random.normal(ks[1], (3, 3, planes, planes), jnp.float32)  # HWIO
    w3 = 0.1 * jax.random.normal(ks[2], (planes, planes * expansion), jnp.float32)

    def bn(k0, k1, k2, k3, c):
        gamma = 1.0 + 0.1 * jax.random.normal(k0, (c,), jnp.float32)
        beta = 0.1 * jax.random.normal(k1, (c,), jnp.float32)
        mean = 0.05 * jax.random.normal(k2, (c,), jnp.float32)
        var = 1.0 + 0.1 * jax.random.uniform(k3, (c,), jnp.float32)
        return fold_bn(gamma, beta, mean, var)

    s1, b1 = bn(ks[3], ks[4], ks[5], ks[6], planes)
    s2, b2 = bn(ks[7], ks[8], ks[9], ks[10], planes)
    s3, b3 = bn(ks[11], ks[12], ks[13], ks[14], planes * expansion)
    return dict(w1=w1, w2=w2, w3=w3, s1=s1, b1=b1, s2=s2, b2=b2, s3=s3, b3=b3)


def bottleneck_reference(x_nhwc, p):
    """Pure-JAX reference mirroring the kernel's bf16-operand / f32-accum math."""
    dn = ("NHWC", "HWIO", "NHWC")
    C = x_nhwc.shape[-1]
    P = p["w1"].shape[1]
    bf16, f32 = jnp.bfloat16, jnp.float32

    def bnrelu(h, s, b, relu=True):
        h = h * s.reshape(1, 1, 1, -1) + b.reshape(1, 1, 1, -1)
        return jnp.maximum(h, 0.0) if relu else h

    xb = x_nhwc.astype(bf16)
    h = lax.conv_general_dilated(xb, p["w1"].reshape(1, 1, C, P).astype(bf16),
                                 (1, 1), "VALID", dimension_numbers=dn,
                                 preferred_element_type=f32)
    h = bnrelu(h, p["s1"], p["b1"]).astype(bf16)
    h = lax.conv_general_dilated(h, p["w2"].astype(bf16), (1, 1),
                                 ((1, 1), (1, 1)), dimension_numbers=dn,
                                 preferred_element_type=f32)
    h = bnrelu(h, p["s2"], p["b2"]).astype(bf16)
    h = lax.conv_general_dilated(h, p["w3"].reshape(1, 1, P, C).astype(bf16),
                                 (1, 1), "VALID", dimension_numbers=dn,
                                 preferred_element_type=f32)
    h = bnrelu(h, p["s3"], p["b3"], relu=False)
    return jnp.maximum(h + xb.astype(f32), 0.0)


if __name__ == "__main__":
    root = jax.random.PRNGKey(0)
    N, H, W = 2, 16, 16
    # planes=32 -> C=128: fully lane-aligned (no padding, no output slice);
    # planes=16 -> C=64 : exercises the channel-padding / slicing path.
    for i, planes in enumerate((32, 16)):
        kx, kp = jax.random.split(jax.random.fold_in(root, i))
        inplanes = planes * 4
        x_nchw = jax.random.normal(kx, (N, inplanes, H, W), jnp.float32)  # NCHW
        x_nhwc = jnp.transpose(x_nchw, (0, 2, 3, 1))
        params = make_params(kp, inplanes, planes)

        out = bottleneck_pallas(x_nhwc, params)
        out = jax.block_until_ready(out).astype(jnp.float32)

        ref = bottleneck_reference(x_nhwc, params)
        max_err = jnp.max(jnp.abs(out - ref))
        assert jnp.allclose(out, ref, atol=3e-2, rtol=3e-2), (
            f"planes={planes}: mismatch vs reference (max err {max_err})")

    print("KERNEL_OK")
</pallas_src>

<mosaic_0001>
module attributes {stable_mosaic.version = 11 : i64} {
  func.func @kernel(%arg0: i32, %arg1: i32, %arg2: memref<1x16x16x128xbf16, #tpu.memory_space<vmem>>, %arg3: memref<1x1x2x16x128xbf16, #tpu.memory_space<vmem>>, %arg4: memref<128x128xbf16, #tpu.memory_space<vmem>>, %arg5: memref<1x128xf32, #tpu.memory_space<vmem>>, %arg6: memref<1x128xf32, #tpu.memory_space<vmem>>, %arg7: memref<1152x128xbf16, #tpu.memory_space<vmem>>, %arg8: memref<1x128xf32, #tpu.memory_space<vmem>>, %arg9: memref<1x128xf32, #tpu.memory_space<vmem>>, %arg10: memref<128x128xbf16, #tpu.memory_space<vmem>>, %arg11: memref<1x128xf32, #tpu.memory_space<vmem>>, %arg12: memref<1x128xf32, #tpu.memory_space<vmem>>, %arg13: memref<1x16x16x128xbf16, #tpu.memory_space<vmem>>, %arg14: memref<1x18x48x128xbf16, #tpu.memory_space<vmem>>) attributes {dimension_semantics = [#tpu.dimension_semantics<parallel>, #tpu.dimension_semantics<parallel>], iteration_bounds = array<i64: 2, 1>, scalar_prefetch = 0 : i64, scratch_operands = 1 : i64, tpu.core_type = #tpu.core_type<tc>, window_params = [{transform_indices = @transform_0, window_bounds = array<i64: 1, 16, 16, 128>}, {transform_indices = @transform_1, window_bounds = array<i64: 1, 1, 2, 16, 128>}, {pipeline_mode = #tpu.pipeline_mode<synchronous>, transform_indices = @transform_2, window_bounds = array<i64: 128, 128>}, {pipeline_mode = #tpu.pipeline_mode<synchronous>, transform_indices = @transform_3, window_bounds = array<i64: 1, 128>}, {pipeline_mode = #tpu.pipeline_mode<synchronous>, transform_indices = @transform_4, window_bounds = array<i64: 1, 128>}, {pipeline_mode = #tpu.pipeline_mode<synchronous>, transform_indices = @transform_5, window_bounds = array<i64: 1152, 128>}, {pipeline_mode = #tpu.pipeline_mode<synchronous>, transform_indices = @transform_6, window_bounds = array<i64: 1, 128>}, {pipeline_mode = #tpu.pipeline_mode<synchronous>, transform_indices = @transform_7, window_bounds = array<i64: 1, 128>}, {pipeline_mode = #tpu.pipeline_mode<synchronous>, transform_indices = @transform_8, window_bounds = array<i64: 128, 128>}, {pipeline_mode = #tpu.pipeline_mode<synchronous>, transform_indices = @transform_9, window_bounds = array<i64: 1, 128>}, {pipeline_mode = #tpu.pipeline_mode<synchronous>, transform_indices = @transform_10, window_bounds = array<i64: 1, 128>}, {transform_indices = @transform_11, window_bounds = array<i64: 1, 16, 16, 128>}]} {
    %c0 = arith.constant 0 : index
    %c0_0 = arith.constant 0 : index
    %c0_1 = arith.constant 0 : index
    %c0_2 = arith.constant 0 : index
    %0 = vector.load %arg2[%c0, %c0_0, %c0_1, %c0_2] : memref<1x16x16x128xbf16, #tpu.memory_space<vmem>>, vector<1x16x16x128xbf16>
    %1 = vector.shape_cast %0 : vector<1x16x16x128xbf16> to vector<256x128xbf16>
    %c0_3 = arith.constant 0 : index
    %c0_4 = arith.constant 0 : index
    %2 = vector.load %arg4[%c0_3, %c0_4] : memref<128x128xbf16, #tpu.memory_space<vmem>>, vector<128x128xbf16>
    %cst = arith.constant dense<0.000000e+00> : vector<256x128xf32>
    %3 = tpu.matmul %1, %2, %cst {dimension_numbers = #tpu.dot_dimension_numbers<[1], [0], [0], [1], [0, 0, 1, 1], [], []>} : vector<256x128xbf16>, vector<128x128xbf16>, vector<256x128xf32> -> vector<256x128xf32>
    %c0_5 = arith.constant 0 : index
    %c0_6 = arith.constant 0 : index
    %4 = vector.load %arg5[%c0_5, %c0_6] : memref<1x128xf32, #tpu.memory_space<vmem>>, vector<1x128xf32>
    %5 = vector.broadcast %4 : vector<1x128xf32> to vector<256x128xf32>
    %6 = arith.mulf %3, %5 : vector<256x128xf32>
    %c0_7 = arith.constant 0 : index
    %c0_8 = arith.constant 0 : index
    %7 = vector.load %arg6[%c0_7, %c0_8] : memref<1x128xf32, #tpu.memory_space<vmem>>, vector<1x128xf32>
    %8 = vector.broadcast %7 : vector<1x128xf32> to vector<256x128xf32>
    %9 = arith.addf %6, %8 : vector<256x128xf32>
    %cst_9 = arith.constant 0.000000e+00 : f32
    %10 = vector.broadcast %cst_9 : f32 to vector<256x128xf32>
    %11 = arith.maximumf %9, %10 : vector<256x128xf32>
    %12 = vector.shape_cast %11 : vector<256x128xf32> to vector<1x16x16x128xf32>
    %13 = arith.truncf %12 : vector<1x16x16x128xf32> to vector<1x16x16x128xbf16>
    %c0_10 = arith.constant 0 : index
    %c0_11 = arith.constant 0 : index
    %c0_12 = arith.constant 0 : index
    %c0_13 = arith.constant 0 : index
    %c0_14 = arith.constant 0 : index
    %14 = vector.load %arg3[%c0_10, %c0_11, %c0_12, %c0_13, %c0_14] : memref<1x1x2x16x128xbf16, #tpu.memory_space<vmem>>, vector<1x1x2x16x128xbf16>
    %15 = vector.shape_cast %14 : vector<1x1x2x16x128xbf16> to vector<32x128xbf16>
    %c0_15 = arith.constant 0 : index
    %c0_16 = arith.constant 0 : index
    %16 = vector.load %arg4[%c0_15, %c0_16] : memref<128x128xbf16, #tpu.memory_space<vmem>>, vector<128x128xbf16>
    %cst_17 = arith.constant dense<0.000000e+00> : vector<32x128xf32>
    %17 = tpu.matmul %15, %16, %cst_17 {dimension_numbers = #tpu.dot_dimension_numbers<[1], [0], [0], [1], [0, 0, 1, 1], [], []>} : vector<32x128xbf16>, vector<128x128xbf16>, vector<32x128xf32> -> vector<32x128xf32>
    %c0_18 = arith.constant 0 : index
    %c0_19 = arith.constant 0 : index
    %18 = vector.load %arg5[%c0_18, %c0_19] : memref<1x128xf32, #tpu.memory_space<vmem>>, vector<1x128xf32>
    %19 = vector.broadcast %18 : vector<1x128xf32> to vector<32x128xf32>
    %20 = arith.mulf %17, %19 : vector<32x128xf32>
    %c0_20 = arith.constant 0 : index
    %c0_21 = arith.constant 0 : index
    %21 = vector.load %arg6[%c0_20, %c0_21] : memref<1x128xf32, #tpu.memory_space<vmem>>, vector<1x128xf32>
    %22 = vector.broadcast %21 : vector<1x128xf32> to vector<32x128xf32>
    %23 = arith.addf %20, %22 : vector<32x128xf32>
    %cst_22 = arith.constant 0.000000e+00 : f32
    %24 = vector.broadcast %cst_22 : f32 to vector<32x128xf32>
    %25 = arith.maximumf %23, %24 : vector<32x128xf32>
    %26 = vector.shape_cast %25 : vector<32x128xf32> to vector<1x2x16x128xf32>
    %27 = vector.extract_strided_slice %26 {offsets = [0, 0, 0, 0], sizes = [1, 1, 16, 128], strides = [1, 1, 1, 1]} : vector<1x2x16x128xf32> to vector<1x1x16x128xf32>
    %c0_i32 = arith.constant 0 : i32
    %28 = arith.cmpi sgt, %arg1, %c0_i32 : i32
    %29 = arith.extui %28 : i1 to i32
    %30 = arith.sitofp %29 : i32 to f32
    %31 = vector.broadcast %30 : f32 to vector<1x1x16x128xf32>
    %32 = arith.mulf %27, %31 : vector<1x1x16x128xf32>
    %33 = vector.extract_strided_slice %26 {offsets = [0, 1, 0, 0], sizes = [1, 1, 16, 128], strides = [1, 1, 1, 1]} : vector<1x2x16x128xf32> to vector<1x1x16x128xf32>
    %c0_i32_23 = arith.constant 0 : i32
    %34 = arith.cmpi slt, %arg1, %c0_i32_23 : i32
    %35 = arith.extui %34 : i1 to i32
    %36 = arith.sitofp %35 : i32 to f32
    %37 = vector.broadcast %36 : f32 to vector<1x1x16x128xf32>
    %38 = arith.mulf %33, %37 : vector<1x1x16x128xf32>
    %39 = arith.truncf %32 : vector<1x1x16x128xf32> to vector<1x1x16x128xbf16>
    %40 = arith.truncf %38 : vector<1x1x16x128xf32> to vector<1x1x16x128xbf16>
    %cst_24 = arith.constant 0.000000e+00 : bf16
    %41 = vector.broadcast %cst_24 : bf16 to vector<1x18x16x128xbf16>
    %c0_25 = arith.constant 0 : index
    %c0_26 = arith.constant 0 : index
    %c0_27 = arith.constant 0 : index
    %c0_28 = arith.constant 0 : index
    %42 = vector.load %arg14[%c0_25, %c0_26, %c0_27, %c0_28] : memref<1x18x48x128xbf16, #tpu.memory_space<vmem>>, vector<1x18x16x128xbf16>
    tpu.vector_store %arg14[%c0_25, %c0_26, %c0_27, %c0_28], %41 {strides = array<i32>} : memref<1x18x48x128xbf16, #tpu.memory_space<vmem>>, vector<1x18x16x128xbf16>,
    %c0_29 = arith.constant 0 : index
    %c0_30 = arith.constant 0 : index
    %c32 = arith.constant 32 : index
    %c0_31 = arith.constant 0 : index
    %43 = vector.load %arg14[%c0_29, %c0_30, %c32, %c0_31] : memref<1x18x48x128xbf16, #tpu.memory_space<vmem>>, vector<1x18x16x128xbf16>
    tpu.vector_store %arg14[%c0_29, %c0_30, %c32, %c0_31], %41 {strides = array<i32>} : memref<1x18x48x128xbf16, #tpu.memory_space<vmem>>, vector<1x18x16x128xbf16>,
    %c0_32 = arith.constant 0 : index
    %c1 = arith.constant 1 : index
    %c16 = arith.constant 16 : index
    %c0_33 = arith.constant 0 : index
    %44 = vector.load %arg14[%c0_32, %c1, %c16, %c0_33] : memref<1x18x48x128xbf16, #tpu.memory_space<vmem>>, vector<1x16x16x128xbf16>
    tpu.vector_store %arg14[%c0_32, %c1, %c16, %c0_33], %13 {strides = array<i32>} : memref<1x18x48x128xbf16, #tpu.memory_space<vmem>>, vector<1x16x16x128xbf16>,
    %c0_34 = arith.constant 0 : index
    %c0_35 = arith.constant 0 : index
    %c16_36 = arith.constant 16 : index
    %c0_37 = arith.constant 0 : index
    %45 = vector.load %arg14[%c0_34, %c0_35, %c16_36, %c0_37] : memref<1x18x48x128xbf16, #tpu.memory_space<vmem>>, vector<1x1x16x128xbf16>
    tpu.vector_store %arg14[%c0_34, %c0_35, %c16_36, %c0_37], %39 {strides = array<i32>} : memref<1x18x48x128xbf16, #tpu.memory_space<vmem>>, vector<1x1x16x128xbf16>,
    %c0_38 = arith.constant 0 : index
    %c17 = arith.constant 17 : index
    %c16_39 = arith.constant 16 : index
    %c0_40 = arith.constant 0 : index
    %46 = vector.load %arg14[%c0_38, %c17, %c16_39, %c0_40] : memref<1x18x48x128xbf16, #tpu.memory_space<vmem>>, vector<1x1x16x128xbf16>
    tpu.vector_store %arg14[%c0_38, %c17, %c16_39, %c0_40], %40 {strides = array<i32>} : memref<1x18x48x128xbf16, #tpu.memory_space<vmem>>, vector<1x1x16x128xbf16>,
    %cst_41 = arith.constant 0.000000e+00 : f32
    %47 = vector.broadcast %cst_41 : f32 to vector<256x128xf32>
    %c0_42 = arith.constant 0 : index
    %c0_43 = arith.constant 0 : index
    %c15 = arith.constant 15 : index
    %c0_44 = arith.constant 0 : index
    %48 = vector.load %arg14[%c0_42, %c0_43, %c15, %c0_44] : memref<1x18x48x128xbf16, #tpu.memory_space<vmem>>, vector<1x16x16x128xbf16>
    %c0_45 = arith.constant 0 : index
    %c0_46 = arith.constant 0 : index
    %49 = vector.load %arg7[%c0_45, %c0_46] : memref<1152x128xbf16, #tpu.memory_space<vmem>>, vector<128x128xbf16>
    %50 = vector.shape_cast %48 : vector<1x16x16x128xbf16> to vector<256x128xbf16>
    %cst_47 = arith.constant dense<0.000000e+00> : vector<256x128xf32>
    %51 = tpu.matmul %50, %49, %cst_47 {dimension_numbers = #tpu.dot_dimension_numbers<[1], [0], [0], [1], [0, 0, 1, 1], [], []>} : vector<256x128xbf16>, vector<128x128xbf16>, vector<256x128xf32> -> vector<256x128xf32>
    %52 = arith.addf %47, %51 : vector<256x128xf32>
    %c0_48 = arith.constant 0 : index
    %c0_49 = arith.constant 0 : index
    %c16_50 = arith.constant 16 : index
    %c0_51 = arith.constant 0 : index
    %53 = vector.load %arg14[%c0_48, %c0_49, %c16_50, %c0_51] : memref<1x18x48x128xbf16, #tpu.memory_space<vmem>>, vector<1x16x16x128xbf16>
    %c128 = arith.constant 128 : index
    %c0_52 = arith.constant 0 : index
    %54 = vector.load %arg7[%c128, %c0_52] : memref<1152x128xbf16, #tpu.memory_space<vmem>>, vector<128x128xbf16>
    %55 = vector.shape_cast %53 : vector<1x16x16x128xbf16> to vector<256x128xbf16>
    %cst_53 = arith.constant dense<0.000000e+00> : vector<256x128xf32>
    %56 = tpu.matmul %55, %54, %cst_53 {dimension_numbers = #tpu.dot_dimension_numbers<[1], [0], [0], [1], [0, 0, 1, 1], [], []>} : vector<256x128xbf16>, vector<128x128xbf16>, vector<256x128xf32> -> vector<256x128xf32>
    %57 = arith.addf %52, %56 : vector<256x128xf32>
    %c0_54 = arith.constant 0 : index
    %c0_55 = arith.constant 0 : index
    %c17_56 = arith.constant 17 : index
    %c0_57 = arith.constant 0 : index
    %58 = vector.load %arg14[%c0_54, %c0_55, %c17_56, %c0_57] : memref<1x18x48x128xbf16, #tpu.memory_space<vmem>>, vector<1x16x16x128xbf16>
    %c256 = arith.constant 256 : index
    %c0_58 = arith.constant 0 : index
    %59 = vector.load %arg7[%c256, %c0_58] : memref<1152x128xbf16, #tpu.memory_space<vmem>>, vector<128x128xbf16>
    %60 = vector.shape_cast %58 : vector<1x16x16x128xbf16> to vector<256x128xbf16>
    %cst_59 = arith.constant dense<0.000000e+00> : vector<256x128xf32>
    %61 = tpu.matmul %60, %59, %cst_59 {dimension_numbers = #tpu.dot_dimension_numbers<[1], [0], [0], [1], [0, 0, 1, 1], [], []>} : vector<256x128xbf16>, vector<128x128xbf16>, vector<256x128xf32> -> vector<256x128xf32>
    %62 = arith.addf %57, %61 : vector<256x128xf32>
    %c0_60 = arith.constant 0 : index
    %c1_61 = arith.constant 1 : index
    %c15_62 = arith.constant 15 : index
    %c0_63 = arith.constant 0 : index
    %63 = vector.load %arg14[%c0_60, %c1_61, %c15_62, %c0_63] : memref<1x18x48x128xbf16, #tpu.memory_space<vmem>>, vector<1x16x16x128xbf16>
    %c384 = arith.constant 384 : index
    %c0_64 = arith.constant 0 : index
    %64 = vector.load %arg7[%c384, %c0_64] : memref<1152x128xbf16, #tpu.memory_space<vmem>>, vector<128x128xbf16>
    %65 = vector.shape_cast %63 : vector<1x16x16x128xbf16> to vector<256x128xbf16>
    %cst_65 = arith.constant dense<0.000000e+00> : vector<256x128xf32>
    %66 = tpu.matmul %65, %64, %cst_65 {dimension_numbers = #tpu.dot_dimension_numbers<[1], [0], [0], [1], [0, 0, 1, 1], [], []>} : vector<256x128xbf16>, vector<128x128xbf16>, vector<256x128xf32> -> vector<256x128xf32>
    %67 = arith.addf %62, %66 : vector<256x128xf32>
    %c0_66 = arith.constant 0 : index
    %c1_67 = arith.constant 1 : index
    %c16_68 = arith.constant 16 : index
    %c0_69 = arith.constant 0 : index
    %68 = vector.load %arg14[%c0_66, %c1_67, %c16_68, %c0_69] : memref<1x18x48x128xbf16, #tpu.memory_space<vmem>>, vector<1x16x16x128xbf16>
    %c512 = arith.constant 512 : index
    %c0_70 = arith.constant 0 : index
    %69 = vector.load %arg7[%c512, %c0_70] : memref<1152x128xbf16, #tpu.memory_space<vmem>>, vector<128x128xbf16>
    %70 = vector.shape_cast %68 : vector<1x16x16x128xbf16> to vector<256x128xbf16>
    %cst_71 = arith.constant dense<0.000000e+00> : vector<256x128xf32>
    %71 = tpu.matmul %70, %69, %cst_71 {dimension_numbers = #tpu.dot_dimension_numbers<[1], [0], [0], [1], [0, 0, 1, 1], [], []>} : vector<256x128xbf16>, vector<128x128xbf16>, vector<256x128xf32> -> vector<256x128xf32>
    %72 = arith.addf %67, %71 : vector<256x128xf32>
    %c0_72 = arith.constant 0 : index
    %c1_73 = arith.constant 1 : index
    %c17_74 = arith.constant 17 : index
    %c0_75 = arith.constant 0 : index
    %73 = vector.load %arg14[%c0_72, %c1_73, %c17_74, %c0_75] : memref<1x18x48x128xbf16, #tpu.memory_space<vmem>>, vector<1x16x16x128xbf16>
    %c640 = arith.constant 640 : index
    %c0_76 = arith.constant 0 : index
    %74 = vector.load %arg7[%c640, %c0_76] : memref<1152x128xbf16, #tpu.memory_space<vmem>>, vector<128x128xbf16>
    %75 = vector.shape_cast %73 : vector<1x16x16x128xbf16> to vector<256x128xbf16>
    %cst_77 = arith.constant dense<0.000000e+00> : vector<256x128xf32>
    %76 = tpu.matmul %75, %74, %cst_77 {dimension_numbers = #tpu.dot_dimension_numbers<[1], [0], [0], [1], [0, 0, 1, 1], [], []>} : vector<256x128xbf16>, vector<128x128xbf16>, vector<256x128xf32> -> vector<256x128xf32>
    %77 = arith.addf %72, %76 : vector<256x128xf32>
    %c0_78 = arith.constant 0 : index
    %c2 = arith.constant 2 : index
    %c15_79 = arith.constant 15 : index
    %c0_80 = arith.constant 0 : index
    %78 = vector.load %arg14[%c0_78, %c2, %c15_79, %c0_80] : memref<1x18x48x128xbf16, #tpu.memory_space<vmem>>, vector<1x16x16x128xbf16>
    %c768 = arith.constant 768 : index
    %c0_81 = arith.constant 0 : index
    %79 = vector.load %arg7[%c768, %c0_81] : memref<1152x128xbf16, #tpu.memory_space<vmem>>, vector<128x128xbf16>
    %80 = vector.shape_cast %78 : vector<1x16x16x128xbf16> to vector<256x128xbf16>
    %cst_82 = arith.constant dense<0.000000e+00> : vector<256x128xf32>
    %81 = tpu.matmul %80, %79, %cst_82 {dimension_numbers = #tpu.dot_dimension_numbers<[1], [0], [0], [1], [0, 0, 1, 1], [], []>} : vector<256x128xbf16>, vector<128x128xbf16>, vector<256x128xf32> -> vector<256x128xf32>
    %82 = arith.addf %77, %81 : vector<256x128xf32>
    %c0_83 = arith.constant 0 : index
    %c2_84 = arith.constant 2 : index
    %c16_85 = arith.constant 16 : index
    %c0_86 = arith.constant 0 : index
    %83 = vector.load %arg14[%c0_83, %c2_84, %c16_85, %c0_86] : memref<1x18x48x128xbf16, #tpu.memory_space<vmem>>, vector<1x16x16x128xbf16>
    %c896 = arith.constant 896 : index
    %c0_87 = arith.constant 0 : index
    %84 = vector.load %arg7[%c896, %c0_87] : memref<1152x128xbf16, #tpu.memory_space<vmem>>, vector<128x128xbf16>
    %85 = vector.shape_cast %83 : vector<1x16x16x128xbf16> to vector<256x128xbf16>
    %cst_88 = arith.constant dense<0.000000e+00> : vector<256x128xf32>
    %86 = tpu.matmul %85, %84, %cst_88 {dimension_numbers = #tpu.dot_dimension_numbers<[1], [0], [0], [1], [0, 0, 1, 1], [], []>} : vector<256x128xbf16>, vector<128x128xbf16>, vector<256x128xf32> -> vector<256x128xf32>
    %87 = arith.addf %82, %86 : vector<256x128xf32>
    %c0_89 = arith.constant 0 : index
    %c2_90 = arith.constant 2 : index
    %c17_91 = arith.constant 17 : index
    %c0_92 = arith.constant 0 : index
    %88 = vector.load %arg14[%c0_89, %c2_90, %c17_91, %c0_92] : memref<1x18x48x128xbf16, #tpu.memory_space<vmem>>, vector<1x16x16x128xbf16>
    %c1024 = arith.constant 1024 : index
    %c0_93 = arith.constant 0 : index
    %89 = vector.load %arg7[%c1024, %c0_93] : memref<1152x128xbf16, #tpu.memory_space<vmem>>, vector<128x128xbf16>
    %90 = vector.shape_cast %88 : vector<1x16x16x128xbf16> to vector<256x128xbf16>
    %cst_94 = arith.constant dense<0.000000e+00> : vector<256x128xf32>
    %91 = tpu.matmul %90, %89, %cst_94 {dimension_numbers = #tpu.dot_dimension_numbers<[1], [0], [0], [1], [0, 0, 1, 1], [], []>} : vector<256x128xbf16>, vector<128x128xbf16>, vector<256x128xf32> -> vector<256x128xf32>
    %92 = arith.addf %87, %91 : vector<256x128xf32>
    %c0_95 = arith.constant 0 : index
    %c0_96 = arith.constant 0 : index
    %93 = vector.load %arg8[%c0_95, %c0_96] : memref<1x128xf32, #tpu.memory_space<vmem>>, vector<1x128xf32>
    %94 = vector.broadcast %93 : vector<1x128xf32> to vector<256x128xf32>
    %95 = arith.mulf %92, %94 : vector<256x128xf32>
    %c0_97 = arith.constant 0 : index
    %c0_98 = arith.constant 0 : index
    %96 = vector.load %arg9[%c0_97, %c0_98] : memref<1x128xf32, #tpu.memory_space<vmem>>, vector<1x128xf32>
    %97 = vector.broadcast %96 : vector<1x128xf32> to vector<256x128xf32>
    %98 = arith.addf %95, %97 : vector<256x128xf32>
    %cst_99 = arith.constant 0.000000e+00 : f32
    %99 = vector.broadcast %cst_99 : f32 to vector<256x128xf32>
    %100 = arith.maximumf %98, %99 : vector<256x128xf32>
    %101 = arith.truncf %100 : vector<256x128xf32> to vector<256x128xbf16>
    %c0_100 = arith.constant 0 : index
    %c0_101 = arith.constant 0 : index
    %102 = vector.load %arg10[%c0_100, %c0_101] : memref<128x128xbf16, #tpu.memory_space<vmem>>, vector<128x128xbf16>
    %cst_102 = arith.constant dense<0.000000e+00> : vector<256x128xf32>
    %103 = tpu.matmul %101, %102, %cst_102 {dimension_numbers = #tpu.dot_dimension_numbers<[1], [0], [0], [1], [0, 0, 1, 1], [], []>} : vector<256x128xbf16>, vector<128x128xbf16>, vector<256x128xf32> -> vector<256x128xf32>
    %c0_103 = arith.constant 0 : index
    %c0_104 = arith.constant 0 : index
    %104 = vector.load %arg11[%c0_103, %c0_104] : memref<1x128xf32, #tpu.memory_space<vmem>>, vector<1x128xf32>
    %105 = vector.broadcast %104 : vector<1x128xf32> to vector<256x128xf32>
    %106 = arith.mulf %103, %105 : vector<256x128xf32>
    %c0_105 = arith.constant 0 : index
    %c0_106 = arith.constant 0 : index
    %107 = vector.load %arg12[%c0_105, %c0_106] : memref<1x128xf32, #tpu.memory_space<vmem>>, vector<1x128xf32>
    %108 = vector.broadcast %107 : vector<1x128xf32> to vector<256x128xf32>
    %109 = arith.addf %106, %108 : vector<256x128xf32>
    %c0_107 = arith.constant 0 : index
    %c0_108 = arith.constant 0 : index
    %c0_109 = arith.constant 0 : index
    %c0_110 = arith.constant 0 : index
    %110 = vector.load %arg2[%c0_107, %c0_108, %c0_109, %c0_110] : memref<1x16x16x128xbf16, #tpu.memory_space<vmem>>, vector<1x16x16x128xbf16>
    %111 = arith.extf %110 : vector<1x16x16x128xbf16> to vector<1x16x16x128xf32>
    %112 = vector.shape_cast %111 : vector<1x16x16x128xf32> to vector<256x128xf32>
    %113 = arith.addf %109, %112 : vector<256x128xf32>
    %cst_111 = arith.constant 0.000000e+00 : f32
    %114 = vector.broadcast %cst_111 : f32 to vector<256x128xf32>
    %115 = arith.maximumf %113, %114 : vector<256x128xf32>
    %116 = vector.shape_cast %115 : vector<256x128xf32> to vector<1x16x16x128xf32>
    %117 = arith.truncf %116 : vector<1x16x16x128xf32> to vector<1x16x16x128xbf16>
    %c0_112 = arith.constant 0 : index
    %c0_113 = arith.constant 0 : index
    %c0_114 = arith.constant 0 : index
    %c0_115 = arith.constant 0 : index
    %118 = vector.load %arg13[%c0_112, %c0_113, %c0_114, %c0_115] : memref<1x16x16x128xbf16, #tpu.memory_space<vmem>>, vector<1x16x16x128xbf16>
    tpu.vector_store %arg13[%c0_112, %c0_113, %c0_114, %c0_115], %117 {strides = array<i32>} : memref<1x16x16x128xbf16, #tpu.memory_space<vmem>>, vector<1x16x16x128xbf16>,
    return
  }
  func.func @transform_0(%arg0: i32, %arg1: i32) -> (i32, i32, i32, i32) {
    %c0_i32 = arith.constant 0 : i32
    %c0_i32_0 = arith.constant 0 : i32
    %c0_i32_1 = arith.constant 0 : i32
    return %arg0, %arg1, %c0_i32, %c0_i32_0 : i32, i32, i32, i32
  }
  func.func @transform_1(%arg0: i32, %arg1: i32) -> (i32, i32, i32, i32, i32) {
    %c0_i32 = arith.constant 0 : i32
    %c0_i32_0 = arith.constant 0 : i32
    %c0_i32_1 = arith.constant 0 : i32
    %c0_i32_2 = arith.constant 0 : i32
    return %arg0, %arg1, %c0_i32, %c0_i32_0, %c0_i32_1 : i32, i32, i32, i32, i32
  }
  func.func @transform_2(%arg0: i32, %arg1: i32) -> (i32, i32) {
    %c0_i32 = arith.constant 0 : i32
    %c0_i32_0 = arith.constant 0 : i32
    %c0_i32_1 = arith.constant 0 : i32
    return %c0_i32, %c0_i32_0 : i32, i32
  }
  func.func @transform_3(%arg0: i32, %arg1: i32) -> (i32, i32) {
    %c0_i32 = arith.constant 0 : i32
    %c0_i32_0 = arith.constant 0 : i32
    %c0_i32_1 = arith.constant 0 : i32
    return %c0_i32, %c0_i32_0 : i32, i32
  }
  func.func @transform_4(%arg0: i32, %arg1: i32) -> (i32, i32) {
    %c0_i32 = arith.constant 0 : i32
    %c0_i32_0 = arith.constant 0 : i32
    %c0_i32_1 = arith.constant 0 : i32
    return %c0_i32, %c0_i32_0 : i32, i32
  }
  func.func @transform_5(%arg0: i32, %arg1: i32) -> (i32, i32) {
    %c0_i32 = arith.constant 0 : i32
    %c0_i32_0 = arith.constant 0 : i32
    %c0_i32_1 = arith.constant 0 : i32
    return %c0_i32, %c0_i32_0 : i32, i32
  }
  func.func @transform_6(%arg0: i32, %arg1: i32) -> (i32, i32) {
    %c0_i32 = arith.constant 0 : i32
    %c0_i32_0 = arith.constant 0 : i32
    %c0_i32_1 = arith.constant 0 : i32
    return %c0_i32, %c0_i32_0 : i32, i32
  }
  func.func @transform_7(%arg0: i32, %arg1: i32) -> (i32, i32) {
    %c0_i32 = arith.constant 0 : i32
    %c0_i32_0 = arith.constant 0 : i32
    %c0_i32_1 = arith.constant 0 : i32
    return %c0_i32, %c0_i32_0 : i32, i32
  }
  func.func @transform_8(%arg0: i32, %arg1: i32) -> (i32, i32) {
    %c0_i32 = arith.constant 0 : i32
    %c0_i32_0 = arith.constant 0 : i32
    %c0_i32_1 = arith.constant 0 : i32
    return %c0_i32, %c0_i32_0 : i32, i32
  }
  func.func @transform_9(%arg0: i32, %arg1: i32) -> (i32, i32) {
    %c0_i32 = arith.constant 0 : i32
    %c0_i32_0 = arith.constant 0 : i32
    %c0_i32_1 = arith.constant 0 : i32
    return %c0_i32, %c0_i32_0 : i32, i32
  }
  func.func @transform_10(%arg0: i32, %arg1: i32) -> (i32, i32) {
    %c0_i32 = arith.constant 0 : i32
    %c0_i32_0 = arith.constant 0 : i32
    %c0_i32_1 = arith.constant 0 : i32
    return %c0_i32, %c0_i32_0 : i32, i32
  }
  func.func @transform_11(%arg0: i32, %arg1: i32) -> (i32, i32, i32, i32) {
    %c0_i32 = arith.constant 0 : i32
    %c0_i32_0 = arith.constant 0 : i32
    %c0_i32_1 = arith.constant 0 : i32
    return %arg0, %arg1, %c0_i32, %c0_i32_0 : i32, i32, i32, i32
  }
}

module attributes {stable_mosaic.version = 11 : i64} {
  func.func @kernel(%arg0: i32, %arg1: i32, %arg2: memref<1x16x16x128xbf16, #tpu.memory_space<vmem>>, %arg3: memref<1x1x2x16x128xbf16, #tpu.memory_space<vmem>>, %arg4: memref<128x128xbf16, #tpu.memory_space<vmem>>, %arg5: memref<1x128xf32, #tpu.memory_space<vmem>>, %arg6: memref<1x128xf32, #tpu.memory_space<vmem>>, %arg7: memref<1152x128xbf16, #tpu.memory_space<vmem>>, %arg8: memref<1x128xf32, #tpu.memory_space<vmem>>, %arg9: memref<1x128xf32, #tpu.memory_space<vmem>>, %arg10: memref<128x128xbf16, #tpu.memory_space<vmem>>, %arg11: memref<1x128xf32, #tpu.memory_space<vmem>>, %arg12: memref<1x128xf32, #tpu.memory_space<vmem>>, %arg13: memref<1x16x16x128xbf16, #tpu.memory_space<vmem>>, %arg14: memref<1x18x48x128xbf16, #tpu.memory_space<vmem>>) attributes {dimension_semantics = [#tpu.dimension_semantics<parallel>, #tpu.dimension_semantics<parallel>], iteration_bounds = array<i64: 2, 1>, scalar_prefetch = 0 : i64, scratch_operands = 1 : i64, tpu.core_type = #tpu.core_type<tc>, window_params = [{transform_indices = @transform_0, window_bounds = array<i64: 1, 16, 16, 128>}, {transform_indices = @transform_1, window_bounds = array<i64: 1, 1, 2, 16, 128>}, {pipeline_mode = #tpu.pipeline_mode<synchronous>, transform_indices = @transform_2, window_bounds = array<i64: 128, 128>}, {pipeline_mode = #tpu.pipeline_mode<synchronous>, transform_indices = @transform_3, window_bounds = array<i64: 1, 128>}, {pipeline_mode = #tpu.pipeline_mode<synchronous>, transform_indices = @transform_4, window_bounds = array<i64: 1, 128>}, {pipeline_mode = #tpu.pipeline_mode<synchronous>, transform_indices = @transform_5, window_bounds = array<i64: 1152, 128>}, {pipeline_mode = #tpu.pipeline_mode<synchronous>, transform_indices = @transform_6, window_bounds = array<i64: 1, 128>}, {pipeline_mode = #tpu.pipeline_mode<synchronous>, transform_indices = @transform_7, window_bounds = array<i64: 1, 128>}, {pipeline_mode = #tpu.pipeline_mode<synchronous>, transform_indices = @transform_8, window_bounds = array<i64: 128, 128>}, {pipeline_mode = #tpu.pipeline_mode<synchronous>, transform_indices = @transform_9, window_bounds = array<i64: 1, 128>}, {pipeline_mode = #tpu.pipeline_mode<synchronous>, transform_indices = @transform_10, window_bounds = array<i64: 1, 128>}, {transform_indices = @transform_11, window_bounds = array<i64: 1, 16, 16, 128>}]} {
    %c0 = arith.constant 0 : index
    %c0_0 = arith.constant 0 : index
    %c0_1 = arith.constant 0 : index
    %c0_2 = arith.constant 0 : index
    %0 = vector.load %arg2[%c0, %c0_0, %c0_1, %c0_2] : memref<1x16x16x128xbf16, #tpu.memory_space<vmem>>, vector<1x16x16x128xbf16>
    %1 = vector.shape_cast %0 : vector<1x16x16x128xbf16> to vector<256x128xbf16>
    %c0_3 = arith.constant 0 : index
    %c0_4 = arith.constant 0 : index
    %2 = vector.load %arg4[%c0_3, %c0_4] : memref<128x128xbf16, #tpu.memory_space<vmem>>, vector<128x128xbf16>
    %cst = arith.constant dense<0.000000e+00> : vector<256x128xf32>
    %3 = tpu.matmul %1, %2, %cst {dimension_numbers = #tpu.dot_dimension_numbers<[1], [0], [0], [1], [0, 0, 1, 1], [], []>} : vector<256x128xbf16>, vector<128x128xbf16>, vector<256x128xf32> -> vector<256x128xf32>
    %c0_5 = arith.constant 0 : index
    %c0_6 = arith.constant 0 : index
    %4 = vector.load %arg5[%c0_5, %c0_6] : memref<1x128xf32, #tpu.memory_space<vmem>>, vector<1x128xf32>
    %5 = vector.broadcast %4 : vector<1x128xf32> to vector<256x128xf32>
    %6 = arith.mulf %3, %5 : vector<256x128xf32>
    %c0_7 = arith.constant 0 : index
    %c0_8 = arith.constant 0 : index
    %7 = vector.load %arg6[%c0_7, %c0_8] : memref<1x128xf32, #tpu.memory_space<vmem>>, vector<1x128xf32>
    %8 = vector.broadcast %7 : vector<1x128xf32> to vector<256x128xf32>
    %9 = arith.addf %6, %8 : vector<256x128xf32>
    %cst_9 = arith.constant 0.000000e+00 : f32
    %10 = vector.broadcast %cst_9 : f32 to vector<256x128xf32>
    %11 = arith.maximumf %9, %10 : vector<256x128xf32>
    %12 = vector.shape_cast %11 : vector<256x128xf32> to vector<1x16x16x128xf32>
    %13 = arith.truncf %12 : vector<1x16x16x128xf32> to vector<1x16x16x128xbf16>
    %c0_10 = arith.constant 0 : index
    %c0_11 = arith.constant 0 : index
    %c0_12 = arith.constant 0 : index
    %c0_13 = arith.constant 0 : index
    %c0_14 = arith.constant 0 : index
    %14 = vector.load %arg3[%c0_10, %c0_11, %c0_12, %c0_13, %c0_14] : memref<1x1x2x16x128xbf16, #tpu.memory_space<vmem>>, vector<1x1x2x16x128xbf16>
    %15 = vector.shape_cast %14 : vector<1x1x2x16x128xbf16> to vector<32x128xbf16>
    %c0_15 = arith.constant 0 : index
    %c0_16 = arith.constant 0 : index
    %16 = vector.load %arg4[%c0_15, %c0_16] : memref<128x128xbf16, #tpu.memory_space<vmem>>, vector<128x128xbf16>
    %cst_17 = arith.constant dense<0.000000e+00> : vector<32x128xf32>
    %17 = tpu.matmul %15, %16, %cst_17 {dimension_numbers = #tpu.dot_dimension_numbers<[1], [0], [0], [1], [0, 0, 1, 1], [], []>} : vector<32x128xbf16>, vector<128x128xbf16>, vector<32x128xf32> -> vector<32x128xf32>
    %c0_18 = arith.constant 0 : index
    %c0_19 = arith.constant 0 : index
    %18 = vector.load %arg5[%c0_18, %c0_19] : memref<1x128xf32, #tpu.memory_space<vmem>>, vector<1x128xf32>
    %19 = vector.broadcast %18 : vector<1x128xf32> to vector<32x128xf32>
    %20 = arith.mulf %17, %19 : vector<32x128xf32>
    %c0_20 = arith.constant 0 : index
    %c0_21 = arith.constant 0 : index
    %21 = vector.load %arg6[%c0_20, %c0_21] : memref<1x128xf32, #tpu.memory_space<vmem>>, vector<1x128xf32>
    %22 = vector.broadcast %21 : vector<1x128xf32> to vector<32x128xf32>
    %23 = arith.addf %20, %22 : vector<32x128xf32>
    %cst_22 = arith.constant 0.000000e+00 : f32
    %24 = vector.broadcast %cst_22 : f32 to vector<32x128xf32>
    %25 = arith.maximumf %23, %24 : vector<32x128xf32>
    %26 = vector.shape_cast %25 : vector<32x128xf32> to vector<1x2x16x128xf32>
    %27 = vector.extract_strided_slice %26 {offsets = [0, 0, 0, 0], sizes = [1, 1, 16, 128], strides = [1, 1, 1, 1]} : vector<1x2x16x128xf32> to vector<1x1x16x128xf32>
    %c0_i32 = arith.constant 0 : i32
    %28 = arith.cmpi sgt, %arg1, %c0_i32 : i32
    %29 = arith.extui %28 : i1 to i32
    %30 = arith.sitofp %29 : i32 to f32
    %31 = vector.broadcast %30 : f32 to vector<1x1x16x128xf32>
    %32 = arith.mulf %27, %31 : vector<1x1x16x128xf32>
    %33 = vector.extract_strided_slice %26 {offsets = [0, 1, 0, 0], sizes = [1, 1, 16, 128], strides = [1, 1, 1, 1]} : vector<1x2x16x128xf32> to vector<1x1x16x128xf32>
    %c0_i32_23 = arith.constant 0 : i32
    %34 = arith.cmpi slt, %arg1, %c0_i32_23 : i32
    %35 = arith.extui %34 : i1 to i32
    %36 = arith.sitofp %35 : i32 to f32
    %37 = vector.broadcast %36 : f32 to vector<1x1x16x128xf32>
    %38 = arith.mulf %33, %37 : vector<1x1x16x128xf32>
    %39 = arith.truncf %32 : vector<1x1x16x128xf32> to vector<1x1x16x128xbf16>
    %40 = arith.truncf %38 : vector<1x1x16x128xf32> to vector<1x1x16x128xbf16>
    %cst_24 = arith.constant 0.000000e+00 : bf16
    %41 = vector.broadcast %cst_24 : bf16 to vector<1x18x16x128xbf16>
    %c0_25 = arith.constant 0 : index
    %c0_26 = arith.constant 0 : index
    %c0_27 = arith.constant 0 : index
    %c0_28 = arith.constant 0 : index
    %42 = vector.load %arg14[%c0_25, %c0_26, %c0_27, %c0_28] : memref<1x18x48x128xbf16, #tpu.memory_space<vmem>>, vector<1x18x16x128xbf16>
    tpu.vector_store %arg14[%c0_25, %c0_26, %c0_27, %c0_28], %41 {strides = array<i32>} : memref<1x18x48x128xbf16, #tpu.memory_space<vmem>>, vector<1x18x16x128xbf16>,
    %c0_29 = arith.constant 0 : index
    %c0_30 = arith.constant 0 : index
    %c32 = arith.constant 32 : index
    %c0_31 = arith.constant 0 : index
    %43 = vector.load %arg14[%c0_29, %c0_30, %c32, %c0_31] : memref<1x18x48x128xbf16, #tpu.memory_space<vmem>>, vector<1x18x16x128xbf16>
    tpu.vector_store %arg14[%c0_29, %c0_30, %c32, %c0_31], %41 {strides = array<i32>} : memref<1x18x48x128xbf16, #tpu.memory_space<vmem>>, vector<1x18x16x128xbf16>,
    %c0_32 = arith.constant 0 : index
    %c1 = arith.constant 1 : index
    %c16 = arith.constant 16 : index
    %c0_33 = arith.constant 0 : index
    %44 = vector.load %arg14[%c0_32, %c1, %c16, %c0_33] : memref<1x18x48x128xbf16, #tpu.memory_space<vmem>>, vector<1x16x16x128xbf16>
    tpu.vector_store %arg14[%c0_32, %c1, %c16, %c0_33], %13 {strides = array<i32>} : memref<1x18x48x128xbf16, #tpu.memory_space<vmem>>, vector<1x16x16x128xbf16>,
    %c0_34 = arith.constant 0 : index
    %c0_35 = arith.constant 0 : index
    %c16_36 = arith.constant 16 : index
    %c0_37 = arith.constant 0 : index
    %45 = vector.load %arg14[%c0_34, %c0_35, %c16_36, %c0_37] : memref<1x18x48x128xbf16, #tpu.memory_space<vmem>>, vector<1x1x16x128xbf16>
    tpu.vector_store %arg14[%c0_34, %c0_35, %c16_36, %c0_37], %39 {strides = array<i32>} : memref<1x18x48x128xbf16, #tpu.memory_space<vmem>>, vector<1x1x16x128xbf16>,
    %c0_38 = arith.constant 0 : index
    %c17 = arith.constant 17 : index
    %c16_39 = arith.constant 16 : index
    %c0_40 = arith.constant 0 : index
    %46 = vector.load %arg14[%c0_38, %c17, %c16_39, %c0_40] : memref<1x18x48x128xbf16, #tpu.memory_space<vmem>>, vector<1x1x16x128xbf16>
    tpu.vector_store %arg14[%c0_38, %c17, %c16_39, %c0_40], %40 {strides = array<i32>} : memref<1x18x48x128xbf16, #tpu.memory_space<vmem>>, vector<1x1x16x128xbf16>,
    %cst_41 = arith.constant 0.000000e+00 : f32
    %47 = vector.broadcast %cst_41 : f32 to vector<256x128xf32>
    %c0_42 = arith.constant 0 : index
    %c0_43 = arith.constant 0 : index
    %c15 = arith.constant 15 : index
    %c0_44 = arith.constant 0 : index
    %48 = vector.load %arg14[%c0_42, %c0_43, %c15, %c0_44] : memref<1x18x48x128xbf16, #tpu.memory_space<vmem>>, vector<1x16x16x128xbf16>
    %c0_45 = arith.constant 0 : index
    %c0_46 = arith.constant 0 : index
    %49 = vector.load %arg7[%c0_45, %c0_46] : memref<1152x128xbf16, #tpu.memory_space<vmem>>, vector<128x128xbf16>
    %50 = vector.shape_cast %48 : vector<1x16x16x128xbf16> to vector<256x128xbf16>
    %cst_47 = arith.constant dense<0.000000e+00> : vector<256x128xf32>
    %51 = tpu.matmul %50, %49, %cst_47 {dimension_numbers = #tpu.dot_dimension_numbers<[1], [0], [0], [1], [0, 0, 1, 1], [], []>} : vector<256x128xbf16>, vector<128x128xbf16>, vector<256x128xf32> -> vector<256x128xf32>
    %52 = arith.addf %47, %51 : vector<256x128xf32>
    %c0_48 = arith.constant 0 : index
    %c0_49 = arith.constant 0 : index
    %c16_50 = arith.constant 16 : index
    %c0_51 = arith.constant 0 : index
    %53 = vector.load %arg14[%c0_48, %c0_49, %c16_50, %c0_51] : memref<1x18x48x128xbf16, #tpu.memory_space<vmem>>, vector<1x16x16x128xbf16>
    %c128 = arith.constant 128 : index
    %c0_52 = arith.constant 0 : index
    %54 = vector.load %arg7[%c128, %c0_52] : memref<1152x128xbf16, #tpu.memory_space<vmem>>, vector<128x128xbf16>
    %55 = vector.shape_cast %53 : vector<1x16x16x128xbf16> to vector<256x128xbf16>
    %cst_53 = arith.constant dense<0.000000e+00> : vector<256x128xf32>
    %56 = tpu.matmul %55, %54, %cst_53 {dimension_numbers = #tpu.dot_dimension_numbers<[1], [0], [0], [1], [0, 0, 1, 1], [], []>} : vector<256x128xbf16>, vector<128x128xbf16>, vector<256x128xf32> -> vector<256x128xf32>
    %57 = arith.addf %52, %56 : vector<256x128xf32>
    %c0_54 = arith.constant 0 : index
    %c0_55 = arith.constant 0 : index
    %c17_56 = arith.constant 17 : index
    %c0_57 = arith.constant 0 : index
    %58 = vector.load %arg14[%c0_54, %c0_55, %c17_56, %c0_57] : memref<1x18x48x128xbf16, #tpu.memory_space<vmem>>, vector<1x16x16x128xbf16>
    %c256 = arith.constant 256 : index
    %c0_58 = arith.constant 0 : index
    %59 = vector.load %arg7[%c256, %c0_58] : memref<1152x128xbf16, #tpu.memory_space<vmem>>, vector<128x128xbf16>
    %60 = vector.shape_cast %58 : vector<1x16x16x128xbf16> to vector<256x128xbf16>
    %cst_59 = arith.constant dense<0.000000e+00> : vector<256x128xf32>
    %61 = tpu.matmul %60, %59, %cst_59 {dimension_numbers = #tpu.dot_dimension_numbers<[1], [0], [0], [1], [0, 0, 1, 1], [], []>} : vector<256x128xbf16>, vector<128x128xbf16>, vector<256x128xf32> -> vector<256x128xf32>
    %62 = arith.addf %57, %61 : vector<256x128xf32>
    %c0_60 = arith.constant 0 : index
    %c1_61 = arith.constant 1 : index
    %c15_62 = arith.constant 15 : index
    %c0_63 = arith.constant 0 : index
    %63 = vector.load %arg14[%c0_60, %c1_61, %c15_62, %c0_63] : memref<1x18x48x128xbf16, #tpu.memory_space<vmem>>, vector<1x16x16x128xbf16>
    %c384 = arith.constant 384 : index
    %c0_64 = arith.constant 0 : index
    %64 = vector.load %arg7[%c384, %c0_64] : memref<1152x128xbf16, #tpu.memory_space<vmem>>, vector<128x128xbf16>
    %65 = vector.shape_cast %63 : vector<1x16x16x128xbf16> to vector<256x128xbf16>
    %cst_65 = arith.constant dense<0.000000e+00> : vector<256x128xf32>
    %66 = tpu.matmul %65, %64, %cst_65 {dimension_numbers = #tpu.dot_dimension_numbers<[1], [0], [0], [1], [0, 0, 1, 1], [], []>} : vector<256x128xbf16>, vector<128x128xbf16>, vector<256x128xf32> -> vector<256x128xf32>
    %67 = arith.addf %62, %66 : vector<256x128xf32>
    %c0_66 = arith.constant 0 : index
    %c1_67 = arith.constant 1 : index
    %c16_68 = arith.constant 16 : index
    %c0_69 = arith.constant 0 : index
    %68 = vector.load %arg14[%c0_66, %c1_67, %c16_68, %c0_69] : memref<1x18x48x128xbf16, #tpu.memory_space<vmem>>, vector<1x16x16x128xbf16>
    %c512 = arith.constant 512 : index
    %c0_70 = arith.constant 0 : index
    %69 = vector.load %arg7[%c512, %c0_70] : memref<1152x128xbf16, #tpu.memory_space<vmem>>, vector<128x128xbf16>
    %70 = vector.shape_cast %68 : vector<1x16x16x128xbf16> to vector<256x128xbf16>
    %cst_71 = arith.constant dense<0.000000e+00> : vector<256x128xf32>
    %71 = tpu.matmul %70, %69, %cst_71 {dimension_numbers = #tpu.dot_dimension_numbers<[1], [0], [0], [1], [0, 0, 1, 1], [], []>} : vector<256x128xbf16>, vector<128x128xbf16>, vector<256x128xf32> -> vector<256x128xf32>
    %72 = arith.addf %67, %71 : vector<256x128xf32>
    %c0_72 = arith.constant 0 : index
    %c1_73 = arith.constant 1 : index
    %c17_74 = arith.constant 17 : index
    %c0_75 = arith.constant 0 : index
    %73 = vector.load %arg14[%c0_72, %c1_73, %c17_74, %c0_75] : memref<1x18x48x128xbf16, #tpu.memory_space<vmem>>, vector<1x16x16x128xbf16>
    %c640 = arith.constant 640 : index
    %c0_76 = arith.constant 0 : index
    %74 = vector.load %arg7[%c640, %c0_76] : memref<1152x128xbf16, #tpu.memory_space<vmem>>, vector<128x128xbf16>
    %75 = vector.shape_cast %73 : vector<1x16x16x128xbf16> to vector<256x128xbf16>
    %cst_77 = arith.constant dense<0.000000e+00> : vector<256x128xf32>
    %76 = tpu.matmul %75, %74, %cst_77 {dimension_numbers = #tpu.dot_dimension_numbers<[1], [0], [0], [1], [0, 0, 1, 1], [], []>} : vector<256x128xbf16>, vector<128x128xbf16>, vector<256x128xf32> -> vector<256x128xf32>
    %77 = arith.addf %72, %76 : vector<256x128xf32>
    %c0_78 = arith.constant 0 : index
    %c2 = arith.constant 2 : index
    %c15_79 = arith.constant 15 : index
    %c0_80 = arith.constant 0 : index
    %78 = vector.load %arg14[%c0_78, %c2, %c15_79, %c0_80] : memref<1x18x48x128xbf16, #tpu.memory_space<vmem>>, vector<1x16x16x128xbf16>
    %c768 = arith.constant 768 : index
    %c0_81 = arith.constant 0 : index
    %79 = vector.load %arg7[%c768, %c0_81] : memref<1152x128xbf16, #tpu.memory_space<vmem>>, vector<128x128xbf16>
    %80 = vector.shape_cast %78 : vector<1x16x16x128xbf16> to vector<256x128xbf16>
    %cst_82 = arith.constant dense<0.000000e+00> : vector<256x128xf32>
    %81 = tpu.matmul %80, %79, %cst_82 {dimension_numbers = #tpu.dot_dimension_numbers<[1], [0], [0], [1], [0, 0, 1, 1], [], []>} : vector<256x128xbf16>, vector<128x128xbf16>, vector<256x128xf32> -> vector<256x128xf32>
    %82 = arith.addf %77, %81 : vector<256x128xf32>
    %c0_83 = arith.constant 0 : index
    %c2_84 = arith.constant 2 : index
    %c16_85 = arith.constant 16 : index
    %c0_86 = arith.constant 0 : index
    %83 = vector.load %arg14[%c0_83, %c2_84, %c16_85, %c0_86] : memref<1x18x48x128xbf16, #tpu.memory_space<vmem>>, vector<1x16x16x128xbf16>
    %c896 = arith.constant 896 : index
    %c0_87 = arith.constant 0 : index
    %84 = vector.load %arg7[%c896, %c0_87] : memref<1152x128xbf16, #tpu.memory_space<vmem>>, vector<128x128xbf16>
    %85 = vector.shape_cast %83 : vector<1x16x16x128xbf16> to vector<256x128xbf16>
    %cst_88 = arith.constant dense<0.000000e+00> : vector<256x128xf32>
    %86 = tpu.matmul %85, %84, %cst_88 {dimension_numbers = #tpu.dot_dimension_numbers<[1], [0], [0], [1], [0, 0, 1, 1], [], []>} : vector<256x128xbf16>, vector<128x128xbf16>, vector<256x128xf32> -> vector<256x128xf32>
    %87 = arith.addf %82, %86 : vector<256x128xf32>
    %c0_89 = arith.constant 0 : index
    %c2_90 = arith.constant 2 : index
    %c17_91 = arith.constant 17 : index
    %c0_92 = arith.constant 0 : index
    %88 = vector.load %arg14[%c0_89, %c2_90, %c17_91, %c0_92] : memref<1x18x48x128xbf16, #tpu.memory_space<vmem>>, vector<1x16x16x128xbf16>
    %c1024 = arith.constant 1024 : index
    %c0_93 = arith.constant 0 : index
    %89 = vector.load %arg7[%c1024, %c0_93] : memref<1152x128xbf16, #tpu.memory_space<vmem>>, vector<128x128xbf16>
    %90 = vector.shape_cast %88 : vector<1x16x16x128xbf16> to vector<256x128xbf16>
    %cst_94 = arith.constant dense<0.000000e+00> : vector<256x128xf32>
    %91 = tpu.matmul %90, %89, %cst_94 {dimension_numbers = #tpu.dot_dimension_numbers<[1], [0], [0], [1], [0, 0, 1, 1], [], []>} : vector<256x128xbf16>, vector<128x128xbf16>, vector<256x128xf32> -> vector<256x128xf32>
    %92 = arith.addf %87, %91 : vector<256x128xf32>
    %c0_95 = arith.constant 0 : index
    %c0_96 = arith.constant 0 : index
    %93 = vector.load %arg8[%c0_95, %c0_96] : memref<1x128xf32, #tpu.memory_space<vmem>>, vector<1x128xf32>
    %94 = vector.broadcast %93 : vector<1x128xf32> to vector<256x128xf32>
    %95 = arith.mulf %92, %94 : vector<256x128xf32>
    %c0_97 = arith.constant 0 : index
    %c0_98 = arith.constant 0 : index
    %96 = vector.load %arg9[%c0_97, %c0_98] : memref<1x128xf32, #tpu.memory_space<vmem>>, vector<1x128xf32>
    %97 = vector.broadcast %96 : vector<1x128xf32> to vector<256x128xf32>
    %98 = arith.addf %95, %97 : vector<256x128xf32>
    %cst_99 = arith.constant 0.000000e+00 : f32
    %99 = vector.broadcast %cst_99 : f32 to vector<256x128xf32>
    %100 = arith.maximumf %98, %99 : vector<256x128xf32>
    %101 = arith.truncf %100 : vector<256x128xf32> to vector<256x128xbf16>
    %c0_100 = arith.constant 0 : index
    %c0_101 = arith.constant 0 : index
    %102 = vector.load %arg10[%c0_100, %c0_101] : memref<128x128xbf16, #tpu.memory_space<vmem>>, vector<128x128xbf16>
    %cst_102 = arith.constant dense<0.000000e+00> : vector<256x128xf32>
    %103 = tpu.matmul %101, %102, %cst_102 {dimension_numbers = #tpu.dot_dimension_numbers<[1], [0], [0], [1], [0, 0, 1, 1], [], []>} : vector<256x128xbf16>, vector<128x128xbf16>, vector<256x128xf32> -> vector<256x128xf32>
    %c0_103 = arith.constant 0 : index
    %c0_104 = arith.constant 0 : index
    %104 = vector.load %arg11[%c0_103, %c0_104] : memref<1x128xf32, #tpu.memory_space<vmem>>, vector<1x128xf32>
    %105 = vector.broadcast %104 : vector<1x128xf32> to vector<256x128xf32>
    %106 = arith.mulf %103, %105 : vector<256x128xf32>
    %c0_105 = arith.constant 0 : index
    %c0_106 = arith.constant 0 : index
    %107 = vector.load %arg12[%c0_105, %c0_106] : memref<1x128xf32, #tpu.memory_space<vmem>>, vector<1x128xf32>
    %108 = vector.broadcast %107 : vector<1x128xf32> to vector<256x128xf32>
    %109 = arith.addf %106, %108 : vector<256x128xf32>
    %c0_107 = arith.constant 0 : index
    %c0_108 = arith.constant 0 : index
    %c0_109 = arith.constant 0 : index
    %c0_110 = arith.constant 0 : index
    %110 = vector.load %arg2[%c0_107, %c0_108, %c0_109, %c0_110] : memref<1x16x16x128xbf16, #tpu.memory_space<vmem>>, vector<1x16x16x128xbf16>
    %111 = arith.extf %110 : vector<1x16x16x128xbf16> to vector<1x16x16x128xf32>
    %112 = vector.shape_cast %111 : vector<1x16x16x128xf32> to vector<256x128xf32>
    %113 = arith.addf %109, %112 : vector<256x128xf32>
    %cst_111 = arith.constant 0.000000e+00 : f32
    %114 = vector.broadcast %cst_111 : f32 to vector<256x128xf32>
    %115 = arith.maximumf %113, %114 : vector<256x128xf32>
    %116 = vector.shape_cast %115 : vector<256x128xf32> to vector<1x16x16x128xf32>
    %117 = arith.truncf %116 : vector<1x16x16x128xf32> to vector<1x16x16x128xbf16>
    %c0_112 = arith.constant 0 : index
    %c0_113 = arith.constant 0 : index
    %c0_114 = arith.constant 0 : index
    %c0_115 = arith.constant 0 : index
    %118 = vector.load %arg13[%c0_112, %c0_113, %c0_114, %c0_115] : memref<1x16x16x128xbf16, #tpu.memory_space<vmem>>, vector<1x16x16x128xbf16>
    tpu.vector_store %arg13[%c0_112, %c0_113, %c0_114, %c0_115], %117 {strides = array<i32>} : memref<1x16x16x128xbf16, #tpu.memory_space<vmem>>, vector<1x16x16x128xbf16>,
    return
  }
  func.func @transform_0(%arg0: i32, %arg1: i32) -> (i32, i32, i32, i32) {
    %c0_i32 = arith.constant 0 : i32
    %c0_i32_0 = arith.constant 0 : i32
    %c0_i32_1 = arith.constant 0 : i32
    return %arg0, %arg1, %c0_i32, %c0_i32_0 : i32, i32, i32, i32
  }
  func.func @transform_1(%arg0: i32, %arg1: i32) -> (i32, i32, i32, i32, i32) {
    %c0_i32 = arith.constant 0 : i32
    %c0_i32_0 = arith.constant 0 : i32
    %c0_i32_1 = arith.constant 0 : i32
    %c0_i32_2 = arith.constant 0 : i32
    return %arg0, %arg1, %c0_i32, %c0_i32_0, %c0_i32_1 : i32, i32, i32, i32, i32
  }
  func.func @transform_2(%arg0: i32, %arg1: i32) -> (i32, i32) {
    %c0_i32 = arith.constant 0 : i32
    %c0_i32_0 = arith.constant 0 : i32
    %c0_i32_1 = arith.constant 0 : i32
    return %c0_i32, %c0_i32_0 : i32, i32
  }
  func.func @transform_3(%arg0: i32, %arg1: i32) -> (i32, i32) {
    %c0_i32 = arith.constant 0 : i32
    %c0_i32_0 = arith.constant 0 : i32
    %c0_i32_1 = arith.constant 0 : i32
    return %c0_i32, %c0_i32_0 : i32, i32
  }
  func.func @transform_4(%arg0: i32, %arg1: i32) -> (i32, i32) {
    %c0_i32 = arith.constant 0 : i32
    %c0_i32_0 = arith.constant 0 : i32
    %c0_i32_1 = arith.constant 0 : i32
    return %c0_i32, %c0_i32_0 : i32, i32
  }
  func.func @transform_5(%arg0: i32, %arg1: i32) -> (i32, i32) {
    %c0_i32 = arith.constant 0 : i32
    %c0_i32_0 = arith.constant 0 : i32
    %c0_i32_1 = arith.constant 0 : i32
    return %c0_i32, %c0_i32_0 : i32, i32
  }
  func.func @transform_6(%arg0: i32, %arg1: i32) -> (i32, i32) {
    %c0_i32 = arith.constant 0 : i32
    %c0_i32_0 = arith.constant 0 : i32
    %c0_i32_1 = arith.constant 0 : i32
    return %c0_i32, %c0_i32_0 : i32, i32
  }
  func.func @transform_7(%arg0: i32, %arg1: i32) -> (i32, i32) {
    %c0_i32 = arith.constant 0 : i32
    %c0_i32_0 = arith.constant 0 : i32
    %c0_i32_1 = arith.constant 0 : i32
    return %c0_i32, %c0_i32_0 : i32, i32
  }
  func.func @transform_8(%arg0: i32, %arg1: i32) -> (i32, i32) {
    %c0_i32 = arith.constant 0 : i32
    %c0_i32_0 = arith.constant 0 : i32
    %c0_i32_1 = arith.constant 0 : i32
    return %c0_i32, %c0_i32_0 : i32, i32
  }
  func.func @transform_9(%arg0: i32, %arg1: i32) -> (i32, i32) {
    %c0_i32 = arith.constant 0 : i32
    %c0_i32_0 = arith.constant 0 : i32
    %c0_i32_1 = arith.constant 0 : i32
    return %c0_i32, %c0_i32_0 : i32, i32
  }
  func.func @transform_10(%arg0: i32, %arg1: i32) -> (i32, i32) {
    %c0_i32 = arith.constant 0 : i32
    %c0_i32_0 = arith.constant 0 : i32
    %c0_i32_1 = arith.constant 0 : i32
    return %c0_i32, %c0_i32_0 : i32, i32
  }
  func.func @transform_11(%arg0: i32, %arg1: i32) -> (i32, i32, i32, i32) {
    %c0_i32 = arith.constant 0 : i32
    %c0_i32_0 = arith.constant 0 : i32
    %c0_i32_1 = arith.constant 0 : i32
    return %arg0, %arg1, %c0_i32, %c0_i32_0 : i32, i32, i32, i32
  }
}

</mosaic_0001>

<llo_original>
// kernel: tpu_custom_call.1
$region0: #{tpu_custom_call.1}
  #allocation0 [shape = 'u32[]', space=smem, size = 0x4, offset = 0x4, fixed_abs, tag = 'smem constant byte address 0x4 - core index']
  #allocation1 [shape = 'u32[144,128]{1,0:T(1,128)}', space=vmem, size = 0x12000, scoped, tag = 'internal scratch']
  #allocation2 [shape = 'bf16[1,18,48,128]{3,2,1,0:T(16,128)(2,1)}', space=vmem, size = 0x36000, scoped, tag = 'scratch operand']
  %s0 = inlined_call_operand.hbm [shape: bf16[2,16,16,128], index: 0, kind: input, shape index: {}]
  %s1 = inlined_call_operand.hbm [shape: bf16[2,1,2,16,128], index: 1, kind: input, shape index: {}]
  %s2 = inlined_call_operand.hbm [shape: bf16[128,128], index: 2, kind: input, shape index: {}]
  %s3 = inlined_call_operand.vmem [shape: f32[1,128], index: 3, kind: input, shape index: {}]
  %s4 = inlined_call_operand.vmem [shape: f32[1,128], index: 4, kind: input, shape index: {}]
  %s5 = inlined_call_operand.hbm [shape: bf16[1152,128], index: 5, kind: input, shape index: {}]
  %s6 = inlined_call_operand.vmem [shape: f32[1,128], index: 6, kind: input, shape index: {}]
  %s7 = inlined_call_operand.vmem [shape: f32[1,128], index: 7, kind: input, shape index: {}]
  %s8 = inlined_call_operand.hbm [shape: bf16[128,128], index: 8, kind: input, shape index: {}]
  %s9 = inlined_call_operand.vmem [shape: f32[1,128], index: 9, kind: input, shape index: {}]
  %s10 = inlined_call_operand.vmem [shape: f32[1,128], index: 10, kind: input, shape index: {}]
  %s11 = inlined_call_operand.hbm [shape: bf16[2,16,16,128], index: 11, kind: output, shape index: {}]
  %s12 = sld [smem:[#allocation0]]
  $region97: #{tpu_custom_call.1} parent=0
    _
  %s14 = ssub.s32 1, %s12
  %s15 = scalar_select 0, %s14, %s12
  $region1: #{tpu_custom_call.1} parent=0
    #allocation3 [shape = 'u8[131072]{0}', space=vmem, size = 0x20000, scoped, tag = 'input window, operand 0']
    #allocation4 [shape = 's32[2]{0}', space=sflag, size = 0x8, scoped, tag = 'scoped memory for tpu_custom_call.1']
    #allocation5 [shape = 's32[2]{0}', space=sflag, size = 0x8, scoped, tag = 'scoped memory for tpu_custom_call.1']
    #allocation6 [shape = 'u8[16384]{0}', space=vmem, size = 0x4000, scoped, tag = 'input window, operand 1']
    #allocation7 [shape = 's32[2]{0}', space=sflag, size = 0x8, scoped, tag = 'scoped memory for tpu_custom_call.1']
    #allocation8 [shape = 'u8[32768]{0}', space=vmem, size = 0x8000, scoped, tag = 'input window, operand 2, single buffered']
    #allocation9 [shape = 'u8[294912]{0}', space=vmem, size = 0x48000, scoped, tag = 'input window, operand 5, single buffered']
    #allocation10 [shape = 's32[1]{0}', space=sflag, size = 0x4, scoped, tag = 'scoped memory for tpu_custom_call.1']
    #allocation11 [shape = 'u8[32768]{0}', space=vmem, size = 0x8000, scoped, tag = 'input window, operand 8, single buffered']
    #allocation12 [shape = 'u8[131072]{0}', space=vmem, size = 0x20000, scoped, tag = 'output window, operand 0']
    %16 = vsyncpa [#allocation4], 0
    %s17 = scalar_lea.sflag [#allocation4], 1
    %18 = vsyncpa %s17, 0
    %19 = vsyncpa [#allocation7], 0
    %s20 = scalar_lea.sflag [#allocation7], 1
    %21 = vsyncpa %s20, 0
    %22 = vsyncpa [#allocation10], 0
    %23 = vsyncpa [#allocation5], 0
    %s24 = scalar_lea.sflag [#allocation5], 1
    %25 = vsyncpa %s24, 0
    loop: start=0, step=1, limit=4
    $region2: #{tpu_custom_call.1} parent=1 // loop_pre_header
      _
    $region3: #{tpu_custom_call.1} parent=1 // loop_header
      %s27 = sphi 0, %s31
      %p28 = scmp.ge.s32.totalorder %s27, 4
      %s34 = sphi 0, %s46
      %s35 = sphi 0, %s42
      %s36 = sphi 0, %s34
      %s37 = sphi 0, %s35
      %s38 = sphi 0, %s36
      %s39 = sphi 0, %s37
      %s51 = sphi 0, %s53
      %s54 = sphi 0, %s51
      %s55 = sphi 0, %s54
      %s71 = sphi 0, %s55
      %s79 = sphi 0, %s81
      %s82 = sphi 0, %s79
      %s83 = sphi 0, %s82
      %s99 = sphi 0, %s83
      %s103 = sphi 0, %s103
      %s105 = sphi 0, %s103
      %s106 = sphi 0, %s105
      %s120 = sphi 0, %s106
      %s124 = sphi 0, %s124
      %s126 = sphi 0, %s124
      %s127 = sphi 0, %s126
      %s141 = sphi 0, %s127
      %s145 = sphi 0, %s145
      %s147 = sphi 0, %s145
      %s148 = sphi 0, %s147
      %s162 = sphi 0, %s148
      %s166 = sphi 0, %s166
      %s168 = sphi 0, %s166
      %s169 = sphi 0, %s168
      %s183 = sphi 0, %s169
      %s187 = sphi 0, %s187
      %s189 = sphi 0, %s187
      %s190 = sphi 0, %s189
      %s204 = sphi 0, %s190
      %s208 = sphi 0, %s208
      %s210 = sphi 0, %s208
      %s211 = sphi 0, %s210
      %s225 = sphi 0, %s211
      %s229 = sphi 0, %s229
      %s231 = sphi 0, %s229
      %s232 = sphi 0, %s231
      %s246 = sphi 0, %s232
      %s250 = sphi 0, %s250
      %s252 = sphi 0, %s250
      %s253 = sphi 0, %s252
      %s267 = sphi 0, %s253
      %s271 = sphi 0, %s271
      %s273 = sphi 0, %s271
      %s274 = sphi 0, %s273
      %s288 = sphi 0, %s274
      %s296 = sphi 0, %s298
      %s299 = sphi 0, %s296
      %s300 = sphi 0, %s299
      %s316 = sphi 0, %s300
    $region4: #{tpu_custom_call.1} parent=1 // loop_header_branch
      %30 = sbr.rel (%p28) target = $region8
    $region5: #{tpu_custom_call.1} parent=1 // loop_body
      %s32 = ssub.s32 %s27, 1
      %s33 = ssub.s32 %s27, 2
      %s40 = sadd.s32 1, %s35
      %p41 = scmp.ge.s32.totalorder %s40, 1
      %s42 = scalar_select %p41, 0, %s40
      %s43 = sadd.s32 1, %s34
      %s44 = scalar_select %p41, %s43, %s34
      %p45 = scmp.ge.s32.totalorder %s44, 2
      %s46 = scalar_select %p45, 0, %s44
      %s47 = ssub.s32 %s34, %s46
      %s48 = ssub.s32 %s35, %s42
      %s49 = sor.u32 %s47, %s48
      %p50 = scmp.eq.s32.totalorder %s49, 0
      %s52 = sadd.s32 %s51, 1
      %s53 = scalar_select %p50, %s51, %s52
      %p56 = pneg %p50
      %p57 = scmp.eq.s32.totalorder %s27, 1
      %p58 = por %p56, %p57
      %p59 = scmp.ne.s32.totalorder %s51, %s54
      %p60 = scmp.eq.s32.totalorder %s27, 0
      %p61 = por %p59, %p60
      %p62 = scmp.ne.s32.totalorder %s51, %s54
      %p63 = scmp.eq.s32.totalorder %s32, 1
      %p64 = por %p62, %p63
      %p65 = scmp.ne.s32.totalorder %s54, %s55
      %p66 = scmp.eq.s32.totalorder %s32, 0
      %p67 = por %p65, %p66
      %p68 = scmp.ne.s32.totalorder %s54, %s55
      %p69 = scmp.eq.s32.totalorder %s33, 1
      %p70 = por %p68, %p69
      %p72 = scmp.ne.s32.totalorder %s55, %s71
      %p73 = scmp.eq.s32.totalorder %s33, 0
      %p74 = por %p72, %p73
      %s75 = ssub.s32 %s34, %s46
      %s76 = ssub.s32 %s35, %s42
      %s77 = sor.u32 %s75, %s76
      %p78 = scmp.eq.s32.totalorder %s77, 0
      %s80 = sadd.s32 %s79, 1
      %s81 = scalar_select %p78, %s79, %s80
      %p84 = pneg %p78
      %p85 = scmp.eq.s32.totalorder %s27, 1
      %p86 = por %p84, %p85
      %p87 = scmp.ne.s32.totalorder %s79, %s82
      %p88 = scmp.eq.s32.totalorder %s27, 0
      %p89 = por %p87, %p88
      %p90 = scmp.ne.s32.totalorder %s79, %s82
      %p91 = scmp.eq.s32.totalorder %s32, 1
      %p92 = por %p90, %p91
      %p93 = scmp.ne.s32.totalorder %s82, %s83
      %p94 = scmp.eq.s32.totalorder %s32, 0
      %p95 = por %p93, %p94
      %p96 = scmp.ne.s32.totalorder %s82, %s83
      %p97 = scmp.eq.s32.totalorder %s33, 1
      %p98 = por %p96, %p97
      %p100 = scmp.ne.s32.totalorder %s83, %s99
      %p101 = scmp.eq.s32.totalorder %s33, 0
      %p102 = por %p100, %p101
      %s104 = sadd.s32 %s103, 1
      %p107 = scmp.eq.s32.totalorder %s27, 1
      %p108 = scmp.ne.s32.totalorder %s103, %s105
      %p109 = scmp.eq.s32.totalorder %s27, 0
      %p110 = por %p108, %p109
      %p111 = scmp.ne.s32.totalorder %s103, %s105
      %p112 = scmp.eq.s32.totalorder %s32, 1
      %p113 = por %p111, %p112
      %p114 = scmp.ne.s32.totalorder %s105, %s106
      %p115 = scmp.eq.s32.totalorder %s32, 0
      %p116 = por %p114, %p115
      %p117 = scmp.ne.s32.totalorder %s105, %s106
      %p118 = scmp.eq.s32.totalorder %s33, 1
      %p119 = por %p117, %p118
      %p121 = scmp.ne.s32.totalorder %s106, %s120
      %p122 = scmp.eq.s32.totalorder %s33, 0
      %p123 = por %p121, %p122
      %s125 = sadd.s32 %s124, 1
      %p128 = scmp.eq.s32.totalorder %s27, 1
      %p129 = scmp.ne.s32.totalorder %s124, %s126
      %p130 = scmp.eq.s32.totalorder %s27, 0
      %p131 = por %p129, %p130
      %p132 = scmp.ne.s32.totalorder %s124, %s126
      %p133 = scmp.eq.s32.totalorder %s32, 1
      %p134 = por %p132, %p133
      %p135 = scmp.ne.s32.totalorder %s126, %s127
      %p136 = scmp.eq.s32.totalorder %s32, 0
      %p137 = por %p135, %p136
      %p138 = scmp.ne.s32.totalorder %s126, %s127
      %p139 = scmp.eq.s32.totalorder %s33, 1
      %p140 = por %p138, %p139
      %p142 = scmp.ne.s32.totalorder %s127, %s141
      %p143 = scmp.eq.s32.totalorder %s33, 0
      %p144 = por %p142, %p143
      %s146 = sadd.s32 %s145, 1
      %p149 = scmp.eq.s32.totalorder %s27, 1
      %p150 = scmp.ne.s32.totalorder %s145, %s147
      %p151 = scmp.eq.s32.totalorder %s27, 0
      %p152 = por %p150, %p151
      %p153 = scmp.ne.s32.totalorder %s145, %s147
      %p154 = scmp.eq.s32.totalorder %s32, 1
      %p155 = por %p153, %p154
      %p156 = scmp.ne.s32.totalorder %s147, %s148
      %p157 = scmp.eq.s32.totalorder %s32, 0
      %p158 = por %p156, %p157
      %p159 = scmp.ne.s32.totalorder %s147, %s148
      %p160 = scmp.eq.s32.totalorder %s33, 1
      %p161 = por %p159, %p160
      %p163 = scmp.ne.s32.totalorder %s148, %s162
      %p164 = scmp.eq.s32.totalorder %s33, 0
      %p165 = por %p163, %p164
      %s167 = sadd.s32 %s166, 1
      %p170 = scmp.eq.s32.totalorder %s27, 1
      %p171 = scmp.ne.s32.totalorder %s166, %s168
      %p172 = scmp.eq.s32.totalorder %s27, 0
      %p173 = por %p171, %p172
      %p174 = scmp.ne.s32.totalorder %s166, %s168
      %p175 = scmp.eq.s32.totalorder %s32, 1
      %p176 = por %p174, %p175
      %p177 = scmp.ne.s32.totalorder %s168, %s169
      %p178 = scmp.eq.s32.totalorder %s32, 0
      %p179 = por %p177, %p178
      %p180 = scmp.ne.s32.totalorder %s168, %s169
      %p181 = scmp.eq.s32.totalorder %s33, 1
      %p182 = por %p180, %p181
      %p184 = scmp.ne.s32.totalorder %s169, %s183
      %p185 = scmp.eq.s32.totalorder %s33, 0
      %p186 = por %p184, %p185
      %s188 = sadd.s32 %s187, 1
      %p191 = scmp.eq.s32.totalorder %s27, 1
      %p192 = scmp.ne.s32.totalorder %s187, %s189
      %p193 = scmp.eq.s32.totalorder %s27, 0
      %p194 = por %p192, %p193
      %p195 = scmp.ne.s32.totalorder %s187, %s189
      %p196 = scmp.eq.s32.totalorder %s32, 1
      %p197 = por %p195, %p196
      %p198 = scmp.ne.s32.totalorder %s189, %s190
      %p199 = scmp.eq.s32.totalorder %s32, 0
      %p200 = por %p198, %p199
      %p201 = scmp.ne.s32.totalorder %s189, %s190
      %p202 = scmp.eq.s32.totalorder %s33, 1
      %p203 = por %p201, %p202
      %p205 = scmp.ne.s32.totalorder %s190, %s204
      %p206 = scmp.eq.s32.totalorder %s33, 0
      %p207 = por %p205, %p206
      %s209 = sadd.s32 %s208, 1
      %p212 = scmp.eq.s32.totalorder %s27, 1
      %p213 = scmp.ne.s32.totalorder %s208, %s210
      %p214 = scmp.eq.s32.totalorder %s27, 0
      %p215 = por %p213, %p214
      %p216 = scmp.ne.s32.totalorder %s208, %s210
      %p217 = scmp.eq.s32.totalorder %s32, 1
      %p218 = por %p216, %p217
      %p219 = scmp.ne.s32.totalorder %s210, %s211
      %p220 = scmp.eq.s32.totalorder %s32, 0
      %p221 = por %p219, %p220
      %p222 = scmp.ne.s32.totalorder %s210, %s211
      %p223 = scmp.eq.s32.totalorder %s33, 1
      %p224 = por %p222, %p223
      %p226 = scmp.ne.s32.totalorder %s211, %s225
      %p227 = scmp.eq.s32.totalorder %s33, 0
      %p228 = por %p226, %p227
      %s230 = sadd.s32 %s229, 1
      %p233 = scmp.eq.s32.totalorder %s27, 1
      %p234 = scmp.ne.s32.totalorder %s229, %s231
      %p235 = scmp.eq.s32.totalorder %s27, 0
      %p236 = por %p234, %p235
      %p237 = scmp.ne.s32.totalorder %s229, %s231
      %p238 = scmp.eq.s32.totalorder %s32, 1
      %p239 = por %p237, %p238
      %p240 = scmp.ne.s32.totalorder %s231, %s232
      %p241 = scmp.eq.s32.totalorder %s32, 0
      %p242 = por %p240, %p241
      %p243 = scmp.ne.s32.totalorder %s231, %s232
      %p244 = scmp.eq.s32.totalorder %s33, 1
      %p245 = por %p243, %p244
      %p247 = scmp.ne.s32.totalorder %s232, %s246
      %p248 = scmp.eq.s32.totalorder %s33, 0
      %p249 = por %p247, %p248
      %s251 = sadd.s32 %s250, 1
      %p254 = scmp.eq.s32.totalorder %s27, 1
      %p255 = scmp.ne.s32.totalorder %s250, %s252
      %p256 = scmp.eq.s32.totalorder %s27, 0
      %p257 = por %p255, %p256
      %p258 = scmp.ne.s32.totalorder %s250, %s252
      %p259 = scmp.eq.s32.totalorder %s32, 1
      %p260 = por %p258, %p259
      %p261 = scmp.ne.s32.totalorder %s252, %s253
      %p262 = scmp.eq.s32.totalorder %s32, 0
      %p263 = por %p261, %p262
      %p264 = scmp.ne.s32.totalorder %s252, %s253
      %p265 = scmp.eq.s32.totalorder %s33, 1
      %p266 = por %p264, %p265
      %p268 = scmp.ne.s32.totalorder %s253, %s267
      %p269 = scmp.eq.s32.totalorder %s33, 0
      %p270 = por %p268, %p269
      %s272 = sadd.s32 %s271, 1
      %p275 = scmp.eq.s32.totalorder %s27, 1
      %p276 = scmp.ne.s32.totalorder %s271, %s273
      %p277 = scmp.eq.s32.totalorder %s27, 0
      %p278 = por %p276, %p277
      %p279 = scmp.ne.s32.totalorder %s271, %s273
      %p280 = scmp.eq.s32.totalorder %s32, 1
      %p281 = por %p279, %p280
      %p282 = scmp.ne.s32.totalorder %s273, %s274
      %p283 = scmp.eq.s32.totalorder %s32, 0
      %p284 = por %p282, %p283
      %p285 = scmp.ne.s32.totalorder %s273, %s274
      %p286 = scmp.eq.s32.totalorder %s33, 1
      %p287 = por %p285, %p286
      %p289 = scmp.ne.s32.totalorder %s274, %s288
      %p290 = scmp.eq.s32.totalorder %s33, 0
      %p291 = por %p289, %p290
      %s292 = ssub.s32 %s34, %s46
      %s293 = ssub.s32 %s35, %s42
      %s294 = sor.u32 %s292, %s293
      %p295 = scmp.eq.s32.totalorder %s294, 0
      %s297 = sadd.s32 %s296, 1
      %s298 = scalar_select %p295, %s296, %s297
      %p301 = pneg %p295
      %p302 = scmp.eq.s32.totalorder %s27, 1
      %p303 = por %p301, %p302
      %p304 = scmp.ne.s32.totalorder %s296, %s299
      %p305 = scmp.eq.s32.totalorder %s27, 0
      %p306 = por %p304, %p305
      %p307 = scmp.ne.s32.totalorder %s296, %s299
      %p308 = scmp.eq.s32.totalorder %s32, 1
      %p309 = por %p307, %p308
      %p310 = scmp.ne.s32.totalorder %s299, %s300
      %p311 = scmp.eq.s32.totalorder %s32, 0
      %p312 = por %p310, %p311
      %p313 = scmp.ne.s32.totalorder %s299, %s300
      %p314 = scmp.eq.s32.totalorder %s33, 1
      %p315 = por %p313, %p314
      %p317 = scmp.ne.s32.totalorder %s300, %s316
      %p318 = scmp.eq.s32.totalorder %s33, 0
      %p319 = por %p317, %p318
      %p320 = scmp.le.s32.totalorder 1, %s27
      %p321 = scmp.lt.s32.totalorder %s27, 3
      %p322 = pnand %p320, %p321
      %p323 = pneg %p322
      // Predicated region
      $region9: #{tpu_custom_call.1} parent=5 // pred_check
        _
      $region10: #{tpu_custom_call.1} parent=5 // pred_check_branch
        %325 = sbr.rel (%p322) target = $region12
      $region11: #{tpu_custom_call.1} parent=5 // pred_region
        %s326 = ssub.s32 %s27, 1
        // Predicated region
        $region13: #{tpu_custom_call.1} parent=11 // pred_check
          %p327 = pneg %p116
        $region14: #{tpu_custom_call.1} parent=11 // pred_check_branch
          %329 = sbr.rel (%p327) target = $region16
        $region15: #{tpu_custom_call.1} parent=11 // pred_region
          %s331 = ssub.s32 1024, 1024
          %332 = vsyncadd [#allocation7], %s331
          %s333 = sshll.u32 [#allocation8], 4
          %s334 = int_to_ptr.vmem [resolvable:$true] %s333
          %339 = dma.hbm_to_vmem [thread:$0]  %s2, 1024, %s334, [#allocation7], 64, 64, 4
        $region16: #{tpu_custom_call.1} parent=11 // pred_fallthru
          _
        // Predicated region
        $region17: #{tpu_custom_call.1} parent=11 // pred_check
          %p340 = pneg %p137
        $region18: #{tpu_custom_call.1} parent=11 // pred_check_branch
          %342 = sbr.rel (%p340) target = $region20
        $region19: #{tpu_custom_call.1} parent=11 // pred_region
          _
        $region20: #{tpu_custom_call.1} parent=11 // pred_fallthru
          _
        // Predicated region
        $region21: #{tpu_custom_call.1} parent=11 // pred_check
          %p343 = pneg %p158
        $region22: #{tpu_custom_call.1} parent=11 // pred_check_branch
          %345 = sbr.rel (%p343) target = $region24
        $region23: #{tpu_custom_call.1} parent=11 // pred_region
          _
        $region24: #{tpu_custom_call.1} parent=11 // pred_fallthru
          _
        // Predicated region
        $region25: #{tpu_custom_call.1} parent=11 // pred_check
          %p346 = pneg %p179
        $region26: #{tpu_custom_call.1} parent=11 // pred_check_branch
          %348 = sbr.rel (%p346) target = $region28
        $region27: #{tpu_custom_call.1} parent=11 // pred_region
          %s350 = ssub.s32 9216, 9216
          %351 = vsyncadd [#allocation10], %s350
          %s352 = sshll.u32 [#allocation9], 4
          %s353 = int_to_ptr.vmem [resolvable:$true] %s352
          %358 = dma.hbm_to_vmem [thread:$0]  %s5, 9216, %s353, [#allocation10], 64, 64, 4
        $region28: #{tpu_custom_call.1} parent=11 // pred_fallthru
          _
        // Predicated region
        $region29: #{tpu_custom_call.1} parent=11 // pred_check
          %p359 = pneg %p200
        $region30: #{tpu_custom_call.1} parent=11 // pred_check_branch
          %361 = sbr.rel (%p359) target = $region32
        $region31: #{tpu_custom_call.1} parent=11 // pred_region
          _
        $region32: #{tpu_custom_call.1} parent=11 // pred_fallthru
          _
        // Predicated region
        $region33: #{tpu_custom_call.1} parent=11 // pred_check
          %p362 = pneg %p221
        $region34: #{tpu_custom_call.1} parent=11 // pred_check_branch
          %364 = sbr.rel (%p362) target = $region36
        $region35: #{tpu_custom_call.1} parent=11 // pred_region
          _
        $region36: #{tpu_custom_call.1} parent=11 // pred_fallthru
          _
        // Predicated region
        $region37: #{tpu_custom_call.1} parent=11 // pred_check
          %p365 = pneg %p242
        $region38: #{tpu_custom_call.1} parent=11 // pred_check_branch
          %367 = sbr.rel (%p365) target = $region40
        $region39: #{tpu_custom_call.1} parent=11 // pred_region
          %s369 = ssub.s32 1024, 1024
          %370 = vsyncadd [#allocation10], %s369
          %s371 = sshll.u32 [#allocation11], 4
          %s372 = int_to_ptr.vmem [resolvable:$true] %s371
          %377 = dma.hbm_to_vmem [thread:$0]  %s8, 1024, %s372, [#allocation10], 64, 64, 4
        $region40: #{tpu_custom_call.1} parent=11 // pred_fallthru
          _
        // Predicated region
        $region41: #{tpu_custom_call.1} parent=11 // pred_check
          %p378 = pneg %p263
        $region42: #{tpu_custom_call.1} parent=11 // pred_check_branch
          %380 = sbr.rel (%p378) target = $region44
        $region43: #{tpu_custom_call.1} parent=11 // pred_region
          _
        $region44: #{tpu_custom_call.1} parent=11 // pred_fallthru
          _
        // Predicated region
        $region45: #{tpu_custom_call.1} parent=11 // pred_check
          %p381 = pneg %p284
        $region46: #{tpu_custom_call.1} parent=11 // pred_check_branch
          %383 = sbr.rel (%p381) target = $region48
        $region47: #{tpu_custom_call.1} parent=11 // pred_region
          _
        $region48: #{tpu_custom_call.1} parent=11 // pred_fallthru
          _
      $region12: #{tpu_custom_call.1} parent=5 // pred_fallthru
        _
      %p384 = scmp.lt.s32.totalorder %s27, 2
      // Predicated region
      $region49: #{tpu_custom_call.1} parent=5 // pred_check
        %p385 = pneg %p384
      $region50: #{tpu_custom_call.1} parent=5 // pred_check_branch
        %387 = sbr.rel (%p385) target = $region52
      $region51: #{tpu_custom_call.1} parent=5 // pred_region
        // Predicated region
        $region53: #{tpu_custom_call.1} parent=51 // pred_check
          %p388 = pneg %p61
        $region54: #{tpu_custom_call.1} parent=51 // pred_check_branch
          %390 = sbr.rel (%p388) target = $region56
        $region55: #{tpu_custom_call.1} parent=51 // pred_region
          %s391 = sand.u32 %s51, 1
          %s392 = scalar_lea.sflag [#allocation4], %s391
          %s393 = sand.u32 %s51, 1
          %s394 = smul.addr %s393, 128
          %s395 = scalar_lea.vmem [#allocation3], %s394
          %s396 = smul.u32 16, %s35
          %s398 = ssub.s32 2048, 2048
          %399 = vsyncadd %s392, %s398
          %s400 = smul.addr %s396, 2
          %s401 = smul.addr %s34, 32
          %s402 = sadd.s32 %s400, %s401
          %s403 = smul.addr %s402, 64
          %s404 = scalar_lea.hbm %s0, %s403
          %s405 = sshll.u32 %s395, 4
          %s406 = int_to_ptr.vmem [resolvable:$true] %s405
          %411 = dma.hbm_to_vmem [thread:$0]  %s404, 2048, %s406, %s392, 64, 64, 4
        $region56: #{tpu_custom_call.1} parent=51 // pred_fallthru
          _
        // Predicated region
        $region57: #{tpu_custom_call.1} parent=51 // pred_check
          %p412 = pneg %p89
        $region58: #{tpu_custom_call.1} parent=51 // pred_check_branch
          %414 = sbr.rel (%p412) target = $region60
        $region59: #{tpu_custom_call.1} parent=51 // pred_region
          %s415 = sand.u32 %s27, 1
          %s416 = scalar_lea.sflag [#allocation7], %s415
          %s417 = sand.u32 %s79, 1
          %s418 = smul.addr %s417, 16
          %s419 = scalar_lea.vmem [#allocation6], %s418
          %s421 = ssub.s32 256, 256
          %422 = vsyncadd %s416, %s421
          %s423 = smul.addr %s35, 4
          %s424 = smul.addr %s34, 4
          %s425 = sadd.s32 %s423, %s424
          %s426 = smul.addr %s425, 64
          %s427 = scalar_lea.hbm %s1, %s426
          %s428 = sshll.u32 %s419, 4
          %s429 = int_to_ptr.vmem [resolvable:$true] %s428
          %434 = dma.hbm_to_vmem [thread:$0]  %s427, 256, %s429, %s416, 64, 64, 4
        $region60: #{tpu_custom_call.1} parent=51 // pred_fallthru
          _
      $region52: #{tpu_custom_call.1} parent=5 // pred_fallthru
        _
      %p435 = scmp.le.s32.totalorder 1, %s27
      %p436 = scmp.lt.s32.totalorder %s27, 3
      %p437 = pnand %p435, %p436
      %p438 = pneg %p437
      // Predicated region
      $region61: #{tpu_custom_call.1} parent=5 // pred_check
        _
      $region62: #{tpu_custom_call.1} parent=5 // pred_check_branch
        %440 = sbr.rel (%p437) target = $region64
      $region63: #{tpu_custom_call.1} parent=5 // pred_region
        %s441 = ssub.s32 %s27, 1
        %s442 = sand.u32 %s54, 1
        %s443 = scalar_lea.sflag [#allocation4], %s442
        %s444 = sand.u32 %s54, 1
        %s445 = smul.addr %s444, 128
        %s446 = scalar_lea.vmem [#allocation3], %s445
        // Predicated region
        $region65: #{tpu_custom_call.1} parent=63 // pred_check
          %p447 = pneg %p67
        $region66: #{tpu_custom_call.1} parent=63 // pred_check_branch
          %449 = sbr.rel (%p447) target = $region68
        $region67: #{tpu_custom_call.1} parent=63 // pred_region
          %450 = dma.done %s443, 2048
        $region68: #{tpu_custom_call.1} parent=63 // pred_fallthru
          _
        %s451 = sand.u32 %s32, 1
        %s452 = scalar_lea.sflag [#allocation7], %s451
        %s453 = sand.u32 %s82, 1
        %s454 = smul.addr %s453, 16
        %s455 = scalar_lea.vmem [#allocation6], %s454
        // Predicated region
        $region69: #{tpu_custom_call.1} parent=63 // pred_check
          %p456 = pneg %p95
        $region70: #{tpu_custom_call.1} parent=63 // pred_check_branch
          %458 = sbr.rel (%p456) target = $region72
        $region71: #{tpu_custom_call.1} parent=63 // pred_region
          %459 = dma.done %s452, 256
        $region72: #{tpu_custom_call.1} parent=63 // pred_fallthru
          _
        // Predicated region
        $region73: #{tpu_custom_call.1} parent=63 // pred_check
          %p460 = pneg %p116
        $region74: #{tpu_custom_call.1} parent=63 // pred_check_branch
          %462 = sbr.rel (%p460) target = $region76
        $region75: #{tpu_custom_call.1} parent=63 // pred_region
          %463 = dma.done [#allocation7], 1024
        $region76: #{tpu_custom_call.1} parent=63 // pred_fallthru
          _
        // Predicated region
        $region77: #{tpu_custom_call.1} parent=63 // pred_check
          %p464 = pneg %p179
        $region78: #{tpu_custom_call.1} parent=63 // pred_check_branch
          %466 = sbr.rel (%p464) target = $region80
        $region79: #{tpu_custom_call.1} parent=63 // pred_region
          %467 = dma.done [#allocation10], 9216
        $region80: #{tpu_custom_call.1} parent=63 // pred_fallthru
          _
        // Predicated region
        $region81: #{tpu_custom_call.1} parent=63 // pred_check
          %p468 = pneg %p242
        $region82: #{tpu_custom_call.1} parent=63 // pred_check_branch
          %470 = sbr.rel (%p468) target = $region84
        $region83: #{tpu_custom_call.1} parent=63 // pred_region
          %471 = dma.done [#allocation10], 1024
        $region84: #{tpu_custom_call.1} parent=63 // pred_fallthru
          _
        %s472 = sand.u32 %s54, 1
        %s473 = scalar_lea.sflag [#allocation4], %s472
        %s474 = sand.u32 %s54, 1
        %s475 = smul.addr %s474, 128
        %s476 = scalar_lea.vmem [#allocation3], %s475
        %p477 = pneg %p67
        %p478 = pneg %p64
        %s479 = sand.u32 %s32, 1
        %s480 = scalar_lea.sflag [#allocation7], %s479
        %s481 = sand.u32 %s82, 1
        %s482 = smul.addr %s481, 16
        %s483 = scalar_lea.vmem [#allocation6], %s482
        %p484 = pneg %p95
        %p485 = pneg %p92
        %p486 = pneg %p116
        %p487 = pneg %p113
        %p488 = pneg %p137
        %p489 = pneg %p134
        %p490 = pneg %p158
        %p491 = pneg %p155
        %p492 = pneg %p179
        %p493 = pneg %p176
        %p494 = pneg %p200
        %p495 = pneg %p197
        %p496 = pneg %p221
        %p497 = pneg %p218
        %p498 = pneg %p242
        %p499 = pneg %p239
        %p500 = pneg %p263
        %p501 = pneg %p260
        %p502 = pneg %p284
        %p503 = pneg %p281
        %p504 = pneg %p312
        %p505 = pneg %p309
        %s506 = sand.u32 %s299, 1
        %s507 = scalar_lea.sflag [#allocation5], %s506
        %s508 = sand.u32 %s299, 1
        %s509 = smul.addr %s508, 128
        %s510 = scalar_lea.vmem [#allocation12], %s509
        %s511 = smul.u32 16, %s37
        %s512 = smul.u32 16, %s37
        %v514 = vld [vmem:[%s446] sm:$0xf]
        %v515 = vld [vmem:[%s446 + $0x4] sm:$0xf]
        %v516 = vld [vmem:[%s446 + $0x8] sm:$0xf]
        %v517 = vld [vmem:[%s446 + $0xc] sm:$0xf]
        %v518 = vld [vmem:[%s446 + $0x10] sm:$0xf]
        %v519 = vld [vmem:[%s446 + $0x14] sm:$0xf]
        %v520 = vld [vmem:[%s446 + $0x18] sm:$0xf]
        %v521 = vld [vmem:[%s446 + $0x1c] sm:$0xf]
        %v522 = vld [vmem:[%s446 + $0x20] sm:$0xf]
        %v523 = vld [vmem:[%s446 + $0x24] sm:$0xf]
        %v524 = vld [vmem:[%s446 + $0x28] sm:$0xf]
        %v525 = vld [vmem:[%s446 + $0x2c] sm:$0xf]
        %v526 = vld [vmem:[%s446 + $0x30] sm:$0xf]
        %v527 = vld [vmem:[%s446 + $0x34] sm:$0xf]
        %v528 = vld [vmem:[%s446 + $0x38] sm:$0xf]
        %v529 = vld [vmem:[%s446 + $0x3c] sm:$0xf]
        %v530 = vld [vmem:[%s446 + $0x40] sm:$0xf]
        %v531 = vld [vmem:[%s446 + $0x44] sm:$0xf]
        %v532 = vld [vmem:[%s446 + $0x48] sm:$0xf]
        %v533 = vld [vmem:[%s446 + $0x4c] sm:$0xf]
        %v534 = vld [vmem:[%s446 + $0x50] sm:$0xf]
        %v535 = vld [vmem:[%s446 + $0x54] sm:$0xf]
        %v536 = vld [vmem:[%s446 + $0x58] sm:$0xf]
        %v537 = vld [vmem:[%s446 + $0x5c] sm:$0xf]
        %v538 = vld [vmem:[%s446 + $0x60] sm:$0xf]
        %v539 = vld [vmem:[%s446 + $0x64] sm:$0xf]
        %v540 = vld [vmem:[%s446 + $0x68] sm:$0xf]
        %v541 = vld [vmem:[%s446 + $0x6c] sm:$0xf]
        %v542 = vld [vmem:[%s446 + $0x70] sm:$0xf]
        %v543 = vld [vmem:[%s446 + $0x74] sm:$0xf]
        %v544 = vld [vmem:[%s446 + $0x78] sm:$0xf]
        %v545 = vld [vmem:[%s446 + $0x7c] sm:$0xf]
        %v546 = vld [vmem:[#allocation8] sm:$0xf]
        %v547 = vld [vmem:[#allocation8 + $0x4] sm:$0xf]
        %v548 = vld [vmem:[#allocation8 + $0x8] sm:$0xf]
        %v549 = vld [vmem:[#allocation8 + $0xc] sm:$0xf]
        %v550 = vld [vmem:[#allocation8 + $0x10] sm:$0xf]
        %v551 = vld [vmem:[#allocation8 + $0x14] sm:$0xf]
        %v552 = vld [vmem:[#allocation8 + $0x18] sm:$0xf]
        %v553 = vld [vmem:[#allocation8 + $0x1c] sm:$0xf]
        %v554 = vld [vmem:[#allocation8 + $0x20] sm:$0xf]
        %v555 = vld [vmem:[#allocation8 + $0x24] sm:$0xf]
        %v556 = vld [vmem:[#allocation8 + $0x28] sm:$0xf]
        %v557 = vld [vmem:[#allocation8 + $0x2c] sm:$0xf]
        %v558 = vld [vmem:[#allocation8 + $0x30] sm:$0xf]
        %v559 = vld [vmem:[#allocation8 + $0x34] sm:$0xf]
        %v560 = vld [vmem:[#allocation8 + $0x38] sm:$0xf]
        %v561 = vld [vmem:[#allocation8 + $0x3c] sm:$0xf]
        %v594 = vunpack.c.l.b16 %v514
        %v595 = vunpack.c.l.b16 %v515
        %v596 = vunpack.c.l.b16 %v516
        %v597 = vunpack.c.l.b16 %v517
        %v598 = vunpack.c.l.b16 %v518
        %v599 = vunpack.c.l.b16 %v519
        %v600 = vunpack.c.l.b16 %v520
        %v601 = vunpack.c.l.b16 %v521
        %v602 = vunpack.c.l.b16 %v522
        %v603 = vunpack.c.l.b16 %v523
        %v604 = vunpack.c.l.b16 %v524
        %v605 = vunpack.c.l.b16 %v525
        %v606 = vunpack.c.l.b16 %v526
        %v607 = vunpack.c.l.b16 %v527
        %v608 = vunpack.c.l.b16 %v528
        %v609 = vunpack.c.l.b16 %v529
        %v610 = vunpack.c.l.b16 %v530
        %v611 = vunpack.c.l.b16 %v531
        %v612 = vunpack.c.l.b16 %v532
        %v613 = vunpack.c.l.b16 %v533
        %v614 = vunpack.c.l.b16 %v534
        %v615 = vunpack.c.l.b16 %v535
        %v616 = vunpack.c.l.b16 %v536
        %v617 = vunpack.c.l.b16 %v537
        %v618 = vunpack.c.l.b16 %v538
        %v619 = vunpack.c.l.b16 %v539
        %v620 = vunpack.c.l.b16 %v540
        %v621 = vunpack.c.l.b16 %v541
        %v622 = vunpack.c.l.b16 %v542
        %v623 = vunpack.c.l.b16 %v543
        %v624 = vunpack.c.l.b16 %v544
        %v625 = vunpack.c.l.b16 %v545
        %v626 = vpack.c.b16 %v595, %v594
        %v627 = vpack.c.b16 %v597, %v596
        %v628 = vpack.c.b16 %v599, %v598
        %v629 = vpack.c.b16 %v601, %v600
        %v630 = vpack.c.b16 %v603, %v602
        %v631 = vpack.c.b16 %v605, %v604
        %v632 = vpack.c.b16 %v607, %v606
        %v633 = vpack.c.b16 %v609, %v608
        %v634 = vpack.c.b16 %v611, %v610
        %v635 = vpack.c.b16 %v613, %v612
        %v636 = vpack.c.b16 %v615, %v614
        %v637 = vpack.c.b16 %v617, %v616
        %v638 = vpack.c.b16 %v619, %v618
        %v639 = vpack.c.b16 %v621, %v620
        %v640 = vpack.c.b16 %v623, %v622
        %v641 = vpack.c.b16 %v625, %v624
        %v674 = vunpack.c.l.b16 %v546
        %v675 = vunpack.c.l.b16 %v547
        %v676 = vunpack.c.l.b16 %v548
        %v677 = vunpack.c.l.b16 %v549
        %v678 = vunpack.c.l.b16 %v550
        %v679 = vunpack.c.l.b16 %v551
        %v680 = vunpack.c.l.b16 %v552
        %v681 = vunpack.c.l.b16 %v553
        %v682 = vunpack.c.l.b16 %v554
        %v683 = vunpack.c.l.b16 %v555
        %v684 = vunpack.c.l.b16 %v556
        %v685 = vunpack.c.l.b16 %v557
        %v686 = vunpack.c.l.b16 %v558
        %v687 = vunpack.c.l.b16 %v559
        %v688 = vunpack.c.l.b16 %v560
        %v689 = vunpack.c.l.b16 %v561
        %v690 = vpack.c.b16 %v675, %v674
        %v691 = vpack.c.b16 %v677, %v676
        %v692 = vpack.c.b16 %v679, %v678
        %v693 = vpack.c.b16 %v681, %v680
        %v694 = vpack.c.b16 %v683, %v682
        %v695 = vpack.c.b16 %v685, %v684
        %v696 = vpack.c.b16 %v687, %v686
        %v697 = vpack.c.b16 %v689, %v688
        %706 = vmatprep.subr.bf16.mxu0 0
        %707 = vmatpush1.bf16.msra.mxu0 %v690
        %708 = vmatprep.subr.bf16.mxu0 0
        %709 = vmatpush1.bf16.msra.mxu0 %v691
        %710 = vmatprep.subr.bf16.mxu0 0
        %711 = vmatpush1.bf16.msra.mxu0 %v692
        %712 = vmatprep.subr.bf16.mxu0 0
        %713 = vmatpush1.bf16.msra.mxu0 %v693
        %714 = vmatprep.subr.bf16.mxu0 0
        %715 = vmatpush1.bf16.msra.mxu0 %v694
        %716 = vmatprep.subr.bf16.mxu0 0
        %717 = vmatpush1.bf16.msra.mxu0 %v695
        %718 = vmatprep.subr.bf16.mxu0 0
        %719 = vmatpush1.bf16.msra.mxu0 %v696
        %720 = vmatprep.subr.bf16.mxu0 0
        %721 = vmatpush1.bf16.msra.mxu0 %v697
        %722 = vmatprep.subr.bf16.mxu0 0
        %723 = vmatpush1.bf16.msra.mxu0 0
        %724 = vmatprep.subr.bf16.mxu0 0
        %725 = vmatpush1.bf16.msra.mxu0 0
        %726 = vmatprep.subr.bf16.mxu0 0
        %727 = vmatpush1.bf16.msra.mxu0 0
        %728 = vmatprep.subr.bf16.mxu0 0
        %729 = vmatpush1.bf16.msra.mxu0 0
        %730 = vmatprep.subr.bf16.mxu0 0
        %731 = vmatpush1.bf16.msra.mxu0 0
        %732 = vmatprep.subr.bf16.mxu0 0
        %733 = vmatpush1.bf16.msra.mxu0 0
        %734 = vmatprep.subr.bf16.mxu0 0
        %735 = vmatpush1.bf16.msra.mxu0 0
        %736 = vmatprep.subr.bf16.mxu0 0
        %737 = vmatpush1.bf16.msra.mxu0 0
        %738 = vmatprep.mubr.bf16.mxu0 0
        %739 = vmatmul.mubr.bf16.gmra.mrb[0].mxu0 %v626
        %v740 = vpop.f32.mrb[0].mxu0
        %v741 = vadd.f32 0.0, %v740
        %v742 = vpop.f32.mrb[0].mxu0
        %v743 = vpop.f32.mrb[0].mxu0
        %v744 = vadd.f32 0.0, %v743
        %v745 = vpop.f32.mrb[0].mxu0
        %746 = vmatprep.mubr.bf16.mxu0 0
        %747 = vmatmul.mubr.bf16.gmra.mrb[0].mxu0 %v627
        %v748 = vpop.f32.mrb[0].mxu0
        %v749 = vadd.f32 0.0, %v748
        %v750 = vpop.f32.mrb[0].mxu0
        %v751 = vpop.f32.mrb[0].mxu0
        %v752 = vadd.f32 0.0, %v751
        %v753 = vpop.f32.mrb[0].mxu0
        %754 = vmatprep.mubr.bf16.mxu0 0
        %755 = vmatmul.mubr.bf16.gmra.mrb[0].mxu0 %v628
        %v756 = vpop.f32.mrb[0].mxu0
        %v757 = vadd.f32 0.0, %v756
        %v758 = vpop.f32.mrb[0].mxu0
        %v759 = vpop.f32.mrb[0].mxu0
        %v760 = vadd.f32 0.0, %v759
        %v761 = vpop.f32.mrb[0].mxu0
        %762 = vmatprep.mubr.bf16.mxu0 0
        %763 = vmatmul.mubr.bf16.gmra.mrb[0].mxu0 %v629
        %v764 = vpop.f32.mrb[0].mxu0
        %v765 = vadd.f32 0.0, %v764
        %v766 = vpop.f32.mrb[0].mxu0
        %v767 = vpop.f32.mrb[0].mxu0
        %v768 = vadd.f32 0.0, %v767
        %v769 = vpop.f32.mrb[0].mxu0
        %770 = vmatprep.mubr.bf16.mxu0 0
        %771 = vmatmul.mubr.bf16.gmra.mrb[0].mxu0 %v630
        %v772 = vpop.f32.mrb[0].mxu0
        %v773 = vadd.f32 0.0, %v772
        %v774 = vpop.f32.mrb[0].mxu0
        %v775 = vpop.f32.mrb[0].mxu0
        %v776 = vadd.f32 0.0, %v775
        %v777 = vpop.f32.mrb[0].mxu0
        %778 = vmatprep.mubr.bf16.mxu0 0
        %779 = vmatmul.mubr.bf16.gmra.mrb[0].mxu0 %v631
        %v780 = vpop.f32.mrb[0].mxu0
        %v781 = vadd.f32 0.0, %v780
        %v782 = vpop.f32.mrb[0].mxu0
        %v783 = vpop.f32.mrb[0].mxu0
        %v784 = vadd.f32 0.0, %v783
        %v785 = vpop.f32.mrb[0].mxu0
        %786 = vmatprep.mubr.bf16.mxu0 0
        %787 = vmatmul.mubr.bf16.gmra.mrb[0].mxu0 %v632
        %v788 = vpop.f32.mrb[0].mxu0
        %v789 = vadd.f32 0.0, %v788
        %v790 = vpop.f32.mrb[0].mxu0
        %v791 = vpop.f32.mrb[0].mxu0
        %v792 = vadd.f32 0.0, %v791
        %v793 = vpop.f32.mrb[0].mxu0
        %794 = vmatprep.mubr.bf16.mxu0 0
        %795 = vmatmul.mubr.bf16.gmra.mrb[0].mxu0 %v633
        %v796 = vpop.f32.mrb[0].mxu0
        %v797 = vadd.f32 0.0, %v796
        %v798 = vpop.f32.mrb[0].mxu0
        %v799 = vpop.f32.mrb[0].mxu0
        %v800 = vadd.f32 0.0, %v799
        %v801 = vpop.f32.mrb[0].mxu0
        %802 = vmatprep.mubr.bf16.mxu0 0
        %803 = vmatmul.mubr.bf16.gmra.mrb[0].mxu0 %v634
        %v804 = vpop.f32.mrb[0].mxu0
        %v805 = vadd.f32 0.0, %v804
        %v806 = vpop.f32.mrb[0].mxu0
        %v807 = vpop.f32.mrb[0].mxu0
        %v808 = vadd.f32 0.0, %v807
        %v809 = vpop.f32.mrb[0].mxu0
        %810 = vmatprep.mubr.bf16.mxu0 0
        %811 = vmatmul.mubr.bf16.gmra.mrb[0].mxu0 %v635
        %v812 = vpop.f32.mrb[0].mxu0
        %v813 = vadd.f32 0.0, %v812
        %v814 = vpop.f32.mrb[0].mxu0
        %v815 = vpop.f32.mrb[0].mxu0
        %v816 = vadd.f32 0.0, %v815
        %v817 = vpop.f32.mrb[0].mxu0
        %818 = vmatprep.mubr.bf16.mxu0 0
        %819 = vmatmul.mubr.bf16.gmra.mrb[0].mxu0 %v636
        %v820 = vpop.f32.mrb[0].mxu0
        %v821 = vadd.f32 0.0, %v820
        %v822 = vpop.f32.mrb[0].mxu0
        %v823 = vpop.f32.mrb[0].mxu0
        %v824 = vadd.f32 0.0, %v823
        %v825 = vpop.f32.mrb[0].mxu0
        %826 = vmatprep.mubr.bf16.mxu0 0
        %827 = vmatmul.mubr.bf16.gmra.mrb[0].mxu0 %v637
        %v828 = vpop.f32.mrb[0].mxu0
        %v829 = vadd.f32 0.0, %v828
        %v830 = vpop.f32.mrb[0].mxu0
        %v831 = vpop.f32.mrb[0].mxu0
        %v832 = vadd.f32 0.0, %v831
        %v833 = vpop.f32.mrb[0].mxu0
        %834 = vmatprep.mubr.bf16.mxu0 0
        %835 = vmatmul.mubr.bf16.gmra.mrb[0].mxu0 %v638
        %v836 = vpop.f32.mrb[0].mxu0
        %v837 = vadd.f32 0.0, %v836
        %v838 = vpop.f32.mrb[0].mxu0
        %v839 = vpop.f32.mrb[0].mxu0
        %v840 = vadd.f32 0.0, %v839
        %v841 = vpop.f32.mrb[0].mxu0
        %842 = vmatprep.mubr.bf16.mxu0 0
        %843 = vmatmul.mubr.bf16.gmra.mrb[0].mxu0 %v639
        %v844 = vpop.f32.mrb[0].mxu0
        %v845 = vadd.f32 0.0, %v844
        %v846 = vpop.f32.mrb[0].mxu0
        %v847 = vpop.f32.mrb[0].mxu0
        %v848 = vadd.f32 0.0, %v847
        %v849 = vpop.f32.mrb[0].mxu0
        %850 = vmatprep.mubr.bf16.mxu0 0
        %851 = vmatmul.mubr.bf16.gmra.mrb[0].mxu0 %v640
        %v852 = vpop.f32.mrb[0].mxu0
        %v853 = vadd.f32 0.0, %v852
        %v854 = vpop.f32.mrb[0].mxu0
        %v855 = vpop.f32.mrb[0].mxu0
        %v856 = vadd.f32 0.0, %v855
        %v857 = vpop.f32.mrb[0].mxu0
        %858 = vmatprep.mubr.bf16.mxu0 0
        %859 = vmatmul.mubr.bf16.gmra.mrb[0].mxu0 %v641
        %v860 = vpop.f32.mrb[0].mxu0
        %v861 = vadd.f32 0.0, %v860
        %v862 = vpop.f32.mrb[0].mxu0
        %v863 = vpop.f32.mrb[0].mxu0
        %v864 = vadd.f32 0.0, %v863
        %v865 = vpop.f32.mrb[0].mxu0
        %866 = vdwg.mxu0
        %v867 = vld [vmem:[%s3] sm:$0x1]
        %v869 = vlaneseq
        %v870 = vshrl.u32 %v869, 7
        %v871 = vsub.s32 0, %v870
        %v872 = vrot.slane %v867, %v871
        %v874 = vmul.f32 %v741, %v872
        %v875 = vmul.f32 %v744, %v872
        %v876 = vmul.f32 %v749, %v872
        %v877 = vmul.f32 %v752, %v872
        %v878 = vmul.f32 %v757, %v872
        %v879 = vmul.f32 %v760, %v872
        %v880 = vmul.f32 %v765, %v872
        %v881 = vmul.f32 %v768, %v872
        %v882 = vmul.f32 %v773, %v872
        %v883 = vmul.f32 %v776, %v872
        %v884 = vmul.f32 %v781, %v872
        %v885 = vmul.f32 %v784, %v872
        %v886 = vmul.f32 %v789, %v872
        %v887 = vmul.f32 %v792, %v872
        %v888 = vmul.f32 %v797, %v872
        %v889 = vmul.f32 %v800, %v872
        %v890 = vmul.f32 %v805, %v872
        %v891 = vmul.f32 %v808, %v872
        %v892 = vmul.f32 %v813, %v872
        %v893 = vmul.f32 %v816, %v872
        %v894 = vmul.f32 %v821, %v872
        %v895 = vmul.f32 %v824, %v872
        %v896 = vmul.f32 %v829, %v872
        %v897 = vmul.f32 %v832, %v872
        %v898 = vmul.f32 %v837, %v872
        %v899 = vmul.f32 %v840, %v872
        %v900 = vmul.f32 %v845, %v872
        %v901 = vmul.f32 %v848, %v872
        %v902 = vmul.f32 %v853, %v872
        %v903 = vmul.f32 %v856, %v872
        %v904 = vmul.f32 %v861, %v872
        %v905 = vmul.f32 %v864, %v872
        %v906 = vld [vmem:[%s4] sm:$0x1]
        %v908 = vlaneseq
        %v909 = vshrl.u32 %v908, 7
        %v910 = vsub.s32 0, %v909
        %v911 = vrot.slane %v906, %v910
        %v913 = vadd.f32 %v874, %v911
        %v914 = vadd.f32 %v875, %v911
        %v915 = vadd.f32 %v876, %v911
        %v916 = vadd.f32 %v877, %v911
        %v917 = vadd.f32 %v878, %v911
        %v918 = vadd.f32 %v879, %v911
        %v919 = vadd.f32 %v880, %v911
        %v920 = vadd.f32 %v881, %v911
        %v921 = vadd.f32 %v882, %v911
        %v922 = vadd.f32 %v883, %v911
        %v923 = vadd.f32 %v884, %v911
        %v924 = vadd.f32 %v885, %v911
        %v925 = vadd.f32 %v886, %v911
        %v926 = vadd.f32 %v887, %v911
        %v927 = vadd.f32 %v888, %v911
        %v928 = vadd.f32 %v889, %v911
        %v929 = vadd.f32 %v890, %v911
        %v930 = vadd.f32 %v891, %v911
        %v931 = vadd.f32 %v892, %v911
        %v932 = vadd.f32 %v893, %v911
        %v933 = vadd.f32 %v894, %v911
        %v934 = vadd.f32 %v895, %v911
        %v935 = vadd.f32 %v896, %v911
        %v936 = vadd.f32 %v897, %v911
        %v937 = vadd.f32 %v898, %v911
        %v938 = vadd.f32 %v899, %v911
        %v939 = vadd.f32 %v900, %v911
        %v940 = vadd.f32 %v901, %v911
        %v941 = vadd.f32 %v902, %v911
        %v942 = vadd.f32 %v903, %v911
        %v943 = vadd.f32 %v904, %v911
        %v944 = vadd.f32 %v905, %v911
        %v945 = vmax.f32 %v913, 0.0
        %v946 = vmax.f32 %v914, 0.0
        %v947 = vmax.f32 %v915, 0.0
        %v948 = vmax.f32 %v916, 0.0
        %v949 = vmax.f32 %v917, 0.0
        %v950 = vmax.f32 %v918, 0.0
        %v951 = vmax.f32 %v919, 0.0
        %v952 = vmax.f32 %v920, 0.0
        %v953 = vmax.f32 %v921, 0.0
        %v954 = vmax.f32 %v922, 0.0
        %v955 = vmax.f32 %v923, 0.0
        %v956 = vmax.f32 %v924, 0.0
        %v957 = vmax.f32 %v925, 0.0
        %v958 = vmax.f32 %v926, 0.0
        %v959 = vmax.f32 %v927, 0.0
        %v960 = vmax.f32 %v928, 0.0
        %v961 = vmax.f32 %v929, 0.0
        %v962 = vmax.f32 %v930, 0.0
        %v963 = vmax.f32 %v931, 0.0
        %v964 = vmax.f32 %v932, 0.0
        %v965 = vmax.f32 %v933, 0.0
        %v966 = vmax.f32 %v934, 0.0
        %v967 = vmax.f32 %v935, 0.0
        %v968 = vmax.f32 %v936, 0.0
        %v969 = vmax.f32 %v937, 0.0
        %v970 = vmax.f32 %v938, 0.0
        %v971 = vmax.f32 %v939, 0.0
        %v972 = vmax.f32 %v940, 0.0
        %v973 = vmax.f32 %v941, 0.0
        %v974 = vmax.f32 %v942, 0.0
        %v975 = vmax.f32 %v943, 0.0
        %v976 = vmax.f32 %v944, 0.0
        %v977 = vpack.c.bf16 %v946, %v945
        %v978 = vpack.c.bf16 %v948, %v947
        %v979 = vpack.c.bf16 %v950, %v949
        %v980 = vpack.c.bf16 %v952, %v951
        %v981 = vpack.c.bf16 %v954, %v953
        %v982 = vpack.c.bf16 %v956, %v955
        %v983 = vpack.c.bf16 %v958, %v957
        %v984 = vpack.c.bf16 %v960, %v959
        %v985 = vpack.c.bf16 %v962, %v961
        %v986 = vpack.c.bf16 %v964, %v963
        %v987 = vpack.c.bf16 %v966, %v965
        %v988 = vpack.c.bf16 %v968, %v967
        %v989 = vpack.c.bf16 %v970, %v969
        %v990 = vpack.c.bf16 %v972, %v971
        %v991 = vpack.c.bf16 %v974, %v973
        %v992 = vpack.c.bf16 %v976, %v975
        %v993 = vld [vmem:[%s455] sm:$0xf]
        %v994 = vld [vmem:[%s455 + $0x4] sm:$0xf]
        %v995 = vld [vmem:[%s455 + $0x8] sm:$0xf]
        %v996 = vld [vmem:[%s455 + $0xc] sm:$0xf]
        %v1001 = vunpack.c.l.b16 %v993
        %v1002 = vunpack.c.l.b16 %v994
        %v1003 = vunpack.c.l.b16 %v995
        %v1004 = vunpack.c.l.b16 %v996
        %v1005 = vpack.c.b16 %v1002, %v1001
        %v1006 = vpack.c.b16 %v1004, %v1003
        %1009 = vmatprep.subr.bf16.mxu0 0
        %1010 = vmatpush1.bf16.msra.mxu0 %v690
        %1011 = vmatprep.subr.bf16.mxu0 0
        %1012 = vmatpush1.bf16.msra.mxu0 %v691
        %1013 = vmatprep.subr.bf16.mxu0 0
        %1014 = vmatpush1.bf16.msra.mxu0 %v692
        %1015 = vmatprep.subr.bf16.mxu0 0
        %1016 = vmatpush1.bf16.msra.mxu0 %v693
        %1017 = vmatprep.subr.bf16.mxu0 0
        %1018 = vmatpush1.bf16.msra.mxu0 %v694
        %1019 = vmatprep.subr.bf16.mxu0 0
        %1020 = vmatpush1.bf16.msra.mxu0 %v695
        %1021 = vmatprep.subr.bf16.mxu0 0
        %1022 = vmatpush1.bf16.msra.mxu0 %v696
        %1023 = vmatprep.subr.bf16.mxu0 0
        %1024 = vmatpush1.bf16.msra.mxu0 %v697
        %1025 = vmatprep.subr.bf16.mxu0 0
        %1026 = vmatpush1.bf16.msra.mxu0 0
        %1027 = vmatprep.subr.bf16.mxu0 0
        %1028 = vmatpush1.bf16.msra.mxu0 0
        %1029 = vmatprep.subr.bf16.mxu0 0
        %1030 = vmatpush1.bf16.msra.mxu0 0
        %1031 = vmatprep.subr.bf16.mxu0 0
        %1032 = vmatpush1.bf16.msra.mxu0 0
        %1033 = vmatprep.subr.bf16.mxu0 0
        %1034 = vmatpush1.bf16.msra.mxu0 0
        %1035 = vmatprep.subr.bf16.mxu0 0
        %1036 = vmatpush1.bf16.msra.mxu0 0
        %1037 = vmatprep.subr.bf16.mxu0 0
        %1038 = vmatpush1.bf16.msra.mxu0 0
        %1039 = vmatprep.subr.bf16.mxu0 0
        %1040 = vmatpush1.bf16.msra.mxu0 0
        %1041 = vmatprep.mubr.bf16.mxu0 0
        %1042 = vmatmul.mubr.bf16.gmra.mrb[0].mxu0 %v1005
        %v1043 = vpop.f32.mrb[0].mxu0
        %v1044 = vadd.f32 0.0, %v1043
        %v1045 = vpop.f32.mrb[0].mxu0
        %v1046 = vpop.f32.mrb[0].mxu0
        %v1047 = vadd.f32 0.0, %v1046
        %v1048 = vpop.f32.mrb[0].mxu0
        %1049 = vmatprep.mubr.bf16.mxu0 0
        %1050 = vmatmul.mubr.bf16.gmra.mrb[0].mxu0 %v1006
        %v1051 = vpop.f32.mrb[0].mxu0
        %v1052 = vadd.f32 0.0, %v1051
        %v1053 = vpop.f32.mrb[0].mxu0
        %v1054 = vpop.f32.mrb[0].mxu0
        %v1055 = vadd.f32 0.0, %v1054
        %v1056 = vpop.f32.mrb[0].mxu0
        %1057 = vdwg.mxu0
        %v1058 = vmul.f32 %v1044, %v872
        %v1059 = vmul.f32 %v1047, %v872
        %v1060 = vmul.f32 %v1052, %v872
        %v1061 = vmul.f32 %v1055, %v872
        %v1062 = vadd.f32 %v1058, %v911
        %v1063 = vadd.f32 %v1059, %v911
        %v1064 = vadd.f32 %v1060, %v911
        %v1065 = vadd.f32 %v1061, %v911
        %v1066 = vmax.f32 %v1062, 0.0
        %v1067 = vmax.f32 %v1063, 0.0
        %v1068 = vmax.f32 %v1064, 0.0
        %v1069 = vmax.f32 %v1065, 0.0
        %p1070 = scmp.gt.s32.totalorder %s37, 0
        %s1071 = scalar_select %p1070, 1, 0
        %s1072 = scvt.s32.f32 %s1071
        %v1073 = vstv %s1072
        %v1074 = vmul.f32 %v1066, %v1073
        %v1075 = vmul.f32 %v1067, %v1073
        %p1076 = scmp.lt.s32.totalorder %s37, 0
        %s1077 = scalar_select %p1076, 1, 0
        %s1078 = scvt.s32.f32 %s1077
        %v1079 = vstv %s1078
        %v1080 = vmul.f32 %v1068, %v1079
        %v1081 = vmul.f32 %v1069, %v1079
        %v1082 = vpack.c.bf16 %v1075, %v1074
        %v1083 = vpack.c.bf16 %v1081, %v1080
        %1084 = vst [vmem:[#allocation2] sm:$0xff] 0
        %1085 = vst [vmem:[#allocation2 + $0x18] sm:$0xff] 0
        %1086 = vst [vmem:[#allocation2 + $0x30] sm:$0xff] 0
        %1087 = vst [vmem:[#allocation2 + $0x48] sm:$0xff] 0
        %1088 = vst [vmem:[#allocation2 + $0x60] sm:$0xff] 0
        %1089 = vst [vmem:[#allocation2 + $0x78] sm:$0xff] 0
        %1090 = vst [vmem:[#allocation2 + $0x90] sm:$0xff] 0
        %1091 = vst [vmem:[#allocation2 + $0xa8] sm:$0xff] 0
        %1092 = vst [vmem:[#allocation2 + $0xc0] sm:$0xff] 0
        %1093 = vst [vmem:[#allocation2 + $0xd8] sm:$0xff] 0
        %1094 = vst [vmem:[#allocation2 + $0xf0] sm:$0xff] 0
        %1095 = vst [vmem:[#allocation2 + $0x108] sm:$0xff] 0
        %1096 = vst [vmem:[#allocation2 + $0x120] sm:$0xff] 0
        %1097 = vst [vmem:[#allocation2 + $0x138] sm:$0xff] 0
        %1098 = vst [vmem:[#allocation2 + $0x150] sm:$0xff] 0
        %1099 = vst [vmem:[#allocation2 + $0x168] sm:$0xff] 0
        %1100 = vst [vmem:[#allocation2 + $0x180] sm:$0xff] 0
        %1101 = vst [vmem:[#allocation2 + $0x198] sm:$0xff] 0
        %1102 = vst [vmem:[#allocation2 + $0x10] sm:$0xff] 0
        %1103 = vst [vmem:[#allocation2 + $0x28] sm:$0xff] 0
        %1104 = vst [vmem:[#allocation2 + $0x40] sm:$0xff] 0
        %1105 = vst [vmem:[#allocation2 + $0x58] sm:$0xff] 0
        %1106 = vst [vmem:[#allocation2 + $0x70] sm:$0xff] 0
        %1107 = vst [vmem:[#allocation2 + $0x88] sm:$0xff] 0
        %1108 = vst [vmem:[#allocation2 + $0xa0] sm:$0xff] 0
        %1109 = vst [vmem:[#allocation2 + $0xb8] sm:$0xff] 0
        %1110 = vst [vmem:[#allocation2 + $0xd0] sm:$0xff] 0
        %1111 = vst [vmem:[#allocation2 + $0xe8] sm:$0xff] 0
        %1112 = vst [vmem:[#allocation2 + $0x100] sm:$0xff] 0
        %1113 = vst [vmem:[#allocation2 + $0x118] sm:$0xff] 0
        %1114 = vst [vmem:[#allocation2 + $0x130] sm:$0xff] 0
        %1115 = vst [vmem:[#allocation2 + $0x148] sm:$0xff] 0
        %1116 = vst [vmem:[#allocation2 + $0x160] sm:$0xff] 0
        %1117 = vst [vmem:[#allocation2 + $0x178] sm:$0xff] 0
        %1118 = vst [vmem:[#allocation2 + $0x190] sm:$0xff] 0
        %1119 = vst [vmem:[#allocation2 + $0x1a8] sm:$0xff] 0
        %s1120 = scalar_lea.vmem [#allocation2], 24
        %1121 = vst [vmem:[%s1120 + $0x8] sm:$0xff] %v977
        %1122 = vst [vmem:[%s1120 + $0x20] sm:$0xff] %v978
        %1123 = vst [vmem:[%s1120 + $0x38] sm:$0xff] %v979
        %1124 = vst [vmem:[%s1120 + $0x50] sm:$0xff] %v980
        %1125 = vst [vmem:[%s1120 + $0x68] sm:$0xff] %v981
        %1126 = vst [vmem:[%s1120 + $0x80] sm:$0xff] %v982
        %1127 = vst [vmem:[%s1120 + $0x98] sm:$0xff] %v983
        %1128 = vst [vmem:[%s1120 + $0xb0] sm:$0xff] %v984
        %1129 = vst [vmem:[%s1120 + $0xc8] sm:$0xff] %v985
        %1130 = vst [vmem:[%s1120 + $0xe0] sm:$0xff] %v986
        %1131 = vst [vmem:[%s1120 + $0xf8] sm:$0xff] %v987
        %1132 = vst [vmem:[%s1120 + $0x110] sm:$0xff] %v988
        %1133 = vst [vmem:[%s1120 + $0x128] sm:$0xff] %v989
        %1134 = vst [vmem:[%s1120 + $0x140] sm:$0xff] %v990
        %1135 = vst [vmem:[%s1120 + $0x158] sm:$0xff] %v991
        %1136 = vst [vmem:[%s1120 + $0x170] sm:$0xff] %v992
        %1137 = vst [vmem:[#allocation2 + $0x8] sm:$0xff] %v1082
        %s1138 = scalar_lea.vmem [#allocation2], 408
        %1139 = vst [vmem:[%s1138 + $0x8] sm:$0xff] %v1083
        %v1140 = vld [vmem:[#allocation2] sm:$0x80]
        %v1141 = vld [vmem:[#allocation2 + $0x8] sm:$0xff]
        %v1142 = vld [vmem:[#allocation2 + $0x18] sm:$0x80]
        %v1143 = vld [vmem:[#allocation2 + $0x20] sm:$0xff]
        %v1144 = vld [vmem:[#allocation2 + $0x30] sm:$0x80]
        %v1145 = vld [vmem:[#allocation2 + $0x38] sm:$0xff]
        %v1146 = vld [vmem:[#allocation2 + $0x48] sm:$0x80]
        %v1147 = vld [vmem:[#allocation2 + $0x50] sm:$0xff]
        %v1148 = vld [vmem:[#allocation2 + $0x60] sm:$0x80]
        %v1149 = vld [vmem:[#allocation2 + $0x68] sm:$0xff]
        %v1150 = vld [vmem:[#allocation2 + $0x78] sm:$0x80]
        %v1151 = vld [vmem:[#allocation2 + $0x80] sm:$0xff]
        %v1152 = vld [vmem:[#allocation2 + $0x90] sm:$0x80]
        %v1153 = vld [vmem:[#allocation2 + $0x98] sm:$0xff]
        %v1154 = vld [vmem:[#allocation2 + $0xa8] sm:$0x80]
        %v1155 = vld [vmem:[#allocation2 + $0xb0] sm:$0xff]
        %v1156 = vld [vmem:[#allocation2 + $0xc0] sm:$0x80]
        %v1157 = vld [vmem:[#allocation2 + $0xc8] sm:$0xff]
        %v1158 = vld [vmem:[#allocation2 + $0xd8] sm:$0x80]
        %v1159 = vld [vmem:[#allocation2 + $0xe0] sm:$0xff]
        %v1160 = vld [vmem:[#allocation2 + $0xf0] sm:$0x80]
        %v1161 = vld [vmem:[#allocation2 + $0xf8] sm:$0xff]
        %v1162 = vld [vmem:[#allocation2 + $0x108] sm:$0x80]
        %v1163 = vld [vmem:[#allocation2 + $0x110] sm:$0xff]
        %v1164 = vld [vmem:[#allocation2 + $0x120] sm:$0x80]
        %v1165 = vld [vmem:[#allocation2 + $0x128] sm:$0xff]
        %v1166 = vld [vmem:[#allocation2 + $0x138] sm:$0x80]
        %v1167 = vld [vmem:[#allocation2 + $0x140] sm:$0xff]
        %v1168 = vld [vmem:[#allocation2 + $0x150] sm:$0x80]
        %v1169 = vld [vmem:[#allocation2 + $0x158] sm:$0xff]
        %v1170 = vld [vmem:[#allocation2 + $0x168] sm:$0x80]
        %v1171 = vld [vmem:[#allocation2 + $0x170] sm:$0xff]
        %v1172 = vld [vmem:[#allocation9] sm:$0xf]
        %v1173 = vld [vmem:[#allocation9 + $0x4] sm:$0xf]
        %v1174 = vld [vmem:[#allocation9 + $0x8] sm:$0xf]
        %v1175 = vld [vmem:[#allocation9 + $0xc] sm:$0xf]
        %v1176 = vld [vmem:[#allocation9 + $0x10] sm:$0xf]
        %v1177 = vld [vmem:[#allocation9 + $0x14] sm:$0xf]
        %v1178 = vld [vmem:[#allocation9 + $0x18] sm:$0xf]
        %v1179 = vld [vmem:[#allocation9 + $0x1c] sm:$0xf]
        %v1180 = vld [vmem:[#allocation9 + $0x20] sm:$0xf]
        %v1181 = vld [vmem:[#allocation9 + $0x24] sm:$0xf]
        %v1182 = vld [vmem:[#allocation9 + $0x28] sm:$0xf]
        %v1183 = vld [vmem:[#allocation9 + $0x2c] sm:$0xf]
        %v1184 = vld [vmem:[#allocation9 + $0x30] sm:$0xf]
        %v1185 = vld [vmem:[#allocation9 + $0x34] sm:$0xf]
        %v1186 = vld [vmem:[#allocation9 + $0x38] sm:$0xf]
        %v1187 = vld [vmem:[#allocation9 + $0x3c] sm:$0xf]
        %vm1188 = vsmask.f32 256
        %v1190 = vshrl.u32 %v1140, 16
        %v1192 = vrot.slane %v1190, 7
        %v1194 = vshrl.u32 %v1141, 16
        %v1196 = vrot.slane %v1194, 7
        %v1197 = vshll.u32 %v1141, 16
        %v1199 = vor.u32 %v1196, %v1197
        %v1200 = vsel %vm1188, %v1192, %v1199
        %v1202 = vshrl.u32 %v1142, 16
        %v1204 = vrot.slane %v1202, 7
        %v1206 = vshrl.u32 %v1143, 16
        %v1208 = vrot.slane %v1206, 7
        %v1209 = vshll.u32 %v1143, 16
        %v1211 = vor.u32 %v1208, %v1209
        %v1212 = vsel %vm1188, %v1204, %v1211
        %v1214 = vshrl.u32 %v1144, 16
        %v1216 = vrot.slane %v1214, 7
        %v1218 = vshrl.u32 %v1145, 16
        %v1220 = vrot.slane %v1218, 7
        %v1221 = vshll.u32 %v1145, 16
        %v1223 = vor.u32 %v1220, %v1221
        %v1224 = vsel %vm1188, %v1216, %v1223
        %v1226 = vshrl.u32 %v1146, 16
        %v1228 = vrot.slane %v1226, 7
        %v1230 = vshrl.u32 %v1147, 16
        %v1232 = vrot.slane %v1230, 7
        %v1233 = vshll.u32 %v1147, 16
        %v1235 = vor.u32 %v1232, %v1233
        %v1236 = vsel %vm1188, %v1228, %v1235
        %v1238 = vshrl.u32 %v1148, 16
        %v1240 = vrot.slane %v1238, 7
        %v1242 = vshrl.u32 %v1149, 16
        %v1244 = vrot.slane %v1242, 7
        %v1245 = vshll.u32 %v1149, 16
        %v1247 = vor.u32 %v1244, %v1245
        %v1248 = vsel %vm1188, %v1240, %v1247
        %v1250 = vshrl.u32 %v1150, 16
        %v1252 = vrot.slane %v1250, 7
        %v1254 = vshrl.u32 %v1151, 16
        %v1256 = vrot.slane %v1254, 7
        %v1257 = vshll.u32 %v1151, 16
        %v1259 = vor.u32 %v1256, %v1257
        %v1260 = vsel %vm1188, %v1252, %v1259
        %v1262 = vshrl.u32 %v1152, 16
        %v1264 = vrot.slane %v1262, 7
        %v1266 = vshrl.u32 %v1153, 16
        %v1268 = vrot.slane %v1266, 7
        %v1269 = vshll.u32 %v1153, 16
        %v1271 = vor.u32 %v1268, %v1269
        %v1272 = vsel %vm1188, %v1264, %v1271
        %v1274 = vshrl.u32 %v1154, 16
        %v1276 = vrot.slane %v1274, 7
        %v1278 = vshrl.u32 %v1155, 16
        %v1280 = vrot.slane %v1278, 7
        %v1281 = vshll.u32 %v1155, 16
        %v1283 = vor.u32 %v1280, %v1281
        %v1284 = vsel %vm1188, %v1276, %v1283
        %v1286 = vshrl.u32 %v1156, 16
        %v1288 = vrot.slane %v1286, 7
        %v1290 = vshrl.u32 %v1157, 16
        %v1292 = vrot.slane %v1290, 7
        %v1293 = vshll.u32 %v1157, 16
        %v1295 = vor.u32 %v1292, %v1293
        %v1296 = vsel %vm1188, %v1288, %v1295
        %v1298 = vshrl.u32 %v1158, 16
        %v1300 = vrot.slane %v1298, 7
        %v1302 = vshrl.u32 %v1159, 16
        %v1304 = vrot.slane %v1302, 7
        %v1305 = vshll.u32 %v1159, 16
        %v1307 = vor.u32 %v1304, %v1305
        %v1308 = vsel %vm1188, %v1300, %v1307
        %v1310 = vshrl.u32 %v1160, 16
        %v1312 = vrot.slane %v1310, 7
        %v1314 = vshrl.u32 %v1161, 16
        %v1316 = vrot.slane %v1314, 7
        %v1317 = vshll.u32 %v1161, 16
        %v1319 = vor.u32 %v1316, %v1317
        %v1320 = vsel %vm1188, %v1312, %v1319
        %v1322 = vshrl.u32 %v1162, 16
        %v1324 = vrot.slane %v1322, 7
        %v1326 = vshrl.u32 %v1163, 16
        %v1328 = vrot.slane %v1326, 7
        %v1329 = vshll.u32 %v1163, 16
        %v1331 = vor.u32 %v1328, %v1329
        %v1332 = vsel %vm1188, %v1324, %v1331
        %v1334 = vshrl.u32 %v1164, 16
        %v1336 = vrot.slane %v1334, 7
        %v1338 = vshrl.u32 %v1165, 16
        %v1340 = vrot.slane %v1338, 7
        %v1341 = vshll.u32 %v1165, 16
        %v1343 = vor.u32 %v1340, %v1341
        %v1344 = vsel %vm1188, %v1336, %v1343
        %v1346 = vshrl.u32 %v1166, 16
        %v1348 = vrot.slane %v1346, 7
        %v1350 = vshrl.u32 %v1167, 16
        %v1352 = vrot.slane %v1350, 7
        %v1353 = vshll.u32 %v1167, 16
        %v1355 = vor.u32 %v1352, %v1353
        %v1356 = vsel %vm1188, %v1348, %v1355
        %v1358 = vshrl.u32 %v1168, 16
        %v1360 = vrot.slane %v1358, 7
        %v1362 = vshrl.u32 %v1169, 16
        %v1364 = vrot.slane %v1362, 7
        %v1365 = vshll.u32 %v1169, 16
        %v1367 = vor.u32 %v1364, %v1365
        %v1368 = vsel %vm1188, %v1360, %v1367
        %v1370 = vshrl.u32 %v1170, 16
        %v1372 = vrot.slane %v1370, 7
        %v1374 = vshrl.u32 %v1171, 16
        %v1376 = vrot.slane %v1374, 7
        %v1377 = vshll.u32 %v1171, 16
        %v1379 = vor.u32 %v1376, %v1377
        %v1380 = vsel %vm1188, %v1372, %v1379
        %v1397 = vld [vmem:[#allocation9 + $0x40] sm:$0xf]
        %v1398 = vld [vmem:[#allocation9 + $0x44] sm:$0xf]
        %v1399 = vld [vmem:[#allocation9 + $0x48] sm:$0xf]
        %v1400 = vld [vmem:[#allocation9 + $0x4c] sm:$0xf]
        %v1401 = vld [vmem:[#allocation9 + $0x50] sm:$0xf]
        %v1402 = vld [vmem:[#allocation9 + $0x54] sm:$0xf]
        %v1403 = vld [vmem:[#allocation9 + $0x58] sm:$0xf]
        %v1404 = vld [vmem:[#allocation9 + $0x5c] sm:$0xf]
        %v1405 = vld [vmem:[#allocation9 + $0x60] sm:$0xf]
        %v1406 = vld [vmem:[#allocation9 + $0x64] sm:$0xf]
        %v1407 = vld [vmem:[#allocation9 + $0x68] sm:$0xf]
        %v1408 = vld [vmem:[#allocation9 + $0x6c] sm:$0xf]
        %v1409 = vld [vmem:[#allocation9 + $0x70] sm:$0xf]
        %v1410 = vld [vmem:[#allocation9 + $0x74] sm:$0xf]
        %v1411 = vld [vmem:[#allocation9 + $0x78] sm:$0xf]
        %v1412 = vld [vmem:[#allocation9 + $0x7c] sm:$0xf]
        %v1429 = vunpack.c.l.b16 %v1397
        %v1430 = vunpack.c.l.b16 %v1398
        %v1431 = vunpack.c.l.b16 %v1399
        %v1432 = vunpack.c.l.b16 %v1400
        %v1433 = vunpack.c.l.b16 %v1401
        %v1434 = vunpack.c.l.b16 %v1402
        %v1435 = vunpack.c.l.b16 %v1403
        %v1436 = vunpack.c.l.b16 %v1404
        %v1437 = vunpack.c.l.b16 %v1405
        %v1438 = vunpack.c.l.b16 %v1406
        %v1439 = vunpack.c.l.b16 %v1407
        %v1440 = vunpack.c.l.b16 %v1408
        %v1441 = vunpack.c.l.b16 %v1409
        %v1442 = vunpack.c.l.b16 %v1410
        %v1443 = vunpack.c.l.b16 %v1411
        %v1444 = vunpack.c.l.b16 %v1412
        %v1445 = vpack.c.b16 %v1430, %v1429
        %v1446 = vpack.c.b16 %v1432, %v1431
        %v1447 = vpack.c.b16 %v1434, %v1433
        %v1448 = vpack.c.b16 %v1436, %v1435
        %v1449 = vpack.c.b16 %v1438, %v1437
        %v1450 = vpack.c.b16 %v1440, %v1439
        %v1451 = vpack.c.b16 %v1442, %v1441
        %v1452 = vpack.c.b16 %v1444, %v1443
        %1461 = vmatprep.subr.bf16.mxu0 0
        %1462 = vmatpush1.bf16.msra.mxu0 %v1445
        %1463 = vmatprep.subr.bf16.mxu0 0
        %1464 = vmatpush1.bf16.msra.mxu0 %v1446
        %1465 = vmatprep.subr.bf16.mxu0 0
        %1466 = vmatpush1.bf16.msra.mxu0 %v1447
        %1467 = vmatprep.subr.bf16.mxu0 0
        %1468 = vmatpush1.bf16.msra.mxu0 %v1448
        %1469 = vmatprep.subr.bf16.mxu0 0
        %1470 = vmatpush1.bf16.msra.mxu0 %v1449
        %1471 = vmatprep.subr.bf16.mxu0 0
        %1472 = vmatpush1.bf16.msra.mxu0 %v1450
        %1473 = vmatprep.subr.bf16.mxu0 0
        %1474 = vmatpush1.bf16.msra.mxu0 %v1451
        %1475 = vmatprep.subr.bf16.mxu0 0
        %1476 = vmatpush1.bf16.msra.mxu0 %v1452
        %1477 = vmatprep.subr.bf16.mxu0 0
        %1478 = vmatpush1.bf16.msra.mxu0 0
        %1479 = vmatprep.subr.bf16.mxu0 0
        %1480 = vmatpush1.bf16.msra.mxu0 0
        %1481 = vmatprep.subr.bf16.mxu0 0
        %1482 = vmatpush1.bf16.msra.mxu0 0
        %1483 = vmatprep.subr.bf16.mxu0 0
        %1484 = vmatpush1.bf16.msra.mxu0 0
        %1485 = vmatprep.subr.bf16.mxu0 0
        %1486 = vmatpush1.bf16.msra.mxu0 0
        %1487 = vmatprep.subr.bf16.mxu0 0
        %1488 = vmatpush1.bf16.msra.mxu0 0
        %1489 = vmatprep.subr.bf16.mxu0 0
        %1490 = vmatpush1.bf16.msra.mxu0 0
        %1491 = vmatprep.subr.bf16.mxu0 0
        %1492 = vmatpush1.bf16.msra.mxu0 0
        %1493 = vmatprep.mubr.bf16.mxu0 0
        %1494 = vmatmul.mubr.bf16.gmra.mrb[0].mxu0 %v1141
        %v1495 = vpop.f32.mrb[0].mxu0
        %v1496 = vadd.f32 0.0, %v1495
        %v1497 = vpop.f32.mrb[0].mxu0
        %v1498 = vpop.f32.mrb[0].mxu0
        %v1499 = vadd.f32 0.0, %v1498
        %v1500 = vpop.f32.mrb[0].mxu0
        %1501 = vmatprep.mubr.bf16.mxu0 0
        %1502 = vmatmul.mubr.bf16.gmra.mrb[0].mxu0 %v1143
        %v1503 = vpop.f32.mrb[0].mxu0
        %v1504 = vadd.f32 0.0, %v1503
        %v1505 = vpop.f32.mrb[0].mxu0
        %v1506 = vpop.f32.mrb[0].mxu0
        %v1507 = vadd.f32 0.0, %v1506
        %v1508 = vpop.f32.mrb[0].mxu0
        %1509 = vmatprep.mubr.bf16.mxu0 0
        %1510 = vmatmul.mubr.bf16.gmra.mrb[0].mxu0 %v1145
        %v1511 = vpop.f32.mrb[0].mxu0
        %v1512 = vadd.f32 0.0, %v1511
        %v1513 = vpop.f32.mrb[0].mxu0
        %v1514 = vpop.f32.mrb[0].mxu0
        %v1515 = vadd.f32 0.0, %v1514
        %v1516 = vpop.f32.mrb[0].mxu0
        %1517 = vmatprep.mubr.bf16.mxu0 0
        %1518 = vmatmul.mubr.bf16.gmra.mrb[0].mxu0 %v1147
        %v1519 = vpop.f32.mrb[0].mxu0
        %v1520 = vadd.f32 0.0, %v1519
        %v1521 = vpop.f32.mrb[0].mxu0
        %v1522 = vpop.f32.mrb[0].mxu0
        %v1523 = vadd.f32 0.0, %v1522
        %v1524 = vpop.f32.mrb[0].mxu0
        %1525 = vmatprep.mubr.bf16.mxu0 0
        %1526 = vmatmul.mubr.bf16.gmra.mrb[0].mxu0 %v1149
        %v1527 = vpop.f32.mrb[0].mxu0
        %v1528 = vadd.f32 0.0, %v1527
        %v1529 = vpop.f32.mrb[0].mxu0
        %v1530 = vpop.f32.mrb[0].mxu0
        %v1531 = vadd.f32 0.0, %v1530
        %v1532 = vpop.f32.mrb[0].mxu0
        %1533 = vmatprep.mubr.bf16.mxu0 0
        %1534 = vmatmul.mubr.bf16.gmra.mrb[0].mxu0 %v1151
        %v1535 = vpop.f32.mrb[0].mxu0
        %v1536 = vadd.f32 0.0, %v1535
        %v1537 = vpop.f32.mrb[0].mxu0
        %v1538 = vpop.f32.mrb[0].mxu0
        %v1539 = vadd.f32 0.0, %v1538
        %v1540 = vpop.f32.mrb[0].mxu0
        %1541 = vmatprep.mubr.bf16.mxu0 0
        %1542 = vmatmul.mubr.bf16.gmra.mrb[0].mxu0 %v1153
        %v1543 = vpop.f32.mrb[0].mxu0
        %v1544 = vadd.f32 0.0, %v1543
        %v1545 = vpop.f32.mrb[0].mxu0
        %v1546 = vpop.f32.mrb[0].mxu0
        %v1547 = vadd.f32 0.0, %v1546
        %v1548 = vpop.f32.mrb[0].mxu0
        %1549 = vmatprep.mubr.bf16.mxu0 0
        %1550 = vmatmul.mubr.bf16.gmra.mrb[0].mxu0 %v1155
        %v1551 = vpop.f32.mrb[0].mxu0
        %v1552 = vadd.f32 0.0, %v1551
        %v1553 = vpop.f32.mrb[0].mxu0
        %v1554 = vpop.f32.mrb[0].mxu0
        %v1555 = vadd.f32 0.0, %v1554
        %v1556 = vpop.f32.mrb[0].mxu0
        %1557 = vmatprep.mubr.bf16.mxu0 0
        %1558 = vmatmul.mubr.bf16.gmra.mrb[0].mxu0 %v1157
        %v1559 = vpop.f32.mrb[0].mxu0
        %v1560 = vadd.f32 0.0, %v1559
        %v1561 = vpop.f32.mrb[0].mxu0
        %v1562 = vpop.f32.mrb[0].mxu0
        %v1563 = vadd.f32 0.0, %v1562
        %v1564 = vpop.f32.mrb[0].mxu0
        %1565 = vmatprep.mubr.bf16.mxu0 0
        %1566 = vmatmul.mubr.bf16.gmra.mrb[0].mxu0 %v1159
        %v1567 = vpop.f32.mrb[0].mxu0
        %v1568 = vadd.f32 0.0, %v1567
        %v1569 = vpop.f32.mrb[0].mxu0
        %v1570 = vpop.f32.mrb[0].mxu0
        %v1571 = vadd.f32 0.0, %v1570
        %v1572 = vpop.f32.mrb[0].mxu0
        %1573 = vmatprep.mubr.bf16.mxu0 0
        %1574 = vmatmul.mubr.bf16.gmra.mrb[0].mxu0 %v1161
        %v1575 = vpop.f32.mrb[0].mxu0
        %v1576 = vadd.f32 0.0, %v1575
        %v1577 = vpop.f32.mrb[0].mxu0
        %v1578 = vpop.f32.mrb[0].mxu0
        %v1579 = vadd.f32 0.0, %v1578
        %v1580 = vpop.f32.mrb[0].mxu0
        %1581 = vmatprep.mubr.bf16.mxu0 0
        %1582 = vmatmul.mubr.bf16.gmra.mrb[0].mxu0 %v1163
        %v1583 = vpop.f32.mrb[0].mxu0
        %v1584 = vadd.f32 0.0, %v1583
        %v1585 = vpop.f32.mrb[0].mxu0
        %v1586 = vpop.f32.mrb[0].mxu0
        %v1587 = vadd.f32 0.0, %v1586
        %v1588 = vpop.f32.mrb[0].mxu0
        %1589 = vmatprep.mubr.bf16.mxu0 0
        %1590 = vmatmul.mubr.bf16.gmra.mrb[0].mxu0 %v1165
        %v1591 = vpop.f32.mrb[0].mxu0
        %v1592 = vadd.f32 0.0, %v1591
        %v1593 = vpop.f32.mrb[0].mxu0
        %v1594 = vpop.f32.mrb[0].mxu0
        %v1595 = vadd.f32 0.0, %v1594
        %v1596 = vpop.f32.mrb[0].mxu0
        %1597 = vmatprep.mubr.bf16.mxu0 0
        %1598 = vmatmul.mubr.bf16.gmra.mrb[0].mxu0 %v1167
        %v1599 = vpop.f32.mrb[0].mxu0
        %v1600 = vadd.f32 0.0, %v1599
        %v1601 = vpop.f32.mrb[0].mxu0
        %v1602 = vpop.f32.mrb[0].mxu0
        %v1603 = vadd.f32 0.0, %v1602
        %v1604 = vpop.f32.mrb[0].mxu0
        %1605 = vmatprep.mubr.bf16.mxu0 0
        %1606 = vmatmul.mubr.bf16.gmra.mrb[0].mxu0 %v1169
        %v1607 = vpop.f32.mrb[0].mxu0
        %v1608 = vadd.f32 0.0, %v1607
        %v1609 = vpop.f32.mrb[0].mxu0
        %v1610 = vpop.f32.mrb[0].mxu0
        %v1611 = vadd.f32 0.0, %v1610
        %v1612 = vpop.f32.mrb[0].mxu0
        %1613 = vmatprep.mubr.bf16.mxu0 0
        %1614 = vmatmul.mubr.bf16.gmra.mrb[0].mxu0 %v1171
        %v1615 = vpop.f32.mrb[0].mxu0
        %v1616 = vadd.f32 0.0, %v1615
        %v1617 = vpop.f32.mrb[0].mxu0
        %v1618 = vpop.f32.mrb[0].mxu0
        %v1619 = vadd.f32 0.0, %v1618
        %v1620 = vpop.f32.mrb[0].mxu0
        %1621 = vdwg.mxu0
        %v1638 = vunpack.c.l.b16 %v1172
        %v1639 = vunpack.c.l.b16 %v1173
        %v1640 = vunpack.c.l.b16 %v1174
        %v1641 = vunpack.c.l.b16 %v1175
        %v1642 = vunpack.c.l.b16 %v1176
        %v1643 = vunpack.c.l.b16 %v1177
        %v1644 = vunpack.c.l.b16 %v1178
        %v1645 = vunpack.c.l.b16 %v1179
        %v1646 = vunpack.c.l.b16 %v1180
        %v1647 = vunpack.c.l.b16 %v1181
        %v1648 = vunpack.c.l.b16 %v1182
        %v1649 = vunpack.c.l.b16 %v1183
        %v1650 = vunpack.c.l.b16 %v1184
        %v1651 = vunpack.c.l.b16 %v1185
        %v1652 = vunpack.c.l.b16 %v1186
        %v1653 = vunpack.c.l.b16 %v1187
        %v1654 = vpack.c.b16 %v1639, %v1638
        %v1655 = vpack.c.b16 %v1641, %v1640
        %v1656 = vpack.c.b16 %v1643, %v1642
        %v1657 = vpack.c.b16 %v1645, %v1644
        %v1658 = vpack.c.b16 %v1647, %v1646
        %v1659 = vpack.c.b16 %v1649, %v1648
        %v1660 = vpack.c.b16 %v1651, %v1650
        %v1661 = vpack.c.b16 %v1653, %v1652
        %1670 = vmatprep.subr.bf16.mxu0 0
        %1671 = vmatpush1.bf16.msra.mxu0 %v1654
        %1672 = vmatprep.subr.bf16.mxu0 0
        %1673 = vmatpush1.bf16.msra.mxu0 %v1655
        %1674 = vmatprep.subr.bf16.mxu0 0
        %1675 = vmatpush1.bf16.msra.mxu0 %v1656
        %1676 = vmatprep.subr.bf16.mxu0 0
        %1677 = vmatpush1.bf16.msra.mxu0 %v1657
        %1678 = vmatprep.subr.bf16.mxu0 0
        %1679 = vmatpush1.bf16.msra.mxu0 %v1658
        %1680 = vmatprep.subr.bf16.mxu0 0
        %1681 = vmatpush1.bf16.msra.mxu0 %v1659
        %1682 = vmatprep.subr.bf16.mxu0 0
        %1683 = vmatpush1.bf16.msra.mxu0 %v1660
        %1684 = vmatprep.subr.bf16.mxu0 0
        %1685 = vmatpush1.bf16.msra.mxu0 %v1661
        %1686 = vmatprep.subr.bf16.mxu0 0
        %1687 = vmatpush1.bf16.msra.mxu0 0
        %1688 = vmatprep.subr.bf16.mxu0 0
        %1689 = vmatpush1.bf16.msra.mxu0 0
        %1690 = vmatprep.subr.bf16.mxu0 0
        %1691 = vmatpush1.bf16.msra.mxu0 0
        %1692 = vmatprep.subr.bf16.mxu0 0
        %1693 = vmatpush1.bf16.msra.mxu0 0
        %1694 = vmatprep.subr.bf16.mxu0 0
        %1695 = vmatpush1.bf16.msra.mxu0 0
        %1696 = vmatprep.subr.bf16.mxu0 0
        %1697 = vmatpush1.bf16.msra.mxu0 0
        %1698 = vmatprep.subr.bf16.mxu0 0
        %1699 = vmatpush1.bf16.msra.mxu0 0
        %1700 = vmatprep.subr.bf16.mxu0 0
        %1701 = vmatpush1.bf16.msra.mxu0 0
        %1702 = vmatprep.mubr.bf16.mxu0 0
        %1703 = vmatmul.mubr.bf16.gmra.mrb[0].mxu0 %v1200
        %v1704 = vpop.f32.mrb[0].mxu0
        %v1705 = vadd.f32 %v1496, %v1704
        %v1706 = vpop.f32.mrb[0].mxu0
        %v1707 = vpop.f32.mrb[0].mxu0
        %v1708 = vadd.f32 %v1499, %v1707
        %v1709 = vpop.f32.mrb[0].mxu0
        %1710 = vmatprep.mubr.bf16.mxu0 0
        %1711 = vmatmul.mubr.bf16.gmra.mrb[0].mxu0 %v1212
        %v1712 = vpop.f32.mrb[0].mxu0
        %v1713 = vadd.f32 %v1504, %v1712
        %v1714 = vpop.f32.mrb[0].mxu0
        %v1715 = vpop.f32.mrb[0].mxu0
        %v1716 = vadd.f32 %v1507, %v1715
        %v1717 = vpop.f32.mrb[0].mxu0
        %1718 = vmatprep.mubr.bf16.mxu0 0
        %1719 = vmatmul.mubr.bf16.gmra.mrb[0].mxu0 %v1224
        %v1720 = vpop.f32.mrb[0].mxu0
        %v1721 = vadd.f32 %v1512, %v1720
        %v1722 = vpop.f32.mrb[0].mxu0
        %v1723 = vpop.f32.mrb[0].mxu0
        %v1724 = vadd.f32 %v1515, %v1723
        %v1725 = vpop.f32.mrb[0].mxu0
        %1726 = vmatprep.mubr.bf16.mxu0 0
        %1727 = vmatmul.mubr.bf16.gmra.mrb[0].mxu0 %v1236
        %v1728 = vpop.f32.mrb[0].mxu0
        %v1729 = vadd.f32 %v1520, %v1728
        %v1730 = vpop.f32.mrb[0].mxu0
        %v1731 = vpop.f32.mrb[0].mxu0
        %v1732 = vadd.f32 %v1523, %v1731
        %v1733 = vpop.f32.mrb[0].mxu0
        %1734 = vmatprep.mubr.bf16.mxu0 0
        %1735 = vmatmul.mubr.bf16.gmra.mrb[0].mxu0 %v1248
        %v1736 = vpop.f32.mrb[0].mxu0
        %v1737 = vadd.f32 %v1528, %v1736
        %v1738 = vpop.f32.mrb[0].mxu0
        %v1739 = vpop.f32.mrb[0].mxu0
        %v1740 = vadd.f32 %v1531, %v1739
        %v1741 = vpop.f32.mrb[0].mxu0
        %1742 = vmatprep.mubr.bf16.mxu0 0
        %1743 = vmatmul.mubr.bf16.gmra.mrb[0].mxu0 %v1260
        %v1744 = vpop.f32.mrb[0].mxu0
        %v1745 = vadd.f32 %v1536, %v1744
        %v1746 = vpop.f32.mrb[0].mxu0
        %v1747 = vpop.f32.mrb[0].mxu0
        %v1748 = vadd.f32 %v1539, %v1747
        %v1749 = vpop.f32.mrb[0].mxu0
        %1750 = vmatprep.mubr.bf16.mxu0 0
        %1751 = vmatmul.mubr.bf16.gmra.mrb[0].mxu0 %v1272
        %v1752 = vpop.f32.mrb[0].mxu0
        %v1753 = vadd.f32 %v1544, %v1752
        %v1754 = vpop.f32.mrb[0].mxu0
        %v1755 = vpop.f32.mrb[0].mxu0
        %v1756 = vadd.f32 %v1547, %v1755
        %v1757 = vpop.f32.mrb[0].mxu0
        %1758 = vmatprep.mubr.bf16.mxu0 0
        %1759 = vmatmul.mubr.bf16.gmra.mrb[0].mxu0 %v1284
        %v1760 = vpop.f32.mrb[0].mxu0
        %v1761 = vadd.f32 %v1552, %v1760
        %v1762 = vpop.f32.mrb[0].mxu0
        %v1763 = vpop.f32.mrb[0].mxu0
        %v1764 = vadd.f32 %v1555, %v1763
        %v1765 = vpop.f32.mrb[0].mxu0
        %1766 = vmatprep.mubr.bf16.mxu0 0
        %1767 = vmatmul.mubr.bf16.gmra.mrb[0].mxu0 %v1296
        %v1768 = vpop.f32.mrb[0].mxu0
        %v1769 = vadd.f32 %v1560, %v1768
        %v1770 = vpop.f32.mrb[0].mxu0
        %v1771 = vpop.f32.mrb[0].mxu0
        %v1772 = vadd.f32 %v1563, %v1771
        %v1773 = vpop.f32.mrb[0].mxu0
        %1774 = vmatprep.mubr.bf16.mxu0 0
        %1775 = vmatmul.mubr.bf16.gmra.mrb[0].mxu0 %v1308
        %v1776 = vpop.f32.mrb[0].mxu0
        %v1777 = vadd.f32 %v1568, %v1776
        %v1778 = vpop.f32.mrb[0].mxu0
        %v1779 = vpop.f32.mrb[0].mxu0
        %v1780 = vadd.f32 %v1571, %v1779
        %v1781 = vpop.f32.mrb[0].mxu0
        %1782 = vmatprep.mubr.bf16.mxu0 0
        %1783 = vmatmul.mubr.bf16.gmra.mrb[0].mxu0 %v1320
        %v1784 = vpop.f32.mrb[0].mxu0
        %v1785 = vadd.f32 %v1576, %v1784
        %v1786 = vpop.f32.mrb[0].mxu0
        %v1787 = vpop.f32.mrb[0].mxu0
        %v1788 = vadd.f32 %v1579, %v1787
        %v1789 = vpop.f32.mrb[0].mxu0
        %1790 = vmatprep.mubr.bf16.mxu0 0
        %1791 = vmatmul.mubr.bf16.gmra.mrb[0].mxu0 %v1332
        %v1792 = vpop.f32.mrb[0].mxu0
        %v1793 = vadd.f32 %v1584, %v1792
        %v1794 = vpop.f32.mrb[0].mxu0
        %v1795 = vpop.f32.mrb[0].mxu0
        %v1796 = vadd.f32 %v1587, %v1795
        %v1797 = vpop.f32.mrb[0].mxu0
        %1798 = vmatprep.mubr.bf16.mxu0 0
        %1799 = vmatmul.mubr.bf16.gmra.mrb[0].mxu0 %v1344
        %v1800 = vpop.f32.mrb[0].mxu0
        %v1801 = vadd.f32 %v1592, %v1800
        %v1802 = vpop.f32.mrb[0].mxu0
        %v1803 = vpop.f32.mrb[0].mxu0
        %v1804 = vadd.f32 %v1595, %v1803
        %v1805 = vpop.f32.mrb[0].mxu0
        %1806 = vmatprep.mubr.bf16.mxu0 0
        %1807 = vmatmul.mubr.bf16.gmra.mrb[0].mxu0 %v1356
        %v1808 = vpop.f32.mrb[0].mxu0
        %v1809 = vadd.f32 %v1600, %v1808
        %v1810 = vpop.f32.mrb[0].mxu0
        %v1811 = vpop.f32.mrb[0].mxu0
        %v1812 = vadd.f32 %v1603, %v1811
        %v1813 = vpop.f32.mrb[0].mxu0
        %1814 = vmatprep.mubr.bf16.mxu0 0
        %1815 = vmatmul.mubr.bf16.gmra.mrb[0].mxu0 %v1368
        %v1816 = vpop.f32.mrb[0].mxu0
        %v1817 = vadd.f32 %v1608, %v1816
        %v1818 = vpop.f32.mrb[0].mxu0
        %v1819 = vpop.f32.mrb[0].mxu0
        %v1820 = vadd.f32 %v1611, %v1819
        %v1821 = vpop.f32.mrb[0].mxu0
        %1822 = vmatprep.mubr.bf16.mxu0 0
        %1823 = vmatmul.mubr.bf16.gmra.mrb[0].mxu0 %v1380
        %v1824 = vpop.f32.mrb[0].mxu0
        %v1825 = vadd.f32 %v1616, %v1824
        %v1826 = vpop.f32.mrb[0].mxu0
        %v1827 = vpop.f32.mrb[0].mxu0
        %v1828 = vadd.f32 %v1619, %v1827
        %v1829 = vpop.f32.mrb[0].mxu0
        %1830 = vdwg.mxu0
        %v1831 = vld [vmem:[#allocation2 + $0x8] sm:$0xff]
        %v1832 = vld [vmem:[#allocation2 + $0x10] sm:$0x1]
        %v1833 = vld [vmem:[#allocation2 + $0x20] sm:$0xff]
        %v1834 = vld [vmem:[#allocation2 + $0x28] sm:$0x1]
        %v1835 = vld [vmem:[#allocation2 + $0x38] sm:$0xff]
        %v1836 = vld [vmem:[#allocation2 + $0x40] sm:$0x1]
        %v1837 = vld [vmem:[#allocation2 + $0x50] sm:$0xff]
        %v1838 = vld [vmem:[#allocation2 + $0x58] sm:$0x1]
        %v1839 = vld [vmem:[#allocation2 + $0x68] sm:$0xff]
        %v1840 = vld [vmem:[#allocation2 + $0x70] sm:$0x1]
        %v1841 = vld [vmem:[#allocation2 + $0x80] sm:$0xff]
        %v1842 = vld [vmem:[#allocation2 + $0x88] sm:$0x1]
        %v1843 = vld [vmem:[#allocation2 + $0x98] sm:$0xff]
        %v1844 = vld [vmem:[#allocation2 + $0xa0] sm:$0x1]
        %v1845 = vld [vmem:[#allocation2 + $0xb0] sm:$0xff]
        %v1846 = vld [vmem:[#allocation2 + $0xb8] sm:$0x1]
        %v1847 = vld [vmem:[#allocation2 + $0xc8] sm:$0xff]
        %v1848 = vld [vmem:[#allocation2 + $0xd0] sm:$0x1]
        %v1849 = vld [vmem:[#allocation2 + $0xe0] sm:$0xff]
        %v1850 = vld [vmem:[#allocation2 + $0xe8] sm:$0x1]
        %v1851 = vld [vmem:[#allocation2 + $0xf8] sm:$0xff]
        %v1852 = vld [vmem:[#allocation2 + $0x100] sm:$0x1]
        %v1853 = vld [vmem:[#allocation2 + $0x110] sm:$0xff]
        %v1854 = vld [vmem:[#allocation2 + $0x118] sm:$0x1]
        %v1855 = vld [vmem:[#allocation2 + $0x128] sm:$0xff]
        %v1856 = vld [vmem:[#allocation2 + $0x130] sm:$0x1]
        %v1857 = vld [vmem:[#allocation2 + $0x140] sm:$0xff]
        %v1858 = vld [vmem:[#allocation2 + $0x148] sm:$0x1]
        %v1859 = vld [vmem:[#allocation2 + $0x158] sm:$0xff]
        %v1860 = vld [vmem:[#allocation2 + $0x160] sm:$0x1]
        %v1861 = vld [vmem:[#allocation2 + $0x170] sm:$0xff]
        %v1862 = vld [vmem:[#allocation2 + $0x178] sm:$0x1]
        %v1863 = vld [vmem:[#allocation9 + $0x80] sm:$0xf]
        %v1864 = vld [vmem:[#allocation9 + $0x84] sm:$0xf]
        %v1865 = vld [vmem:[#allocation9 + $0x88] sm:$0xf]
        %v1866 = vld [vmem:[#allocation9 + $0x8c] sm:$0xf]
        %v1867 = vld [vmem:[#allocation9 + $0x90] sm:$0xf]
        %v1868 = vld [vmem:[#allocation9 + $0x94] sm:$0xf]
        %v1869 = vld [vmem:[#allocation9 + $0x98] sm:$0xf]
        %v1870 = vld [vmem:[#allocation9 + $0x9c] sm:$0xf]
        %v1871 = vld [vmem:[#allocation9 + $0xa0] sm:$0xf]
        %v1872 = vld [vmem:[#allocation9 + $0xa4] sm:$0xf]
        %v1873 = vld [vmem:[#allocation9 + $0xa8] sm:$0xf]
        %v1874 = vld [vmem:[#allocation9 + $0xac] sm:$0xf]
        %v1875 = vld [vmem:[#allocation9 + $0xb0] sm:$0xf]
        %v1876 = vld [vmem:[#allocation9 + $0xb4] sm:$0xf]
        %v1877 = vld [vmem:[#allocation9 + $0xb8] sm:$0xf]
        %v1878 = vld [vmem:[#allocation9 + $0xbc] sm:$0xf]
        %vm1879 = vsmask.f32 7424
        %v1881 = vshrl.u32 %v1831, 16
        %v1883 = vshll.u32 %v1831, 16
        %v1885 = vrot.slane %v1883, 1
        %v1886 = vor.u32 %v1881, %v1885
        %v1888 = vshll.u32 %v1832, 16
        %v1890 = vrot.slane %v1888, 1
        %v1891 = vsel %vm1879, %v1886, %v1890
        %v1893 = vshrl.u32 %v1833, 16
        %v1895 = vshll.u32 %v1833, 16
        %v1897 = vrot.slane %v1895, 1
        %v1898 = vor.u32 %v1893, %v1897
        %v1900 = vshll.u32 %v1834, 16
        %v1902 = vrot.slane %v1900, 1
        %v1903 = vsel %vm1879, %v1898, %v1902
        %v1905 = vshrl.u32 %v1835, 16
        %v1907 = vshll.u32 %v1835, 16
        %v1909 = vrot.slane %v1907, 1
        %v1910 = vor.u32 %v1905, %v1909
        %v1912 = vshll.u32 %v1836, 16
        %v1914 = vrot.slane %v1912, 1
        %v1915 = vsel %vm1879, %v1910, %v1914
        %v1917 = vshrl.u32 %v1837, 16
        %v1919 = vshll.u32 %v1837, 16
        %v1921 = vrot.slane %v1919, 1
        %v1922 = vor.u32 %v1917, %v1921
        %v1924 = vshll.u32 %v1838, 16
        %v1926 = vrot.slane %v1924, 1
        %v1927 = vsel %vm1879, %v1922, %v1926
        %v1929 = vshrl.u32 %v1839, 16
        %v1931 = vshll.u32 %v1839, 16
        %v1933 = vrot.slane %v1931, 1
        %v1934 = vor.u32 %v1929, %v1933
        %v1936 = vshll.u32 %v1840, 16
        %v1938 = vrot.slane %v1936, 1
        %v1939 = vsel %vm1879, %v1934, %v1938
        %v1941 = vshrl.u32 %v1841, 16
        %v1943 = vshll.u32 %v1841, 16
        %v1945 = vrot.slane %v1943, 1
        %v1946 = vor.u32 %v1941, %v1945
        %v1948 = vshll.u32 %v1842, 16
        %v1950 = vrot.slane %v1948, 1
        %v1951 = vsel %vm1879, %v1946, %v1950
        %v1953 = vshrl.u32 %v1843, 16
        %v1955 = vshll.u32 %v1843, 16
        %v1957 = vrot.slane %v1955, 1
        %v1958 = vor.u32 %v1953, %v1957
        %v1960 = vshll.u32 %v1844, 16
        %v1962 = vrot.slane %v1960, 1
        %v1963 = vsel %vm1879, %v1958, %v1962
        %v1965 = vshrl.u32 %v1845, 16
        %v1967 = vshll.u32 %v1845, 16
        %v1969 = vrot.slane %v1967, 1
        %v1970 = vor.u32 %v1965, %v1969
        %v1972 = vshll.u32 %v1846, 16
        %v1974 = vrot.slane %v1972, 1
        %v1975 = vsel %vm1879, %v1970, %v1974
        %v1977 = vshrl.u32 %v1847, 16
        %v1979 = vshll.u32 %v1847, 16
        %v1981 = vrot.slane %v1979, 1
        %v1982 = vor.u32 %v1977, %v1981
        %v1984 = vshll.u32 %v1848, 16
        %v1986 = vrot.slane %v1984, 1
        %v1987 = vsel %vm1879, %v1982, %v1986
        %v1989 = vshrl.u32 %v1849, 16
        %v1991 = vshll.u32 %v1849, 16
        %v1993 = vrot.slane %v1991, 1
        %v1994 = vor.u32 %v1989, %v1993
        %v1996 = vshll.u32 %v1850, 16
        %v1998 = vrot.slane %v1996, 1
        %v1999 = vsel %vm1879, %v1994, %v1998
        %v2001 = vshrl.u32 %v1851, 16
        %v2003 = vshll.u32 %v1851, 16
        %v2005 = vrot.slane %v2003, 1
        %v2006 = vor.u32 %v2001, %v2005
        %v2008 = vshll.u32 %v1852, 16
        %v2010 = vrot.slane %v2008, 1
        %v2011 = vsel %vm1879, %v2006, %v2010
        %v2013 = vshrl.u32 %v1853, 16
        %v2015 = vshll.u32 %v1853, 16
        %v2017 = vrot.slane %v2015, 1
        %v2018 = vor.u32 %v2013, %v2017
        %v2020 = vshll.u32 %v1854, 16
        %v2022 = vrot.slane %v2020, 1
        %v2023 = vsel %vm1879, %v2018, %v2022
        %v2025 = vshrl.u32 %v1855, 16
        %v2027 = vshll.u32 %v1855, 16
        %v2029 = vrot.slane %v2027, 1
        %v2030 = vor.u32 %v2025, %v2029
        %v2032 = vshll.u32 %v1856, 16
        %v2034 = vrot.slane %v2032, 1
        %v2035 = vsel %vm1879, %v2030, %v2034
        %v2037 = vshrl.u32 %v1857, 16
        %v2039 = vshll.u32 %v1857, 16
        %v2041 = vrot.slane %v2039, 1
        %v2042 = vor.u32 %v2037, %v2041
        %v2044 = vshll.u32 %v1858, 16
        %v2046 = vrot.slane %v2044, 1
        %v2047 = vsel %vm1879, %v2042, %v2046
        %v2049 = vshrl.u32 %v1859, 16
        %v2051 = vshll.u32 %v1859, 16
        %v2053 = vrot.slane %v2051, 1
        %v2054 = vor.u32 %v2049, %v2053
        %v2056 = vshll.u32 %v1860, 16
        %v2058 = vrot.slane %v2056, 1
        %v2059 = vsel %vm1879, %v2054, %v2058
        %v2061 = vshrl.u32 %v1861, 16
        %v2063 = vshll.u32 %v1861, 16
        %v2065 = vrot.slane %v2063, 1
        %v2066 = vor.u32 %v2061, %v2065
        %v2068 = vshll.u32 %v1862, 16
        %v2070 = vrot.slane %v2068, 1
        %v2071 = vsel %vm1879, %v2066, %v2070
        %v2104 = vunpack.c.l.b16 %v1863
        %v2105 = vunpack.c.l.b16 %v1864
        %v2106 = vunpack.c.l.b16 %v1865
        %v2107 = vunpack.c.l.b16 %v1866
        %v2108 = vunpack.c.l.b16 %v1867
        %v2109 = vunpack.c.l.b16 %v1868
        %v2110 = vunpack.c.l.b16 %v1869
        %v2111 = vunpack.c.l.b16 %v1870
        %v2112 = vunpack.c.l.b16 %v1871
        %v2113 = vunpack.c.l.b16 %v1872
        %v2114 = vunpack.c.l.b16 %v1873
        %v2115 = vunpack.c.l.b16 %v1874
        %v2116 = vunpack.c.l.b16 %v1875
        %v2117 = vunpack.c.l.b16 %v1876
        %v2118 = vunpack.c.l.b16 %v1877
        %v2119 = vunpack.c.l.b16 %v1878
        %v2120 = vpack.c.b16 %v2105, %v2104
        %v2121 = vpack.c.b16 %v2107, %v2106
        %v2122 = vpack.c.b16 %v2109, %v2108
        %v2123 = vpack.c.b16 %v2111, %v2110
        %v2124 = vpack.c.b16 %v2113, %v2112
        %v2125 = vpack.c.b16 %v2115, %v2114
        %v2126 = vpack.c.b16 %v2117, %v2116
        %v2127 = vpack.c.b16 %v2119, %v2118
        %2136 = vmatprep.subr.bf16.mxu0 0
        %2137 = vmatpush1.bf16.msra.mxu0 %v2120
        %2138 = vmatprep.subr.bf16.mxu0 0
        %2139 = vmatpush1.bf16.msra.mxu0 %v2121
        %2140 = vmatprep.subr.bf16.mxu0 0
        %2141 = vmatpush1.bf16.msra.mxu0 %v2122
        %2142 = vmatprep.subr.bf16.mxu0 0
        %2143 = vmatpush1.bf16.msra.mxu0 %v2123
        %2144 = vmatprep.subr.bf16.mxu0 0
        %2145 = vmatpush1.bf16.msra.mxu0 %v2124
        %2146 = vmatprep.subr.bf16.mxu0 0
        %2147 = vmatpush1.bf16.msra.mxu0 %v2125
        %2148 = vmatprep.subr.bf16.mxu0 0
        %2149 = vmatpush1.bf16.msra.mxu0 %v2126
        %2150 = vmatprep.subr.bf16.mxu0 0
        %2151 = vmatpush1.bf16.msra.mxu0 %v2127
        %2152 = vmatprep.subr.bf16.mxu0 0
        %2153 = vmatpush1.bf16.msra.mxu0 0
        %2154 = vmatprep.subr.bf16.mxu0 0
        %2155 = vmatpush1.bf16.msra.mxu0 0
        %2156 = vmatprep.subr.bf16.mxu0 0
        %2157 = vmatpush1.bf16.msra.mxu0 0
        %2158 = vmatprep.subr.bf16.mxu0 0
        %2159 = vmatpush1.bf16.msra.mxu0 0
        %2160 = vmatprep.subr.bf16.mxu0 0
        %2161 = vmatpush1.bf16.msra.mxu0 0
        %2162 = vmatprep.subr.bf16.mxu0 0
        %2163 = vmatpush1.bf16.msra.mxu0 0
        %2164 = vmatprep.subr.bf16.mxu0 0
        %2165 = vmatpush1.bf16.msra.mxu0 0
        %2166 = vmatprep.subr.bf16.mxu0 0
        %2167 = vmatpush1.bf16.msra.mxu0 0
        %2168 = vmatprep.mubr.bf16.mxu0 0
        %2169 = vmatmul.mubr.bf16.gmra.mrb[0].mxu0 %v1891
        %v2170 = vpop.f32.mrb[0].mxu0
        %v2171 = vadd.f32 0.0, %v2170
        %v2172 = vpop.f32.mrb[0].mxu0
        %v2173 = vpop.f32.mrb[0].mxu0
        %v2174 = vadd.f32 0.0, %v2173
        %v2175 = vpop.f32.mrb[0].mxu0
        %2176 = vmatprep.mubr.bf16.mxu0 0
        %2177 = vmatmul.mubr.bf16.gmra.mrb[0].mxu0 %v1903
        %v2178 = vpop.f32.mrb[0].mxu0
        %v2179 = vadd.f32 0.0, %v2178
        %v2180 = vpop.f32.mrb[0].mxu0
        %v2181 = vpop.f32.mrb[0].mxu0
        %v2182 = vadd.f32 0.0, %v2181
        %v2183 = vpop.f32.mrb[0].mxu0
        %2184 = vmatprep.mubr.bf16.mxu0 0
        %2185 = vmatmul.mubr.bf16.gmra.mrb[0].mxu0 %v1915
        %v2186 = vpop.f32.mrb[0].mxu0
        %v2187 = vadd.f32 0.0, %v2186
        %v2188 = vpop.f32.mrb[0].mxu0
        %v2189 = vpop.f32.mrb[0].mxu0
        %v2190 = vadd.f32 0.0, %v2189
        %v2191 = vpop.f32.mrb[0].mxu0
        %2192 = vmatprep.mubr.bf16.mxu0 0
        %2193 = vmatmul.mubr.bf16.gmra.mrb[0].mxu0 %v1927
        %v2194 = vpop.f32.mrb[0].mxu0
        %v2195 = vadd.f32 0.0, %v2194
        %v2196 = vpop.f32.mrb[0].mxu0
        %v2197 = vpop.f32.mrb[0].mxu0
        %v2198 = vadd.f32 0.0, %v2197
        %v2199 = vpop.f32.mrb[0].mxu0
        %2200 = vmatprep.mubr.bf16.mxu0 0
        %2201 = vmatmul.mubr.bf16.gmra.mrb[0].mxu0 %v1939
        %v2202 = vpop.f32.mrb[0].mxu0
        %v2203 = vadd.f32 0.0, %v2202
        %v2204 = vpop.f32.mrb[0].mxu0
        %v2205 = vpop.f32.mrb[0].mxu0
        %v2206 = vadd.f32 0.0, %v2205
        %v2207 = vpop.f32.mrb[0].mxu0
        %2208 = vmatprep.mubr.bf16.mxu0 0
        %2209 = vmatmul.mubr.bf16.gmra.mrb[0].mxu0 %v1951
        %v2210 = vpop.f32.mrb[0].mxu0
        %v2211 = vadd.f32 0.0, %v2210
        %v2212 = vpop.f32.mrb[0].mxu0
        %v2213 = vpop.f32.mrb[0].mxu0
        %v2214 = vadd.f32 0.0, %v2213
        %v2215 = vpop.f32.mrb[0].mxu0
        %2216 = vmatprep.mubr.bf16.mxu0 0
        %2217 = vmatmul.mubr.bf16.gmra.mrb[0].mxu0 %v1963
        %v2218 = vpop.f32.mrb[0].mxu0
        %v2219 = vadd.f32 0.0, %v2218
        %v2220 = vpop.f32.mrb[0].mxu0
        %v2221 = vpop.f32.mrb[0].mxu0
        %v2222 = vadd.f32 0.0, %v2221
        %v2223 = vpop.f32.mrb[0].mxu0
        %2224 = vmatprep.mubr.bf16.mxu0 0
        %2225 = vmatmul.mubr.bf16.gmra.mrb[0].mxu0 %v1975
        %v2226 = vpop.f32.mrb[0].mxu0
        %v2227 = vadd.f32 0.0, %v2226
        %v2228 = vpop.f32.mrb[0].mxu0
        %v2229 = vpop.f32.mrb[0].mxu0
        %v2230 = vadd.f32 0.0, %v2229
        %v2231 = vpop.f32.mrb[0].mxu0
        %2232 = vmatprep.mubr.bf16.mxu0 0
        %2233 = vmatmul.mubr.bf16.gmra.mrb[0].mxu0 %v1987
        %v2234 = vpop.f32.mrb[0].mxu0
        %v2235 = vadd.f32 0.0, %v2234
        %v2236 = vpop.f32.mrb[0].mxu0
        %v2237 = vpop.f32.mrb[0].mxu0
        %v2238 = vadd.f32 0.0, %v2237
        %v2239 = vpop.f32.mrb[0].mxu0
        %2240 = vmatprep.mubr.bf16.mxu0 0
        %2241 = vmatmul.mubr.bf16.gmra.mrb[0].mxu0 %v1999
        %v2242 = vpop.f32.mrb[0].mxu0
        %v2243 = vadd.f32 0.0, %v2242
        %v2244 = vpop.f32.mrb[0].mxu0
        %v2245 = vpop.f32.mrb[0].mxu0
        %v2246 = vadd.f32 0.0, %v2245
        %v2247 = vpop.f32.mrb[0].mxu0
        %2248 = vmatprep.mubr.bf16.mxu0 0
        %2249 = vmatmul.mubr.bf16.gmra.mrb[0].mxu0 %v2011
        %v2250 = vpop.f32.mrb[0].mxu0
        %v2251 = vadd.f32 0.0, %v2250
        %v2252 = vpop.f32.mrb[0].mxu0
        %v2253 = vpop.f32.mrb[0].mxu0
        %v2254 = vadd.f32 0.0, %v2253
        %v2255 = vpop.f32.mrb[0].mxu0
        %2256 = vmatprep.mubr.bf16.mxu0 0
        %2257 = vmatmul.mubr.bf16.gmra.mrb[0].mxu0 %v2023
        %v2258 = vpop.f32.mrb[0].mxu0
        %v2259 = vadd.f32 0.0, %v2258
        %v2260 = vpop.f32.mrb[0].mxu0
        %v2261 = vpop.f32.mrb[0].mxu0
        %v2262 = vadd.f32 0.0, %v2261
        %v2263 = vpop.f32.mrb[0].mxu0
        %2264 = vmatprep.mubr.bf16.mxu0 0
        %2265 = vmatmul.mubr.bf16.gmra.mrb[0].mxu0 %v2035
        %v2266 = vpop.f32.mrb[0].mxu0
        %v2267 = vadd.f32 0.0, %v2266
        %v2268 = vpop.f32.mrb[0].mxu0
        %v2269 = vpop.f32.mrb[0].mxu0
        %v2270 = vadd.f32 0.0, %v2269
        %v2271 = vpop.f32.mrb[0].mxu0
        %2272 = vmatprep.mubr.bf16.mxu0 0
        %2273 = vmatmul.mubr.bf16.gmra.mrb[0].mxu0 %v2047
        %v2274 = vpop.f32.mrb[0].mxu0
        %v2275 = vadd.f32 0.0, %v2274
        %v2276 = vpop.f32.mrb[0].mxu0
        %v2277 = vpop.f32.mrb[0].mxu0
        %v2278 = vadd.f32 0.0, %v2277
        %v2279 = vpop.f32.mrb[0].mxu0
        %2280 = vmatprep.mubr.bf16.mxu0 0
        %2281 = vmatmul.mubr.bf16.gmra.mrb[0].mxu0 %v2059
        %v2282 = vpop.f32.mrb[0].mxu0
        %v2283 = vadd.f32 0.0, %v2282
        %v2284 = vpop.f32.mrb[0].mxu0
        %v2285 = vpop.f32.mrb[0].mxu0
        %v2286 = vadd.f32 0.0, %v2285
        %v2287 = vpop.f32.mrb[0].mxu0
        %2288 = vmatprep.mubr.bf16.mxu0 0
        %2289 = vmatmul.mubr.bf16.gmra.mrb[0].mxu0 %v2071
        %v2290 = vpop.f32.mrb[0].mxu0
        %v2291 = vadd.f32 0.0, %v2290
        %v2292 = vpop.f32.mrb[0].mxu0
        %v2293 = vpop.f32.mrb[0].mxu0
        %v2294 = vadd.f32 0.0, %v2293
        %v2295 = vpop.f32.mrb[0].mxu0
        %2296 = vdwg.mxu0
        %v2297 = vadd.f32 %v1705, %v2171
        %v2298 = vadd.f32 %v1708, %v2174
        %v2299 = vadd.f32 %v1713, %v2179
        %v2300 = vadd.f32 %v1716, %v2182
        %v2301 = vadd.f32 %v1721, %v2187
        %v2302 = vadd.f32 %v1724, %v2190
        %v2303 = vadd.f32 %v1729, %v2195
        %v2304 = vadd.f32 %v1732, %v2198
        %v2305 = vadd.f32 %v1737, %v2203
        %v2306 = vadd.f32 %v1740, %v2206
        %v2307 = vadd.f32 %v1745, %v2211
        %v2308 = vadd.f32 %v1748, %v2214
        %v2309 = vadd.f32 %v1753, %v2219
        %v2310 = vadd.f32 %v1756, %v2222
        %v2311 = vadd.f32 %v1761, %v2227
        %v2312 = vadd.f32 %v1764, %v2230
        %v2313 = vadd.f32 %v1769, %v2235
        %v2314 = vadd.f32 %v1772, %v2238
        %v2315 = vadd.f32 %v1777, %v2243
        %v2316 = vadd.f32 %v1780, %v2246
        %v2317 = vadd.f32 %v1785, %v2251
        %v2318 = vadd.f32 %v1788, %v2254
        %v2319 = vadd.f32 %v1793, %v2259
        %v2320 = vadd.f32 %v1796, %v2262
        %v2321 = vadd.f32 %v1801, %v2267
        %v2322 = vadd.f32 %v1804, %v2270
        %v2323 = vadd.f32 %v1809, %v2275
        %v2324 = vadd.f32 %v1812, %v2278
        %v2325 = vadd.f32 %v1817, %v2283
        %v2326 = vadd.f32 %v1820, %v2286
        %v2327 = vadd.f32 %v1825, %v2291
        %v2328 = vadd.f32 %v1828, %v2294
        %v2329 = vld [vmem:[%s1120] sm:$0x80]
        %v2330 = vld [vmem:[%s1120 + $0x8] sm:$0xff]
        %v2331 = vld [vmem:[%s1120 + $0x18] sm:$0x80]
        %v2332 = vld [vmem:[%s1120 + $0x20] sm:$0xff]
        %v2333 = vld [vmem:[%s1120 + $0x30] sm:$0x80]
        %v2334 = vld [vmem:[%s1120 + $0x38] sm:$0xff]
        %v2335 = vld [vmem:[%s1120 + $0x48] sm:$0x80]
        %v2336 = vld [vmem:[%s1120 + $0x50] sm:$0xff]
        %v2337 = vld [vmem:[%s1120 + $0x60] sm:$0x80]
        %v2338 = vld [vmem:[%s1120 + $0x68] sm:$0xff]
        %v2339 = vld [vmem:[%s1120 + $0x78] sm:$0x80]
        %v2340 = vld [vmem:[%s1120 + $0x80] sm:$0xff]
        %v2341 = vld [vmem:[%s1120 + $0x90] sm:$0x80]
        %v2342 = vld [vmem:[%s1120 + $0x98] sm:$0xff]
        %v2343 = vld [vmem:[%s1120 + $0xa8] sm:$0x80]
        %v2344 = vld [vmem:[%s1120 + $0xb0] sm:$0xff]
        %v2345 = vld [vmem:[%s1120 + $0xc0] sm:$0x80]
        %v2346 = vld [vmem:[%s1120 + $0xc8] sm:$0xff]
        %v2347 = vld [vmem:[%s1120 + $0xd8] sm:$0x80]
        %v2348 = vld [vmem:[%s1120 + $0xe0] sm:$0xff]
        %v2349 = vld [vmem:[%s1120 + $0xf0] sm:$0x80]
        %v2350 = vld [vmem:[%s1120 + $0xf8] sm:$0xff]
        %v2351 = vld [vmem:[%s1120 + $0x108] sm:$0x80]
        %v2352 = vld [vmem:[%s1120 + $0x110] sm:$0xff]
        %v2353 = vld [vmem:[%s1120 + $0x120] sm:$0x80]
        %v2354 = vld [vmem:[%s1120 + $0x128] sm:$0xff]
        %v2355 = vld [vmem:[%s1120 + $0x138] sm:$0x80]
        %v2356 = vld [vmem:[%s1120 + $0x140] sm:$0xff]
        %v2357 = vld [vmem:[%s1120 + $0x150] sm:$0x80]
        %v2358 = vld [vmem:[%s1120 + $0x158] sm:$0xff]
        %v2359 = vld [vmem:[%s1120 + $0x168] sm:$0x80]
        %v2360 = vld [vmem:[%s1120 + $0x170] sm:$0xff]
        %v2361 = vld [vmem:[#allocation9 + $0xc0] sm:$0xf]
        %v2362 = vld [vmem:[#allocation9 + $0xc4] sm:$0xf]
        %v2363 = vld [vmem:[#allocation9 + $0xc8] sm:$0xf]
        %v2364 = vld [vmem:[#allocation9 + $0xcc] sm:$0xf]
        %v2365 = vld [vmem:[#allocation9 + $0xd0] sm:$0xf]
        %v2366 = vld [vmem:[#allocation9 + $0xd4] sm:$0xf]
        %v2367 = vld [vmem:[#allocation9 + $0xd8] sm:$0xf]
        %v2368 = vld [vmem:[#allocation9 + $0xdc] sm:$0xf]
        %v2369 = vld [vmem:[#allocation9 + $0xe0] sm:$0xf]
        %v2370 = vld [vmem:[#allocation9 + $0xe4] sm:$0xf]
        %v2371 = vld [vmem:[#allocation9 + $0xe8] sm:$0xf]
        %v2372 = vld [vmem:[#allocation9 + $0xec] sm:$0xf]
        %v2373 = vld [vmem:[#allocation9 + $0xf0] sm:$0xf]
        %v2374 = vld [vmem:[#allocation9 + $0xf4] sm:$0xf]
        %v2375 = vld [vmem:[#allocation9 + $0xf8] sm:$0xf]
        %v2376 = vld [vmem:[#allocation9 + $0xfc] sm:$0xf]
        %v2378 = vshrl.u32 %v2329, 16
        %v2380 = vrot.slane %v2378, 7
        %v2382 = vshrl.u32 %v2330, 16
        %v2384 = vrot.slane %v2382, 7
        %v2385 = vshll.u32 %v2330, 16
        %v2387 = vor.u32 %v2384, %v2385
        %v2388 = vsel %vm1188, %v2380, %v2387
        %v2390 = vshrl.u32 %v2331, 16
        %v2392 = vrot.slane %v2390, 7
        %v2394 = vshrl.u32 %v2332, 16
        %v2396 = vrot.slane %v2394, 7
        %v2397 = vshll.u32 %v2332, 16
        %v2399 = vor.u32 %v2396, %v2397
        %v2400 = vsel %vm1188, %v2392, %v2399
        %v2402 = vshrl.u32 %v2333, 16
        %v2404 = vrot.slane %v2402, 7
        %v2406 = vshrl.u32 %v2334, 16
        %v2408 = vrot.slane %v2406, 7
        %v2409 = vshll.u32 %v2334, 16
        %v2411 = vor.u32 %v2408, %v2409
        %v2412 = vsel %vm1188, %v2404, %v2411
        %v2414 = vshrl.u32 %v2335, 16
        %v2416 = vrot.slane %v2414, 7
        %v2418 = vshrl.u32 %v2336, 16
        %v2420 = vrot.slane %v2418, 7
        %v2421 = vshll.u32 %v2336, 16
        %v2423 = vor.u32 %v2420, %v2421
        %v2424 = vsel %vm1188, %v2416, %v2423
        %v2426 = vshrl.u32 %v2337, 16
        %v2428 = vrot.slane %v2426, 7
        %v2430 = vshrl.u32 %v2338, 16
        %v2432 = vrot.slane %v2430, 7
        %v2433 = vshll.u32 %v2338, 16
        %v2435 = vor.u32 %v2432, %v2433
        %v2436 = vsel %vm1188, %v2428, %v2435
        %v2438 = vshrl.u32 %v2339, 16
        %v2440 = vrot.slane %v2438, 7
        %v2442 = vshrl.u32 %v2340, 16
        %v2444 = vrot.slane %v2442, 7
        %v2445 = vshll.u32 %v2340, 16
        %v2447 = vor.u32 %v2444, %v2445
        %v2448 = vsel %vm1188, %v2440, %v2447
        %v2450 = vshrl.u32 %v2341, 16
        %v2452 = vrot.slane %v2450, 7
        %v2454 = vshrl.u32 %v2342, 16
        %v2456 = vrot.slane %v2454, 7
        %v2457 = vshll.u32 %v2342, 16
        %v2459 = vor.u32 %v2456, %v2457
        %v2460 = vsel %vm1188, %v2452, %v2459
        %v2462 = vshrl.u32 %v2343, 16
        %v2464 = vrot.slane %v2462, 7
        %v2466 = vshrl.u32 %v2344, 16
        %v2468 = vrot.slane %v2466, 7
        %v2469 = vshll.u32 %v2344, 16
        %v2471 = vor.u32 %v2468, %v2469
        %v2472 = vsel %vm1188, %v2464, %v2471
        %v2474 = vshrl.u32 %v2345, 16
        %v2476 = vrot.slane %v2474, 7
        %v2478 = vshrl.u32 %v2346, 16
        %v2480 = vrot.slane %v2478, 7
        %v2481 = vshll.u32 %v2346, 16
        %v2483 = vor.u32 %v2480, %v2481
        %v2484 = vsel %vm1188, %v2476, %v2483
        %v2486 = vshrl.u32 %v2347, 16
        %v2488 = vrot.slane %v2486, 7
        %v2490 = vshrl.u32 %v2348, 16
        %v2492 = vrot.slane %v2490, 7
        %v2493 = vshll.u32 %v2348, 16
        %v2495 = vor.u32 %v2492, %v2493
        %v2496 = vsel %vm1188, %v2488, %v2495
        %v2498 = vshrl.u32 %v2349, 16
        %v2500 = vrot.slane %v2498, 7
        %v2502 = vshrl.u32 %v2350, 16
        %v2504 = vrot.slane %v2502, 7
        %v2505 = vshll.u32 %v2350, 16
        %v2507 = vor.u32 %v2504, %v2505
        %v2508 = vsel %vm1188, %v2500, %v2507
        %v2510 = vshrl.u32 %v2351, 16
        %v2512 = vrot.slane %v2510, 7
        %v2514 = vshrl.u32 %v2352, 16
        %v2516 = vrot.slane %v2514, 7
        %v2517 = vshll.u32 %v2352, 16
        %v2519 = vor.u32 %v2516, %v2517
        %v2520 = vsel %vm1188, %v2512, %v2519
        %v2522 = vshrl.u32 %v2353, 16
        %v2524 = vrot.slane %v2522, 7
        %v2526 = vshrl.u32 %v2354, 16
        %v2528 = vrot.slane %v2526, 7
        %v2529 = vshll.u32 %v2354, 16
        %v2531 = vor.u32 %v2528, %v2529
        %v2532 = vsel %vm1188, %v2524, %v2531
        %v2534 = vshrl.u32 %v2355, 16
        %v2536 = vrot.slane %v2534, 7
        %v2538 = vshrl.u32 %v2356, 16
        %v2540 = vrot.slane %v2538, 7
        %v2541 = vshll.u32 %v2356, 16
        %v2543 = vor.u32 %v2540, %v2541
        %v2544 = vsel %vm1188, %v2536, %v2543
        %v2546 = vshrl.u32 %v2357, 16
        %v2548 = vrot.slane %v2546, 7
        %v2550 = vshrl.u32 %v2358, 16
        %v2552 = vrot.slane %v2550, 7
        %v2553 = vshll.u32 %v2358, 16
        %v2555 = vor.u32 %v2552, %v2553
        %v2556 = vsel %vm1188, %v2548, %v2555
        %v2558 = vshrl.u32 %v2359, 16
        %v2560 = vrot.slane %v2558, 7
        %v2562 = vshrl.u32 %v2360, 16
        %v2564 = vrot.slane %v2562, 7
        %v2565 = vshll.u32 %v2360, 16
        %v2567 = vor.u32 %v2564, %v2565
        %v2568 = vsel %vm1188, %v2560, %v2567
        %v2601 = vunpack.c.l.b16 %v2361
        %v2602 = vunpack.c.l.b16 %v2362
        %v2603 = vunpack.c.l.b16 %v2363
        %v2604 = vunpack.c.l.b16 %v2364
        %v2605 = vunpack.c.l.b16 %v2365
        %v2606 = vunpack.c.l.b16 %v2366
        %v2607 = vunpack.c.l.b16 %v2367
        %v2608 = vunpack.c.l.b16 %v2368
        %v2609 = vunpack.c.l.b16 %v2369
        %v2610 = vunpack.c.l.b16 %v2370
        %v2611 = vunpack.c.l.b16 %v2371
        %v2612 = vunpack.c.l.b16 %v2372
        %v2613 = vunpack.c.l.b16 %v2373
        %v2614 = vunpack.c.l.b16 %v2374
        %v2615 = vunpack.c.l.b16 %v2375
        %v2616 = vunpack.c.l.b16 %v2376
        %v2617 = vpack.c.b16 %v2602, %v2601
        %v2618 = vpack.c.b16 %v2604, %v2603
        %v2619 = vpack.c.b16 %v2606, %v2605
        %v2620 = vpack.c.b16 %v2608, %v2607
        %v2621 = vpack.c.b16 %v2610, %v2609
        %v2622 = vpack.c.b16 %v2612, %v2611
        %v2623 = vpack.c.b16 %v2614, %v2613
        %v2624 = vpack.c.b16 %v2616, %v2615
        %2633 = vmatprep.subr.bf16.mxu0 0
        %2634 = vmatpush1.bf16.msra.mxu0 %v2617
        %2635 = vmatprep.subr.bf16.mxu0 0
        %2636 = vmatpush1.bf16.msra.mxu0 %v2618
        %2637 = vmatprep.subr.bf16.mxu0 0
        %2638 = vmatpush1.bf16.msra.mxu0 %v2619
        %2639 = vmatprep.subr.bf16.mxu0 0
        %2640 = vmatpush1.bf16.msra.mxu0 %v2620
        %2641 = vmatprep.subr.bf16.mxu0 0
        %2642 = vmatpush1.bf16.msra.mxu0 %v2621
        %2643 = vmatprep.subr.bf16.mxu0 0
        %2644 = vmatpush1.bf16.msra.mxu0 %v2622
        %2645 = vmatprep.subr.bf16.mxu0 0
        %2646 = vmatpush1.bf16.msra.mxu0 %v2623
        %2647 = vmatprep.subr.bf16.mxu0 0
        %2648 = vmatpush1.bf16.msra.mxu0 %v2624
        %2649 = vmatprep.subr.bf16.mxu0 0
        %2650 = vmatpush1.bf16.msra.mxu0 0
        %2651 = vmatprep.subr.bf16.mxu0 0
        %2652 = vmatpush1.bf16.msra.mxu0 0
        %2653 = vmatprep.subr.bf16.mxu0 0
        %2654 = vmatpush1.bf16.msra.mxu0 0
        %2655 = vmatprep.subr.bf16.mxu0 0
        %2656 = vmatpush1.bf16.msra.mxu0 0
        %2657 = vmatprep.subr.bf16.mxu0 0
        %2658 = vmatpush1.bf16.msra.mxu0 0
        %2659 = vmatprep.subr.bf16.mxu0 0
        %2660 = vmatpush1.bf16.msra.mxu0 0
        %2661 = vmatprep.subr.bf16.mxu0 0
        %2662 = vmatpush1.bf16.msra.mxu0 0
        %2663 = vmatprep.subr.bf16.mxu0 0
        %2664 = vmatpush1.bf16.msra.mxu0 0
        %2665 = vmatprep.mubr.bf16.mxu0 0
        %2666 = vmatmul.mubr.bf16.gmra.mrb[0].mxu0 %v2388
        %v2667 = vpop.f32.mrb[0].mxu0
        %v2668 = vadd.f32 0.0, %v2667
        %v2669 = vpop.f32.mrb[0].mxu0
        %v2670 = vpop.f32.mrb[0].mxu0
        %v2671 = vadd.f32 0.0, %v2670
        %v2672 = vpop.f32.mrb[0].mxu0
        %2673 = vmatprep.mubr.bf16.mxu0 0
        %2674 = vmatmul.mubr.bf16.gmra.mrb[0].mxu0 %v2400
        %v2675 = vpop.f32.mrb[0].mxu0
        %v2676 = vadd.f32 0.0, %v2675
        %v2677 = vpop.f32.mrb[0].mxu0
        %v2678 = vpop.f32.mrb[0].mxu0
        %v2679 = vadd.f32 0.0, %v2678
        %v2680 = vpop.f32.mrb[0].mxu0
        %2681 = vmatprep.mubr.bf16.mxu0 0
        %2682 = vmatmul.mubr.bf16.gmra.mrb[0].mxu0 %v2412
        %v2683 = vpop.f32.mrb[0].mxu0
        %v2684 = vadd.f32 0.0, %v2683
        %v2685 = vpop.f32.mrb[0].mxu0
        %v2686 = vpop.f32.mrb[0].mxu0
        %v2687 = vadd.f32 0.0, %v2686
        %v2688 = vpop.f32.mrb[0].mxu0
        %2689 = vmatprep.mubr.bf16.mxu0 0
        %2690 = vmatmul.mubr.bf16.gmra.mrb[0].mxu0 %v2424
        %v2691 = vpop.f32.mrb[0].mxu0
        %v2692 = vadd.f32 0.0, %v2691
        %v2693 = vpop.f32.mrb[0].mxu0
        %v2694 = vpop.f32.mrb[0].mxu0
        %v2695 = vadd.f32 0.0, %v2694
        %v2696 = vpop.f32.mrb[0].mxu0
        %2697 = vmatprep.mubr.bf16.mxu0 0
        %2698 = vmatmul.mubr.bf16.gmra.mrb[0].mxu0 %v2436
        %v2699 = vpop.f32.mrb[0].mxu0
        %v2700 = vadd.f32 0.0, %v2699
        %v2701 = vpop.f32.mrb[0].mxu0
        %v2702 = vpop.f32.mrb[0].mxu0
        %v2703 = vadd.f32 0.0, %v2702
        %v2704 = vpop.f32.mrb[0].mxu0
        %2705 = vmatprep.mubr.bf16.mxu0 0
        %2706 = vmatmul.mubr.bf16.gmra.mrb[0].mxu0 %v2448
        %v2707 = vpop.f32.mrb[0].mxu0
        %v2708 = vadd.f32 0.0, %v2707
        %v2709 = vpop.f32.mrb[0].mxu0
        %v2710 = vpop.f32.mrb[0].mxu0
        %v2711 = vadd.f32 0.0, %v2710
        %v2712 = vpop.f32.mrb[0].mxu0
        %2713 = vmatprep.mubr.bf16.mxu0 0
        %2714 = vmatmul.mubr.bf16.gmra.mrb[0].mxu0 %v2460
        %v2715 = vpop.f32.mrb[0].mxu0
        %v2716 = vadd.f32 0.0, %v2715
        %v2717 = vpop.f32.mrb[0].mxu0
        %v2718 = vpop.f32.mrb[0].mxu0
        %v2719 = vadd.f32 0.0, %v2718
        %v2720 = vpop.f32.mrb[0].mxu0
        %2721 = vmatprep.mubr.bf16.mxu0 0
        %2722 = vmatmul.mubr.bf16.gmra.mrb[0].mxu0 %v2472
        %v2723 = vpop.f32.mrb[0].mxu0
        %v2724 = vadd.f32 0.0, %v2723
        %v2725 = vpop.f32.mrb[0].mxu0
        %v2726 = vpop.f32.mrb[0].mxu0
        %v2727 = vadd.f32 0.0, %v2726
        %v2728 = vpop.f32.mrb[0].mxu0
        %2729 = vmatprep.mubr.bf16.mxu0 0
        %2730 = vmatmul.mubr.bf16.gmra.mrb[0].mxu0 %v2484
        %v2731 = vpop.f32.mrb[0].mxu0
        %v2732 = vadd.f32 0.0, %v2731
        %v2733 = vpop.f32.mrb[0].mxu0
        %v2734 = vpop.f32.mrb[0].mxu0
        %v2735 = vadd.f32 0.0, %v2734
        %v2736 = vpop.f32.mrb[0].mxu0
        %2737 = vmatprep.mubr.bf16.mxu0 0
        %2738 = vmatmul.mubr.bf16.gmra.mrb[0].mxu0 %v2496
        %v2739 = vpop.f32.mrb[0].mxu0
        %v2740 = vadd.f32 0.0, %v2739
        %v2741 = vpop.f32.mrb[0].mxu0
        %v2742 = vpop.f32.mrb[0].mxu0
        %v2743 = vadd.f32 0.0, %v2742
        %v2744 = vpop.f32.mrb[0].mxu0
        %2745 = vmatprep.mubr.bf16.mxu0 0
        %2746 = vmatmul.mubr.bf16.gmra.mrb[0].mxu0 %v2508
        %v2747 = vpop.f32.mrb[0].mxu0
        %v2748 = vadd.f32 0.0, %v2747
        %v2749 = vpop.f32.mrb[0].mxu0
        %v2750 = vpop.f32.mrb[0].mxu0
        %v2751 = vadd.f32 0.0, %v2750
        %v2752 = vpop.f32.mrb[0].mxu0
        %2753 = vmatprep.mubr.bf16.mxu0 0
        %2754 = vmatmul.mubr.bf16.gmra.mrb[0].mxu0 %v2520
        %v2755 = vpop.f32.mrb[0].mxu0
        %v2756 = vadd.f32 0.0, %v2755
        %v2757 = vpop.f32.mrb[0].mxu0
        %v2758 = vpop.f32.mrb[0].mxu0
        %v2759 = vadd.f32 0.0, %v2758
        %v2760 = vpop.f32.mrb[0].mxu0
        %2761 = vmatprep.mubr.bf16.mxu0 0
        %2762 = vmatmul.mubr.bf16.gmra.mrb[0].mxu0 %v2532
        %v2763 = vpop.f32.mrb[0].mxu0
        %v2764 = vadd.f32 0.0, %v2763
        %v2765 = vpop.f32.mrb[0].mxu0
        %v2766 = vpop.f32.mrb[0].mxu0
        %v2767 = vadd.f32 0.0, %v2766
        %v2768 = vpop.f32.mrb[0].mxu0
        %2769 = vmatprep.mubr.bf16.mxu0 0
        %2770 = vmatmul.mubr.bf16.gmra.mrb[0].mxu0 %v2544
        %v2771 = vpop.f32.mrb[0].mxu0
        %v2772 = vadd.f32 0.0, %v2771
        %v2773 = vpop.f32.mrb[0].mxu0
        %v2774 = vpop.f32.mrb[0].mxu0
        %v2775 = vadd.f32 0.0, %v2774
        %v2776 = vpop.f32.mrb[0].mxu0
        %2777 = vmatprep.mubr.bf16.mxu0 0
        %2778 = vmatmul.mubr.bf16.gmra.mrb[0].mxu0 %v2556
        %v2779 = vpop.f32.mrb[0].mxu0
        %v2780 = vadd.f32 0.0, %v2779
        %v2781 = vpop.f32.mrb[0].mxu0
        %v2782 = vpop.f32.mrb[0].mxu0
        %v2783 = vadd.f32 0.0, %v2782
        %v2784 = vpop.f32.mrb[0].mxu0
        %2785 = vmatprep.mubr.bf16.mxu0 0
        %2786 = vmatmul.mubr.bf16.gmra.mrb[0].mxu0 %v2568
        %v2787 = vpop.f32.mrb[0].mxu0
        %v2788 = vadd.f32 0.0, %v2787
        %v2789 = vpop.f32.mrb[0].mxu0
        %v2790 = vpop.f32.mrb[0].mxu0
        %v2791 = vadd.f32 0.0, %v2790
        %v2792 = vpop.f32.mrb[0].mxu0
        %2793 = vdwg.mxu0
        %v2794 = vadd.f32 %v2297, %v2668
        %v2795 = vadd.f32 %v2298, %v2671
        %v2796 = vadd.f32 %v2299, %v2676
        %v2797 = vadd.f32 %v2300, %v2679
        %v2798 = vadd.f32 %v2301, %v2684
        %v2799 = vadd.f32 %v2302, %v2687
        %v2800 = vadd.f32 %v2303, %v2692
        %v2801 = vadd.f32 %v2304, %v2695
        %v2802 = vadd.f32 %v2305, %v2700
        %v2803 = vadd.f32 %v2306, %v2703
        %v2804 = vadd.f32 %v2307, %v2708
        %v2805 = vadd.f32 %v2308, %v2711
        %v2806 = vadd.f32 %v2309, %v2716
        %v2807 = vadd.f32 %v2310, %v2719
        %v2808 = vadd.f32 %v2311, %v2724
        %v2809 = vadd.f32 %v2312, %v2727
        %v2810 = vadd.f32 %v2313, %v2732
        %v2811 = vadd.f32 %v2314, %v2735
        %v2812 = vadd.f32 %v2315, %v2740
        %v2813 = vadd.f32 %v2316, %v2743
        %v2814 = vadd.f32 %v2317, %v2748
        %v2815 = vadd.f32 %v2318, %v2751
        %v2816 = vadd.f32 %v2319, %v2756
        %v2817 = vadd.f32 %v2320, %v2759
        %v2818 = vadd.f32 %v2321, %v2764
        %v2819 = vadd.f32 %v2322, %v2767
        %v2820 = vadd.f32 %v2323, %v2772
        %v2821 = vadd.f32 %v2324, %v2775
        %v2822 = vadd.f32 %v2325, %v2780
        %v2823 = vadd.f32 %v2326, %v2783
        %v2824 = vadd.f32 %v2327, %v2788
        %v2825 = vadd.f32 %v2328, %v2791
        %v2826 = vld [vmem:[#allocation9 + $0x100] sm:$0xf]
        %v2827 = vld [vmem:[#allocation9 + $0x104] sm:$0xf]
        %v2828 = vld [vmem:[#allocation9 + $0x108] sm:$0xf]
        %v2829 = vld [vmem:[#allocation9 + $0x10c] sm:$0xf]
        %v2830 = vld [vmem:[#allocation9 + $0x110] sm:$0xf]
        %v2831 = vld [vmem:[#allocation9 + $0x114] sm:$0xf]
        %v2832 = vld [vmem:[#allocation9 + $0x118] sm:$0xf]
        %v2833 = vld [vmem:[#allocation9 + $0x11c] sm:$0xf]
        %v2834 = vld [vmem:[#allocation9 + $0x120] sm:$0xf]
        %v2835 = vld [vmem:[#allocation9 + $0x124] sm:$0xf]
        %v2836 = vld [vmem:[#allocation9 + $0x128] sm:$0xf]
        %v2837 = vld [vmem:[#allocation9 + $0x12c] sm:$0xf]
        %v2838 = vld [vmem:[#allocation9 + $0x130] sm:$0xf]
        %v2839 = vld [vmem:[#allocation9 + $0x134] sm:$0xf]
        %v2840 = vld [vmem:[#allocation9 + $0x138] sm:$0xf]
        %v2841 = vld [vmem:[#allocation9 + $0x13c] sm:$0xf]
        %v2858 = vunpack.c.l.b16 %v2826
        %v2859 = vunpack.c.l.b16 %v2827
        %v2860 = vunpack.c.l.b16 %v2828
        %v2861 = vunpack.c.l.b16 %v2829
        %v2862 = vunpack.c.l.b16 %v2830
        %v2863 = vunpack.c.l.b16 %v2831
        %v2864 = vunpack.c.l.b16 %v2832
        %v2865 = vunpack.c.l.b16 %v2833
        %v2866 = vunpack.c.l.b16 %v2834
        %v2867 = vunpack.c.l.b16 %v2835
        %v2868 = vunpack.c.l.b16 %v2836
        %v2869 = vunpack.c.l.b16 %v2837
        %v2870 = vunpack.c.l.b16 %v2838
        %v2871 = vunpack.c.l.b16 %v2839
        %v2872 = vunpack.c.l.b16 %v2840
        %v2873 = vunpack.c.l.b16 %v2841
        %v2874 = vpack.c.b16 %v2859, %v2858
        %v2875 = vpack.c.b16 %v2861, %v2860
        %v2876 = vpack.c.b16 %v2863, %v2862
        %v2877 = vpack.c.b16 %v2865, %v2864
        %v2878 = vpack.c.b16 %v2867, %v2866
        %v2879 = vpack.c.b16 %v2869, %v2868
        %v2880 = vpack.c.b16 %v2871, %v2870
        %v2881 = vpack.c.b16 %v2873, %v2872
        %2890 = vmatprep.subr.bf16.mxu0 0
        %2891 = vmatpush1.bf16.msra.mxu0 %v2874
        %2892 = vmatprep.subr.bf16.mxu0 0
        %2893 = vmatpush1.bf16.msra.mxu0 %v2875
        %2894 = vmatprep.subr.bf16.mxu0 0
        %2895 = vmatpush1.bf16.msra.mxu0 %v2876
        %2896 = vmatprep.subr.bf16.mxu0 0
        %2897 = vmatpush1.bf16.msra.mxu0 %v2877
        %2898 = vmatprep.subr.bf16.mxu0 0
        %2899 = vmatpush1.bf16.msra.mxu0 %v2878
        %2900 = vmatprep.subr.bf16.mxu0 0
        %2901 = vmatpush1.bf16.msra.mxu0 %v2879
        %2902 = vmatprep.subr.bf16.mxu0 0
        %2903 = vmatpush1.bf16.msra.mxu0 %v2880
        %2904 = vmatprep.subr.bf16.mxu0 0
        %2905 = vmatpush1.bf16.msra.mxu0 %v2881
        %2906 = vmatprep.subr.bf16.mxu0 0
        %2907 = vmatpush1.bf16.msra.mxu0 0
        %2908 = vmatprep.subr.bf16.mxu0 0
        %2909 = vmatpush1.bf16.msra.mxu0 0
        %2910 = vmatprep.subr.bf16.mxu0 0
        %2911 = vmatpush1.bf16.msra.mxu0 0
        %2912 = vmatprep.subr.bf16.mxu0 0
        %2913 = vmatpush1.bf16.msra.mxu0 0
        %2914 = vmatprep.subr.bf16.mxu0 0
        %2915 = vmatpush1.bf16.msra.mxu0 0
        %2916 = vmatprep.subr.bf16.mxu0 0
        %2917 = vmatpush1.bf16.msra.mxu0 0
        %2918 = vmatprep.subr.bf16.mxu0 0
        %2919 = vmatpush1.bf16.msra.mxu0 0
        %2920 = vmatprep.subr.bf16.mxu0 0
        %2921 = vmatpush1.bf16.msra.mxu0 0
        %2922 = vmatprep.mubr.bf16.mxu0 0
        %2923 = vmatmul.mubr.bf16.gmra.mrb[0].mxu0 %v2330
        %v2924 = vpop.f32.mrb[0].mxu0
        %v2925 = vadd.f32 0.0, %v2924
        %v2926 = vpop.f32.mrb[0].mxu0
        %v2927 = vpop.f32.mrb[0].mxu0
        %v2928 = vadd.f32 0.0, %v2927
        %v2929 = vpop.f32.mrb[0].mxu0
        %2930 = vmatprep.mubr.bf16.mxu0 0
        %2931 = vmatmul.mubr.bf16.gmra.mrb[0].mxu0 %v2332
        %v2932 = vpop.f32.mrb[0].mxu0
        %v2933 = vadd.f32 0.0, %v2932
        %v2934 = vpop.f32.mrb[0].mxu0
        %v2935 = vpop.f32.mrb[0].mxu0
        %v2936 = vadd.f32 0.0, %v2935
        %v2937 = vpop.f32.mrb[0].mxu0
        %2938 = vmatprep.mubr.bf16.mxu0 0
        %2939 = vmatmul.mubr.bf16.gmra.mrb[0].mxu0 %v2334
        %v2940 = vpop.f32.mrb[0].mxu0
        %v2941 = vadd.f32 0.0, %v2940
        %v2942 = vpop.f32.mrb[0].mxu0
        %v2943 = vpop.f32.mrb[0].mxu0
        %v2944 = vadd.f32 0.0, %v2943
        %v2945 = vpop.f32.mrb[0].mxu0
        %2946 = vmatprep.mubr.bf16.mxu0 0
        %2947 = vmatmul.mubr.bf16.gmra.mrb[0].mxu0 %v2336
        %v2948 = vpop.f32.mrb[0].mxu0
        %v2949 = vadd.f32 0.0, %v2948
        %v2950 = vpop.f32.mrb[0].mxu0
        %v2951 = vpop.f32.mrb[0].mxu0
        %v2952 = vadd.f32 0.0, %v2951
        %v2953 = vpop.f32.mrb[0].mxu0
        %2954 = vmatprep.mubr.bf16.mxu0 0
        %2955 = vmatmul.mubr.bf16.gmra.mrb[0].mxu0 %v2338
        %v2956 = vpop.f32.mrb[0].mxu0
        %v2957 = vadd.f32 0.0, %v2956
        %v2958 = vpop.f32.mrb[0].mxu0
        %v2959 = vpop.f32.mrb[0].mxu0
        %v2960 = vadd.f32 0.0, %v2959
        %v2961 = vpop.f32.mrb[0].mxu0
        %2962 = vmatprep.mubr.bf16.mxu0 0
        %2963 = vmatmul.mubr.bf16.gmra.mrb[0].mxu0 %v2340
        %v2964 = vpop.f32.mrb[0].mxu0
        %v2965 = vadd.f32 0.0, %v2964
        %v2966 = vpop.f32.mrb[0].mxu0
        %v2967 = vpop.f32.mrb[0].mxu0
        %v2968 = vadd.f32 0.0, %v2967
        %v2969 = vpop.f32.mrb[0].mxu0
        %2970 = vmatprep.mubr.bf16.mxu0 0
        %2971 = vmatmul.mubr.bf16.gmra.mrb[0].mxu0 %v2342
        %v2972 = vpop.f32.mrb[0].mxu0
        %v2973 = vadd.f32 0.0, %v2972
        %v2974 = vpop.f32.mrb[0].mxu0
        %v2975 = vpop.f32.mrb[0].mxu0
        %v2976 = vadd.f32 0.0, %v2975
        %v2977 = vpop.f32.mrb[0].mxu0
        %2978 = vmatprep.mubr.bf16.mxu0 0
        %2979 = vmatmul.mubr.bf16.gmra.mrb[0].mxu0 %v2344
        %v2980 = vpop.f32.mrb[0].mxu0
        %v2981 = vadd.f32 0.0, %v2980
        %v2982 = vpop.f32.mrb[0].mxu0
        %v2983 = vpop.f32.mrb[0].mxu0
        %v2984 = vadd.f32 0.0, %v2983
        %v2985 = vpop.f32.mrb[0].mxu0
        %2986 = vmatprep.mubr.bf16.mxu0 0
        %2987 = vmatmul.mubr.bf16.gmra.mrb[0].mxu0 %v2346
        %v2988 = vpop.f32.mrb[0].mxu0
        %v2989 = vadd.f32 0.0, %v2988
        %v2990 = vpop.f32.mrb[0].mxu0
        %v2991 = vpop.f32.mrb[0].mxu0
        %v2992 = vadd.f32 0.0, %v2991
        %v2993 = vpop.f32.mrb[0].mxu0
        %2994 = vmatprep.mubr.bf16.mxu0 0
        %2995 = vmatmul.mubr.bf16.gmra.mrb[0].mxu0 %v2348
        %v2996 = vpop.f32.mrb[0].mxu0
        %v2997 = vadd.f32 0.0, %v2996
        %v2998 = vpop.f32.mrb[0].mxu0
        %v2999 = vpop.f32.mrb[0].mxu0
        %v3000 = vadd.f32 0.0, %v2999
        %v3001 = vpop.f32.mrb[0].mxu0
        %3002 = vmatprep.mubr.bf16.mxu0 0
        %3003 = vmatmul.mubr.bf16.gmra.mrb[0].mxu0 %v2350
        %v3004 = vpop.f32.mrb[0].mxu0
        %v3005 = vadd.f32 0.0, %v3004
        %v3006 = vpop.f32.mrb[0].mxu0
        %v3007 = vpop.f32.mrb[0].mxu0
        %v3008 = vadd.f32 0.0, %v3007
        %v3009 = vpop.f32.mrb[0].mxu0
        %3010 = vmatprep.mubr.bf16.mxu0 0
        %3011 = vmatmul.mubr.bf16.gmra.mrb[0].mxu0 %v2352
        %v3012 = vpop.f32.mrb[0].mxu0
        %v3013 = vadd.f32 0.0, %v3012
        %v3014 = vpop.f32.mrb[0].mxu0
        %v3015 = vpop.f32.mrb[0].mxu0
        %v3016 = vadd.f32 0.0, %v3015
        %v3017 = vpop.f32.mrb[0].mxu0
        %3018 = vmatprep.mubr.bf16.mxu0 0
        %3019 = vmatmul.mubr.bf16.gmra.mrb[0].mxu0 %v2354
        %v3020 = vpop.f32.mrb[0].mxu0
        %v3021 = vadd.f32 0.0, %v3020
        %v3022 = vpop.f32.mrb[0].mxu0
        %v3023 = vpop.f32.mrb[0].mxu0
        %v3024 = vadd.f32 0.0, %v3023
        %v3025 = vpop.f32.mrb[0].mxu0
        %3026 = vmatprep.mubr.bf16.mxu0 0
        %3027 = vmatmul.mubr.bf16.gmra.mrb[0].mxu0 %v2356
        %v3028 = vpop.f32.mrb[0].mxu0
        %v3029 = vadd.f32 0.0, %v3028
        %v3030 = vpop.f32.mrb[0].mxu0
        %v3031 = vpop.f32.mrb[0].mxu0
        %v3032 = vadd.f32 0.0, %v3031
        %v3033 = vpop.f32.mrb[0].mxu0
        %3034 = vmatprep.mubr.bf16.mxu0 0
        %3035 = vmatmul.mubr.bf16.gmra.mrb[0].mxu0 %v2358
        %v3036 = vpop.f32.mrb[0].mxu0
        %v3037 = vadd.f32 0.0, %v3036
        %v3038 = vpop.f32.mrb[0].mxu0
        %v3039 = vpop.f32.mrb[0].mxu0
        %v3040 = vadd.f32 0.0, %v3039
        %v3041 = vpop.f32.mrb[0].mxu0
        %3042 = vmatprep.mubr.bf16.mxu0 0
        %3043 = vmatmul.mubr.bf16.gmra.mrb[0].mxu0 %v2360
        %v3044 = vpop.f32.mrb[0].mxu0
        %v3045 = vadd.f32 0.0, %v3044
        %v3046 = vpop.f32.mrb[0].mxu0
        %v3047 = vpop.f32.mrb[0].mxu0
        %v3048 = vadd.f32 0.0, %v3047
        %v3049 = vpop.f32.mrb[0].mxu0
        %3050 = vdwg.mxu0
        %v3051 = vadd.f32 %v2794, %v2925
        %v3052 = vadd.f32 %v2795, %v2928
        %v3053 = vadd.f32 %v2796, %v2933
        %v3054 = vadd.f32 %v2797, %v2936
        %v3055 = vadd.f32 %v2798, %v2941
        %v3056 = vadd.f32 %v2799, %v2944
        %v3057 = vadd.f32 %v2800, %v2949
        %v3058 = vadd.f32 %v2801, %v2952
        %v3059 = vadd.f32 %v2802, %v2957
        %v3060 = vadd.f32 %v2803, %v2960
        %v3061 = vadd.f32 %v2804, %v2965
        %v3062 = vadd.f32 %v2805, %v2968
        %v3063 = vadd.f32 %v2806, %v2973
        %v3064 = vadd.f32 %v2807, %v2976
        %v3065 = vadd.f32 %v2808, %v2981
        %v3066 = vadd.f32 %v2809, %v2984
        %v3067 = vadd.f32 %v2810, %v2989
        %v3068 = vadd.f32 %v2811, %v2992
        %v3069 = vadd.f32 %v2812, %v2997
        %v3070 = vadd.f32 %v2813, %v3000
        %v3071 = vadd.f32 %v2814, %v3005
        %v3072 = vadd.f32 %v2815, %v3008
        %v3073 = vadd.f32 %v2816, %v3013
        %v3074 = vadd.f32 %v2817, %v3016
        %v3075 = vadd.f32 %v2818, %v3021
        %v3076 = vadd.f32 %v2819, %v3024
        %v3077 = vadd.f32 %v2820, %v3029
        %v3078 = vadd.f32 %v2821, %v3032
        %v3079 = vadd.f32 %v2822, %v3037
        %v3080 = vadd.f32 %v2823, %v3040
        %v3081 = vadd.f32 %v2824, %v3045
        %v3082 = vadd.f32 %v2825, %v3048
        %v3083 = vld [vmem:[%s1120 + $0x8] sm:$0xff]
        %v3084 = vld [vmem:[%s1120 + $0x10] sm:$0x1]
        %v3085 = vld [vmem:[%s1120 + $0x20] sm:$0xff]
        %v3086 = vld [vmem:[%s1120 + $0x28] sm:$0x1]
        %v3087 = vld [vmem:[%s1120 + $0x38] sm:$0xff]
        %v3088 = vld [vmem:[%s1120 + $0x40] sm:$0x1]
        %v3089 = vld [vmem:[%s1120 + $0x50] sm:$0xff]
        %v3090 = vld [vmem:[%s1120 + $0x58] sm:$0x1]
        %v3091 = vld [vmem:[%s1120 + $0x68] sm:$0xff]
        %v3092 = vld [vmem:[%s1120 + $0x70] sm:$0x1]
        %v3093 = vld [vmem:[%s1120 + $0x80] sm:$0xff]
        %v3094 = vld [vmem:[%s1120 + $0x88] sm:$0x1]
        %v3095 = vld [vmem:[%s1120 + $0x98] sm:$0xff]
        %v3096 = vld [vmem:[%s1120 + $0xa0] sm:$0x1]
        %v3097 = vld [vmem:[%s1120 + $0xb0] sm:$0xff]
        %v3098 = vld [vmem:[%s1120 + $0xb8] sm:$0x1]
        %v3099 = vld [vmem:[%s1120 + $0xc8] sm:$0xff]
        %v3100 = vld [vmem:[%s1120 + $0xd0] sm:$0x1]
        %v3101 = vld [vmem:[%s1120 + $0xe0] sm:$0xff]
        %v3102 = vld [vmem:[%s1120 + $0xe8] sm:$0x1]
        %v3103 = vld [vmem:[%s1120 + $0xf8] sm:$0xff]
        %v3104 = vld [vmem:[%s1120 + $0x100] sm:$0x1]
        %v3105 = vld [vmem:[%s1120 + $0x110] sm:$0xff]
        %v3106 = vld [vmem:[%s1120 + $0x118] sm:$0x1]
        %v3107 = vld [vmem:[%s1120 + $0x128] sm:$0xff]
        %v3108 = vld [vmem:[%s1120 + $0x130] sm:$0x1]
        %v3109 = vld [vmem:[%s1120 + $0x140] sm:$0xff]
        %v3110 = vld [vmem:[%s1120 + $0x148] sm:$0x1]
        %v3111 = vld [vmem:[%s1120 + $0x158] sm:$0xff]
        %v3112 = vld [vmem:[%s1120 + $0x160] sm:$0x1]
        %v3113 = vld [vmem:[%s1120 + $0x170] sm:$0xff]
        %v3114 = vld [vmem:[%s1120 + $0x178] sm:$0x1]
        %v3115 = vld [vmem:[#allocation9 + $0x140] sm:$0xf]
        %v3116 = vld [vmem:[#allocation9 + $0x144] sm:$0xf]
        %v3117 = vld [vmem:[#allocation9 + $0x148] sm:$0xf]
        %v3118 = vld [vmem:[#allocation9 + $0x14c] sm:$0xf]
        %v3119 = vld [vmem:[#allocation9 + $0x150] sm:$0xf]
        %v3120 = vld [vmem:[#allocation9 + $0x154] sm:$0xf]
        %v3121 = vld [vmem:[#allocation9 + $0x158] sm:$0xf]
        %v3122 = vld [vmem:[#allocation9 + $0x15c] sm:$0xf]
        %v3123 = vld [vmem:[#allocation9 + $0x160] sm:$0xf]
        %v3124 = vld [vmem:[#allocation9 + $0x164] sm:$0xf]
        %v3125 = vld [vmem:[#allocation9 + $0x168] sm:$0xf]
        %v3126 = vld [vmem:[#allocation9 + $0x16c] sm:$0xf]
        %v3127 = vld [vmem:[#allocation9 + $0x170] sm:$0xf]
        %v3128 = vld [vmem:[#allocation9 + $0x174] sm:$0xf]
        %v3129 = vld [vmem:[#allocation9 + $0x178] sm:$0xf]
        %v3130 = vld [vmem:[#allocation9 + $0x17c] sm:$0xf]
        %v3132 = vshrl.u32 %v3083, 16
        %v3134 = vshll.u32 %v3083, 16
        %v3136 = vrot.slane %v3134, 1
        %v3137 = vor.u32 %v3132, %v3136
        %v3139 = vshll.u32 %v3084, 16
        %v3141 = vrot.slane %v3139, 1
        %v3142 = vsel %vm1879, %v3137, %v3141
        %v3144 = vshrl.u32 %v3085, 16
        %v3146 = vshll.u32 %v3085, 16
        %v3148 = vrot.slane %v3146, 1
        %v3149 = vor.u32 %v3144, %v3148
        %v3151 = vshll.u32 %v3086, 16
        %v3153 = vrot.slane %v3151, 1
        %v3154 = vsel %vm1879, %v3149, %v3153
        %v3156 = vshrl.u32 %v3087, 16
        %v3158 = vshll.u32 %v3087, 16
        %v3160 = vrot.slane %v3158, 1
        %v3161 = vor.u32 %v3156, %v3160
        %v3163 = vshll.u32 %v3088, 16
        %v3165 = vrot.slane %v3163, 1
        %v3166 = vsel %vm1879, %v3161, %v3165
        %v3168 = vshrl.u32 %v3089, 16
        %v3170 = vshll.u32 %v3089, 16
        %v3172 = vrot.slane %v3170, 1
        %v3173 = vor.u32 %v3168, %v3172
        %v3175 = vshll.u32 %v3090, 16
        %v3177 = vrot.slane %v3175, 1
        %v3178 = vsel %vm1879, %v3173, %v3177
        %v3180 = vshrl.u32 %v3091, 16
        %v3182 = vshll.u32 %v3091, 16
        %v3184 = vrot.slane %v3182, 1
        %v3185 = vor.u32 %v3180, %v3184
        %v3187 = vshll.u32 %v3092, 16
        %v3189 = vrot.slane %v3187, 1
        %v3190 = vsel %vm1879, %v3185, %v3189
        %v3192 = vshrl.u32 %v3093, 16
        %v3194 = vshll.u32 %v3093, 16
        %v3196 = vrot.slane %v3194, 1
        %v3197 = vor.u32 %v3192, %v3196
        %v3199 = vshll.u32 %v3094, 16
        %v3201 = vrot.slane %v3199, 1
        %v3202 = vsel %vm1879, %v3197, %v3201
        %v3204 = vshrl.u32 %v3095, 16
        %v3206 = vshll.u32 %v3095, 16
        %v3208 = vrot.slane %v3206, 1
        %v3209 = vor.u32 %v3204, %v3208
        %v3211 = vshll.u32 %v3096, 16
        %v3213 = vrot.slane %v3211, 1
        %v3214 = vsel %vm1879, %v3209, %v3213
        %v3216 = vshrl.u32 %v3097, 16
        %v3218 = vshll.u32 %v3097, 16
        %v3220 = vrot.slane %v3218, 1
        %v3221 = vor.u32 %v3216, %v3220
        %v3223 = vshll.u32 %v3098, 16
        %v3225 = vrot.slane %v3223, 1
        %v3226 = vsel %vm1879, %v3221, %v3225
        %v3228 = vshrl.u32 %v3099, 16
        %v3230 = vshll.u32 %v3099, 16
        %v3232 = vrot.slane %v3230, 1
        %v3233 = vor.u32 %v3228, %v3232
        %v3235 = vshll.u32 %v3100, 16
        %v3237 = vrot.slane %v3235, 1
        %v3238 = vsel %vm1879, %v3233, %v3237
        %v3240 = vshrl.u32 %v3101, 16
        %v3242 = vshll.u32 %v3101, 16
        %v3244 = vrot.slane %v3242, 1
        %v3245 = vor.u32 %v3240, %v3244
        %v3247 = vshll.u32 %v3102, 16
        %v3249 = vrot.slane %v3247, 1
        %v3250 = vsel %vm1879, %v3245, %v3249
        %v3252 = vshrl.u32 %v3103, 16
        %v3254 = vshll.u32 %v3103, 16
        %v3256 = vrot.slane %v3254, 1
        %v3257 = vor.u32 %v3252, %v3256
        %v3259 = vshll.u32 %v3104, 16
        %v3261 = vrot.slane %v3259, 1
        %v3262 = vsel %vm1879, %v3257, %v3261
        %v3264 = vshrl.u32 %v3105, 16
        %v3266 = vshll.u32 %v3105, 16
        %v3268 = vrot.slane %v3266, 1
        %v3269 = vor.u32 %v3264, %v3268
        %v3271 = vshll.u32 %v3106, 16
        %v3273 = vrot.slane %v3271, 1
        %v3274 = vsel %vm1879, %v3269, %v3273
        %v3276 = vshrl.u32 %v3107, 16
        %v3278 = vshll.u32 %v3107, 16
        %v3280 = vrot.slane %v3278, 1
        %v3281 = vor.u32 %v3276, %v3280
        %v3283 = vshll.u32 %v3108, 16
        %v3285 = vrot.slane %v3283, 1
        %v3286 = vsel %vm1879, %v3281, %v3285
        %v3288 = vshrl.u32 %v3109, 16
        %v3290 = vshll.u32 %v3109, 16
        %v3292 = vrot.slane %v3290, 1
        %v3293 = vor.u32 %v3288, %v3292
        %v3295 = vshll.u32 %v3110, 16
        %v3297 = vrot.slane %v3295, 1
        %v3298 = vsel %vm1879, %v3293, %v3297
        %v3300 = vshrl.u32 %v3111, 16
        %v3302 = vshll.u32 %v3111, 16
        %v3304 = vrot.slane %v3302, 1
        %v3305 = vor.u32 %v3300, %v3304
        %v3307 = vshll.u32 %v3112, 16
        %v3309 = vrot.slane %v3307, 1
        %v3310 = vsel %vm1879, %v3305, %v3309
        %v3312 = vshrl.u32 %v3113, 16
        %v3314 = vshll.u32 %v3113, 16
        %v3316 = vrot.slane %v3314, 1
        %v3317 = vor.u32 %v3312, %v3316
        %v3319 = vshll.u32 %v3114, 16
        %v3321 = vrot.slane %v3319, 1
        %v3322 = vsel %vm1879, %v3317, %v3321
        %v3355 = vunpack.c.l.b16 %v3115
        %v3356 = vunpack.c.l.b16 %v3116
        %v3357 = vunpack.c.l.b16 %v3117
        %v3358 = vunpack.c.l.b16 %v3118
        %v3359 = vunpack.c.l.b16 %v3119
        %v3360 = vunpack.c.l.b16 %v3120
        %v3361 = vunpack.c.l.b16 %v3121
        %v3362 = vunpack.c.l.b16 %v3122
        %v3363 = vunpack.c.l.b16 %v3123
        %v3364 = vunpack.c.l.b16 %v3124
        %v3365 = vunpack.c.l.b16 %v3125
        %v3366 = vunpack.c.l.b16 %v3126
        %v3367 = vunpack.c.l.b16 %v3127
        %v3368 = vunpack.c.l.b16 %v3128
        %v3369 = vunpack.c.l.b16 %v3129
        %v3370 = vunpack.c.l.b16 %v3130
        %v3371 = vpack.c.b16 %v3356, %v3355
        %v3372 = vpack.c.b16 %v3358, %v3357
        %v3373 = vpack.c.b16 %v3360, %v3359
        %v3374 = vpack.c.b16 %v3362, %v3361
        %v3375 = vpack.c.b16 %v3364, %v3363
        %v3376 = vpack.c.b16 %v3366, %v3365
        %v3377 = vpack.c.b16 %v3368, %v3367
        %v3378 = vpack.c.b16 %v3370, %v3369
        %3387 = vmatprep.subr.bf16.mxu0 0
        %3388 = vmatpush1.bf16.msra.mxu0 %v3371
        %3389 = vmatprep.subr.bf16.mxu0 0
        %3390 = vmatpush1.bf16.msra.mxu0 %v3372
        %3391 = vmatprep.subr.bf16.mxu0 0
        %3392 = vmatpush1.bf16.msra.mxu0 %v3373
        %3393 = vmatprep.subr.bf16.mxu0 0
        %3394 = vmatpush1.bf16.msra.mxu0 %v3374
        %3395 = vmatprep.subr.bf16.mxu0 0
        %3396 = vmatpush1.bf16.msra.mxu0 %v3375
        %3397 = vmatprep.subr.bf16.mxu0 0
        %3398 = vmatpush1.bf16.msra.mxu0 %v3376
        %3399 = vmatprep.subr.bf16.mxu0 0
        %3400 = vmatpush1.bf16.msra.mxu0 %v3377
        %3401 = vmatprep.subr.bf16.mxu0 0
        %3402 = vmatpush1.bf16.msra.mxu0 %v3378
        %3403 = vmatprep.subr.bf16.mxu0 0
        %3404 = vmatpush1.bf16.msra.mxu0 0
        %3405 = vmatprep.subr.bf16.mxu0 0
        %3406 = vmatpush1.bf16.msra.mxu0 0
        %3407 = vmatprep.subr.bf16.mxu0 0
        %3408 = vmatpush1.bf16.msra.mxu0 0
        %3409 = vmatprep.subr.bf16.mxu0 0
        %3410 = vmatpush1.bf16.msra.mxu0 0
        %3411 = vmatprep.subr.bf16.mxu0 0
        %3412 = vmatpush1.bf16.msra.mxu0 0
        %3413 = vmatprep.subr.bf16.mxu0 0
        %3414 = vmatpush1.bf16.msra.mxu0 0
        %3415 = vmatprep.subr.bf16.mxu0 0
        %3416 = vmatpush1.bf16.msra.mxu0 0
        %3417 = vmatprep.subr.bf16.mxu0 0
        %3418 = vmatpush1.bf16.msra.mxu0 0
        %3419 = vmatprep.mubr.bf16.mxu0 0
        %3420 = vmatmul.mubr.bf16.gmra.mrb[0].mxu0 %v3142
        %v3421 = vpop.f32.mrb[0].mxu0
        %v3422 = vadd.f32 0.0, %v3421
        %v3423 = vpop.f32.mrb[0].mxu0
        %v3424 = vpop.f32.mrb[0].mxu0
        %v3425 = vadd.f32 0.0, %v3424
        %v3426 = vpop.f32.mrb[0].mxu0
        %3427 = vmatprep.mubr.bf16.mxu0 0
        %3428 = vmatmul.mubr.bf16.gmra.mrb[0].mxu0 %v3154
        %v3429 = vpop.f32.mrb[0].mxu0
        %v3430 = vadd.f32 0.0, %v3429
        %v3431 = vpop.f32.mrb[0].mxu0
        %v3432 = vpop.f32.mrb[0].mxu0
        %v3433 = vadd.f32 0.0, %v3432
        %v3434 = vpop.f32.mrb[0].mxu0
        %3435 = vmatprep.mubr.bf16.mxu0 0
        %3436 = vmatmul.mubr.bf16.gmra.mrb[0].mxu0 %v3166
        %v3437 = vpop.f32.mrb[0].mxu0
        %v3438 = vadd.f32 0.0, %v3437
        %v3439 = vpop.f32.mrb[0].mxu0
        %v3440 = vpop.f32.mrb[0].mxu0
        %v3441 = vadd.f32 0.0, %v3440
        %v3442 = vpop.f32.mrb[0].mxu0
        %3443 = vmatprep.mubr.bf16.mxu0 0
        %3444 = vmatmul.mubr.bf16.gmra.mrb[0].mxu0 %v3178
        %v3445 = vpop.f32.mrb[0].mxu0
        %v3446 = vadd.f32 0.0, %v3445
        %v3447 = vpop.f32.mrb[0].mxu0
        %v3448 = vpop.f32.mrb[0].mxu0
        %v3449 = vadd.f32 0.0, %v3448
        %v3450 = vpop.f32.mrb[0].mxu0
        %3451 = vmatprep.mubr.bf16.mxu0 0
        %3452 = vmatmul.mubr.bf16.gmra.mrb[0].mxu0 %v3190
        %v3453 = vpop.f32.mrb[0].mxu0
        %v3454 = vadd.f32 0.0, %v3453
        %v3455 = vpop.f32.mrb[0].mxu0
        %v3456 = vpop.f32.mrb[0].mxu0
        %v3457 = vadd.f32 0.0, %v3456
        %v3458 = vpop.f32.mrb[0].mxu0
        %3459 = vmatprep.mubr.bf16.mxu0 0
        %3460 = vmatmul.mubr.bf16.gmra.mrb[0].mxu0 %v3202
        %v3461 = vpop.f32.mrb[0].mxu0
        %v3462 = vadd.f32 0.0, %v3461
        %v3463 = vpop.f32.mrb[0].mxu0
        %v3464 = vpop.f32.mrb[0].mxu0
        %v3465 = vadd.f32 0.0, %v3464
        %v3466 = vpop.f32.mrb[0].mxu0
        %3467 = vmatprep.mubr.bf16.mxu0 0
        %3468 = vmatmul.mubr.bf16.gmra.mrb[0].mxu0 %v3214
        %v3469 = vpop.f32.mrb[0].mxu0
        %v3470 = vadd.f32 0.0, %v3469
        %v3471 = vpop.f32.mrb[0].mxu0
        %v3472 = vpop.f32.mrb[0].mxu0
        %v3473 = vadd.f32 0.0, %v3472
        %v3474 = vpop.f32.mrb[0].mxu0
        %3475 = vmatprep.mubr.bf16.mxu0 0
        %3476 = vmatmul.mubr.bf16.gmra.mrb[0].mxu0 %v3226
        %v3477 = vpop.f32.mrb[0].mxu0
        %v3478 = vadd.f32 0.0, %v3477
        %v3479 = vpop.f32.mrb[0].mxu0
        %v3480 = vpop.f32.mrb[0].mxu0
        %v3481 = vadd.f32 0.0, %v3480
        %v3482 = vpop.f32.mrb[0].mxu0
        %3483 = vmatprep.mubr.bf16.mxu0 0
        %3484 = vmatmul.mubr.bf16.gmra.mrb[0].mxu0 %v3238
        %v3485 = vpop.f32.mrb[0].mxu0
        %v3486 = vadd.f32 0.0, %v3485
        %v3487 = vpop.f32.mrb[0].mxu0
        %v3488 = vpop.f32.mrb[0].mxu0
        %v3489 = vadd.f32 0.0, %v3488
        %v3490 = vpop.f32.mrb[0].mxu0
        %3491 = vmatprep.mubr.bf16.mxu0 0
        %3492 = vmatmul.mubr.bf16.gmra.mrb[0].mxu0 %v3250
        %v3493 = vpop.f32.mrb[0].mxu0
        %v3494 = vadd.f32 0.0, %v3493
        %v3495 = vpop.f32.mrb[0].mxu0
        %v3496 = vpop.f32.mrb[0].mxu0
        %v3497 = vadd.f32 0.0, %v3496
        %v3498 = vpop.f32.mrb[0].mxu0
        %3499 = vmatprep.mubr.bf16.mxu0 0
        %3500 = vmatmul.mubr.bf16.gmra.mrb[0].mxu0 %v3262
        %v3501 = vpop.f32.mrb[0].mxu0
        %v3502 = vadd.f32 0.0, %v3501
        %v3503 = vpop.f32.mrb[0].mxu0
        %v3504 = vpop.f32.mrb[0].mxu0
        %v3505 = vadd.f32 0.0, %v3504
        %v3506 = vpop.f32.mrb[0].mxu0
        %3507 = vmatprep.mubr.bf16.mxu0 0
        %3508 = vmatmul.mubr.bf16.gmra.mrb[0].mxu0 %v3274
        %v3509 = vpop.f32.mrb[0].mxu0
        %v3510 = vadd.f32 0.0, %v3509
        %v3511 = vpop.f32.mrb[0].mxu0
        %v3512 = vpop.f32.mrb[0].mxu0
        %v3513 = vadd.f32 0.0, %v3512
        %v3514 = vpop.f32.mrb[0].mxu0
        %3515 = vmatprep.mubr.bf16.mxu0 0
        %3516 = vmatmul.mubr.bf16.gmra.mrb[0].mxu0 %v3286
        %v3517 = vpop.f32.mrb[0].mxu0
        %v3518 = vadd.f32 0.0, %v3517
        %v3519 = vpop.f32.mrb[0].mxu0
        %v3520 = vpop.f32.mrb[0].mxu0
        %v3521 = vadd.f32 0.0, %v3520
        %v3522 = vpop.f32.mrb[0].mxu0
        %3523 = vmatprep.mubr.bf16.mxu0 0
        %3524 = vmatmul.mubr.bf16.gmra.mrb[0].mxu0 %v3298
        %v3525 = vpop.f32.mrb[0].mxu0
        %v3526 = vadd.f32 0.0, %v3525
        %v3527 = vpop.f32.mrb[0].mxu0
        %v3528 = vpop.f32.mrb[0].mxu0
        %v3529 = vadd.f32 0.0, %v3528
        %v3530 = vpop.f32.mrb[0].mxu0
        %3531 = vmatprep.mubr.bf16.mxu0 0
        %3532 = vmatmul.mubr.bf16.gmra.mrb[0].mxu0 %v3310
        %v3533 = vpop.f32.mrb[0].mxu0
        %v3534 = vadd.f32 0.0, %v3533
        %v3535 = vpop.f32.mrb[0].mxu0
        %v3536 = vpop.f32.mrb[0].mxu0
        %v3537 = vadd.f32 0.0, %v3536
        %v3538 = vpop.f32.mrb[0].mxu0
        %3539 = vmatprep.mubr.bf16.mxu0 0
        %3540 = vmatmul.mubr.bf16.gmra.mrb[0].mxu0 %v3322
        %v3541 = vpop.f32.mrb[0].mxu0
        %v3542 = vadd.f32 0.0, %v3541
        %v3543 = vpop.f32.mrb[0].mxu0
        %v3544 = vpop.f32.mrb[0].mxu0
        %v3545 = vadd.f32 0.0, %v3544
        %v3546 = vpop.f32.mrb[0].mxu0
        %3547 = vdwg.mxu0
        %v3548 = vadd.f32 %v3051, %v3422
        %v3549 = vadd.f32 %v3052, %v3425
        %v3550 = vadd.f32 %v3053, %v3430
        %v3551 = vadd.f32 %v3054, %v3433
        %v3552 = vadd.f32 %v3055, %v3438
        %v3553 = vadd.f32 %v3056, %v3441
        %v3554 = vadd.f32 %v3057, %v3446
        %v3555 = vadd.f32 %v3058, %v3449
        %v3556 = vadd.f32 %v3059, %v3454
        %v3557 = vadd.f32 %v3060, %v3457
        %v3558 = vadd.f32 %v3061, %v3462
        %v3559 = vadd.f32 %v3062, %v3465
        %v3560 = vadd.f32 %v3063, %v3470
        %v3561 = vadd.f32 %v3064, %v3473
        %v3562 = vadd.f32 %v3065, %v3478
        %v3563 = vadd.f32 %v3066, %v3481
        %v3564 = vadd.f32 %v3067, %v3486
        %v3565 = vadd.f32 %v3068, %v3489
        %v3566 = vadd.f32 %v3069, %v3494
        %v3567 = vadd.f32 %v3070, %v3497
        %v3568 = vadd.f32 %v3071, %v3502
        %v3569 = vadd.f32 %v3072, %v3505
        %v3570 = vadd.f32 %v3073, %v3510
        %v3571 = vadd.f32 %v3074, %v3513
        %v3572 = vadd.f32 %v3075, %v3518
        %v3573 = vadd.f32 %v3076, %v3521
        %v3574 = vadd.f32 %v3077, %v3526
        %v3575 = vadd.f32 %v3078, %v3529
        %v3576 = vadd.f32 %v3079, %v3534
        %v3577 = vadd.f32 %v3080, %v3537
        %v3578 = vadd.f32 %v3081, %v3542
        %v3579 = vadd.f32 %v3082, %v3545
        %s3580 = scalar_lea.vmem [#allocation2], 48
        %v3581 = vld [vmem:[%s3580] sm:$0x80]
        %v3582 = vld [vmem:[%s3580 + $0x8] sm:$0xff]
        %v3583 = vld [vmem:[%s3580 + $0x18] sm:$0x80]
        %v3584 = vld [vmem:[%s3580 + $0x20] sm:$0xff]
        %v3585 = vld [vmem:[%s3580 + $0x30] sm:$0x80]
        %v3586 = vld [vmem:[%s3580 + $0x38] sm:$0xff]
        %v3587 = vld [vmem:[%s3580 + $0x48] sm:$0x80]
        %v3588 = vld [vmem:[%s3580 + $0x50] sm:$0xff]
        %v3589 = vld [vmem:[%s3580 + $0x60] sm:$0x80]
        %v3590 = vld [vmem:[%s3580 + $0x68] sm:$0xff]
        %v3591 = vld [vmem:[%s3580 + $0x78] sm:$0x80]
        %v3592 = vld [vmem:[%s3580 + $0x80] sm:$0xff]
        %v3593 = vld [vmem:[%s3580 + $0x90] sm:$0x80]
        %v3594 = vld [vmem:[%s3580 + $0x98] sm:$0xff]
        %v3595 = vld [vmem:[%s3580 + $0xa8] sm:$0x80]
        %v3596 = vld [vmem:[%s3580 + $0xb0] sm:$0xff]
        %v3597 = vld [vmem:[%s3580 + $0xc0] sm:$0x80]
        %v3598 = vld [vmem:[%s3580 + $0xc8] sm:$0xff]
        %v3599 = vld [vmem:[%s3580 + $0xd8] sm:$0x80]
        %v3600 = vld [vmem:[%s3580 + $0xe0] sm:$0xff]
        %v3601 = vld [vmem:[%s3580 + $0xf0] sm:$0x80]
        %v3602 = vld [vmem:[%s3580 + $0xf8] sm:$0xff]
        %v3603 = vld [vmem:[%s3580 + $0x108] sm:$0x80]
        %v3604 = vld [vmem:[%s3580 + $0x110] sm:$0xff]
        %v3605 = vld [vmem:[%s3580 + $0x120] sm:$0x80]
        %v3606 = vld [vmem:[%s3580 + $0x128] sm:$0xff]
        %v3607 = vld [vmem:[%s3580 + $0x138] sm:$0x80]
        %v3608 = vld [vmem:[%s3580 + $0x140] sm:$0xff]
        %v3609 = vld [vmem:[%s3580 + $0x150] sm:$0x80]
        %v3610 = vld [vmem:[%s3580 + $0x158] sm:$0xff]
        %v3611 = vld [vmem:[%s3580 + $0x168] sm:$0x80]
        %v3612 = vld [vmem:[%s3580 + $0x170] sm:$0xff]
        %v3613 = vld [vmem:[#allocation9 + $0x180] sm:$0xf]
        %v3614 = vld [vmem:[#allocation9 + $0x184] sm:$0xf]
        %v3615 = vld [vmem:[#allocation9 + $0x188] sm:$0xf]
        %v3616 = vld [vmem:[#allocation9 + $0x18c] sm:$0xf]
        %v3617 = vld [vmem:[#allocation9 + $0x190] sm:$0xf]
        %v3618 = vld [vmem:[#allocation9 + $0x194] sm:$0xf]
        %v3619 = vld [vmem:[#allocation9 + $0x198] sm:$0xf]
        %v3620 = vld [vmem:[#allocation9 + $0x19c] sm:$0xf]
        %v3621 = vld [vmem:[#allocation9 + $0x1a0] sm:$0xf]
        %v3622 = vld [vmem:[#allocation9 + $0x1a4] sm:$0xf]
        %v3623 = vld [vmem:[#allocation9 + $0x1a8] sm:$0xf]
        %v3624 = vld [vmem:[#allocation9 + $0x1ac] sm:$0xf]
        %v3625 = vld [vmem:[#allocation9 + $0x1b0] sm:$0xf]
        %v3626 = vld [vmem:[#allocation9 + $0x1b4] sm:$0xf]
        %v3627 = vld [vmem:[#allocation9 + $0x1b8] sm:$0xf]
        %v3628 = vld [vmem:[#allocation9 + $0x1bc] sm:$0xf]
        %v3630 = vshrl.u32 %v3581, 16
        %v3632 = vrot.slane %v3630, 7
        %v3634 = vshrl.u32 %v3582, 16
        %v3636 = vrot.slane %v3634, 7
        %v3637 = vshll.u32 %v3582, 16
        %v3639 = vor.u32 %v3636, %v3637
        %v3640 = vsel %vm1188, %v3632, %v3639
        %v3642 = vshrl.u32 %v3583, 16
        %v3644 = vrot.slane %v3642, 7
        %v3646 = vshrl.u32 %v3584, 16
        %v3648 = vrot.slane %v3646, 7
        %v3649 = vshll.u32 %v3584, 16
        %v3651 = vor.u32 %v3648, %v3649
        %v3652 = vsel %vm1188, %v3644, %v3651
        %v3654 = vshrl.u32 %v3585, 16
        %v3656 = vrot.slane %v3654, 7
        %v3658 = vshrl.u32 %v3586, 16
        %v3660 = vrot.slane %v3658, 7
        %v3661 = vshll.u32 %v3586, 16
        %v3663 = vor.u32 %v3660, %v3661
        %v3664 = vsel %vm1188, %v3656, %v3663
        %v3666 = vshrl.u32 %v3587, 16
        %v3668 = vrot.slane %v3666, 7
        %v3670 = vshrl.u32 %v3588, 16
        %v3672 = vrot.slane %v3670, 7
        %v3673 = vshll.u32 %v3588, 16
        %v3675 = vor.u32 %v3672, %v3673
        %v3676 = vsel %vm1188, %v3668, %v3675
        %v3678 = vshrl.u32 %v3589, 16
        %v3680 = vrot.slane %v3678, 7
        %v3682 = vshrl.u32 %v3590, 16
        %v3684 = vrot.slane %v3682, 7
        %v3685 = vshll.u32 %v3590, 16
        %v3687 = vor.u32 %v3684, %v3685
        %v3688 = vsel %vm1188, %v3680, %v3687
        %v3690 = vshrl.u32 %v3591, 16
        %v3692 = vrot.slane %v3690, 7
        %v3694 = vshrl.u32 %v3592, 16
        %v3696 = vrot.slane %v3694, 7
        %v3697 = vshll.u32 %v3592, 16
        %v3699 = vor.u32 %v3696, %v3697
        %v3700 = vsel %vm1188, %v3692, %v3699
        %v3702 = vshrl.u32 %v3593, 16
        %v3704 = vrot.slane %v3702, 7
        %v3706 = vshrl.u32 %v3594, 16
        %v3708 = vrot.slane %v3706, 7
        %v3709 = vshll.u32 %v3594, 16
        %v3711 = vor.u32 %v3708, %v3709
        %v3712 = vsel %vm1188, %v3704, %v3711
        %v3714 = vshrl.u32 %v3595, 16
        %v3716 = vrot.slane %v3714, 7
        %v3718 = vshrl.u32 %v3596, 16
        %v3720 = vrot.slane %v3718, 7
        %v3721 = vshll.u32 %v3596, 16
        %v3723 = vor.u32 %v3720, %v3721
        %v3724 = vsel %vm1188, %v3716, %v3723
        %v3726 = vshrl.u32 %v3597, 16
        %v3728 = vrot.slane %v3726, 7
        %v3730 = vshrl.u32 %v3598, 16
        %v3732 = vrot.slane %v3730, 7
        %v3733 = vshll.u32 %v3598, 16
        %v3735 = vor.u32 %v3732, %v3733
        %v3736 = vsel %vm1188, %v3728, %v3735
        %v3738 = vshrl.u32 %v3599, 16
        %v3740 = vrot.slane %v3738, 7
        %v3742 = vshrl.u32 %v3600, 16
        %v3744 = vrot.slane %v3742, 7
        %v3745 = vshll.u32 %v3600, 16
        %v3747 = vor.u32 %v3744, %v3745
        %v3748 = vsel %vm1188, %v3740, %v3747
        %v3750 = vshrl.u32 %v3601, 16
        %v3752 = vrot.slane %v3750, 7
        %v3754 = vshrl.u32 %v3602, 16
        %v3756 = vrot.slane %v3754, 7
        %v3757 = vshll.u32 %v3602, 16
        %v3759 = vor.u32 %v3756, %v3757
        %v3760 = vsel %vm1188, %v3752, %v3759
        %v3762 = vshrl.u32 %v3603, 16
        %v3764 = vrot.slane %v3762, 7
        %v3766 = vshrl.u32 %v3604, 16
        %v3768 = vrot.slane %v3766, 7
        %v3769 = vshll.u32 %v3604, 16
        %v3771 = vor.u32 %v3768, %v3769
        %v3772 = vsel %vm1188, %v3764, %v3771
        %v3774 = vshrl.u32 %v3605, 16
        %v3776 = vrot.slane %v3774, 7
        %v3778 = vshrl.u32 %v3606, 16
        %v3780 = vrot.slane %v3778, 7
        %v3781 = vshll.u32 %v3606, 16
        %v3783 = vor.u32 %v3780, %v3781
        %v3784 = vsel %vm1188, %v3776, %v3783
        %v3786 = vshrl.u32 %v3607, 16
        %v3788 = vrot.slane %v3786, 7
        %v3790 = vshrl.u32 %v3608, 16
        %v3792 = vrot.slane %v3790, 7
        %v3793 = vshll.u32 %v3608, 16
        %v3795 = vor.u32 %v3792, %v3793
        %v3796 = vsel %vm1188, %v3788, %v3795
        %v3798 = vshrl.u32 %v3609, 16
        %v3800 = vrot.slane %v3798, 7
        %v3802 = vshrl.u32 %v3610, 16
        %v3804 = vrot.slane %v3802, 7
        %v3805 = vshll.u32 %v3610, 16
        %v3807 = vor.u32 %v3804, %v3805
        %v3808 = vsel %vm1188, %v3800, %v3807
        %v3810 = vshrl.u32 %v3611, 16
        %v3812 = vrot.slane %v3810, 7
        %v3814 = vshrl.u32 %v3612, 16
        %v3816 = vrot.slane %v3814, 7
        %v3817 = vshll.u32 %v3612, 16
        %v3819 = vor.u32 %v3816, %v3817
        %v3820 = vsel %vm1188, %v3812, %v3819
        %v3853 = vunpack.c.l.b16 %v3613
        %v3854 = vunpack.c.l.b16 %v3614
        %v3855 = vunpack.c.l.b16 %v3615
        %v3856 = vunpack.c.l.b16 %v3616
        %v3857 = vunpack.c.l.b16 %v3617
        %v3858 = vunpack.c.l.b16 %v3618
        %v3859 = vunpack.c.l.b16 %v3619
        %v3860 = vunpack.c.l.b16 %v3620
        %v3861 = vunpack.c.l.b16 %v3621
        %v3862 = vunpack.c.l.b16 %v3622
        %v3863 = vunpack.c.l.b16 %v3623
        %v3864 = vunpack.c.l.b16 %v3624
        %v3865 = vunpack.c.l.b16 %v3625
        %v3866 = vunpack.c.l.b16 %v3626
        %v3867 = vunpack.c.l.b16 %v3627
        %v3868 = vunpack.c.l.b16 %v3628
        %v3869 = vpack.c.b16 %v3854, %v3853
        %v3870 = vpack.c.b16 %v3856, %v3855
        %v3871 = vpack.c.b16 %v3858, %v3857
        %v3872 = vpack.c.b16 %v3860, %v3859
        %v3873 = vpack.c.b16 %v3862, %v3861
        %v3874 = vpack.c.b16 %v3864, %v3863
        %v3875 = vpack.c.b16 %v3866, %v3865
        %v3876 = vpack.c.b16 %v3868, %v3867
        %3885 = vmatprep.subr.bf16.mxu0 0
        %3886 = vmatpush1.bf16.msra.mxu0 %v3869
        %3887 = vmatprep.subr.bf16.mxu0 0
        %3888 = vmatpush1.bf16.msra.mxu0 %v3870
        %3889 = vmatprep.subr.bf16.mxu0 0
        %3890 = vmatpush1.bf16.msra.mxu0 %v3871
        %3891 = vmatprep.subr.bf16.mxu0 0
        %3892 = vmatpush1.bf16.msra.mxu0 %v3872
        %3893 = vmatprep.subr.bf16.mxu0 0
        %3894 = vmatpush1.bf16.msra.mxu0 %v3873
        %3895 = vmatprep.subr.bf16.mxu0 0
        %3896 = vmatpush1.bf16.msra.mxu0 %v3874
        %3897 = vmatprep.subr.bf16.mxu0 0
        %3898 = vmatpush1.bf16.msra.mxu0 %v3875
        %3899 = vmatprep.subr.bf16.mxu0 0
        %3900 = vmatpush1.bf16.msra.mxu0 %v3876
        %3901 = vmatprep.subr.bf16.mxu0 0
        %3902 = vmatpush1.bf16.msra.mxu0 0
        %3903 = vmatprep.subr.bf16.mxu0 0
        %3904 = vmatpush1.bf16.msra.mxu0 0
        %3905 = vmatprep.subr.bf16.mxu0 0
        %3906 = vmatpush1.bf16.msra.mxu0 0
        %3907 = vmatprep.subr.bf16.mxu0 0
        %3908 = vmatpush1.bf16.msra.mxu0 0
        %3909 = vmatprep.subr.bf16.mxu0 0
        %3910 = vmatpush1.bf16.msra.mxu0 0
        %3911 = vmatprep.subr.bf16.mxu0 0
        %3912 = vmatpush1.bf16.msra.mxu0 0
        %3913 = vmatprep.subr.bf16.mxu0 0
        %3914 = vmatpush1.bf16.msra.mxu0 0
        %3915 = vmatprep.subr.bf16.mxu0 0
        %3916 = vmatpush1.bf16.msra.mxu0 0
        %3917 = vmatprep.mubr.bf16.mxu0 0
        %3918 = vmatmul.mubr.bf16.gmra.mrb[0].mxu0 %v3640
        %v3919 = vpop.f32.mrb[0].mxu0
        %v3920 = vadd.f32 0.0, %v3919
        %v3921 = vpop.f32.mrb[0].mxu0
        %v3922 = vpop.f32.mrb[0].mxu0
        %v3923 = vadd.f32 0.0, %v3922
        %v3924 = vpop.f32.mrb[0].mxu0
        %3925 = vmatprep.mubr.bf16.mxu0 0
        %3926 = vmatmul.mubr.bf16.gmra.mrb[0].mxu0 %v3652
        %v3927 = vpop.f32.mrb[0].mxu0
        %v3928 = vadd.f32 0.0, %v3927
        %v3929 = vpop.f32.mrb[0].mxu0
        %v3930 = vpop.f32.mrb[0].mxu0
        %v3931 = vadd.f32 0.0, %v3930
        %v3932 = vpop.f32.mrb[0].mxu0
        %3933 = vmatprep.mubr.bf16.mxu0 0
        %3934 = vmatmul.mubr.bf16.gmra.mrb[0].mxu0 %v3664
        %v3935 = vpop.f32.mrb[0].mxu0
        %v3936 = vadd.f32 0.0, %v3935
        %v3937 = vpop.f32.mrb[0].mxu0
        %v3938 = vpop.f32.mrb[0].mxu0
        %v3939 = vadd.f32 0.0, %v3938
        %v3940 = vpop.f32.mrb[0].mxu0
        %3941 = vmatprep.mubr.bf16.mxu0 0
        %3942 = vmatmul.mubr.bf16.gmra.mrb[0].mxu0 %v3676
        %v3943 = vpop.f32.mrb[0].mxu0
        %v3944 = vadd.f32 0.0, %v3943
        %v3945 = vpop.f32.mrb[0].mxu0
        %v3946 = vpop.f32.mrb[0].mxu0
        %v3947 = vadd.f32 0.0, %v3946
        %v3948 = vpop.f32.mrb[0].mxu0
        %3949 = vmatprep.mubr.bf16.mxu0 0
        %3950 = vmatmul.mubr.bf16.gmra.mrb[0].mxu0 %v3688
        %v3951 = vpop.f32.mrb[0].mxu0
        %v3952 = vadd.f32 0.0, %v3951
        %v3953 = vpop.f32.mrb[0].mxu0
        %v3954 = vpop.f32.mrb[0].mxu0
        %v3955 = vadd.f32 0.0, %v3954
        %v3956 = vpop.f32.mrb[0].mxu0
        %3957 = vmatprep.mubr.bf16.mxu0 0
        %3958 = vmatmul.mubr.bf16.gmra.mrb[0].mxu0 %v3700
        %v3959 = vpop.f32.mrb[0].mxu0
        %v3960 = vadd.f32 0.0, %v3959
        %v3961 = vpop.f32.mrb[0].mxu0
        %v3962 = vpop.f32.mrb[0].mxu0
        %v3963 = vadd.f32 0.0, %v3962
        %v3964 = vpop.f32.mrb[0].mxu0
        %3965 = vmatprep.mubr.bf16.mxu0 0
        %3966 = vmatmul.mubr.bf16.gmra.mrb[0].mxu0 %v3712
        %v3967 = vpop.f32.mrb[0].mxu0
        %v3968 = vadd.f32 0.0, %v3967
        %v3969 = vpop.f32.mrb[0].mxu0
        %v3970 = vpop.f32.mrb[0].mxu0
        %v3971 = vadd.f32 0.0, %v3970
        %v3972 = vpop.f32.mrb[0].mxu0
        %3973 = vmatprep.mubr.bf16.mxu0 0
        %3974 = vmatmul.mubr.bf16.gmra.mrb[0].mxu0 %v3724
        %v3975 = vpop.f32.mrb[0].mxu0
        %v3976 = vadd.f32 0.0, %v3975
        %v3977 = vpop.f32.mrb[0].mxu0
        %v3978 = vpop.f32.mrb[0].mxu0
        %v3979 = vadd.f32 0.0, %v3978
        %v3980 = vpop.f32.mrb[0].mxu0
        %3981 = vmatprep.mubr.bf16.mxu0 0
        %3982 = vmatmul.mubr.bf16.gmra.mrb[0].mxu0 %v3736
        %v3983 = vpop.f32.mrb[0].mxu0
        %v3984 = vadd.f32 0.0, %v3983
        %v3985 = vpop.f32.mrb[0].mxu0
        %v3986 = vpop.f32.mrb[0].mxu0
        %v3987 = vadd.f32 0.0, %v3986
        %v3988 = vpop.f32.mrb[0].mxu0
        %3989 = vmatprep.mubr.bf16.mxu0 0
        %3990 = vmatmul.mubr.bf16.gmra.mrb[0].mxu0 %v3748
        %v3991 = vpop.f32.mrb[0].mxu0
        %v3992 = vadd.f32 0.0, %v3991
        %v3993 = vpop.f32.mrb[0].mxu0
        %v3994 = vpop.f32.mrb[0].mxu0
        %v3995 = vadd.f32 0.0, %v3994
        %v3996 = vpop.f32.mrb[0].mxu0
        %3997 = vmatprep.mubr.bf16.mxu0 0
        %3998 = vmatmul.mubr.bf16.gmra.mrb[0].mxu0 %v3760
        %v3999 = vpop.f32.mrb[0].mxu0
        %v4000 = vadd.f32 0.0, %v3999
        %v4001 = vpop.f32.mrb[0].mxu0
        %v4002 = vpop.f32.mrb[0].mxu0
        %v4003 = vadd.f32 0.0, %v4002
        %v4004 = vpop.f32.mrb[0].mxu0
        %4005 = vmatprep.mubr.bf16.mxu0 0
        %4006 = vmatmul.mubr.bf16.gmra.mrb[0].mxu0 %v3772
        %v4007 = vpop.f32.mrb[0].mxu0
        %v4008 = vadd.f32 0.0, %v4007
        %v4009 = vpop.f32.mrb[0].mxu0
        %v4010 = vpop.f32.mrb[0].mxu0
        %v4011 = vadd.f32 0.0, %v4010
        %v4012 = vpop.f32.mrb[0].mxu0
        %4013 = vmatprep.mubr.bf16.mxu0 0
        %4014 = vmatmul.mubr.bf16.gmra.mrb[0].mxu0 %v3784
        %v4015 = vpop.f32.mrb[0].mxu0
        %v4016 = vadd.f32 0.0, %v4015
        %v4017 = vpop.f32.mrb[0].mxu0
        %v4018 = vpop.f32.mrb[0].mxu0
        %v4019 = vadd.f32 0.0, %v4018
        %v4020 = vpop.f32.mrb[0].mxu0
        %4021 = vmatprep.mubr.bf16.mxu0 0
        %4022 = vmatmul.mubr.bf16.gmra.mrb[0].mxu0 %v3796
        %v4023 = vpop.f32.mrb[0].mxu0
        %v4024 = vadd.f32 0.0, %v4023
        %v4025 = vpop.f32.mrb[0].mxu0
        %v4026 = vpop.f32.mrb[0].mxu0
        %v4027 = vadd.f32 0.0, %v4026
        %v4028 = vpop.f32.mrb[0].mxu0
        %4029 = vmatprep.mubr.bf16.mxu0 0
        %4030 = vmatmul.mubr.bf16.gmra.mrb[0].mxu0 %v3808
        %v4031 = vpop.f32.mrb[0].mxu0
        %v4032 = vadd.f32 0.0, %v4031
        %v4033 = vpop.f32.mrb[0].mxu0
        %v4034 = vpop.f32.mrb[0].mxu0
        %v4035 = vadd.f32 0.0, %v4034
        %v4036 = vpop.f32.mrb[0].mxu0
        %4037 = vmatprep.mubr.bf16.mxu0 0
        %4038 = vmatmul.mubr.bf16.gmra.mrb[0].mxu0 %v3820
        %v4039 = vpop.f32.mrb[0].mxu0
        %v4040 = vadd.f32 0.0, %v4039
        %v4041 = vpop.f32.mrb[0].mxu0
        %v4042 = vpop.f32.mrb[0].mxu0
        %v4043 = vadd.f32 0.0, %v4042
        %v4044 = vpop.f32.mrb[0].mxu0
        %4045 = vdwg.mxu0
        %v4046 = vadd.f32 %v3548, %v3920
        %v4047 = vadd.f32 %v3549, %v3923
        %v4048 = vadd.f32 %v3550, %v3928
        %v4049 = vadd.f32 %v3551, %v3931
        %v4050 = vadd.f32 %v3552, %v3936
        %v4051 = vadd.f32 %v3553, %v3939
        %v4052 = vadd.f32 %v3554, %v3944
        %v4053 = vadd.f32 %v3555, %v3947
        %v4054 = vadd.f32 %v3556, %v3952
        %v4055 = vadd.f32 %v3557, %v3955
        %v4056 = vadd.f32 %v3558, %v3960
        %v4057 = vadd.f32 %v3559, %v3963
        %v4058 = vadd.f32 %v3560, %v3968
        %v4059 = vadd.f32 %v3561, %v3971
        %v4060 = vadd.f32 %v3562, %v3976
        %v4061 = vadd.f32 %v3563, %v3979
        %v4062 = vadd.f32 %v3564, %v3984
        %v4063 = vadd.f32 %v3565, %v3987
        %v4064 = vadd.f32 %v3566, %v3992
        %v4065 = vadd.f32 %v3567, %v3995
        %v4066 = vadd.f32 %v3568, %v4000
        %v4067 = vadd.f32 %v3569, %v4003
        %v4068 = vadd.f32 %v3570, %v4008
        %v4069 = vadd.f32 %v3571, %v4011
        %v4070 = vadd.f32 %v3572, %v4016
        %v4071 = vadd.f32 %v3573, %v4019
        %v4072 = vadd.f32 %v3574, %v4024
        %v4073 = vadd.f32 %v3575, %v4027
        %v4074 = vadd.f32 %v3576, %v4032
        %v4075 = vadd.f32 %v3577, %v4035
        %v4076 = vadd.f32 %v3578, %v4040
        %v4077 = vadd.f32 %v3579, %v4043
        %v4078 = vld [vmem:[#allocation9 + $0x1c0] sm:$0xf]
        %v4079 = vld [vmem:[#allocation9 + $0x1c4] sm:$0xf]
        %v4080 = vld [vmem:[#allocation9 + $0x1c8] sm:$0xf]
        %v4081 = vld [vmem:[#allocation9 + $0x1cc] sm:$0xf]
        %v4082 = vld [vmem:[#allocation9 + $0x1d0] sm:$0xf]
        %v4083 = vld [vmem:[#allocation9 + $0x1d4] sm:$0xf]
        %v4084 = vld [vmem:[#allocation9 + $0x1d8] sm:$0xf]
        %v4085 = vld [vmem:[#allocation9 + $0x1dc] sm:$0xf]
        %v4086 = vld [vmem:[#allocation9 + $0x1e0] sm:$0xf]
        %v4087 = vld [vmem:[#allocation9 + $0x1e4] sm:$0xf]
        %v4088 = vld [vmem:[#allocation9 + $0x1e8] sm:$0xf]
        %v4089 = vld [vmem:[#allocation9 + $0x1ec] sm:$0xf]
        %v4090 = vld [vmem:[#allocation9 + $0x1f0] sm:$0xf]
        %v4091 = vld [vmem:[#allocation9 + $0x1f4] sm:$0xf]
        %v4092 = vld [vmem:[#allocation9 + $0x1f8] sm:$0xf]
        %v4093 = vld [vmem:[#allocation9 + $0x1fc] sm:$0xf]
        %v4110 = vunpack.c.l.b16 %v4078
        %v4111 = vunpack.c.l.b16 %v4079
        %v4112 = vunpack.c.l.b16 %v4080
        %v4113 = vunpack.c.l.b16 %v4081
        %v4114 = vunpack.c.l.b16 %v4082
        %v4115 = vunpack.c.l.b16 %v4083
        %v4116 = vunpack.c.l.b16 %v4084
        %v4117 = vunpack.c.l.b16 %v4085
        %v4118 = vunpack.c.l.b16 %v4086
        %v4119 = vunpack.c.l.b16 %v4087
        %v4120 = vunpack.c.l.b16 %v4088
        %v4121 = vunpack.c.l.b16 %v4089
        %v4122 = vunpack.c.l.b16 %v4090
        %v4123 = vunpack.c.l.b16 %v4091
        %v4124 = vunpack.c.l.b16 %v4092
        %v4125 = vunpack.c.l.b16 %v4093
        %v4126 = vpack.c.b16 %v4111, %v4110
        %v4127 = vpack.c.b16 %v4113, %v4112
        %v4128 = vpack.c.b16 %v4115, %v4114
        %v4129 = vpack.c.b16 %v4117, %v4116
        %v4130 = vpack.c.b16 %v4119, %v4118
        %v4131 = vpack.c.b16 %v4121, %v4120
        %v4132 = vpack.c.b16 %v4123, %v4122
        %v4133 = vpack.c.b16 %v4125, %v4124
        %4142 = vmatprep.subr.bf16.mxu0 0
        %4143 = vmatpush1.bf16.msra.mxu0 %v4126
        %4144 = vmatprep.subr.bf16.mxu0 0
        %4145 = vmatpush1.bf16.msra.mxu0 %v4127
        %4146 = vmatprep.subr.bf16.mxu0 0
        %4147 = vmatpush1.bf16.msra.mxu0 %v4128
        %4148 = vmatprep.subr.bf16.mxu0 0
        %4149 = vmatpush1.bf16.msra.mxu0 %v4129
        %4150 = vmatprep.subr.bf16.mxu0 0
        %4151 = vmatpush1.bf16.msra.mxu0 %v4130
        %4152 = vmatprep.subr.bf16.mxu0 0
        %4153 = vmatpush1.bf16.msra.mxu0 %v4131
        %4154 = vmatprep.subr.bf16.mxu0 0
        %4155 = vmatpush1.bf16.msra.mxu0 %v4132
        %4156 = vmatprep.subr.bf16.mxu0 0
        %4157 = vmatpush1.bf16.msra.mxu0 %v4133
        %4158 = vmatprep.subr.bf16.mxu0 0
        %4159 = vmatpush1.bf16.msra.mxu0 0
        %4160 = vmatprep.subr.bf16.mxu0 0
        %4161 = vmatpush1.bf16.msra.mxu0 0
        %4162 = vmatprep.subr.bf16.mxu0 0
        %4163 = vmatpush1.bf16.msra.mxu0 0
        %4164 = vmatprep.subr.bf16.mxu0 0
        %4165 = vmatpush1.bf16.msra.mxu0 0
        %4166 = vmatprep.subr.bf16.mxu0 0
        %4167 = vmatpush1.bf16.msra.mxu0 0
        %4168 = vmatprep.subr.bf16.mxu0 0
        %4169 = vmatpush1.bf16.msra.mxu0 0
        %4170 = vmatprep.subr.bf16.mxu0 0
        %4171 = vmatpush1.bf16.msra.mxu0 0
        %4172 = vmatprep.subr.bf16.mxu0 0
        %4173 = vmatpush1.bf16.msra.mxu0 0
        %4174 = vmatprep.mubr.bf16.mxu0 0
        %4175 = vmatmul.mubr.bf16.gmra.mrb[0].mxu0 %v3582
        %v4176 = vpop.f32.mrb[0].mxu0
        %v4177 = vadd.f32 0.0, %v4176
        %v4178 = vpop.f32.mrb[0].mxu0
        %v4179 = vpop.f32.mrb[0].mxu0
        %v4180 = vadd.f32 0.0, %v4179
        %v4181 = vpop.f32.mrb[0].mxu0
        %4182 = vmatprep.mubr.bf16.mxu0 0
        %4183 = vmatmul.mubr.bf16.gmra.mrb[0].mxu0 %v3584
        %v4184 = vpop.f32.mrb[0].mxu0
        %v4185 = vadd.f32 0.0, %v4184
        %v4186 = vpop.f32.mrb[0].mxu0
        %v4187 = vpop.f32.mrb[0].mxu0
        %v4188 = vadd.f32 0.0, %v4187
        %v4189 = vpop.f32.mrb[0].mxu0
        %4190 = vmatprep.mubr.bf16.mxu0 0
        %4191 = vmatmul.mubr.bf16.gmra.mrb[0].mxu0 %v3586
        %v4192 = vpop.f32.mrb[0].mxu0
        %v4193 = vadd.f32 0.0, %v4192
        %v4194 = vpop.f32.mrb[0].mxu0
        %v4195 = vpop.f32.mrb[0].mxu0
        %v4196 = vadd.f32 0.0, %v4195
        %v4197 = vpop.f32.mrb[0].mxu0
        %4198 = vmatprep.mubr.bf16.mxu0 0
        %4199 = vmatmul.mubr.bf16.gmra.mrb[0].mxu0 %v3588
        %v4200 = vpop.f32.mrb[0].mxu0
        %v4201 = vadd.f32 0.0, %v4200
        %v4202 = vpop.f32.mrb[0].mxu0
        %v4203 = vpop.f32.mrb[0].mxu0
        %v4204 = vadd.f32 0.0, %v4203
        %v4205 = vpop.f32.mrb[0].mxu0
        %4206 = vmatprep.mubr.bf16.mxu0 0
        %4207 = vmatmul.mubr.bf16.gmra.mrb[0].mxu0 %v3590
        %v4208 = vpop.f32.mrb[0].mxu0
        %v4209 = vadd.f32 0.0, %v4208
        %v4210 = vpop.f32.mrb[0].mxu0
        %v4211 = vpop.f32.mrb[0].mxu0
        %v4212 = vadd.f32 0.0, %v4211
        %v4213 = vpop.f32.mrb[0].mxu0
        %4214 = vmatprep.mubr.bf16.mxu0 0
        %4215 = vmatmul.mubr.bf16.gmra.mrb[0].mxu0 %v3592
        %v4216 = vpop.f32.mrb[0].mxu0
        %v4217 = vadd.f32 0.0, %v4216
        %v4218 = vpop.f32.mrb[0].mxu0
        %v4219 = vpop.f32.mrb[0].mxu0
        %v4220 = vadd.f32 0.0, %v4219
        %v4221 = vpop.f32.mrb[0].mxu0
        %4222 = vmatprep.mubr.bf16.mxu0 0
        %4223 = vmatmul.mubr.bf16.gmra.mrb[0].mxu0 %v3594
        %v4224 = vpop.f32.mrb[0].mxu0
        %v4225 = vadd.f32 0.0, %v4224
        %v4226 = vpop.f32.mrb[0].mxu0
        %v4227 = vpop.f32.mrb[0].mxu0
        %v4228 = vadd.f32 0.0, %v4227
        %v4229 = vpop.f32.mrb[0].mxu0
        %4230 = vmatprep.mubr.bf16.mxu0 0
        %4231 = vmatmul.mubr.bf16.gmra.mrb[0].mxu0 %v3596
        %v4232 = vpop.f32.mrb[0].mxu0
        %v4233 = vadd.f32 0.0, %v4232
        %v4234 = vpop.f32.mrb[0].mxu0
        %v4235 = vpop.f32.mrb[0].mxu0
        %v4236 = vadd.f32 0.0, %v4235
        %v4237 = vpop.f32.mrb[0].mxu0
        %4238 = vmatprep.mubr.bf16.mxu0 0
        %4239 = vmatmul.mubr.bf16.gmra.mrb[0].mxu0 %v3598
        %v4240 = vpop.f32.mrb[0].mxu0
        %v4241 = vadd.f32 0.0, %v4240
        %v4242 = vpop.f32.mrb[0].mxu0
        %v4243 = vpop.f32.mrb[0].mxu0
        %v4244 = vadd.f32 0.0, %v4243
        %v4245 = vpop.f32.mrb[0].mxu0
        %4246 = vmatprep.mubr.bf16.mxu0 0
        %4247 = vmatmul.mubr.bf16.gmra.mrb[0].mxu0 %v3600
        %v4248 = vpop.f32.mrb[0].mxu0
        %v4249 = vadd.f32 0.0, %v4248
        %v4250 = vpop.f32.mrb[0].mxu0
        %v4251 = vpop.f32.mrb[0].mxu0
        %v4252 = vadd.f32 0.0, %v4251
        %v4253 = vpop.f32.mrb[0].mxu0
        %4254 = vmatprep.mubr.bf16.mxu0 0
        %4255 = vmatmul.mubr.bf16.gmra.mrb[0].mxu0 %v3602
        %v4256 = vpop.f32.mrb[0].mxu0
        %v4257 = vadd.f32 0.0, %v4256
        %v4258 = vpop.f32.mrb[0].mxu0
        %v4259 = vpop.f32.mrb[0].mxu0
        %v4260 = vadd.f32 0.0, %v4259
        %v4261 = vpop.f32.mrb[0].mxu0
        %4262 = vmatprep.mubr.bf16.mxu0 0
        %4263 = vmatmul.mubr.bf16.gmra.mrb[0].mxu0 %v3604
        %v4264 = vpop.f32.mrb[0].mxu0
        %v4265 = vadd.f32 0.0, %v4264
        %v4266 = vpop.f32.mrb[0].mxu0
        %v4267 = vpop.f32.mrb[0].mxu0
        %v4268 = vadd.f32 0.0, %v4267
        %v4269 = vpop.f32.mrb[0].mxu0
        %4270 = vmatprep.mubr.bf16.mxu0 0
        %4271 = vmatmul.mubr.bf16.gmra.mrb[0].mxu0 %v3606
        %v4272 = vpop.f32.mrb[0].mxu0
        %v4273 = vadd.f32 0.0, %v4272
        %v4274 = vpop.f32.mrb[0].mxu0
        %v4275 = vpop.f32.mrb[0].mxu0
        %v4276 = vadd.f32 0.0, %v4275
        %v4277 = vpop.f32.mrb[0].mxu0
        %4278 = vmatprep.mubr.bf16.mxu0 0
        %4279 = vmatmul.mubr.bf16.gmra.mrb[0].mxu0 %v3608
        %v4280 = vpop.f32.mrb[0].mxu0
        %v4281 = vadd.f32 0.0, %v4280
        %v4282 = vpop.f32.mrb[0].mxu0
        %v4283 = vpop.f32.mrb[0].mxu0
        %v4284 = vadd.f32 0.0, %v4283
        %v4285 = vpop.f32.mrb[0].mxu0
        %4286 = vmatprep.mubr.bf16.mxu0 0
        %4287 = vmatmul.mubr.bf16.gmra.mrb[0].mxu0 %v3610
        %v4288 = vpop.f32.mrb[0].mxu0
        %v4289 = vadd.f32 0.0, %v4288
        %v4290 = vpop.f32.mrb[0].mxu0
        %v4291 = vpop.f32.mrb[0].mxu0
        %v4292 = vadd.f32 0.0, %v4291
        %v4293 = vpop.f32.mrb[0].mxu0
        %4294 = vmatprep.mubr.bf16.mxu0 0
        %4295 = vmatmul.mubr.bf16.gmra.mrb[0].mxu0 %v3612
        %v4296 = vpop.f32.mrb[0].mxu0
        %v4297 = vadd.f32 0.0, %v4296
        %v4298 = vpop.f32.mrb[0].mxu0
        %v4299 = vpop.f32.mrb[0].mxu0
        %v4300 = vadd.f32 0.0, %v4299
        %v4301 = vpop.f32.mrb[0].mxu0
        %4302 = vdwg.mxu0
        %v4303 = vadd.f32 %v4046, %v4177
        %v4304 = vadd.f32 %v4047, %v4180
        %v4305 = vadd.f32 %v4048, %v4185
        %v4306 = vadd.f32 %v4049, %v4188
        %v4307 = vadd.f32 %v4050, %v4193
        %v4308 = vadd.f32 %v4051, %v4196
        %v4309 = vadd.f32 %v4052, %v4201
        %v4310 = vadd.f32 %v4053, %v4204
        %v4311 = vadd.f32 %v4054, %v4209
        %v4312 = vadd.f32 %v4055, %v4212
        %v4313 = vadd.f32 %v4056, %v4217
        %v4314 = vadd.f32 %v4057, %v4220
        %v4315 = vadd.f32 %v4058, %v4225
        %v4316 = vadd.f32 %v4059, %v4228
        %v4317 = vadd.f32 %v4060, %v4233
        %v4318 = vadd.f32 %v4061, %v4236
        %v4319 = vadd.f32 %v4062, %v4241
        %v4320 = vadd.f32 %v4063, %v4244
        %v4321 = vadd.f32 %v4064, %v4249
        %v4322 = vadd.f32 %v4065, %v4252
        %v4323 = vadd.f32 %v4066, %v4257
        %v4324 = vadd.f32 %v4067, %v4260
        %v4325 = vadd.f32 %v4068, %v4265
        %v4326 = vadd.f32 %v4069, %v4268
        %v4327 = vadd.f32 %v4070, %v4273
        %v4328 = vadd.f32 %v4071, %v4276
        %v4329 = vadd.f32 %v4072, %v4281
        %v4330 = vadd.f32 %v4073, %v4284
        %v4331 = vadd.f32 %v4074, %v4289
        %v4332 = vadd.f32 %v4075, %v4292
        %v4333 = vadd.f32 %v4076, %v4297
        %v4334 = vadd.f32 %v4077, %v4300
        %v4335 = vld [vmem:[%s3580 + $0x8] sm:$0xff]
        %v4336 = vld [vmem:[%s3580 + $0x10] sm:$0x1]
        %v4337 = vld [vmem:[%s3580 + $0x20] sm:$0xff]
        %v4338 = vld [vmem:[%s3580 + $0x28] sm:$0x1]
        %v4339 = vld [vmem:[%s3580 + $0x38] sm:$0xff]
        %v4340 = vld [vmem:[%s3580 + $0x40] sm:$0x1]
        %v4341 = vld [vmem:[%s3580 + $0x50] sm:$0xff]
        %v4342 = vld [vmem:[%s3580 + $0x58] sm:$0x1]
        %v4343 = vld [vmem:[%s3580 + $0x68] sm:$0xff]
        %v4344 = vld [vmem:[%s3580 + $0x70] sm:$0x1]
        %v4345 = vld [vmem:[%s3580 + $0x80] sm:$0xff]
        %v4346 = vld [vmem:[%s3580 + $0x88] sm:$0x1]
        %v4347 = vld [vmem:[%s3580 + $0x98] sm:$0xff]
        %v4348 = vld [vmem:[%s3580 + $0xa0] sm:$0x1]
        %v4349 = vld [vmem:[%s3580 + $0xb0] sm:$0xff]
        %v4350 = vld [vmem:[%s3580 + $0xb8] sm:$0x1]
        %v4351 = vld [vmem:[%s3580 + $0xc8] sm:$0xff]
        %v4352 = vld [vmem:[%s3580 + $0xd0] sm:$0x1]
        %v4353 = vld [vmem:[%s3580 + $0xe0] sm:$0xff]
        %v4354 = vld [vmem:[%s3580 + $0xe8] sm:$0x1]
        %v4355 = vld [vmem:[%s3580 + $0xf8] sm:$0xff]
        %v4356 = vld [vmem:[%s3580 + $0x100] sm:$0x1]
        %v4357 = vld [vmem:[%s3580 + $0x110] sm:$0xff]
        %v4358 = vld [vmem:[%s3580 + $0x118] sm:$0x1]
        %v4359 = vld [vmem:[%s3580 + $0x128] sm:$0xff]
        %v4360 = vld [vmem:[%s3580 + $0x130] sm:$0x1]
        %v4361 = vld [vmem:[%s3580 + $0x140] sm:$0xff]
        %v4362 = vld [vmem:[%s3580 + $0x148] sm:$0x1]
        %v4363 = vld [vmem:[%s3580 + $0x158] sm:$0xff]
        %v4364 = vld [vmem:[%s3580 + $0x160] sm:$0x1]
        %v4365 = vld [vmem:[%s3580 + $0x170] sm:$0xff]
        %v4366 = vld [vmem:[%s3580 + $0x178] sm:$0x1]
        %v4367 = vld [vmem:[#allocation9 + $0x200] sm:$0xf]
        %v4368 = vld [vmem:[#allocation9 + $0x204] sm:$0xf]
        %v4369 = vld [vmem:[#allocation9 + $0x208] sm:$0xf]
        %v4370 = vld [vmem:[#allocation9 + $0x20c] sm:$0xf]
        %v4371 = vld [vmem:[#allocation9 + $0x210] sm:$0xf]
        %v4372 = vld [vmem:[#allocation9 + $0x214] sm:$0xf]
        %v4373 = vld [vmem:[#allocation9 + $0x218] sm:$0xf]
        %v4374 = vld [vmem:[#allocation9 + $0x21c] sm:$0xf]
        %v4375 = vld [vmem:[#allocation9 + $0x220] sm:$0xf]
        %v4376 = vld [vmem:[#allocation9 + $0x224] sm:$0xf]
        %v4377 = vld [vmem:[#allocation9 + $0x228] sm:$0xf]
        %v4378 = vld [vmem:[#allocation9 + $0x22c] sm:$0xf]
        %v4379 = vld [vmem:[#allocation9 + $0x230] sm:$0xf]
        %v4380 = vld [vmem:[#allocation9 + $0x234] sm:$0xf]
        %v4381 = vld [vmem:[#allocation9 + $0x238] sm:$0xf]
        %v4382 = vld [vmem:[#allocation9 + $0x23c] sm:$0xf]
        %v4384 = vshrl.u32 %v4335, 16
        %v4386 = vshll.u32 %v4335, 16
        %v4388 = vrot.slane %v4386, 1
        %v4389 = vor.u32 %v4384, %v4388
        %v4391 = vshll.u32 %v4336, 16
        %v4393 = vrot.slane %v4391, 1
        %v4394 = vsel %vm1879, %v4389, %v4393
        %v4396 = vshrl.u32 %v4337, 16
        %v4398 = vshll.u32 %v4337, 16
        %v4400 = vrot.slane %v4398, 1
        %v4401 = vor.u32 %v4396, %v4400
        %v4403 = vshll.u32 %v4338, 16
        %v4405 = vrot.slane %v4403, 1
        %v4406 = vsel %vm1879, %v4401, %v4405
        %v4408 = vshrl.u32 %v4339, 16
        %v4410 = vshll.u32 %v4339, 16
        %v4412 = vrot.slane %v4410, 1
        %v4413 = vor.u32 %v4408, %v4412
        %v4415 = vshll.u32 %v4340, 16
        %v4417 = vrot.slane %v4415, 1
        %v4418 = vsel %vm1879, %v4413, %v4417
        %v4420 = vshrl.u32 %v4341, 16
        %v4422 = vshll.u32 %v4341, 16
        %v4424 = vrot.slane %v4422, 1
        %v4425 = vor.u32 %v4420, %v4424
        %v4427 = vshll.u32 %v4342, 16
        %v4429 = vrot.slane %v4427, 1
        %v4430 = vsel %vm1879, %v4425, %v4429
        %v4432 = vshrl.u32 %v4343, 16
        %v4434 = vshll.u32 %v4343, 16
        %v4436 = vrot.slane %v4434, 1
        %v4437 = vor.u32 %v4432, %v4436
        %v4439 = vshll.u32 %v4344, 16
        %v4441 = vrot.slane %v4439, 1
        %v4442 = vsel %vm1879, %v4437, %v4441
        %v4444 = vshrl.u32 %v4345, 16
        %v4446 = vshll.u32 %v4345, 16
        %v4448 = vrot.slane %v4446, 1
        %v4449 = vor.u32 %v4444, %v4448
        %v4451 = vshll.u32 %v4346, 16
        %v4453 = vrot.slane %v4451, 1
        %v4454 = vsel %vm1879, %v4449, %v4453
        %v4456 = vshrl.u32 %v4347, 16
        %v4458 = vshll.u32 %v4347, 16
        %v4460 = vrot.slane %v4458, 1
        %v4461 = vor.u32 %v4456, %v4460
        %v4463 = vshll.u32 %v4348, 16
        %v4465 = vrot.slane %v4463, 1
        %v4466 = vsel %vm1879, %v4461, %v4465
        %v4468 = vshrl.u32 %v4349, 16
        %v4470 = vshll.u32 %v4349, 16
        %v4472 = vrot.slane %v4470, 1
        %v4473 = vor.u32 %v4468, %v4472
        %v4475 = vshll.u32 %v4350, 16
        %v4477 = vrot.slane %v4475, 1
        %v4478 = vsel %vm1879, %v4473, %v4477
        %v4480 = vshrl.u32 %v4351, 16
        %v4482 = vshll.u32 %v4351, 16
        %v4484 = vrot.slane %v4482, 1
        %v4485 = vor.u32 %v4480, %v4484
        %v4487 = vshll.u32 %v4352, 16
        %v4489 = vrot.slane %v4487, 1
        %v4490 = vsel %vm1879, %v4485, %v4489
        %v4492 = vshrl.u32 %v4353, 16
        %v4494 = vshll.u32 %v4353, 16
        %v4496 = vrot.slane %v4494, 1
        %v4497 = vor.u32 %v4492, %v4496
        %v4499 = vshll.u32 %v4354, 16
        %v4501 = vrot.slane %v4499, 1
        %v4502 = vsel %vm1879, %v4497, %v4501
        %v4504 = vshrl.u32 %v4355, 16
        %v4506 = vshll.u32 %v4355, 16
        %v4508 = vrot.slane %v4506, 1
        %v4509 = vor.u32 %v4504, %v4508
        %v4511 = vshll.u32 %v4356, 16
        %v4513 = vrot.slane %v4511, 1
        %v4514 = vsel %vm1879, %v4509, %v4513
        %v4516 = vshrl.u32 %v4357, 16
        %v4518 = vshll.u32 %v4357, 16
        %v4520 = vrot.slane %v4518, 1
        %v4521 = vor.u32 %v4516, %v4520
        %v4523 = vshll.u32 %v4358, 16
        %v4525 = vrot.slane %v4523, 1
        %v4526 = vsel %vm1879, %v4521, %v4525
        %v4528 = vshrl.u32 %v4359, 16
        %v4530 = vshll.u32 %v4359, 16
        %v4532 = vrot.slane %v4530, 1
        %v4533 = vor.u32 %v4528, %v4532
        %v4535 = vshll.u32 %v4360, 16
        %v4537 = vrot.slane %v4535, 1
        %v4538 = vsel %vm1879, %v4533, %v4537
        %v4540 = vshrl.u32 %v4361, 16
        %v4542 = vshll.u32 %v4361, 16
        %v4544 = vrot.slane %v4542, 1
        %v4545 = vor.u32 %v4540, %v4544
        %v4547 = vshll.u32 %v4362, 16
        %v4549 = vrot.slane %v4547, 1
        %v4550 = vsel %vm1879, %v4545, %v4549
        %v4552 = vshrl.u32 %v4363, 16
        %v4554 = vshll.u32 %v4363, 16
        %v4556 = vrot.slane %v4554, 1
        %v4557 = vor.u32 %v4552, %v4556
        %v4559 = vshll.u32 %v4364, 16
        %v4561 = vrot.slane %v4559, 1
        %v4562 = vsel %vm1879, %v4557, %v4561
        %v4564 = vshrl.u32 %v4365, 16
        %v4566 = vshll.u32 %v4365, 16
        %v4568 = vrot.slane %v4566, 1
        %v4569 = vor.u32 %v4564, %v4568
        %v4571 = vshll.u32 %v4366, 16
        %v4573 = vrot.slane %v4571, 1
        %v4574 = vsel %vm1879, %v4569, %v4573
        %v4607 = vunpack.c.l.b16 %v4367
        %v4608 = vunpack.c.l.b16 %v4368
        %v4609 = vunpack.c.l.b16 %v4369
        %v4610 = vunpack.c.l.b16 %v4370
        %v4611 = vunpack.c.l.b16 %v4371
        %v4612 = vunpack.c.l.b16 %v4372
        %v4613 = vunpack.c.l.b16 %v4373
        %v4614 = vunpack.c.l.b16 %v4374
        %v4615 = vunpack.c.l.b16 %v4375
        %v4616 = vunpack.c.l.b16 %v4376
        %v4617 = vunpack.c.l.b16 %v4377
        %v4618 = vunpack.c.l.b16 %v4378
        %v4619 = vunpack.c.l.b16 %v4379
        %v4620 = vunpack.c.l.b16 %v4380
        %v4621 = vunpack.c.l.b16 %v4381
        %v4622 = vunpack.c.l.b16 %v4382
        %v4623 = vpack.c.b16 %v4608, %v4607
        %v4624 = vpack.c.b16 %v4610, %v4609
        %v4625 = vpack.c.b16 %v4612, %v4611
        %v4626 = vpack.c.b16 %v4614, %v4613
        %v4627 = vpack.c.b16 %v4616, %v4615
        %v4628 = vpack.c.b16 %v4618, %v4617
        %v4629 = vpack.c.b16 %v4620, %v4619
        %v4630 = vpack.c.b16 %v4622, %v4621
        %4639 = vmatprep.subr.bf16.mxu0 0
        %4640 = vmatpush1.bf16.msra.mxu0 %v4623
        %4641 = vmatprep.subr.bf16.mxu0 0
        %4642 = vmatpush1.bf16.msra.mxu0 %v4624
        %4643 = vmatprep.subr.bf16.mxu0 0
        %4644 = vmatpush1.bf16.msra.mxu0 %v4625
        %4645 = vmatprep.subr.bf16.mxu0 0
        %4646 = vmatpush1.bf16.msra.mxu0 %v4626
        %4647 = vmatprep.subr.bf16.mxu0 0
        %4648 = vmatpush1.bf16.msra.mxu0 %v4627
        %4649 = vmatprep.subr.bf16.mxu0 0
        %4650 = vmatpush1.bf16.msra.mxu0 %v4628
        %4651 = vmatprep.subr.bf16.mxu0 0
        %4652 = vmatpush1.bf16.msra.mxu0 %v4629
        %4653 = vmatprep.subr.bf16.mxu0 0
        %4654 = vmatpush1.bf16.msra.mxu0 %v4630
        %4655 = vmatprep.subr.bf16.mxu0 0
        %4656 = vmatpush1.bf16.msra.mxu0 0
        %4657 = vmatprep.subr.bf16.mxu0 0
        %4658 = vmatpush1.bf16.msra.mxu0 0
        %4659 = vmatprep.subr.bf16.mxu0 0
        %4660 = vmatpush1.bf16.msra.mxu0 0
        %4661 = vmatprep.subr.bf16.mxu0 0
        %4662 = vmatpush1.bf16.msra.mxu0 0
        %4663 = vmatprep.subr.bf16.mxu0 0
        %4664 = vmatpush1.bf16.msra.mxu0 0
        %4665 = vmatprep.subr.bf16.mxu0 0
        %4666 = vmatpush1.bf16.msra.mxu0 0
        %4667 = vmatprep.subr.bf16.mxu0 0
        %4668 = vmatpush1.bf16.msra.mxu0 0
        %4669 = vmatprep.subr.bf16.mxu0 0
        %4670 = vmatpush1.bf16.msra.mxu0 0
        %4671 = vmatprep.mubr.bf16.mxu0 0
        %4672 = vmatmul.mubr.bf16.gmra.mrb[0].mxu0 %v4394
        %v4673 = vpop.f32.mrb[0].mxu0
        %v4674 = vadd.f32 0.0, %v4673
        %v4675 = vpop.f32.mrb[0].mxu0
        %v4676 = vpop.f32.mrb[0].mxu0
        %v4677 = vadd.f32 0.0, %v4676
        %v4678 = vpop.f32.mrb[0].mxu0
        %4679 = vmatprep.mubr.bf16.mxu0 0
        %4680 = vmatmul.mubr.bf16.gmra.mrb[0].mxu0 %v4406
        %v4681 = vpop.f32.mrb[0].mxu0
        %v4682 = vadd.f32 0.0, %v4681
        %v4683 = vpop.f32.mrb[0].mxu0
        %v4684 = vpop.f32.mrb[0].mxu0
        %v4685 = vadd.f32 0.0, %v4684
        %v4686 = vpop.f32.mrb[0].mxu0
        %4687 = vmatprep.mubr.bf16.mxu0 0
        %4688 = vmatmul.mubr.bf16.gmra.mrb[0].mxu0 %v4418
        %v4689 = vpop.f32.mrb[0].mxu0
        %v4690 = vadd.f32 0.0, %v4689
        %v4691 = vpop.f32.mrb[0].mxu0
        %v4692 = vpop.f32.mrb[0].mxu0
        %v4693 = vadd.f32 0.0, %v4692
        %v4694 = vpop.f32.mrb[0].mxu0
        %4695 = vmatprep.mubr.bf16.mxu0 0
        %4696 = vmatmul.mubr.bf16.gmra.mrb[0].mxu0 %v4430
        %v4697 = vpop.f32.mrb[0].mxu0
        %v4698 = vadd.f32 0.0, %v4697
        %v4699 = vpop.f32.mrb[0].mxu0
        %v4700 = vpop.f32.mrb[0].mxu0
        %v4701 = vadd.f32 0.0, %v4700
        %v4702 = vpop.f32.mrb[0].mxu0
        %4703 = vmatprep.mubr.bf16.mxu0 0
        %4704 = vmatmul.mubr.bf16.gmra.mrb[0].mxu0 %v4442
        %v4705 = vpop.f32.mrb[0].mxu0
        %v4706 = vadd.f32 0.0, %v4705
        %v4707 = vpop.f32.mrb[0].mxu0
        %v4708 = vpop.f32.mrb[0].mxu0
        %v4709 = vadd.f32 0.0, %v4708
        %v4710 = vpop.f32.mrb[0].mxu0
        %4711 = vmatprep.mubr.bf16.mxu0 0
        %4712 = vmatmul.mubr.bf16.gmra.mrb[0].mxu0 %v4454
        %v4713 = vpop.f32.mrb[0].mxu0
        %v4714 = vadd.f32 0.0, %v4713
        %v4715 = vpop.f32.mrb[0].mxu0
        %v4716 = vpop.f32.mrb[0].mxu0
        %v4717 = vadd.f32 0.0, %v4716
        %v4718 = vpop.f32.mrb[0].mxu0
        %4719 = vmatprep.mubr.bf16.mxu0 0
        %4720 = vmatmul.mubr.bf16.gmra.mrb[0].mxu0 %v4466
        %v4721 = vpop.f32.mrb[0].mxu0
        %v4722 = vadd.f32 0.0, %v4721
        %v4723 = vpop.f32.mrb[0].mxu0
        %v4724 = vpop.f32.mrb[0].mxu0
        %v4725 = vadd.f32 0.0, %v4724
        %v4726 = vpop.f32.mrb[0].mxu0
        %4727 = vmatprep.mubr.bf16.mxu0 0
        %4728 = vmatmul.mubr.bf16.gmra.mrb[0].mxu0 %v4478
        %v4729 = vpop.f32.mrb[0].mxu0
        %v4730 = vadd.f32 0.0, %v4729
        %v4731 = vpop.f32.mrb[0].mxu0
        %v4732 = vpop.f32.mrb[0].mxu0
        %v4733 = vadd.f32 0.0, %v4732
        %v4734 = vpop.f32.mrb[0].mxu0
        %4735 = vmatprep.mubr.bf16.mxu0 0
        %4736 = vmatmul.mubr.bf16.gmra.mrb[0].mxu0 %v4490
        %v4737 = vpop.f32.mrb[0].mxu0
        %v4738 = vadd.f32 0.0, %v4737
        %v4739 = vpop.f32.mrb[0].mxu0
        %v4740 = vpop.f32.mrb[0].mxu0
        %v4741 = vadd.f32 0.0, %v4740
        %v4742 = vpop.f32.mrb[0].mxu0
        %4743 = vmatprep.mubr.bf16.mxu0 0
        %4744 = vmatmul.mubr.bf16.gmra.mrb[0].mxu0 %v4502
        %v4745 = vpop.f32.mrb[0].mxu0
        %v4746 = vadd.f32 0.0, %v4745
        %v4747 = vpop.f32.mrb[0].mxu0
        %v4748 = vpop.f32.mrb[0].mxu0
        %v4749 = vadd.f32 0.0, %v4748
        %v4750 = vpop.f32.mrb[0].mxu0
        %4751 = vmatprep.mubr.bf16.mxu0 0
        %4752 = vmatmul.mubr.bf16.gmra.mrb[0].mxu0 %v4514
        %v4753 = vpop.f32.mrb[0].mxu0
        %v4754 = vadd.f32 0.0, %v4753
        %v4755 = vpop.f32.mrb[0].mxu0
        %v4756 = vpop.f32.mrb[0].mxu0
        %v4757 = vadd.f32 0.0, %v4756
        %v4758 = vpop.f32.mrb[0].mxu0
        %4759 = vmatprep.mubr.bf16.mxu0 0
        %4760 = vmatmul.mubr.bf16.gmra.mrb[0].mxu0 %v4526
        %v4761 = vpop.f32.mrb[0].mxu0
        %v4762 = vadd.f32 0.0, %v4761
        %v4763 = vpop.f32.mrb[0].mxu0
        %v4764 = vpop.f32.mrb[0].mxu0
        %v4765 = vadd.f32 0.0, %v4764
        %v4766 = vpop.f32.mrb[0].mxu0
        %4767 = vmatprep.mubr.bf16.mxu0 0
        %4768 = vmatmul.mubr.bf16.gmra.mrb[0].mxu0 %v4538
        %v4769 = vpop.f32.mrb[0].mxu0
        %v4770 = vadd.f32 0.0, %v4769
        %v4771 = vpop.f32.mrb[0].mxu0
        %v4772 = vpop.f32.mrb[0].mxu0
        %v4773 = vadd.f32 0.0, %v4772
        %v4774 = vpop.f32.mrb[0].mxu0
        %4775 = vmatprep.mubr.bf16.mxu0 0
        %4776 = vmatmul.mubr.bf16.gmra.mrb[0].mxu0 %v4550
        %v4777 = vpop.f32.mrb[0].mxu0
        %v4778 = vadd.f32 0.0, %v4777
        %v4779 = vpop.f32.mrb[0].mxu0
        %v4780 = vpop.f32.mrb[0].mxu0
        %v4781 = vadd.f32 0.0, %v4780
        %v4782 = vpop.f32.mrb[0].mxu0
        %4783 = vmatprep.mubr.bf16.mxu0 0
        %4784 = vmatmul.mubr.bf16.gmra.mrb[0].mxu0 %v4562
        %v4785 = vpop.f32.mrb[0].mxu0
        %v4786 = vadd.f32 0.0, %v4785
        %v4787 = vpop.f32.mrb[0].mxu0
        %v4788 = vpop.f32.mrb[0].mxu0
        %v4789 = vadd.f32 0.0, %v4788
        %v4790 = vpop.f32.mrb[0].mxu0
        %4791 = vmatprep.mubr.bf16.mxu0 0
        %4792 = vmatmul.mubr.bf16.gmra.mrb[0].mxu0 %v4574
        %v4793 = vpop.f32.mrb[0].mxu0
        %v4794 = vadd.f32 0.0, %v4793
        %v4795 = vpop.f32.mrb[0].mxu0
        %v4796 = vpop.f32.mrb[0].mxu0
        %v4797 = vadd.f32 0.0, %v4796
        %v4798 = vpop.f32.mrb[0].mxu0
        %4799 = vdwg.mxu0
        %v4800 = vadd.f32 %v4303, %v4674
        %v4801 = vadd.f32 %v4304, %v4677
        %v4802 = vadd.f32 %v4305, %v4682
        %v4803 = vadd.f32 %v4306, %v4685
        %v4804 = vadd.f32 %v4307, %v4690
        %v4805 = vadd.f32 %v4308, %v4693
        %v4806 = vadd.f32 %v4309, %v4698
        %v4807 = vadd.f32 %v4310, %v4701
        %v4808 = vadd.f32 %v4311, %v4706
        %v4809 = vadd.f32 %v4312, %v4709
        %v4810 = vadd.f32 %v4313, %v4714
        %v4811 = vadd.f32 %v4314, %v4717
        %v4812 = vadd.f32 %v4315, %v4722
        %v4813 = vadd.f32 %v4316, %v4725
        %v4814 = vadd.f32 %v4317, %v4730
        %v4815 = vadd.f32 %v4318, %v4733
        %v4816 = vadd.f32 %v4319, %v4738
        %v4817 = vadd.f32 %v4320, %v4741
        %v4818 = vadd.f32 %v4321, %v4746
        %v4819 = vadd.f32 %v4322, %v4749
        %v4820 = vadd.f32 %v4323, %v4754
        %v4821 = vadd.f32 %v4324, %v4757
        %v4822 = vadd.f32 %v4325, %v4762
        %v4823 = vadd.f32 %v4326, %v4765
        %v4824 = vadd.f32 %v4327, %v4770
        %v4825 = vadd.f32 %v4328, %v4773
        %v4826 = vadd.f32 %v4329, %v4778
        %v4827 = vadd.f32 %v4330, %v4781
        %v4828 = vadd.f32 %v4331, %v4786
        %v4829 = vadd.f32 %v4332, %v4789
        %v4830 = vadd.f32 %v4333, %v4794
        %v4831 = vadd.f32 %v4334, %v4797
        %v4832 = vld [vmem:[%s6] sm:$0x1]
        %v4834 = vlaneseq
        %v4835 = vshrl.u32 %v4834, 7
        %v4836 = vsub.s32 0, %v4835
        %v4837 = vrot.slane %v4832, %v4836
        %v4839 = vmul.f32 %v4800, %v4837
        %v4840 = vmul.f32 %v4801, %v4837
        %v4841 = vmul.f32 %v4802, %v4837
        %v4842 = vmul.f32 %v4803, %v4837
        %v4843 = vmul.f32 %v4804, %v4837
        %v4844 = vmul.f32 %v4805, %v4837
        %v4845 = vmul.f32 %v4806, %v4837
        %v4846 = vmul.f32 %v4807, %v4837
        %v4847 = vmul.f32 %v4808, %v4837
        %v4848 = vmul.f32 %v4809, %v4837
        %v4849 = vmul.f32 %v4810, %v4837
        %v4850 = vmul.f32 %v4811, %v4837
        %v4851 = vmul.f32 %v4812, %v4837
        %v4852 = vmul.f32 %v4813, %v4837
        %v4853 = vmul.f32 %v4814, %v4837
        %v4854 = vmul.f32 %v4815, %v4837
        %v4855 = vmul.f32 %v4816, %v4837
        %v4856 = vmul.f32 %v4817, %v4837
        %v4857 = vmul.f32 %v4818, %v4837
        %v4858 = vmul.f32 %v4819, %v4837
        %v4859 = vmul.f32 %v4820, %v4837
        %v4860 = vmul.f32 %v4821, %v4837
        %v4861 = vmul.f32 %v4822, %v4837
        %v4862 = vmul.f32 %v4823, %v4837
        %v4863 = vmul.f32 %v4824, %v4837
        %v4864 = vmul.f32 %v4825, %v4837
        %v4865 = vmul.f32 %v4826, %v4837
        %v4866 = vmul.f32 %v4827, %v4837
        %v4867 = vmul.f32 %v4828, %v4837
        %v4868 = vmul.f32 %v4829, %v4837
        %v4869 = vmul.f32 %v4830, %v4837
        %v4870 = vmul.f32 %v4831, %v4837
        %v4871 = vld [vmem:[%s7] sm:$0x1]
        %v4873 = vlaneseq
        %v4874 = vshrl.u32 %v4873, 7
        %v4875 = vsub.s32 0, %v4874
        %v4876 = vrot.slane %v4871, %v4875
        %v4878 = vadd.f32 %v4839, %v4876
        %v4879 = vadd.f32 %v4840, %v4876
        %v4880 = vadd.f32 %v4841, %v4876
        %v4881 = vadd.f32 %v4842, %v4876
        %v4882 = vadd.f32 %v4843, %v4876
        %v4883 = vadd.f32 %v4844, %v4876
        %v4884 = vadd.f32 %v4845, %v4876
        %v4885 = vadd.f32 %v4846, %v4876
        %v4886 = vadd.f32 %v4847, %v4876
        %v4887 = vadd.f32 %v4848, %v4876
        %v4888 = vadd.f32 %v4849, %v4876
        %v4889 = vadd.f32 %v4850, %v4876
        %v4890 = vadd.f32 %v4851, %v4876
        %v4891 = vadd.f32 %v4852, %v4876
        %v4892 = vadd.f32 %v4853, %v4876
        %v4893 = vadd.f32 %v4854, %v4876
        %v4894 = vadd.f32 %v4855, %v4876
        %v4895 = vadd.f32 %v4856, %v4876
        %v4896 = vadd.f32 %v4857, %v4876
        %v4897 = vadd.f32 %v4858, %v4876
        %v4898 = vadd.f32 %v4859, %v4876
        %v4899 = vadd.f32 %v4860, %v4876
        %v4900 = vadd.f32 %v4861, %v4876
        %v4901 = vadd.f32 %v4862, %v4876
        %v4902 = vadd.f32 %v4863, %v4876
        %v4903 = vadd.f32 %v4864, %v4876
        %v4904 = vadd.f32 %v4865, %v4876
        %v4905 = vadd.f32 %v4866, %v4876
        %v4906 = vadd.f32 %v4867, %v4876
        %v4907 = vadd.f32 %v4868, %v4876
        %v4908 = vadd.f32 %v4869, %v4876
        %v4909 = vadd.f32 %v4870, %v4876
        %v4910 = vmax.f32 %v4878, 0.0
        %v4911 = vmax.f32 %v4879, 0.0
        %v4912 = vmax.f32 %v4880, 0.0
        %v4913 = vmax.f32 %v4881, 0.0
        %v4914 = vmax.f32 %v4882, 0.0
        %v4915 = vmax.f32 %v4883, 0.0
        %v4916 = vmax.f32 %v4884, 0.0
        %v4917 = vmax.f32 %v4885, 0.0
        %v4918 = vmax.f32 %v4886, 0.0
        %v4919 = vmax.f32 %v4887, 0.0
        %v4920 = vmax.f32 %v4888, 0.0
        %v4921 = vmax.f32 %v4889, 0.0
        %v4922 = vmax.f32 %v4890, 0.0
        %v4923 = vmax.f32 %v4891, 0.0
        %v4924 = vmax.f32 %v4892, 0.0
        %v4925 = vmax.f32 %v4893, 0.0
        %v4926 = vmax.f32 %v4894, 0.0
        %v4927 = vmax.f32 %v4895, 0.0
        %v4928 = vmax.f32 %v4896, 0.0
        %v4929 = vmax.f32 %v4897, 0.0
        %v4930 = vmax.f32 %v4898, 0.0
        %v4931 = vmax.f32 %v4899, 0.0
        %v4932 = vmax.f32 %v4900, 0.0
        %v4933 = vmax.f32 %v4901, 0.0
        %v4934 = vmax.f32 %v4902, 0.0
        %v4935 = vmax.f32 %v4903, 0.0
        %v4936 = vmax.f32 %v4904, 0.0
        %v4937 = vmax.f32 %v4905, 0.0
        %v4938 = vmax.f32 %v4906, 0.0
        %v4939 = vmax.f32 %v4907, 0.0
        %v4940 = vmax.f32 %v4908, 0.0
        %v4941 = vmax.f32 %v4909, 0.0
        %v4942 = vpack.c.bf16 %v4911, %v4910
        %v4943 = vpack.c.bf16 %v4913, %v4912
        %v4944 = vpack.c.bf16 %v4915, %v4914
        %v4945 = vpack.c.bf16 %v4917, %v4916
        %v4946 = vpack.c.bf16 %v4919, %v4918
        %v4947 = vpack.c.bf16 %v4921, %v4920
        %v4948 = vpack.c.bf16 %v4923, %v4922
        %v4949 = vpack.c.bf16 %v4925, %v4924
        %v4950 = vpack.c.bf16 %v4927, %v4926
        %v4951 = vpack.c.bf16 %v4929, %v4928
        %v4952 = vpack.c.bf16 %v4931, %v4930
        %v4953 = vpack.c.bf16 %v4933, %v4932
        %v4954 = vpack.c.bf16 %v4935, %v4934
        %v4955 = vpack.c.bf16 %v4937, %v4936
        %v4956 = vpack.c.bf16 %v4939, %v4938
        %v4957 = vpack.c.bf16 %v4941, %v4940
        %v4958 = vld [vmem:[#allocation11] sm:$0xf]
        %v4959 = vld [vmem:[#allocation11 + $0x4] sm:$0xf]
        %v4960 = vld [vmem:[#allocation11 + $0x8] sm:$0xf]
        %v4961 = vld [vmem:[#allocation11 + $0xc] sm:$0xf]
        %v4962 = vld [vmem:[#allocation11 + $0x10] sm:$0xf]
        %v4963 = vld [vmem:[#allocation11 + $0x14] sm:$0xf]
        %v4964 = vld [vmem:[#allocation11 + $0x18] sm:$0xf]
        %v4965 = vld [vmem:[#allocation11 + $0x1c] sm:$0xf]
        %v4966 = vld [vmem:[#allocation11 + $0x20] sm:$0xf]
        %v4967 = vld [vmem:[#allocation11 + $0x24] sm:$0xf]
        %v4968 = vld [vmem:[#allocation11 + $0x28] sm:$0xf]
        %v4969 = vld [vmem:[#allocation11 + $0x2c] sm:$0xf]
        %v4970 = vld [vmem:[#allocation11 + $0x30] sm:$0xf]
        %v4971 = vld [vmem:[#allocation11 + $0x34] sm:$0xf]
        %v4972 = vld [vmem:[#allocation11 + $0x38] sm:$0xf]
        %v4973 = vld [vmem:[#allocation11 + $0x3c] sm:$0xf]
        %v4990 = vunpack.c.l.b16 %v4958
        %v4991 = vunpack.c.l.b16 %v4959
        %v4992 = vunpack.c.l.b16 %v4960
        %v4993 = vunpack.c.l.b16 %v4961
        %v4994 = vunpack.c.l.b16 %v4962
        %v4995 = vunpack.c.l.b16 %v4963
        %v4996 = vunpack.c.l.b16 %v4964
        %v4997 = vunpack.c.l.b16 %v4965
        %v4998 = vunpack.c.l.b16 %v4966
        %v4999 = vunpack.c.l.b16 %v4967
        %v5000 = vunpack.c.l.b16 %v4968
        %v5001 = vunpack.c.l.b16 %v4969
        %v5002 = vunpack.c.l.b16 %v4970
        %v5003 = vunpack.c.l.b16 %v4971
        %v5004 = vunpack.c.l.b16 %v4972
        %v5005 = vunpack.c.l.b16 %v4973
        %v5006 = vpack.c.b16 %v4991, %v4990
        %v5007 = vpack.c.b16 %v4993, %v4992
        %v5008 = vpack.c.b16 %v4995, %v4994
        %v5009 = vpack.c.b16 %v4997, %v4996
        %v5010 = vpack.c.b16 %v4999, %v4998
        %v5011 = vpack.c.b16 %v5001, %v5000
        %v5012 = vpack.c.b16 %v5003, %v5002
        %v5013 = vpack.c.b16 %v5005, %v5004
        %5022 = vmatprep.subr.bf16.mxu0 0
        %5023 = vmatpush1.bf16.msra.mxu0 %v5006
        %5024 = vmatprep.subr.bf16.mxu0 0
        %5025 = vmatpush1.bf16.msra.mxu0 %v5007
        %5026 = vmatprep.subr.bf16.mxu0 0
        %5027 = vmatpush1.bf16.msra.mxu0 %v5008
        %5028 = vmatprep.subr.bf16.mxu0 0
        %5029 = vmatpush1.bf16.msra.mxu0 %v5009
        %5030 = vmatprep.subr.bf16.mxu0 0
        %5031 = vmatpush1.bf16.msra.mxu0 %v5010
        %5032 = vmatprep.subr.bf16.mxu0 0
        %5033 = vmatpush1.bf16.msra.mxu0 %v5011
        %5034 = vmatprep.subr.bf16.mxu0 0
        %5035 = vmatpush1.bf16.msra.mxu0 %v5012
        %5036 = vmatprep.subr.bf16.mxu0 0
        %5037 = vmatpush1.bf16.msra.mxu0 %v5013
        %5038 = vmatprep.subr.bf16.mxu0 0
        %5039 = vmatpush1.bf16.msra.mxu0 0
        %5040 = vmatprep.subr.bf16.mxu0 0
        %5041 = vmatpush1.bf16.msra.mxu0 0
        %5042 = vmatprep.subr.bf16.mxu0 0
        %5043 = vmatpush1.bf16.msra.mxu0 0
        %5044 = vmatprep.subr.bf16.mxu0 0
        %5045 = vmatpush1.bf16.msra.mxu0 0
        %5046 = vmatprep.subr.bf16.mxu0 0
        %5047 = vmatpush1.bf16.msra.mxu0 0
        %5048 = vmatprep.subr.bf16.mxu0 0
        %5049 = vmatpush1.bf16.msra.mxu0 0
        %5050 = vmatprep.subr.bf16.mxu0 0
        %5051 = vmatpush1.bf16.msra.mxu0 0
        %5052 = vmatprep.subr.bf16.mxu0 0
        %5053 = vmatpush1.bf16.msra.mxu0 0
        %5054 = vmatprep.mubr.bf16.mxu0 0
        %5055 = vmatmul.mubr.bf16.gmra.mrb[0].mxu0 %v4942
        %v5056 = vpop.f32.mrb[0].mxu0
        %v5057 = vadd.f32 0.0, %v5056
        %v5058 = vpop.f32.mrb[0].mxu0
        %v5059 = vpop.f32.mrb[0].mxu0
        %v5060 = vadd.f32 0.0, %v5059
        %v5061 = vpop.f32.mrb[0].mxu0
        %5062 = vmatprep.mubr.bf16.mxu0 0
        %5063 = vmatmul.mubr.bf16.gmra.mrb[0].mxu0 %v4943
        %v5064 = vpop.f32.mrb[0].mxu0
        %v5065 = vadd.f32 0.0, %v5064
        %v5066 = vpop.f32.mrb[0].mxu0
        %v5067 = vpop.f32.mrb[0].mxu0
        %v5068 = vadd.f32 0.0, %v5067
        %v5069 = vpop.f32.mrb[0].mxu0
        %5070 = vmatprep.mubr.bf16.mxu0 0
        %5071 = vmatmul.mubr.bf16.gmra.mrb[0].mxu0 %v4944
        %v5072 = vpop.f32.mrb[0].mxu0
        %v5073 = vadd.f32 0.0, %v5072
        %v5074 = vpop.f32.mrb[0].mxu0
        %v5075 = vpop.f32.mrb[0].mxu0
        %v5076 = vadd.f32 0.0, %v5075
        %v5077 = vpop.f32.mrb[0].mxu0
        %5078 = vmatprep.mubr.bf16.mxu0 0
        %5079 = vmatmul.mubr.bf16.gmra.mrb[0].mxu0 %v4945
        %v5080 = vpop.f32.mrb[0].mxu0
        %v5081 = vadd.f32 0.0, %v5080
        %v5082 = vpop.f32.mrb[0].mxu0
        %v5083 = vpop.f32.mrb[0].mxu0
        %v5084 = vadd.f32 0.0, %v5083
        %v5085 = vpop.f32.mrb[0].mxu0
        %5086 = vmatprep.mubr.bf16.mxu0 0
        %5087 = vmatmul.mubr.bf16.gmra.mrb[0].mxu0 %v4946
        %v5088 = vpop.f32.mrb[0].mxu0
        %v5089 = vadd.f32 0.0, %v5088
        %v5090 = vpop.f32.mrb[0].mxu0
        %v5091 = vpop.f32.mrb[0].mxu0
        %v5092 = vadd.f32 0.0, %v5091
        %v5093 = vpop.f32.mrb[0].mxu0
        %5094 = vmatprep.mubr.bf16.mxu0 0
        %5095 = vmatmul.mubr.bf16.gmra.mrb[0].mxu0 %v4947
        %v5096 = vpop.f32.mrb[0].mxu0
        %v5097 = vadd.f32 0.0, %v5096
        %v5098 = vpop.f32.mrb[0].mxu0
        %v5099 = vpop.f32.mrb[0].mxu0
        %v5100 = vadd.f32 0.0, %v5099
        %v5101 = vpop.f32.mrb[0].mxu0
        %5102 = vmatprep.mubr.bf16.mxu0 0
        %5103 = vmatmul.mubr.bf16.gmra.mrb[0].mxu0 %v4948
        %v5104 = vpop.f32.mrb[0].mxu0
        %v5105 = vadd.f32 0.0, %v5104
        %v5106 = vpop.f32.mrb[0].mxu0
        %v5107 = vpop.f32.mrb[0].mxu0
        %v5108 = vadd.f32 0.0, %v5107
        %v5109 = vpop.f32.mrb[0].mxu0
        %5110 = vmatprep.mubr.bf16.mxu0 0
        %5111 = vmatmul.mubr.bf16.gmra.mrb[0].mxu0 %v4949
        %v5112 = vpop.f32.mrb[0].mxu0
        %v5113 = vadd.f32 0.0, %v5112
        %v5114 = vpop.f32.mrb[0].mxu0
        %v5115 = vpop.f32.mrb[0].mxu0
        %v5116 = vadd.f32 0.0, %v5115
        %v5117 = vpop.f32.mrb[0].mxu0
        %5118 = vmatprep.mubr.bf16.mxu0 0
        %5119 = vmatmul.mubr.bf16.gmra.mrb[0].mxu0 %v4950
        %v5120 = vpop.f32.mrb[0].mxu0
        %v5121 = vadd.f32 0.0, %v5120
        %v5122 = vpop.f32.mrb[0].mxu0
        %v5123 = vpop.f32.mrb[0].mxu0
        %v5124 = vadd.f32 0.0, %v5123
        %v5125 = vpop.f32.mrb[0].mxu0
        %5126 = vmatprep.mubr.bf16.mxu0 0
        %5127 = vmatmul.mubr.bf16.gmra.mrb[0].mxu0 %v4951
        %v5128 = vpop.f32.mrb[0].mxu0
        %v5129 = vadd.f32 0.0, %v5128
        %v5130 = vpop.f32.mrb[0].mxu0
        %v5131 = vpop.f32.mrb[0].mxu0
        %v5132 = vadd.f32 0.0, %v5131
        %v5133 = vpop.f32.mrb[0].mxu0
        %5134 = vmatprep.mubr.bf16.mxu0 0
        %5135 = vmatmul.mubr.bf16.gmra.mrb[0].mxu0 %v4952
        %v5136 = vpop.f32.mrb[0].mxu0
        %v5137 = vadd.f32 0.0, %v5136
        %v5138 = vpop.f32.mrb[0].mxu0
        %v5139 = vpop.f32.mrb[0].mxu0
        %v5140 = vadd.f32 0.0, %v5139
        %v5141 = vpop.f32.mrb[0].mxu0
        %5142 = vmatprep.mubr.bf16.mxu0 0
        %5143 = vmatmul.mubr.bf16.gmra.mrb[0].mxu0 %v4953
        %v5144 = vpop.f32.mrb[0].mxu0
        %v5145 = vadd.f32 0.0, %v5144
        %v5146 = vpop.f32.mrb[0].mxu0
        %v5147 = vpop.f32.mrb[0].mxu0
        %v5148 = vadd.f32 0.0, %v5147
        %v5149 = vpop.f32.mrb[0].mxu0
        %5150 = vmatprep.mubr.bf16.mxu0 0
        %5151 = vmatmul.mubr.bf16.gmra.mrb[0].mxu0 %v4954
        %v5152 = vpop.f32.mrb[0].mxu0
        %v5153 = vadd.f32 0.0, %v5152
        %v5154 = vpop.f32.mrb[0].mxu0
        %v5155 = vpop.f32.mrb[0].mxu0
        %v5156 = vadd.f32 0.0, %v5155
        %v5157 = vpop.f32.mrb[0].mxu0
        %5158 = vmatprep.mubr.bf16.mxu0 0
        %5159 = vmatmul.mubr.bf16.gmra.mrb[0].mxu0 %v4955
        %v5160 = vpop.f32.mrb[0].mxu0
        %v5161 = vadd.f32 0.0, %v5160
        %v5162 = vpop.f32.mrb[0].mxu0
        %v5163 = vpop.f32.mrb[0].mxu0
        %v5164 = vadd.f32 0.0, %v5163
        %v5165 = vpop.f32.mrb[0].mxu0
        %5166 = vmatprep.mubr.bf16.mxu0 0
        %5167 = vmatmul.mubr.bf16.gmra.mrb[0].mxu0 %v4956
        %v5168 = vpop.f32.mrb[0].mxu0
        %v5169 = vadd.f32 0.0, %v5168
        %v5170 = vpop.f32.mrb[0].mxu0
        %v5171 = vpop.f32.mrb[0].mxu0
        %v5172 = vadd.f32 0.0, %v5171
        %v5173 = vpop.f32.mrb[0].mxu0
        %5174 = vmatprep.mubr.bf16.mxu0 0
        %5175 = vmatmul.mubr.bf16.gmra.mrb[0].mxu0 %v4957
        %v5176 = vpop.f32.mrb[0].mxu0
        %v5177 = vadd.f32 0.0, %v5176
        %v5178 = vpop.f32.mrb[0].mxu0
        %v5179 = vpop.f32.mrb[0].mxu0
        %v5180 = vadd.f32 0.0, %v5179
        %v5181 = vpop.f32.mrb[0].mxu0
        %5182 = vdwg.mxu0
        %v5183 = vld [vmem:[%s9] sm:$0x1]
        %v5185 = vlaneseq
        %v5186 = vshrl.u32 %v5185, 7
        %v5187 = vsub.s32 0, %v5186
        %v5188 = vrot.slane %v5183, %v5187
        %v5190 = vmul.f32 %v5057, %v5188
        %v5191 = vmul.f32 %v5060, %v5188
        %v5192 = vmul.f32 %v5065, %v5188
        %v5193 = vmul.f32 %v5068, %v5188
        %v5194 = vmul.f32 %v5073, %v5188
        %v5195 = vmul.f32 %v5076, %v5188
        %v5196 = vmul.f32 %v5081, %v5188
        %v5197 = vmul.f32 %v5084, %v5188
        %v5198 = vmul.f32 %v5089, %v5188
        %v5199 = vmul.f32 %v5092, %v5188
        %v5200 = vmul.f32 %v5097, %v5188
        %v5201 = vmul.f32 %v5100, %v5188
        %v5202 = vmul.f32 %v5105, %v5188
        %v5203 = vmul.f32 %v5108, %v5188
        %v5204 = vmul.f32 %v5113, %v5188
        %v5205 = vmul.f32 %v5116, %v5188
        %v5206 = vmul.f32 %v5121, %v5188
        %v5207 = vmul.f32 %v5124, %v5188
        %v5208 = vmul.f32 %v5129, %v5188
        %v5209 = vmul.f32 %v5132, %v5188
        %v5210 = vmul.f32 %v5137, %v5188
        %v5211 = vmul.f32 %v5140, %v5188
        %v5212 = vmul.f32 %v5145, %v5188
        %v5213 = vmul.f32 %v5148, %v5188
        %v5214 = vmul.f32 %v5153, %v5188
        %v5215 = vmul.f32 %v5156, %v5188
        %v5216 = vmul.f32 %v5161, %v5188
        %v5217 = vmul.f32 %v5164, %v5188
        %v5218 = vmul.f32 %v5169, %v5188
        %v5219 = vmul.f32 %v5172, %v5188
        %v5220 = vmul.f32 %v5177, %v5188
        %v5221 = vmul.f32 %v5180, %v5188
        %v5222 = vld [vmem:[%s10] sm:$0x1]
        %v5224 = vlaneseq
        %v5225 = vshrl.u32 %v5224, 7
        %v5226 = vsub.s32 0, %v5225
        %v5227 = vrot.slane %v5222, %v5226
        %v5229 = vadd.f32 %v5190, %v5227
        %v5230 = vadd.f32 %v5191, %v5227
        %v5231 = vadd.f32 %v5192, %v5227
        %v5232 = vadd.f32 %v5193, %v5227
        %v5233 = vadd.f32 %v5194, %v5227
        %v5234 = vadd.f32 %v5195, %v5227
        %v5235 = vadd.f32 %v5196, %v5227
        %v5236 = vadd.f32 %v5197, %v5227
        %v5237 = vadd.f32 %v5198, %v5227
        %v5238 = vadd.f32 %v5199, %v5227
        %v5239 = vadd.f32 %v5200, %v5227
        %v5240 = vadd.f32 %v5201, %v5227
        %v5241 = vadd.f32 %v5202, %v5227
        %v5242 = vadd.f32 %v5203, %v5227
        %v5243 = vadd.f32 %v5204, %v5227
        %v5244 = vadd.f32 %v5205, %v5227
        %v5245 = vadd.f32 %v5206, %v5227
        %v5246 = vadd.f32 %v5207, %v5227
        %v5247 = vadd.f32 %v5208, %v5227
        %v5248 = vadd.f32 %v5209, %v5227
        %v5249 = vadd.f32 %v5210, %v5227
        %v5250 = vadd.f32 %v5211, %v5227
        %v5251 = vadd.f32 %v5212, %v5227
        %v5252 = vadd.f32 %v5213, %v5227
        %v5253 = vadd.f32 %v5214, %v5227
        %v5254 = vadd.f32 %v5215, %v5227
        %v5255 = vadd.f32 %v5216, %v5227
        %v5256 = vadd.f32 %v5217, %v5227
        %v5257 = vadd.f32 %v5218, %v5227
        %v5258 = vadd.f32 %v5219, %v5227
        %v5259 = vadd.f32 %v5220, %v5227
        %v5260 = vadd.f32 %v5221, %v5227
        %v5261 = vld [vmem:[%s446] sm:$0xf]
        %v5262 = vld [vmem:[%s446 + $0x4] sm:$0xf]
        %v5263 = vld [vmem:[%s446 + $0x8] sm:$0xf]
        %v5264 = vld [vmem:[%s446 + $0xc] sm:$0xf]
        %v5265 = vld [vmem:[%s446 + $0x10] sm:$0xf]
        %v5266 = vld [vmem:[%s446 + $0x14] sm:$0xf]
        %v5267 = vld [vmem:[%s446 + $0x18] sm:$0xf]
        %v5268 = vld [vmem:[%s446 + $0x1c] sm:$0xf]
        %v5269 = vld [vmem:[%s446 + $0x20] sm:$0xf]
        %v5270 = vld [vmem:[%s446 + $0x24] sm:$0xf]
        %v5271 = vld [vmem:[%s446 + $0x28] sm:$0xf]
        %v5272 = vld [vmem:[%s446 + $0x2c] sm:$0xf]
        %v5273 = vld [vmem:[%s446 + $0x30] sm:$0xf]
        %v5274 = vld [vmem:[%s446 + $0x34] sm:$0xf]
        %v5275 = vld [vmem:[%s446 + $0x38] sm:$0xf]
        %v5276 = vld [vmem:[%s446 + $0x3c] sm:$0xf]
        %v5277 = vld [vmem:[%s446 + $0x40] sm:$0xf]
        %v5278 = vld [vmem:[%s446 + $0x44] sm:$0xf]
        %v5279 = vld [vmem:[%s446 + $0x48] sm:$0xf]
        %v5280 = vld [vmem:[%s446 + $0x4c] sm:$0xf]
        %v5281 = vld [vmem:[%s446 + $0x50] sm:$0xf]
        %v5282 = vld [vmem:[%s446 + $0x54] sm:$0xf]
        %v5283 = vld [vmem:[%s446 + $0x58] sm:$0xf]
        %v5284 = vld [vmem:[%s446 + $0x5c] sm:$0xf]
        %v5285 = vld [vmem:[%s446 + $0x60] sm:$0xf]
        %v5286 = vld [vmem:[%s446 + $0x64] sm:$0xf]
        %v5287 = vld [vmem:[%s446 + $0x68] sm:$0xf]
        %v5288 = vld [vmem:[%s446 + $0x6c] sm:$0xf]
        %v5289 = vld [vmem:[%s446 + $0x70] sm:$0xf]
        %v5290 = vld [vmem:[%s446 + $0x74] sm:$0xf]
        %v5291 = vld [vmem:[%s446 + $0x78] sm:$0xf]
        %v5292 = vld [vmem:[%s446 + $0x7c] sm:$0xf]
        %v5293 = vunpack.c.l.bf16 %v5261
        %v5294 = vunpack.c.l.bf16 %v5262
        %v5295 = vunpack.c.l.bf16 %v5263
        %v5296 = vunpack.c.l.bf16 %v5264
        %v5297 = vunpack.c.l.bf16 %v5265
        %v5298 = vunpack.c.l.bf16 %v5266
        %v5299 = vunpack.c.l.bf16 %v5267
        %v5300 = vunpack.c.l.bf16 %v5268
        %v5301 = vunpack.c.l.bf16 %v5269
        %v5302 = vunpack.c.l.bf16 %v5270
        %v5303 = vunpack.c.l.bf16 %v5271
        %v5304 = vunpack.c.l.bf16 %v5272
        %v5305 = vunpack.c.l.bf16 %v5273
        %v5306 = vunpack.c.l.bf16 %v5274
        %v5307 = vunpack.c.l.bf16 %v5275
        %v5308 = vunpack.c.l.bf16 %v5276
        %v5309 = vunpack.c.l.bf16 %v5277
        %v5310 = vunpack.c.l.bf16 %v5278
        %v5311 = vunpack.c.l.bf16 %v5279
        %v5312 = vunpack.c.l.bf16 %v5280
        %v5313 = vunpack.c.l.bf16 %v5281
        %v5314 = vunpack.c.l.bf16 %v5282
        %v5315 = vunpack.c.l.bf16 %v5283
        %v5316 = vunpack.c.l.bf16 %v5284
        %v5317 = vunpack.c.l.bf16 %v5285
        %v5318 = vunpack.c.l.bf16 %v5286
        %v5319 = vunpack.c.l.bf16 %v5287
        %v5320 = vunpack.c.l.bf16 %v5288
        %v5321 = vunpack.c.l.bf16 %v5289
        %v5322 = vunpack.c.l.bf16 %v5290
        %v5323 = vunpack.c.l.bf16 %v5291
        %v5324 = vunpack.c.l.bf16 %v5292
        %v5325 = vadd.f32 %v5229, %v5293
        %v5326 = vadd.f32 %v5230, %v5294
        %v5327 = vadd.f32 %v5231, %v5295
        %v5328 = vadd.f32 %v5232, %v5296
        %v5329 = vadd.f32 %v5233, %v5297
        %v5330 = vadd.f32 %v5234, %v5298
        %v5331 = vadd.f32 %v5235, %v5299
        %v5332 = vadd.f32 %v5236, %v5300
        %v5333 = vadd.f32 %v5237, %v5301
        %v5334 = vadd.f32 %v5238, %v5302
        %v5335 = vadd.f32 %v5239, %v5303
        %v5336 = vadd.f32 %v5240, %v5304
        %v5337 = vadd.f32 %v5241, %v5305
        %v5338 = vadd.f32 %v5242, %v5306
        %v5339 = vadd.f32 %v5243, %v5307
        %v5340 = vadd.f32 %v5244, %v5308
        %v5341 = vadd.f32 %v5245, %v5309
        %v5342 = vadd.f32 %v5246, %v5310
        %v5343 = vadd.f32 %v5247, %v5311
        %v5344 = vadd.f32 %v5248, %v5312
        %v5345 = vadd.f32 %v5249, %v5313
        %v5346 = vadd.f32 %v5250, %v5314
        %v5347 = vadd.f32 %v5251, %v5315
        %v5348 = vadd.f32 %v5252, %v5316
        %v5349 = vadd.f32 %v5253, %v5317
        %v5350 = vadd.f32 %v5254, %v5318
        %v5351 = vadd.f32 %v5255, %v5319
        %v5352 = vadd.f32 %v5256, %v5320
        %v5353 = vadd.f32 %v5257, %v5321
        %v5354 = vadd.f32 %v5258, %v5322
        %v5355 = vadd.f32 %v5259, %v5323
        %v5356 = vadd.f32 %v5260, %v5324
        %v5357 = vmax.f32 %v5325, 0.0
        %v5358 = vmax.f32 %v5326, 0.0
        %v5359 = vmax.f32 %v5327, 0.0
        %v5360 = vmax.f32 %v5328, 0.0
        %v5361 = vmax.f32 %v5329, 0.0
        %v5362 = vmax.f32 %v5330, 0.0
        %v5363 = vmax.f32 %v5331, 0.0
        %v5364 = vmax.f32 %v5332, 0.0
        %v5365 = vmax.f32 %v5333, 0.0
        %v5366 = vmax.f32 %v5334, 0.0
        %v5367 = vmax.f32 %v5335, 0.0
        %v5368 = vmax.f32 %v5336, 0.0
        %v5369 = vmax.f32 %v5337, 0.0
        %v5370 = vmax.f32 %v5338, 0.0
        %v5371 = vmax.f32 %v5339, 0.0
        %v5372 = vmax.f32 %v5340, 0.0
        %v5373 = vmax.f32 %v5341, 0.0
        %v5374 = vmax.f32 %v5342, 0.0
        %v5375 = vmax.f32 %v5343, 0.0
        %v5376 = vmax.f32 %v5344, 0.0
        %v5377 = vmax.f32 %v5345, 0.0
        %v5378 = vmax.f32 %v5346, 0.0
        %v5379 = vmax.f32 %v5347, 0.0
        %v5380 = vmax.f32 %v5348, 0.0
        %v5381 = vmax.f32 %v5349, 0.0
        %v5382 = vmax.f32 %v5350, 0.0
        %v5383 = vmax.f32 %v5351, 0.0
        %v5384 = vmax.f32 %v5352, 0.0
        %v5385 = vmax.f32 %v5353, 0.0
        %v5386 = vmax.f32 %v5354, 0.0
        %v5387 = vmax.f32 %v5355, 0.0
        %v5388 = vmax.f32 %v5356, 0.0
        %v5389 = vpack.c.bf16 %v5358, %v5357
        %v5390 = vpack.c.bf16 %v5360, %v5359
        %v5391 = vpack.c.bf16 %v5362, %v5361
        %v5392 = vpack.c.bf16 %v5364, %v5363
        %v5393 = vpack.c.bf16 %v5366, %v5365
        %v5394 = vpack.c.bf16 %v5368, %v5367
        %v5395 = vpack.c.bf16 %v5370, %v5369
        %v5396 = vpack.c.bf16 %v5372, %v5371
        %v5397 = vpack.c.bf16 %v5374, %v5373
        %v5398 = vpack.c.bf16 %v5376, %v5375
        %v5399 = vpack.c.bf16 %v5378, %v5377
        %v5400 = vpack.c.bf16 %v5380, %v5379
        %v5401 = vpack.c.bf16 %v5382, %v5381
        %v5402 = vpack.c.bf16 %v5384, %v5383
        %v5403 = vpack.c.bf16 %v5386, %v5385
        %v5404 = vpack.c.bf16 %v5388, %v5387
        %v5421 = vunpack.c.l.b16 %v5389
        %v5422 = vunpack.c.h.b16 %v5389
        %v5423 = vunpack.c.l.b16 %v5390
        %v5424 = vunpack.c.h.b16 %v5390
        %v5425 = vunpack.c.l.b16 %v5391
        %v5426 = vunpack.c.h.b16 %v5391
        %v5427 = vunpack.c.l.b16 %v5392
        %v5428 = vunpack.c.h.b16 %v5392
        %v5429 = vunpack.c.l.b16 %v5393
        %v5430 = vunpack.c.h.b16 %v5393
        %v5431 = vunpack.c.l.b16 %v5394
        %v5432 = vunpack.c.h.b16 %v5394
        %v5433 = vunpack.c.l.b16 %v5395
        %v5434 = vunpack.c.h.b16 %v5395
        %v5435 = vunpack.c.l.b16 %v5396
        %v5436 = vunpack.c.h.b16 %v5396
        %v5437 = vunpack.c.l.b16 %v5397
        %v5438 = vunpack.c.h.b16 %v5397
        %v5439 = vunpack.c.l.b16 %v5398
        %v5440 = vunpack.c.h.b16 %v5398
        %v5441 = vunpack.c.l.b16 %v5399
        %v5442 = vunpack.c.h.b16 %v5399
        %v5443 = vunpack.c.l.b16 %v5400
        %v5444 = vunpack.c.h.b16 %v5400
        %v5445 = vunpack.c.l.b16 %v5401
        %v5446 = vunpack.c.h.b16 %v5401
        %v5447 = vunpack.c.l.b16 %v5402
        %v5448 = vunpack.c.h.b16 %v5402
        %v5449 = vunpack.c.l.b16 %v5403
        %v5450 = vunpack.c.h.b16 %v5403
        %v5451 = vunpack.c.l.b16 %v5404
        %v5452 = vunpack.c.h.b16 %v5404
        %v5453 = vpack.c.b16 %v5421, %v5421
        %v5454 = vpack.c.b16 %v5422, %v5422
        %v5455 = vpack.c.b16 %v5423, %v5423
        %v5456 = vpack.c.b16 %v5424, %v5424
        %v5457 = vpack.c.b16 %v5425, %v5425
        %v5458 = vpack.c.b16 %v5426, %v5426
        %v5459 = vpack.c.b16 %v5427, %v5427
        %v5460 = vpack.c.b16 %v5428, %v5428
        %v5461 = vpack.c.b16 %v5429, %v5429
        %v5462 = vpack.c.b16 %v5430, %v5430
        %v5463 = vpack.c.b16 %v5431, %v5431
        %v5464 = vpack.c.b16 %v5432, %v5432
        %v5465 = vpack.c.b16 %v5433, %v5433
        %v5466 = vpack.c.b16 %v5434, %v5434
        %v5467 = vpack.c.b16 %v5435, %v5435
        %v5468 = vpack.c.b16 %v5436, %v5436
        %v5469 = vpack.c.b16 %v5437, %v5437
        %v5470 = vpack.c.b16 %v5438, %v5438
        %v5471 = vpack.c.b16 %v5439, %v5439
        %v5472 = vpack.c.b16 %v5440, %v5440
        %v5473 = vpack.c.b16 %v5441, %v5441
        %v5474 = vpack.c.b16 %v5442, %v5442
        %v5475 = vpack.c.b16 %v5443, %v5443
        %v5476 = vpack.c.b16 %v5444, %v5444
        %v5477 = vpack.c.b16 %v5445, %v5445
        %v5478 = vpack.c.b16 %v5446, %v5446
        %v5479 = vpack.c.b16 %v5447, %v5447
        %v5480 = vpack.c.b16 %v5448, %v5448
        %v5481 = vpack.c.b16 %v5449, %v5449
        %v5482 = vpack.c.b16 %v5450, %v5450
        %v5483 = vpack.c.b16 %v5451, %v5451
        %v5484 = vpack.c.b16 %v5452, %v5452
        %5517 = vst [vmem:[%s510] sm:$0xf] %v5453
        %5518 = vst [vmem:[%s510 + $0x4] sm:$0xf] %v5454
        %5519 = vst [vmem:[%s510 + $0x8] sm:$0xf] %v5455
        %5520 = vst [vmem:[%s510 + $0xc] sm:$0xf] %v5456
        %5521 = vst [vmem:[%s510 + $0x10] sm:$0xf] %v5457
        %5522 = vst [vmem:[%s510 + $0x14] sm:$0xf] %v5458
        %5523 = vst [vmem:[%s510 + $0x18] sm:$0xf] %v5459
        %5524 = vst [vmem:[%s510 + $0x1c] sm:$0xf] %v5460
        %5525 = vst [vmem:[%s510 + $0x20] sm:$0xf] %v5461
        %5526 = vst [vmem:[%s510 + $0x24] sm:$0xf] %v5462
        %5527 = vst [vmem:[%s510 + $0x28] sm:$0xf] %v5463
        %5528 = vst [vmem:[%s510 + $0x2c] sm:$0xf] %v5464
        %5529 = vst [vmem:[%s510 + $0x30] sm:$0xf] %v5465
        %5530 = vst [vmem:[%s510 + $0x34] sm:$0xf] %v5466
        %5531 = vst [vmem:[%s510 + $0x38] sm:$0xf] %v5467
        %5532 = vst [vmem:[%s510 + $0x3c] sm:$0xf] %v5468
        %5533 = vst [vmem:[%s510 + $0x40] sm:$0xf] %v5469
        %5534 = vst [vmem:[%s510 + $0x44] sm:$0xf] %v5470
        %5535 = vst [vmem:[%s510 + $0x48] sm:$0xf] %v5471
        %5536 = vst [vmem:[%s510 + $0x4c] sm:$0xf] %v5472
        %5537 = vst [vmem:[%s510 + $0x50] sm:$0xf] %v5473
        %5538 = vst [vmem:[%s510 + $0x54] sm:$0xf] %v5474
        %5539 = vst [vmem:[%s510 + $0x58] sm:$0xf] %v5475
        %5540 = vst [vmem:[%s510 + $0x5c] sm:$0xf] %v5476
        %5541 = vst [vmem:[%s510 + $0x60] sm:$0xf] %v5477
        %5542 = vst [vmem:[%s510 + $0x64] sm:$0xf] %v5478
        %5543 = vst [vmem:[%s510 + $0x68] sm:$0xf] %v5479
        %5544 = vst [vmem:[%s510 + $0x6c] sm:$0xf] %v5480
        %5545 = vst [vmem:[%s510 + $0x70] sm:$0xf] %v5481
        %5546 = vst [vmem:[%s510 + $0x74] sm:$0xf] %v5482
        %5547 = vst [vmem:[%s510 + $0x78] sm:$0xf] %v5483
        %5548 = vst [vmem:[%s510 + $0x7c] sm:$0xf] %v5484
        %s5549 = sand.u32 %s299, 1
        %s5550 = scalar_lea.sflag [#allocation5], %s5549
        %s5551 = sand.u32 %s299, 1
        %s5552 = smul.addr %s5551, 128
        %s5553 = scalar_lea.vmem [#allocation12], %s5552
        // Predicated region
        $region85: #{tpu_custom_call.1} parent=63 // pred_check
          %p5554 = pneg %p309
        $region86: #{tpu_custom_call.1} parent=63 // pred_check_branch
          %5556 = sbr.rel (%p5554) target = $region88
        $region87: #{tpu_custom_call.1} parent=63 // pred_region
          %s5557 = smul.u32 16, %s37
          %s5559 = ssub.s32 2048, 2048
          %5560 = vsyncadd %s5550, %s5559
          %s5561 = smul.addr %s5557, 2
          %s5562 = smul.addr %s36, 32
          %s5563 = sadd.s32 %s5561, %s5562
          %s5564 = smul.addr %s5563, 64
          %s5565 = scalar_lea.hbm %s11, %s5564
          %s5566 = sshll.u32 %s5553, 4
          %s5567 = int_to_ptr.vmem [resolvable:$true] %s5566
          %5572 = dma.vmem_to_hbm [thread:$0]  %s5567, 2048, %s5565, %s5550, 64, 64, 4
        $region88: #{tpu_custom_call.1} parent=63 // pred_fallthru
          _
      $region64: #{tpu_custom_call.1} parent=5 // pred_fallthru
        _
      %p5573 = scmp.le.s32.totalorder 2, %s27
      // Predicated region
      $region89: #{tpu_custom_call.1} parent=5 // pred_check
        %p5574 = pneg %p5573
      $region90: #{tpu_custom_call.1} parent=5 // pred_check_branch
        %5576 = sbr.rel (%p5574) target = $region92
      $region91: #{tpu_custom_call.1} parent=5 // pred_region
        %s5577 = ssub.s32 %s27, 2
        // Predicated region
        $region93: #{tpu_custom_call.1} parent=91 // pred_check
          %p5578 = pneg %p315
        $region94: #{tpu_custom_call.1} parent=91 // pred_check_branch
          %5580 = sbr.rel (%p5578) target = $region96
        $region95: #{tpu_custom_call.1} parent=91 // pred_region
          %s5581 = sand.u32 %s300, 1
          %s5582 = scalar_lea.sflag [#allocation5], %s5581
          %s5583 = sand.u32 %s300, 1
          %s5584 = smul.addr %s5583, 128
          %s5585 = scalar_lea.vmem [#allocation12], %s5584
          %5586 = dma.done %s5582, 2048
        $region96: #{tpu_custom_call.1} parent=91 // pred_fallthru
          _
      $region92: #{tpu_custom_call.1} parent=5 // pred_fallthru
        _
    $region6: #{tpu_custom_call.1} parent=1 // loop_footer
      %s31 = sadd.s32 1, %s27
    $region7: #{tpu_custom_call.1} parent=1 // loop_footer_branch
      %26 = sbr.rel target = $region3
    $region8: #{tpu_custom_call.1} parent=1 // loop_exit
      _
    %5587 = vsyncpa [#allocation4], 1
    %s5588 = scalar_lea.sflag [#allocation4], 1
    %5589 = vsyncpa %s5588, 1
    %5590 = vsyncpa [#allocation7], 1
    %s5591 = scalar_lea.sflag [#allocation7], 1
    %5592 = vsyncpa %s5591, 1
    %5593 = vsyncpa [#allocation10], 1
    %5594 = vsyncpa [#allocation5], 1
    %s5595 = scalar_lea.sflag [#allocation5], 1
    %5596 = vsyncpa %s5595, 1

// kernel: tpu_custom_call.1
$region0: #{tpu_custom_call.1}
  #allocation0 [shape = 'u32[]', space=smem, size = 0x4, offset = 0x4, fixed_abs, tag = 'smem constant byte address 0x4 - core index']
  #allocation1 [shape = 'u32[144,128]{1,0:T(1,128)}', space=vmem, size = 0x12000, scoped, tag = 'internal scratch']
  #allocation2 [shape = 'bf16[1,18,48,128]{3,2,1,0:T(16,128)(2,1)}', space=vmem, size = 0x36000, scoped, tag = 'scratch operand']
  %s0 = inlined_call_operand.hbm [shape: bf16[2,16,16,128], index: 0, kind: input, shape index: {}]
  %s1 = inlined_call_operand.hbm [shape: bf16[2,1,2,16,128], index: 1, kind: input, shape index: {}]
  %s2 = inlined_call_operand.hbm [shape: bf16[128,128], index: 2, kind: input, shape index: {}]
  %s3 = inlined_call_operand.vmem [shape: f32[1,128], index: 3, kind: input, shape index: {}]
  %s4 = inlined_call_operand.vmem [shape: f32[1,128], index: 4, kind: input, shape index: {}]
  %s5 = inlined_call_operand.hbm [shape: bf16[1152,128], index: 5, kind: input, shape index: {}]
  %s6 = inlined_call_operand.vmem [shape: f32[1,128], index: 6, kind: input, shape index: {}]
  %s7 = inlined_call_operand.vmem [shape: f32[1,128], index: 7, kind: input, shape index: {}]
  %s8 = inlined_call_operand.hbm [shape: bf16[128,128], index: 8, kind: input, shape index: {}]
  %s9 = inlined_call_operand.vmem [shape: f32[1,128], index: 9, kind: input, shape index: {}]
  %s10 = inlined_call_operand.vmem [shape: f32[1,128], index: 10, kind: input, shape index: {}]
  %s11 = inlined_call_operand.hbm [shape: bf16[2,16,16,128], index: 11, kind: output, shape index: {}]
  %s12 = sld [smem:[#allocation0]]
  $region97: #{tpu_custom_call.1} parent=0
    _
  %s14 = ssub.s32 1, %s12
  %s15 = scalar_select 0, %s14, %s12
  $region1: #{tpu_custom_call.1} parent=0
    #allocation3 [shape = 'u8[131072]{0}', space=vmem, size = 0x20000, scoped, tag = 'input window, operand 0']
    #allocation4 [shape = 's32[2]{0}', space=sflag, size = 0x8, scoped, tag = 'scoped memory for tpu_custom_call.1']
    #allocation5 [shape = 's32[2]{0}', space=sflag, size = 0x8, scoped, tag = 'scoped memory for tpu_custom_call.1']
    #allocation6 [shape = 'u8[16384]{0}', space=vmem, size = 0x4000, scoped, tag = 'input window, operand 1']
    #allocation7 [shape = 's32[2]{0}', space=sflag, size = 0x8, scoped, tag = 'scoped memory for tpu_custom_call.1']
    #allocation8 [shape = 'u8[32768]{0}', space=vmem, size = 0x8000, scoped, tag = 'input window, operand 2, single buffered']
    #allocation9 [shape = 'u8[294912]{0}', space=vmem, size = 0x48000, scoped, tag = 'input window, operand 5, single buffered']
    #allocation10 [shape = 's32[1]{0}', space=sflag, size = 0x4, scoped, tag = 'scoped memory for tpu_custom_call.1']
    #allocation11 [shape = 'u8[32768]{0}', space=vmem, size = 0x8000, scoped, tag = 'input window, operand 8, single buffered']
    #allocation12 [shape = 'u8[131072]{0}', space=vmem, size = 0x20000, scoped, tag = 'output window, operand 0']
    %16 = vsyncpa [#allocation4], 0
    %s17 = scalar_lea.sflag [#allocation4], 1
    %18 = vsyncpa %s17, 0
    %19 = vsyncpa [#allocation7], 0
    %s20 = scalar_lea.sflag [#allocation7], 1
    %21 = vsyncpa %s20, 0
    %22 = vsyncpa [#allocation10], 0
    %23 = vsyncpa [#allocation5], 0
    %s24 = scalar_lea.sflag [#allocation5], 1
    %25 = vsyncpa %s24, 0
    loop: start=0, step=1, limit=4
    $region2: #{tpu_custom_call.1} parent=1 // loop_pre_header
      _
    $region3: #{tpu_custom_call.1} parent=1 // loop_header
      %s27 = sphi 0, %s31
      %p28 = scmp.ge.s32.totalorder %s27, 4
      %s34 = sphi 0, %s46
      %s35 = sphi 0, %s42
      %s36 = sphi 0, %s34
      %s37 = sphi 0, %s35
      %s38 = sphi 0, %s36
      %s39 = sphi 0, %s37
      %s51 = sphi 0, %s53
      %s54 = sphi 0, %s51
      %s55 = sphi 0, %s54
      %s71 = sphi 0, %s55
      %s79 = sphi 0, %s81
      %s82 = sphi 0, %s79
      %s83 = sphi 0, %s82
      %s99 = sphi 0, %s83
      %s103 = sphi 0, %s103
      %s105 = sphi 0, %s103
      %s106 = sphi 0, %s105
      %s120 = sphi 0, %s106
      %s124 = sphi 0, %s124
      %s126 = sphi 0, %s124
      %s127 = sphi 0, %s126
      %s141 = sphi 0, %s127
      %s145 = sphi 0, %s145
      %s147 = sphi 0, %s145
      %s148 = sphi 0, %s147
      %s162 = sphi 0, %s148
      %s166 = sphi 0, %s166
      %s168 = sphi 0, %s166
      %s169 = sphi 0, %s168
      %s183 = sphi 0, %s169
      %s187 = sphi 0, %s187
      %s189 = sphi 0, %s187
      %s190 = sphi 0, %s189
      %s204 = sphi 0, %s190
      %s208 = sphi 0, %s208
      %s210 = sphi 0, %s208
      %s211 = sphi 0, %s210
      %s225 = sphi 0, %s211
      %s229 = sphi 0, %s229
      %s231 = sphi 0, %s229
      %s232 = sphi 0, %s231
      %s246 = sphi 0, %s232
      %s250 = sphi 0, %s250
      %s252 = sphi 0, %s250
      %s253 = sphi 0, %s252
      %s267 = sphi 0, %s253
      %s271 = sphi 0, %s271
      %s273 = sphi 0, %s271
      %s274 = sphi 0, %s273
      %s288 = sphi 0, %s274
      %s296 = sphi 0, %s298
      %s299 = sphi 0, %s296
      %s300 = sphi 0, %s299
      %s316 = sphi 0, %s300
    $region4: #{tpu_custom_call.1} parent=1 // loop_header_branch
      %30 = sbr.rel (%p28) target = $region8
    $region5: #{tpu_custom_call.1} parent=1 // loop_body
      %s32 = ssub.s32 %s27, 1
      %s33 = ssub.s32 %s27, 2
      %s40 = sadd.s32 1, %s35
      %p41 = scmp.ge.s32.totalorder %s40, 1
      %s42 = scalar_select %p41, 0, %s40
      %s43 = sadd.s32 1, %s34
      %s44 = scalar_select %p41, %s43, %s34
      %p45 = scmp.ge.s32.totalorder %s44, 2
      %s46 = scalar_select %p45, 0, %s44
      %s47 = ssub.s32 %s34, %s46
      %s48 = ssub.s32 %s35, %s42
      %s49 = sor.u32 %s47, %s48
      %p50 = scmp.eq.s32.totalorder %s49, 0
      %s52 = sadd.s32 %s51, 1
      %s53 = scalar_select %p50, %s51, %s52
      %p56 = pneg %p50
      %p57 = scmp.eq.s32.totalorder %s27, 1
      %p58 = por %p56, %p57
      %p59 = scmp.ne.s32.totalorder %s51, %s54
      %p60 = scmp.eq.s32.totalorder %s27, 0
      %p61 = por %p59, %p60
      %p62 = scmp.ne.s32.totalorder %s51, %s54
      %p63 = scmp.eq.s32.totalorder %s32, 1
      %p64 = por %p62, %p63
      %p65 = scmp.ne.s32.totalorder %s54, %s55
      %p66 = scmp.eq.s32.totalorder %s32, 0
      %p67 = por %p65, %p66
      %p68 = scmp.ne.s32.totalorder %s54, %s55
      %p69 = scmp.eq.s32.totalorder %s33, 1
      %p70 = por %p68, %p69
      %p72 = scmp.ne.s32.totalorder %s55, %s71
      %p73 = scmp.eq.s32.totalorder %s33, 0
      %p74 = por %p72, %p73
      %s75 = ssub.s32 %s34, %s46
      %s76 = ssub.s32 %s35, %s42
      %s77 = sor.u32 %s75, %s76
      %p78 = scmp.eq.s32.totalorder %s77, 0
      %s80 = sadd.s32 %s79, 1
      %s81 = scalar_select %p78, %s79, %s80
      %p84 = pneg %p78
      %p85 = scmp.eq.s32.totalorder %s27, 1
      %p86 = por %p84, %p85
      %p87 = scmp.ne.s32.totalorder %s79, %s82
      %p88 = scmp.eq.s32.totalorder %s27, 0
      %p89 = por %p87, %p88
      %p90 = scmp.ne.s32.totalorder %s79, %s82
      %p91 = scmp.eq.s32.totalorder %s32, 1
      %p92 = por %p90, %p91
      %p93 = scmp.ne.s32.totalorder %s82, %s83
      %p94 = scmp.eq.s32.totalorder %s32, 0
      %p95 = por %p93, %p94
      %p96 = scmp.ne.s32.totalorder %s82, %s83
      %p97 = scmp.eq.s32.totalorder %s33, 1
      %p98 = por %p96, %p97
      %p100 = scmp.ne.s32.totalorder %s83, %s99
      %p101 = scmp.eq.s32.totalorder %s33, 0
      %p102 = por %p100, %p101
      %s104 = sadd.s32 %s103, 1
      %p107 = scmp.eq.s32.totalorder %s27, 1
      %p108 = scmp.ne.s32.totalorder %s103, %s105
      %p109 = scmp.eq.s32.totalorder %s27, 0
      %p110 = por %p108, %p109
      %p111 = scmp.ne.s32.totalorder %s103, %s105
      %p112 = scmp.eq.s32.totalorder %s32, 1
      %p113 = por %p111, %p112
      %p114 = scmp.ne.s32.totalorder %s105, %s106
      %p115 = scmp.eq.s32.totalorder %s32, 0
      %p116 = por %p114, %p115
      %p117 = scmp.ne.s32.totalorder %s105, %s106
      %p118 = scmp.eq.s32.totalorder %s33, 1
      %p119 = por %p117, %p118
      %p121 = scmp.ne.s32.totalorder %s106, %s120
      %p122 = scmp.eq.s32.totalorder %s33, 0
      %p123 = por %p121, %p122
      %s125 = sadd.s32 %s124, 1
      %p128 = scmp.eq.s32.totalorder %s27, 1
      %p129 = scmp.ne.s32.totalorder %s124, %s126
      %p130 = scmp.eq.s32.totalorder %s27, 0
      %p131 = por %p129, %p130
      %p132 = scmp.ne.s32.totalorder %s124, %s126
      %p133 = scmp.eq.s32.totalorder %s32, 1
      %p134 = por %p132, %p133
      %p135 = scmp.ne.s32.totalorder %s126, %s127
      %p136 = scmp.eq.s32.totalorder %s32, 0
      %p137 = por %p135, %p136
      %p138 = scmp.ne.s32.totalorder %s126, %s127
      %p139 = scmp.eq.s32.totalorder %s33, 1
      %p140 = por %p138, %p139
      %p142 = scmp.ne.s32.totalorder %s127, %s141
      %p143 = scmp.eq.s32.totalorder %s33, 0
      %p144 = por %p142, %p143
      %s146 = sadd.s32 %s145, 1
      %p149 = scmp.eq.s32.totalorder %s27, 1
      %p150 = scmp.ne.s32.totalorder %s145, %s147
      %p151 = scmp.eq.s32.totalorder %s27, 0
      %p152 = por %p150, %p151
      %p153 = scmp.ne.s32.totalorder %s145, %s147
      %p154 = scmp.eq.s32.totalorder %s32, 1
      %p155 = por %p153, %p154
      %p156 = scmp.ne.s32.totalorder %s147, %s148
      %p157 = scmp.eq.s32.totalorder %s32, 0
      %p158 = por %p156, %p157
      %p159 = scmp.ne.s32.totalorder %s147, %s148
      %p160 = scmp.eq.s32.totalorder %s33, 1
      %p161 = por %p159, %p160
      %p163 = scmp.ne.s32.totalorder %s148, %s162
      %p164 = scmp.eq.s32.totalorder %s33, 0
      %p165 = por %p163, %p164
      %s167 = sadd.s32 %s166, 1
      %p170 = scmp.eq.s32.totalorder %s27, 1
      %p171 = scmp.ne.s32.totalorder %s166, %s168
      %p172 = scmp.eq.s32.totalorder %s27, 0
      %p173 = por %p171, %p172
      %p174 = scmp.ne.s32.totalorder %s166, %s168
      %p175 = scmp.eq.s32.totalorder %s32, 1
      %p176 = por %p174, %p175
      %p177 = scmp.ne.s32.totalorder %s168, %s169
      %p178 = scmp.eq.s32.totalorder %s32, 0
      %p179 = por %p177, %p178
      %p180 = scmp.ne.s32.totalorder %s168, %s169
      %p181 = scmp.eq.s32.totalorder %s33, 1
      %p182 = por %p180, %p181
      %p184 = scmp.ne.s32.totalorder %s169, %s183
      %p185 = scmp.eq.s32.totalorder %s33, 0
      %p186 = por %p184, %p185
      %s188 = sadd.s32 %s187, 1
      %p191 = scmp.eq.s32.totalorder %s27, 1
      %p192 = scmp.ne.s32.totalorder %s187, %s189
      %p193 = scmp.eq.s32.totalorder %s27, 0
      %p194 = por %p192, %p193
      %p195 = scmp.ne.s32.totalorder %s187, %s189
      %p196 = scmp.eq.s32.totalorder %s32, 1
      %p197 = por %p195, %p196
      %p198 = scmp.ne.s32.totalorder %s189, %s190
      %p199 = scmp.eq.s32.totalorder %s32, 0
      %p200 = por %p198, %p199
      %p201 = scmp.ne.s32.totalorder %s189, %s190
      %p202 = scmp.eq.s32.totalorder %s33, 1
      %p203 = por %p201, %p202
      %p205 = scmp.ne.s32.totalorder %s190, %s204
      %p206 = scmp.eq.s32.totalorder %s33, 0
      %p207 = por %p205, %p206
      %s209 = sadd.s32 %s208, 1
      %p212 = scmp.eq.s32.totalorder %s27, 1
      %p213 = scmp.ne.s32.totalorder %s208, %s210
      %p214 = scmp.eq.s32.totalorder %s27, 0
      %p215 = por %p213, %p214
      %p216 = scmp.ne.s32.totalorder %s208, %s210
      %p217 = scmp.eq.s32.totalorder %s32, 1
      %p218 = por %p216, %p217
      %p219 = scmp.ne.s32.totalorder %s210, %s211
      %p220 = scmp.eq.s32.totalorder %s32, 0
      %p221 = por %p219, %p220
      %p222 = scmp.ne.s32.totalorder %s210, %s211
      %p223 = scmp.eq.s32.totalorder %s33, 1
      %p224 = por %p222, %p223
      %p226 = scmp.ne.s32.totalorder %s211, %s225
      %p227 = scmp.eq.s32.totalorder %s33, 0
      %p228 = por %p226, %p227
      %s230 = sadd.s32 %s229, 1
      %p233 = scmp.eq.s32.totalorder %s27, 1
      %p234 = scmp.ne.s32.totalorder %s229, %s231
      %p235 = scmp.eq.s32.totalorder %s27, 0
      %p236 = por %p234, %p235
      %p237 = scmp.ne.s32.totalorder %s229, %s231
      %p238 = scmp.eq.s32.totalorder %s32, 1
      %p239 = por %p237, %p238
      %p240 = scmp.ne.s32.totalorder %s231, %s232
      %p241 = scmp.eq.s32.totalorder %s32, 0
      %p242 = por %p240, %p241
      %p243 = scmp.ne.s32.totalorder %s231, %s232
      %p244 = scmp.eq.s32.totalorder %s33, 1
      %p245 = por %p243, %p244
      %p247 = scmp.ne.s32.totalorder %s232, %s246
      %p248 = scmp.eq.s32.totalorder %s33, 0
      %p249 = por %p247, %p248
      %s251 = sadd.s32 %s250, 1
      %p254 = scmp.eq.s32.totalorder %s27, 1
      %p255 = scmp.ne.s32.totalorder %s250, %s252
      %p256 = scmp.eq.s32.totalorder %s27, 0
      %p257 = por %p255, %p256
      %p258 = scmp.ne.s32.totalorder %s250, %s252
      %p259 = scmp.eq.s32.totalorder %s32, 1
      %p260 = por %p258, %p259
      %p261 = scmp.ne.s32.totalorder %s252, %s253
      %p262 = scmp.eq.s32.totalorder %s32, 0
      %p263 = por %p261, %p262
      %p264 = scmp.ne.s32.totalorder %s252, %s253
      %p265 = scmp.eq.s32.totalorder %s33, 1
      %p266 = por %p264, %p265
      %p268 = scmp.ne.s32.totalorder %s253, %s267
      %p269 = scmp.eq.s32.totalorder %s33, 0
      %p270 = por %p268, %p269
      %s272 = sadd.s32 %s271, 1
      %p275 = scmp.eq.s32.totalorder %s27, 1
      %p276 = scmp.ne.s32.totalorder %s271, %s273
      %p277 = scmp.eq.s32.totalorder %s27, 0
      %p278 = por %p276, %p277
      %p279 = scmp.ne.s32.totalorder %s271, %s273
      %p280 = scmp.eq.s32.totalorder %s32, 1
      %p281 = por %p279, %p280
      %p282 = scmp.ne.s32.totalorder %s273, %s274
      %p283 = scmp.eq.s32.totalorder %s32, 0
      %p284 = por %p282, %p283
      %p285 = scmp.ne.s32.totalorder %s273, %s274
      %p286 = scmp.eq.s32.totalorder %s33, 1
      %p287 = por %p285, %p286
      %p289 = scmp.ne.s32.totalorder %s274, %s288
      %p290 = scmp.eq.s32.totalorder %s33, 0
      %p291 = por %p289, %p290
      %s292 = ssub.s32 %s34, %s46
      %s293 = ssub.s32 %s35, %s42
      %s294 = sor.u32 %s292, %s293
      %p295 = scmp.eq.s32.totalorder %s294, 0
      %s297 = sadd.s32 %s296, 1
      %s298 = scalar_select %p295, %s296, %s297
      %p301 = pneg %p295
      %p302 = scmp.eq.s32.totalorder %s27, 1
      %p303 = por %p301, %p302
      %p304 = scmp.ne.s32.totalorder %s296, %s299
      %p305 = scmp.eq.s32.totalorder %s27, 0
      %p306 = por %p304, %p305
      %p307 = scmp.ne.s32.totalorder %s296, %s299
      %p308 = scmp.eq.s32.totalorder %s32, 1
      %p309 = por %p307, %p308
      %p310 = scmp.ne.s32.totalorder %s299, %s300
      %p311 = scmp.eq.s32.totalorder %s32, 0
      %p312 = por %p310, %p311
      %p313 = scmp.ne.s32.totalorder %s299, %s300
      %p314 = scmp.eq.s32.totalorder %s33, 1
      %p315 = por %p313, %p314
      %p317 = scmp.ne.s32.totalorder %s300, %s316
      %p318 = scmp.eq.s32.totalorder %s33, 0
      %p319 = por %p317, %p318
      %p320 = scmp.le.s32.totalorder 1, %s27
      %p321 = scmp.lt.s32.totalorder %s27, 3
      %p322 = pnand %p320, %p321
      %p323 = pneg %p322
      // Predicated region
      $region9: #{tpu_custom_call.1} parent=5 // pred_check
        _
      $region10: #{tpu_custom_call.1} parent=5 // pred_check_branch
        %325 = sbr.rel (%p322) target = $region12
      $region11: #{tpu_custom_call.1} parent=5 // pred_region
        %s326 = ssub.s32 %s27, 1
        // Predicated region
        $region13: #{tpu_custom_call.1} parent=11 // pred_check
          %p327 = pneg %p116
        $region14: #{tpu_custom_call.1} parent=11 // pred_check_branch
          %329 = sbr.rel (%p327) target = $region16
        $region15: #{tpu_custom_call.1} parent=11 // pred_region
          %s331 = ssub.s32 1024, 1024
          %332 = vsyncadd [#allocation7], %s331
          %s333 = sshll.u32 [#allocation8], 4
          %s334 = int_to_ptr.vmem [resolvable:$true] %s333
          %339 = dma.hbm_to_vmem [thread:$0]  %s2, 1024, %s334, [#allocation7], 64, 64, 4
        $region16: #{tpu_custom_call.1} parent=11 // pred_fallthru
          _
        // Predicated region
        $region17: #{tpu_custom_call.1} parent=11 // pred_check
          %p340 = pneg %p137
        $region18: #{tpu_custom_call.1} parent=11 // pred_check_branch
          %342 = sbr.rel (%p340) target = $region20
        $region19: #{tpu_custom_call.1} parent=11 // pred_region
          _
        $region20: #{tpu_custom_call.1} parent=11 // pred_fallthru
          _
        // Predicated region
        $region21: #{tpu_custom_call.1} parent=11 // pred_check
          %p343 = pneg %p158
        $region22: #{tpu_custom_call.1} parent=11 // pred_check_branch
          %345 = sbr.rel (%p343) target = $region24
        $region23: #{tpu_custom_call.1} parent=11 // pred_region
          _
        $region24: #{tpu_custom_call.1} parent=11 // pred_fallthru
          _
        // Predicated region
        $region25: #{tpu_custom_call.1} parent=11 // pred_check
          %p346 = pneg %p179
        $region26: #{tpu_custom_call.1} parent=11 // pred_check_branch
          %348 = sbr.rel (%p346) target = $region28
        $region27: #{tpu_custom_call.1} parent=11 // pred_region
          %s350 = ssub.s32 9216, 9216
          %351 = vsyncadd [#allocation10], %s350
          %s352 = sshll.u32 [#allocation9], 4
          %s353 = int_to_ptr.vmem [resolvable:$true] %s352
          %358 = dma.hbm_to_vmem [thread:$0]  %s5, 9216, %s353, [#allocation10], 64, 64, 4
        $region28: #{tpu_custom_call.1} parent=11 // pred_fallthru
          _
        // Predicated region
        $region29: #{tpu_custom_call.1} parent=11 // pred_check
          %p359 = pneg %p200
        $region30: #{tpu_custom_call.1} parent=11 // pred_check_branch
          %361 = sbr.rel (%p359) target = $region32
        $region31: #{tpu_custom_call.1} parent=11 // pred_region
          _
        $region32: #{tpu_custom_call.1} parent=11 // pred_fallthru
          _
        // Predicated region
        $region33: #{tpu_custom_call.1} parent=11 // pred_check
          %p362 = pneg %p221
        $region34: #{tpu_custom_call.1} parent=11 // pred_check_branch
          %364 = sbr.rel (%p362) target = $region36
        $region35: #{tpu_custom_call.1} parent=11 // pred_region
          _
        $region36: #{tpu_custom_call.1} parent=11 // pred_fallthru
          _
        // Predicated region
        $region37: #{tpu_custom_call.1} parent=11 // pred_check
          %p365 = pneg %p242
        $region38: #{tpu_custom_call.1} parent=11 // pred_check_branch
          %367 = sbr.rel (%p365) target = $region40
        $region39: #{tpu_custom_call.1} parent=11 // pred_region
          %s369 = ssub.s32 1024, 1024
          %370 = vsyncadd [#allocation10], %s369
          %s371 = sshll.u32 [#allocation11], 4
          %s372 = int_to_ptr.vmem [resolvable:$true] %s371
          %377 = dma.hbm_to_vmem [thread:$0]  %s8, 1024, %s372, [#allocation10], 64, 64, 4
        $region40: #{tpu_custom_call.1} parent=11 // pred_fallthru
          _
        // Predicated region
        $region41: #{tpu_custom_call.1} parent=11 // pred_check
          %p378 = pneg %p263
        $region42: #{tpu_custom_call.1} parent=11 // pred_check_branch
          %380 = sbr.rel (%p378) target = $region44
        $region43: #{tpu_custom_call.1} parent=11 // pred_region
          _
        $region44: #{tpu_custom_call.1} parent=11 // pred_fallthru
          _
        // Predicated region
        $region45: #{tpu_custom_call.1} parent=11 // pred_check
          %p381 = pneg %p284
        $region46: #{tpu_custom_call.1} parent=11 // pred_check_branch
          %383 = sbr.rel (%p381) target = $region48
        $region47: #{tpu_custom_call.1} parent=11 // pred_region
          _
        $region48: #{tpu_custom_call.1} parent=11 // pred_fallthru
          _
      $region12: #{tpu_custom_call.1} parent=5 // pred_fallthru
        _
      %p384 = scmp.lt.s32.totalorder %s27, 2
      // Predicated region
      $region49: #{tpu_custom_call.1} parent=5 // pred_check
        %p385 = pneg %p384
      $region50: #{tpu_custom_call.1} parent=5 // pred_check_branch
        %387 = sbr.rel (%p385) target = $region52
      $region51: #{tpu_custom_call.1} parent=5 // pred_region
        // Predicated region
        $region53: #{tpu_custom_call.1} parent=51 // pred_check
          %p388 = pneg %p61
        $region54: #{tpu_custom_call.1} parent=51 // pred_check_branch
          %390 = sbr.rel (%p388) target = $region56
        $region55: #{tpu_custom_call.1} parent=51 // pred_region
          %s391 = sand.u32 %s51, 1
          %s392 = scalar_lea.sflag [#allocation4], %s391
          %s393 = sand.u32 %s51, 1
          %s394 = smul.addr %s393, 128
          %s395 = scalar_lea.vmem [#allocation3], %s394
          %s396 = smul.u32 16, %s35
          %s398 = ssub.s32 2048, 2048
          %399 = vsyncadd %s392, %s398
          %s400 = smul.addr %s396, 2
          %s401 = smul.addr %s34, 32
          %s402 = sadd.s32 %s400, %s401
          %s403 = smul.addr %s402, 64
          %s404 = scalar_lea.hbm %s0, %s403
          %s405 = sshll.u32 %s395, 4
          %s406 = int_to_ptr.vmem [resolvable:$true] %s405
          %411 = dma.hbm_to_vmem [thread:$0]  %s404, 2048, %s406, %s392, 64, 64, 4
        $region56: #{tpu_custom_call.1} parent=51 // pred_fallthru
          _
        // Predicated region
        $region57: #{tpu_custom_call.1} parent=51 // pred_check
          %p412 = pneg %p89
        $region58: #{tpu_custom_call.1} parent=51 // pred_check_branch
          %414 = sbr.rel (%p412) target = $region60
        $region59: #{tpu_custom_call.1} parent=51 // pred_region
          %s415 = sand.u32 %s27, 1
          %s416 = scalar_lea.sflag [#allocation7], %s415
          %s417 = sand.u32 %s79, 1
          %s418 = smul.addr %s417, 16
          %s419 = scalar_lea.vmem [#allocation6], %s418
          %s421 = ssub.s32 256, 256
          %422 = vsyncadd %s416, %s421
          %s423 = smul.addr %s35, 4
          %s424 = smul.addr %s34, 4
          %s425 = sadd.s32 %s423, %s424
          %s426 = smul.addr %s425, 64
          %s427 = scalar_lea.hbm %s1, %s426
          %s428 = sshll.u32 %s419, 4
          %s429 = int_to_ptr.vmem [resolvable:$true] %s428
          %434 = dma.hbm_to_vmem [thread:$0]  %s427, 256, %s429, %s416, 64, 64, 4
        $region60: #{tpu_custom_call.1} parent=51 // pred_fallthru
          _
      $region52: #{tpu_custom_call.1} parent=5 // pred_fallthru
        _
      %p435 = scmp.le.s32.totalorder 1, %s27
      %p436 = scmp.lt.s32.totalorder %s27, 3
      %p437 = pnand %p435, %p436
      %p438 = pneg %p437
      // Predicated region
      $region61: #{tpu_custom_call.1} parent=5 // pred_check
        _
      $region62: #{tpu_custom_call.1} parent=5 // pred_check_branch
        %440 = sbr.rel (%p437) target = $region64
      $region63: #{tpu_custom_call.1} parent=5 // pred_region
        %s441 = ssub.s32 %s27, 1
        %s442 = sand.u32 %s54, 1
        %s443 = scalar_lea.sflag [#allocation4], %s442
        %s444 = sand.u32 %s54, 1
        %s445 = smul.addr %s444, 128
        %s446 = scalar_lea.vmem [#allocation3], %s445
        // Predicated region
        $region65: #{tpu_custom_call.1} parent=63 // pred_check
          %p447 = pneg %p67
        $region66: #{tpu_custom_call.1} parent=63 // pred_check_branch
          %449 = sbr.rel (%p447) target = $region68
        $region67: #{tpu_custom_call.1} parent=63 // pred_region
          %450 = dma.done %s443, 2048
        $region68: #{tpu_custom_call.1} parent=63 // pred_fallthru
          _
        %s451 = sand.u32 %s32, 1
        %s452 = scalar_lea.sflag [#allocation7], %s451
        %s453 = sand.u32 %s82, 1
        %s454 = smul.addr %s453, 16
        %s455 = scalar_lea.vmem [#allocation6], %s454
        // Predicated region
        $region69: #{tpu_custom_call.1} parent=63 // pred_check
          %p456 = pneg %p95
        $region70: #{tpu_custom_call.1} parent=63 // pred_check_branch
          %458 = sbr.rel (%p456) target = $region72
        $region71: #{tpu_custom_call.1} parent=63 // pred_region
          %459 = dma.done %s452, 256
        $region72: #{tpu_custom_call.1} parent=63 // pred_fallthru
          _
        // Predicated region
        $region73: #{tpu_custom_call.1} parent=63 // pred_check
          %p460 = pneg %p116
        $region74: #{tpu_custom_call.1} parent=63 // pred_check_branch
          %462 = sbr.rel (%p460) target = $region76
        $region75: #{tpu_custom_call.1} parent=63 // pred_region
          %463 = dma.done [#allocation7], 1024
        $region76: #{tpu_custom_call.1} parent=63 // pred_fallthru
          _
        // Predicated region
        $region77: #{tpu_custom_call.1} parent=63 // pred_check
          %p464 = pneg %p179
        $region78: #{tpu_custom_call.1} parent=63 // pred_check_branch
          %466 = sbr.rel (%p464) target = $region80
        $region79: #{tpu_custom_call.1} parent=63 // pred_region
          %467 = dma.done [#allocation10], 9216
        $region80: #{tpu_custom_call.1} parent=63 // pred_fallthru
          _
        // Predicated region
        $region81: #{tpu_custom_call.1} parent=63 // pred_check
          %p468 = pneg %p242
        $region82: #{tpu_custom_call.1} parent=63 // pred_check_branch
          %470 = sbr.rel (%p468) target = $region84
        $region83: #{tpu_custom_call.1} parent=63 // pred_region
          %471 = dma.done [#allocation10], 1024
        $region84: #{tpu_custom_call.1} parent=63 // pred_fallthru
          _
        %s472 = sand.u32 %s54, 1
        %s473 = scalar_lea.sflag [#allocation4], %s472
        %s474 = sand.u32 %s54, 1
        %s475 = smul.addr %s474, 128
        %s476 = scalar_lea.vmem [#allocation3], %s475
        %p477 = pneg %p67
        %p478 = pneg %p64
        %s479 = sand.u32 %s32, 1
        %s480 = scalar_lea.sflag [#allocation7], %s479
        %s481 = sand.u32 %s82, 1
        %s482 = smul.addr %s481, 16
        %s483 = scalar_lea.vmem [#allocation6], %s482
        %p484 = pneg %p95
        %p485 = pneg %p92
        %p486 = pneg %p116
        %p487 = pneg %p113
        %p488 = pneg %p137
        %p489 = pneg %p134
        %p490 = pneg %p158
        %p491 = pneg %p155
        %p492 = pneg %p179
        %p493 = pneg %p176
        %p494 = pneg %p200
        %p495 = pneg %p197
        %p496 = pneg %p221
        %p497 = pneg %p218
        %p498 = pneg %p242
        %p499 = pneg %p239
        %p500 = pneg %p263
        %p501 = pneg %p260
        %p502 = pneg %p284
        %p503 = pneg %p281
        %p504 = pneg %p312
        %p505 = pneg %p309
        %s506 = sand.u32 %s299, 1
        %s507 = scalar_lea.sflag [#allocation5], %s506
        %s508 = sand.u32 %s299, 1
        %s509 = smul.addr %s508, 128
        %s510 = scalar_lea.vmem [#allocation12], %s509
        %s511 = smul.u32 16, %s37
        %s512 = smul.u32 16, %s37
        %v514 = vld [vmem:[%s446] sm:$0xf]
        %v515 = vld [vmem:[%s446 + $0x4] sm:$0xf]
        %v516 = vld [vmem:[%s446 + $0x8] sm:$0xf]
        %v517 = vld [vmem:[%s446 + $0xc] sm:$0xf]
        %v518 = vld [vmem:[%s446 + $0x10] sm:$0xf]
        %v519 = vld [vmem:[%s446 + $0x14] sm:$0xf]
        %v520 = vld [vmem:[%s446 + $0x18] sm:$0xf]
        %v521 = vld [vmem:[%s446 + $0x1c] sm:$0xf]
        %v522 = vld [vmem:[%s446 + $0x20] sm:$0xf]
        %v523 = vld [vmem:[%s446 + $0x24] sm:$0xf]
        %v524 = vld [vmem:[%s446 + $0x28] sm:$0xf]
        %v525 = vld [vmem:[%s446 + $0x2c] sm:$0xf]
        %v526 = vld [vmem:[%s446 + $0x30] sm:$0xf]
        %v527 = vld [vmem:[%s446 + $0x34] sm:$0xf]
        %v528 = vld [vmem:[%s446 + $0x38] sm:$0xf]
        %v529 = vld [vmem:[%s446 + $0x3c] sm:$0xf]
        %v530 = vld [vmem:[%s446 + $0x40] sm:$0xf]
        %v531 = vld [vmem:[%s446 + $0x44] sm:$0xf]
        %v532 = vld [vmem:[%s446 + $0x48] sm:$0xf]
        %v533 = vld [vmem:[%s446 + $0x4c] sm:$0xf]
        %v534 = vld [vmem:[%s446 + $0x50] sm:$0xf]
        %v535 = vld [vmem:[%s446 + $0x54] sm:$0xf]
        %v536 = vld [vmem:[%s446 + $0x58] sm:$0xf]
        %v537 = vld [vmem:[%s446 + $0x5c] sm:$0xf]
        %v538 = vld [vmem:[%s446 + $0x60] sm:$0xf]
        %v539 = vld [vmem:[%s446 + $0x64] sm:$0xf]
        %v540 = vld [vmem:[%s446 + $0x68] sm:$0xf]
        %v541 = vld [vmem:[%s446 + $0x6c] sm:$0xf]
        %v542 = vld [vmem:[%s446 + $0x70] sm:$0xf]
        %v543 = vld [vmem:[%s446 + $0x74] sm:$0xf]
        %v544 = vld [vmem:[%s446 + $0x78] sm:$0xf]
        %v545 = vld [vmem:[%s446 + $0x7c] sm:$0xf]
        %v546 = vld [vmem:[#allocation8] sm:$0xf]
        %v547 = vld [vmem:[#allocation8 + $0x4] sm:$0xf]
        %v548 = vld [vmem:[#allocation8 + $0x8] sm:$0xf]
        %v549 = vld [vmem:[#allocation8 + $0xc] sm:$0xf]
        %v550 = vld [vmem:[#allocation8 + $0x10] sm:$0xf]
        %v551 = vld [vmem:[#allocation8 + $0x14] sm:$0xf]
        %v552 = vld [vmem:[#allocation8 + $0x18] sm:$0xf]
        %v553 = vld [vmem:[#allocation8 + $0x1c] sm:$0xf]
        %v554 = vld [vmem:[#allocation8 + $0x20] sm:$0xf]
        %v555 = vld [vmem:[#allocation8 + $0x24] sm:$0xf]
        %v556 = vld [vmem:[#allocation8 + $0x28] sm:$0xf]
        %v557 = vld [vmem:[#allocation8 + $0x2c] sm:$0xf]
        %v558 = vld [vmem:[#allocation8 + $0x30] sm:$0xf]
        %v559 = vld [vmem:[#allocation8 + $0x34] sm:$0xf]
        %v560 = vld [vmem:[#allocation8 + $0x38] sm:$0xf]
        %v561 = vld [vmem:[#allocation8 + $0x3c] sm:$0xf]
        %v594 = vunpack.c.l.b16 %v514
        %v595 = vunpack.c.l.b16 %v515
        %v596 = vunpack.c.l.b16 %v516
        %v597 = vunpack.c.l.b16 %v517
        %v598 = vunpack.c.l.b16 %v518
        %v599 = vunpack.c.l.b16 %v519
        %v600 = vunpack.c.l.b16 %v520
        %v601 = vunpack.c.l.b16 %v521
        %v602 = vunpack.c.l.b16 %v522
        %v603 = vunpack.c.l.b16 %v523
        %v604 = vunpack.c.l.b16 %v524
        %v605 = vunpack.c.l.b16 %v525
        %v606 = vunpack.c.l.b16 %v526
        %v607 = vunpack.c.l.b16 %v527
        %v608 = vunpack.c.l.b16 %v528
        %v609 = vunpack.c.l.b16 %v529
        %v610 = vunpack.c.l.b16 %v530
        %v611 = vunpack.c.l.b16 %v531
        %v612 = vunpack.c.l.b16 %v532
        %v613 = vunpack.c.l.b16 %v533
        %v614 = vunpack.c.l.b16 %v534
        %v615 = vunpack.c.l.b16 %v535
        %v616 = vunpack.c.l.b16 %v536
        %v617 = vunpack.c.l.b16 %v537
        %v618 = vunpack.c.l.b16 %v538
        %v619 = vunpack.c.l.b16 %v539
        %v620 = vunpack.c.l.b16 %v540
        %v621 = vunpack.c.l.b16 %v541
        %v622 = vunpack.c.l.b16 %v542
        %v623 = vunpack.c.l.b16 %v543
        %v624 = vunpack.c.l.b16 %v544
        %v625 = vunpack.c.l.b16 %v545
        %v626 = vpack.c.b16 %v595, %v594
        %v627 = vpack.c.b16 %v597, %v596
        %v628 = vpack.c.b16 %v599, %v598
        %v629 = vpack.c.b16 %v601, %v600
        %v630 = vpack.c.b16 %v603, %v602
        %v631 = vpack.c.b16 %v605, %v604
        %v632 = vpack.c.b16 %v607, %v606
        %v633 = vpack.c.b16 %v609, %v608
        %v634 = vpack.c.b16 %v611, %v610
        %v635 = vpack.c.b16 %v613, %v612
        %v636 = vpack.c.b16 %v615, %v614
        %v637 = vpack.c.b16 %v617, %v616
        %v638 = vpack.c.b16 %v619, %v618
        %v639 = vpack.c.b16 %v621, %v620
        %v640 = vpack.c.b16 %v623, %v622
        %v641 = vpack.c.b16 %v625, %v624
        %v674 = vunpack.c.l.b16 %v546
        %v675 = vunpack.c.l.b16 %v547
        %v676 = vunpack.c.l.b16 %v548
        %v677 = vunpack.c.l.b16 %v549
        %v678 = vunpack.c.l.b16 %v550
        %v679 = vunpack.c.l.b16 %v551
        %v680 = vunpack.c.l.b16 %v552
        %v681 = vunpack.c.l.b16 %v553
        %v682 = vunpack.c.l.b16 %v554
        %v683 = vunpack.c.l.b16 %v555
        %v684 = vunpack.c.l.b16 %v556
        %v685 = vunpack.c.l.b16 %v557
        %v686 = vunpack.c.l.b16 %v558
        %v687 = vunpack.c.l.b16 %v559
        %v688 = vunpack.c.l.b16 %v560
        %v689 = vunpack.c.l.b16 %v561
        %v690 = vpack.c.b16 %v675, %v674
        %v691 = vpack.c.b16 %v677, %v676
        %v692 = vpack.c.b16 %v679, %v678
        %v693 = vpack.c.b16 %v681, %v680
        %v694 = vpack.c.b16 %v683, %v682
        %v695 = vpack.c.b16 %v685, %v684
        %v696 = vpack.c.b16 %v687, %v686
        %v697 = vpack.c.b16 %v689, %v688
        %706 = vmatprep.subr.bf16.mxu0 0
        %707 = vmatpush1.bf16.msra.mxu0 %v690
        %708 = vmatprep.subr.bf16.mxu0 0
        %709 = vmatpush1.bf16.msra.mxu0 %v691
        %710 = vmatprep.subr.bf16.mxu0 0
        %711 = vmatpush1.bf16.msra.mxu0 %v692
        %712 = vmatprep.subr.bf16.mxu0 0
        %713 = vmatpush1.bf16.msra.mxu0 %v693
        %714 = vmatprep.subr.bf16.mxu0 0
        %715 = vmatpush1.bf16.msra.mxu0 %v694
        %716 = vmatprep.subr.bf16.mxu0 0
        %717 = vmatpush1.bf16.msra.mxu0 %v695
        %718 = vmatprep.subr.bf16.mxu0 0
        %719 = vmatpush1.bf16.msra.mxu0 %v696
        %720 = vmatprep.subr.bf16.mxu0 0
        %721 = vmatpush1.bf16.msra.mxu0 %v697
        %722 = vmatprep.subr.bf16.mxu0 0
        %723 = vmatpush1.bf16.msra.mxu0 0
        %724 = vmatprep.subr.bf16.mxu0 0
        %725 = vmatpush1.bf16.msra.mxu0 0
        %726 = vmatprep.subr.bf16.mxu0 0
        %727 = vmatpush1.bf16.msra.mxu0 0
        %728 = vmatprep.subr.bf16.mxu0 0
        %729 = vmatpush1.bf16.msra.mxu0 0
        %730 = vmatprep.subr.bf16.mxu0 0
        %731 = vmatpush1.bf16.msra.mxu0 0
        %732 = vmatprep.subr.bf16.mxu0 0
        %733 = vmatpush1.bf16.msra.mxu0 0
        %734 = vmatprep.subr.bf16.mxu0 0
        %735 = vmatpush1.bf16.msra.mxu0 0
        %736 = vmatprep.subr.bf16.mxu0 0
        %737 = vmatpush1.bf16.msra.mxu0 0
        %738 = vmatprep.mubr.bf16.mxu0 0
        %739 = vmatmul.mubr.bf16.gmra.mrb[0].mxu0 %v626
        %v740 = vpop.f32.mrb[0].mxu0
        %v741 = vadd.f32 0.0, %v740
        %v742 = vpop.f32.mrb[0].mxu0
        %v743 = vpop.f32.mrb[0].mxu0
        %v744 = vadd.f32 0.0, %v743
        %v745 = vpop.f32.mrb[0].mxu0
        %746 = vmatprep.mubr.bf16.mxu0 0
        %747 = vmatmul.mubr.bf16.gmra.mrb[0].mxu0 %v627
        %v748 = vpop.f32.mrb[0].mxu0
        %v749 = vadd.f32 0.0, %v748
        %v750 = vpop.f32.mrb[0].mxu0
        %v751 = vpop.f32.mrb[0].mxu0
        %v752 = vadd.f32 0.0, %v751
        %v753 = vpop.f32.mrb[0].mxu0
        %754 = vmatprep.mubr.bf16.mxu0 0
        %755 = vmatmul.mubr.bf16.gmra.mrb[0].mxu0 %v628
        %v756 = vpop.f32.mrb[0].mxu0
        %v757 = vadd.f32 0.0, %v756
        %v758 = vpop.f32.mrb[0].mxu0
        %v759 = vpop.f32.mrb[0].mxu0
        %v760 = vadd.f32 0.0, %v759
        %v761 = vpop.f32.mrb[0].mxu0
        %762 = vmatprep.mubr.bf16.mxu0 0
        %763 = vmatmul.mubr.bf16.gmra.mrb[0].mxu0 %v629
        %v764 = vpop.f32.mrb[0].mxu0
        %v765 = vadd.f32 0.0, %v764
        %v766 = vpop.f32.mrb[0].mxu0
        %v767 = vpop.f32.mrb[0].mxu0
        %v768 = vadd.f32 0.0, %v767
        %v769 = vpop.f32.mrb[0].mxu0
        %770 = vmatprep.mubr.bf16.mxu0 0
        %771 = vmatmul.mubr.bf16.gmra.mrb[0].mxu0 %v630
        %v772 = vpop.f32.mrb[0].mxu0
        %v773 = vadd.f32 0.0, %v772
        %v774 = vpop.f32.mrb[0].mxu0
        %v775 = vpop.f32.mrb[0].mxu0
        %v776 = vadd.f32 0.0, %v775
        %v777 = vpop.f32.mrb[0].mxu0
        %778 = vmatprep.mubr.bf16.mxu0 0
        %779 = vmatmul.mubr.bf16.gmra.mrb[0].mxu0 %v631
        %v780 = vpop.f32.mrb[0].mxu0
        %v781 = vadd.f32 0.0, %v780
        %v782 = vpop.f32.mrb[0].mxu0
        %v783 = vpop.f32.mrb[0].mxu0
        %v784 = vadd.f32 0.0, %v783
        %v785 = vpop.f32.mrb[0].mxu0
        %786 = vmatprep.mubr.bf16.mxu0 0
        %787 = vmatmul.mubr.bf16.gmra.mrb[0].mxu0 %v632
        %v788 = vpop.f32.mrb[0].mxu0
        %v789 = vadd.f32 0.0, %v788
        %v790 = vpop.f32.mrb[0].mxu0
        %v791 = vpop.f32.mrb[0].mxu0
        %v792 = vadd.f32 0.0, %v791
        %v793 = vpop.f32.mrb[0].mxu0
        %794 = vmatprep.mubr.bf16.mxu0 0
        %795 = vmatmul.mubr.bf16.gmra.mrb[0].mxu0 %v633
        %v796 = vpop.f32.mrb[0].mxu0
        %v797 = vadd.f32 0.0, %v796
        %v798 = vpop.f32.mrb[0].mxu0
        %v799 = vpop.f32.mrb[0].mxu0
        %v800 = vadd.f32 0.0, %v799
        %v801 = vpop.f32.mrb[0].mxu0
        %802 = vmatprep.mubr.bf16.mxu0 0
        %803 = vmatmul.mubr.bf16.gmra.mrb[0].mxu0 %v634
        %v804 = vpop.f32.mrb[0].mxu0
        %v805 = vadd.f32 0.0, %v804
        %v806 = vpop.f32.mrb[0].mxu0
        %v807 = vpop.f32.mrb[0].mxu0
        %v808 = vadd.f32 0.0, %v807
        %v809 = vpop.f32.mrb[0].mxu0
        %810 = vmatprep.mubr.bf16.mxu0 0
        %811 = vmatmul.mubr.bf16.gmra.mrb[0].mxu0 %v635
        %v812 = vpop.f32.mrb[0].mxu0
        %v813 = vadd.f32 0.0, %v812
        %v814 = vpop.f32.mrb[0].mxu0
        %v815 = vpop.f32.mrb[0].mxu0
        %v816 = vadd.f32 0.0, %v815
        %v817 = vpop.f32.mrb[0].mxu0
        %818 = vmatprep.mubr.bf16.mxu0 0
        %819 = vmatmul.mubr.bf16.gmra.mrb[0].mxu0 %v636
        %v820 = vpop.f32.mrb[0].mxu0
        %v821 = vadd.f32 0.0, %v820
        %v822 = vpop.f32.mrb[0].mxu0
        %v823 = vpop.f32.mrb[0].mxu0
        %v824 = vadd.f32 0.0, %v823
        %v825 = vpop.f32.mrb[0].mxu0
        %826 = vmatprep.mubr.bf16.mxu0 0
        %827 = vmatmul.mubr.bf16.gmra.mrb[0].mxu0 %v637
        %v828 = vpop.f32.mrb[0].mxu0
        %v829 = vadd.f32 0.0, %v828
        %v830 = vpop.f32.mrb[0].mxu0
        %v831 = vpop.f32.mrb[0].mxu0
        %v832 = vadd.f32 0.0, %v831
        %v833 = vpop.f32.mrb[0].mxu0
        %834 = vmatprep.mubr.bf16.mxu0 0
        %835 = vmatmul.mubr.bf16.gmra.mrb[0].mxu0 %v638
        %v836 = vpop.f32.mrb[0].mxu0
        %v837 = vadd.f32 0.0, %v836
        %v838 = vpop.f32.mrb[0].mxu0
        %v839 = vpop.f32.mrb[0].mxu0
        %v840 = vadd.f32 0.0, %v839
        %v841 = vpop.f32.mrb[0].mxu0
        %842 = vmatprep.mubr.bf16.mxu0 0
        %843 = vmatmul.mubr.bf16.gmra.mrb[0].mxu0 %v639
        %v844 = vpop.f32.mrb[0].mxu0
        %v845 = vadd.f32 0.0, %v844
        %v846 = vpop.f32.mrb[0].mxu0
        %v847 = vpop.f32.mrb[0].mxu0
        %v848 = vadd.f32 0.0, %v847
        %v849 = vpop.f32.mrb[0].mxu0
        %850 = vmatprep.mubr.bf16.mxu0 0
        %851 = vmatmul.mubr.bf16.gmra.mrb[0].mxu0 %v640
        %v852 = vpop.f32.mrb[0].mxu0
        %v853 = vadd.f32 0.0, %v852
        %v854 = vpop.f32.mrb[0].mxu0
        %v855 = vpop.f32.mrb[0].mxu0
        %v856 = vadd.f32 0.0, %v855
        %v857 = vpop.f32.mrb[0].mxu0
        %858 = vmatprep.mubr.bf16.mxu0 0
        %859 = vmatmul.mubr.bf16.gmra.mrb[0].mxu0 %v641
        %v860 = vpop.f32.mrb[0].mxu0
        %v861 = vadd.f32 0.0, %v860
        %v862 = vpop.f32.mrb[0].mxu0
        %v863 = vpop.f32.mrb[0].mxu0
        %v864 = vadd.f32 0.0, %v863
        %v865 = vpop.f32.mrb[0].mxu0
        %866 = vdwg.mxu0
        %v867 = vld [vmem:[%s3] sm:$0x1]
        %v869 = vlaneseq
        %v870 = vshrl.u32 %v869, 7
        %v871 = vsub.s32 0, %v870
        %v872 = vrot.slane %v867, %v871
        %v874 = vmul.f32 %v741, %v872
        %v875 = vmul.f32 %v744, %v872
        %v876 = vmul.f32 %v749, %v872
        %v877 = vmul.f32 %v752, %v872
        %v878 = vmul.f32 %v757, %v872
        %v879 = vmul.f32 %v760, %v872
        %v880 = vmul.f32 %v765, %v872
        %v881 = vmul.f32 %v768, %v872
        %v882 = vmul.f32 %v773, %v872
        %v883 = vmul.f32 %v776, %v872
        %v884 = vmul.f32 %v781, %v872
        %v885 = vmul.f32 %v784, %v872
        %v886 = vmul.f32 %v789, %v872
        %v887 = vmul.f32 %v792, %v872
        %v888 = vmul.f32 %v797, %v872
        %v889 = vmul.f32 %v800, %v872
        %v890 = vmul.f32 %v805, %v872
        %v891 = vmul.f32 %v808, %v872
        %v892 = vmul.f32 %v813, %v872
        %v893 = vmul.f32 %v816, %v872
        %v894 = vmul.f32 %v821, %v872
        %v895 = vmul.f32 %v824, %v872
        %v896 = vmul.f32 %v829, %v872
        %v897 = vmul.f32 %v832, %v872
        %v898 = vmul.f32 %v837, %v872
        %v899 = vmul.f32 %v840, %v872
        %v900 = vmul.f32 %v845, %v872
        %v901 = vmul.f32 %v848, %v872
        %v902 = vmul.f32 %v853, %v872
        %v903 = vmul.f32 %v856, %v872
        %v904 = vmul.f32 %v861, %v872
        %v905 = vmul.f32 %v864, %v872
        %v906 = vld [vmem:[%s4] sm:$0x1]
        %v908 = vlaneseq
        %v909 = vshrl.u32 %v908, 7
        %v910 = vsub.s32 0, %v909
        %v911 = vrot.slane %v906, %v910
        %v913 = vadd.f32 %v874, %v911
        %v914 = vadd.f32 %v875, %v911
        %v915 = vadd.f32 %v876, %v911
        %v916 = vadd.f32 %v877, %v911
        %v917 = vadd.f32 %v878, %v911
        %v918 = vadd.f32 %v879, %v911
        %v919 = vadd.f32 %v880, %v911
        %v920 = vadd.f32 %v881, %v911
        %v921 = vadd.f32 %v882, %v911
        %v922 = vadd.f32 %v883, %v911
        %v923 = vadd.f32 %v884, %v911
        %v924 = vadd.f32 %v885, %v911
        %v925 = vadd.f32 %v886, %v911
        %v926 = vadd.f32 %v887, %v911
        %v927 = vadd.f32 %v888, %v911
        %v928 = vadd.f32 %v889, %v911
        %v929 = vadd.f32 %v890, %v911
        %v930 = vadd.f32 %v891, %v911
        %v931 = vadd.f32 %v892, %v911
        %v932 = vadd.f32 %v893, %v911
        %v933 = vadd.f32 %v894, %v911
        %v934 = vadd.f32 %v895, %v911
        %v935 = vadd.f32 %v896, %v911
        %v936 = vadd.f32 %v897, %v911
        %v937 = vadd.f32 %v898, %v911
        %v938 = vadd.f32 %v899, %v911
        %v939 = vadd.f32 %v900, %v911
        %v940 = vadd.f32 %v901, %v911
        %v941 = vadd.f32 %v902, %v911
        %v942 = vadd.f32 %v903, %v911
        %v943 = vadd.f32 %v904, %v911
        %v944 = vadd.f32 %v905, %v911
        %v945 = vmax.f32 %v913, 0.0
        %v946 = vmax.f32 %v914, 0.0
        %v947 = vmax.f32 %v915, 0.0
        %v948 = vmax.f32 %v916, 0.0
        %v949 = vmax.f32 %v917, 0.0
        %v950 = vmax.f32 %v918, 0.0
        %v951 = vmax.f32 %v919, 0.0
        %v952 = vmax.f32 %v920, 0.0
        %v953 = vmax.f32 %v921, 0.0
        %v954 = vmax.f32 %v922, 0.0
        %v955 = vmax.f32 %v923, 0.0
        %v956 = vmax.f32 %v924, 0.0
        %v957 = vmax.f32 %v925, 0.0
        %v958 = vmax.f32 %v926, 0.0
        %v959 = vmax.f32 %v927, 0.0
        %v960 = vmax.f32 %v928, 0.0
        %v961 = vmax.f32 %v929, 0.0
        %v962 = vmax.f32 %v930, 0.0
        %v963 = vmax.f32 %v931, 0.0
        %v964 = vmax.f32 %v932, 0.0
        %v965 = vmax.f32 %v933, 0.0
        %v966 = vmax.f32 %v934, 0.0
        %v967 = vmax.f32 %v935, 0.0
        %v968 = vmax.f32 %v936, 0.0
        %v969 = vmax.f32 %v937, 0.0
        %v970 = vmax.f32 %v938, 0.0
        %v971 = vmax.f32 %v939, 0.0
        %v972 = vmax.f32 %v940, 0.0
        %v973 = vmax.f32 %v941, 0.0
        %v974 = vmax.f32 %v942, 0.0
        %v975 = vmax.f32 %v943, 0.0
        %v976 = vmax.f32 %v944, 0.0
        %v977 = vpack.c.bf16 %v946, %v945
        %v978 = vpack.c.bf16 %v948, %v947
        %v979 = vpack.c.bf16 %v950, %v949
        %v980 = vpack.c.bf16 %v952, %v951
        %v981 = vpack.c.bf16 %v954, %v953
        %v982 = vpack.c.bf16 %v956, %v955
        %v983 = vpack.c.bf16 %v958, %v957
        %v984 = vpack.c.bf16 %v960, %v959
        %v985 = vpack.c.bf16 %v962, %v961
        %v986 = vpack.c.bf16 %v964, %v963
        %v987 = vpack.c.bf16 %v966, %v965
        %v988 = vpack.c.bf16 %v968, %v967
        %v989 = vpack.c.bf16 %v970, %v969
        %v990 = vpack.c.bf16 %v972, %v971
        %v991 = vpack.c.bf16 %v974, %v973
        %v992 = vpack.c.bf16 %v976, %v975
        %v993 = vld [vmem:[%s455] sm:$0xf]
        %v994 = vld [vmem:[%s455 + $0x4] sm:$0xf]
        %v995 = vld [vmem:[%s455 + $0x8] sm:$0xf]
        %v996 = vld [vmem:[%s455 + $0xc] sm:$0xf]
        %v1001 = vunpack.c.l.b16 %v993
        %v1002 = vunpack.c.l.b16 %v994
        %v1003 = vunpack.c.l.b16 %v995
        %v1004 = vunpack.c.l.b16 %v996
        %v1005 = vpack.c.b16 %v1002, %v1001
        %v1006 = vpack.c.b16 %v1004, %v1003
        %1009 = vmatprep.subr.bf16.mxu0 0
        %1010 = vmatpush1.bf16.msra.mxu0 %v690
        %1011 = vmatprep.subr.bf16.mxu0 0
        %1012 = vmatpush1.bf16.msra.mxu0 %v691
        %1013 = vmatprep.subr.bf16.mxu0 0
        %1014 = vmatpush1.bf16.msra.mxu0 %v692
        %1015 = vmatprep.subr.bf16.mxu0 0
        %1016 = vmatpush1.bf16.msra.mxu0 %v693
        %1017 = vmatprep.subr.bf16.mxu0 0
        %1018 = vmatpush1.bf16.msra.mxu0 %v694
        %1019 = vmatprep.subr.bf16.mxu0 0
        %1020 = vmatpush1.bf16.msra.mxu0 %v695
        %1021 = vmatprep.subr.bf16.mxu0 0
        %1022 = vmatpush1.bf16.msra.mxu0 %v696
        %1023 = vmatprep.subr.bf16.mxu0 0
        %1024 = vmatpush1.bf16.msra.mxu0 %v697
        %1025 = vmatprep.subr.bf16.mxu0 0
        %1026 = vmatpush1.bf16.msra.mxu0 0
        %1027 = vmatprep.subr.bf16.mxu0 0
        %1028 = vmatpush1.bf16.msra.mxu0 0
        %1029 = vmatprep.subr.bf16.mxu0 0
        %1030 = vmatpush1.bf16.msra.mxu0 0
        %1031 = vmatprep.subr.bf16.mxu0 0
        %1032 = vmatpush1.bf16.msra.mxu0 0
        %1033 = vmatprep.subr.bf16.mxu0 0
        %1034 = vmatpush1.bf16.msra.mxu0 0
        %1035 = vmatprep.subr.bf16.mxu0 0
        %1036 = vmatpush1.bf16.msra.mxu0 0
        %1037 = vmatprep.subr.bf16.mxu0 0
        %1038 = vmatpush1.bf16.msra.mxu0 0
        %1039 = vmatprep.subr.bf16.mxu0 0
        %1040 = vmatpush1.bf16.msra.mxu0 0
        %1041 = vmatprep.mubr.bf16.mxu0 0
        %1042 = vmatmul.mubr.bf16.gmra.mrb[0].mxu0 %v1005
        %v1043 = vpop.f32.mrb[0].mxu0
        %v1044 = vadd.f32 0.0, %v1043
        %v1045 = vpop.f32.mrb[0].mxu0
        %v1046 = vpop.f32.mrb[0].mxu0
        %v1047 = vadd.f32 0.0, %v1046
        %v1048 = vpop.f32.mrb[0].mxu0
        %1049 = vmatprep.mubr.bf16.mxu0 0
        %1050 = vmatmul.mubr.bf16.gmra.mrb[0].mxu0 %v1006
        %v1051 = vpop.f32.mrb[0].mxu0
        %v1052 = vadd.f32 0.0, %v1051
        %v1053 = vpop.f32.mrb[0].mxu0
        %v1054 = vpop.f32.mrb[0].mxu0
        %v1055 = vadd.f32 0.0, %v1054
        %v1056 = vpop.f32.mrb[0].mxu0
        %1057 = vdwg.mxu0
        %v1058 = vmul.f32 %v1044, %v872
        %v1059 = vmul.f32 %v1047, %v872
        %v1060 = vmul.f32 %v1052, %v872
        %v1061 = vmul.f32 %v1055, %v872
        %v1062 = vadd.f32 %v1058, %v911
        %v1063 = vadd.f32 %v1059, %v911
        %v1064 = vadd.f32 %v1060, %v911
        %v1065 = vadd.f32 %v1061, %v911
        %v1066 = vmax.f32 %v1062, 0.0
        %v1067 = vmax.f32 %v1063, 0.0
        %v1068 = vmax.f32 %v1064, 0.0
        %v1069 = vmax.f32 %v1065, 0.0
        %p1070 = scmp.gt.s32.totalorder %s37, 0
        %s1071 = scalar_select %p1070, 1, 0
        %s1072 = scvt.s32.f32 %s1071
        %v1073 = vstv %s1072
        %v1074 = vmul.f32 %v1066, %v1073
        %v1075 = vmul.f32 %v1067, %v1073
        %p1076 = scmp.lt.s32.totalorder %s37, 0
        %s1077 = scalar_select %p1076, 1, 0
        %s1078 = scvt.s32.f32 %s1077
        %v1079 = vstv %s1078
        %v1080 = vmul.f32 %v1068, %v1079
        %v1081 = vmul.f32 %v1069, %v1079
        %v1082 = vpack.c.bf16 %v1075, %v1074
        %v1083 = vpack.c.bf16 %v1081, %v1080
        %1084 = vst [vmem:[#allocation2] sm:$0xff] 0
        %1085 = vst [vmem:[#allocation2 + $0x18] sm:$0xff] 0
        %1086 = vst [vmem:[#allocation2 + $0x30] sm:$0xff] 0
        %1087 = vst [vmem:[#allocation2 + $0x48] sm:$0xff] 0
        %1088 = vst [vmem:[#allocation2 + $0x60] sm:$0xff] 0
        %1089 = vst [vmem:[#allocation2 + $0x78] sm:$0xff] 0
        %1090 = vst [vmem:[#allocation2 + $0x90] sm:$0xff] 0
        %1091 = vst [vmem:[#allocation2 + $0xa8] sm:$0xff] 0
        %1092 = vst [vmem:[#allocation2 + $0xc0] sm:$0xff] 0
        %1093 = vst [vmem:[#allocation2 + $0xd8] sm:$0xff] 0
        %1094 = vst [vmem:[#allocation2 + $0xf0] sm:$0xff] 0
        %1095 = vst [vmem:[#allocation2 + $0x108] sm:$0xff] 0
        %1096 = vst [vmem:[#allocation2 + $0x120] sm:$0xff] 0
        %1097 = vst [vmem:[#allocation2 + $0x138] sm:$0xff] 0
        %1098 = vst [vmem:[#allocation2 + $0x150] sm:$0xff] 0
        %1099 = vst [vmem:[#allocation2 + $0x168] sm:$0xff] 0
        %1100 = vst [vmem:[#allocation2 + $0x180] sm:$0xff] 0
        %1101 = vst [vmem:[#allocation2 + $0x198] sm:$0xff] 0
        %1102 = vst [vmem:[#allocation2 + $0x10] sm:$0xff] 0
        %1103 = vst [vmem:[#allocation2 + $0x28] sm:$0xff] 0
        %1104 = vst [vmem:[#allocation2 + $0x40] sm:$0xff] 0
        %1105 = vst [vmem:[#allocation2 + $0x58] sm:$0xff] 0
        %1106 = vst [vmem:[#allocation2 + $0x70] sm:$0xff] 0
        %1107 = vst [vmem:[#allocation2 + $0x88] sm:$0xff] 0
        %1108 = vst [vmem:[#allocation2 + $0xa0] sm:$0xff] 0
        %1109 = vst [vmem:[#allocation2 + $0xb8] sm:$0xff] 0
        %1110 = vst [vmem:[#allocation2 + $0xd0] sm:$0xff] 0
        %1111 = vst [vmem:[#allocation2 + $0xe8] sm:$0xff] 0
        %1112 = vst [vmem:[#allocation2 + $0x100] sm:$0xff] 0
        %1113 = vst [vmem:[#allocation2 + $0x118] sm:$0xff] 0
        %1114 = vst [vmem:[#allocation2 + $0x130] sm:$0xff] 0
        %1115 = vst [vmem:[#allocation2 + $0x148] sm:$0xff] 0
        %1116 = vst [vmem:[#allocation2 + $0x160] sm:$0xff] 0
        %1117 = vst [vmem:[#allocation2 + $0x178] sm:$0xff] 0
        %1118 = vst [vmem:[#allocation2 + $0x190] sm:$0xff] 0
        %1119 = vst [vmem:[#allocation2 + $0x1a8] sm:$0xff] 0
        %s1120 = scalar_lea.vmem [#allocation2], 24
        %1121 = vst [vmem:[%s1120 + $0x8] sm:$0xff] %v977
        %1122 = vst [vmem:[%s1120 + $0x20] sm:$0xff] %v978
        %1123 = vst [vmem:[%s1120 + $0x38] sm:$0xff] %v979
        %1124 = vst [vmem:[%s1120 + $0x50] sm:$0xff] %v980
        %1125 = vst [vmem:[%s1120 + $0x68] sm:$0xff] %v981
        %1126 = vst [vmem:[%s1120 + $0x80] sm:$0xff] %v982
        %1127 = vst [vmem:[%s1120 + $0x98] sm:$0xff] %v983
        %1128 = vst [vmem:[%s1120 + $0xb0] sm:$0xff] %v984
        %1129 = vst [vmem:[%s1120 + $0xc8] sm:$0xff] %v985
        %1130 = vst [vmem:[%s1120 + $0xe0] sm:$0xff] %v986
        %1131 = vst [vmem:[%s1120 + $0xf8] sm:$0xff] %v987
        %1132 = vst [vmem:[%s1120 + $0x110] sm:$0xff] %v988
        %1133 = vst [vmem:[%s1120 + $0x128] sm:$0xff] %v989
        %1134 = vst [vmem:[%s1120 + $0x140] sm:$0xff] %v990
        %1135 = vst [vmem:[%s1120 + $0x158] sm:$0xff] %v991
        %1136 = vst [vmem:[%s1120 + $0x170] sm:$0xff] %v992
        %1137 = vst [vmem:[#allocation2 + $0x8] sm:$0xff] %v1082
        %s1138 = scalar_lea.vmem [#allocation2], 408
        %1139 = vst [vmem:[%s1138 + $0x8] sm:$0xff] %v1083
        %v1140 = vld [vmem:[#allocation2] sm:$0x80]
        %v1141 = vld [vmem:[#allocation2 + $0x8] sm:$0xff]
        %v1142 = vld [vmem:[#allocation2 + $0x18] sm:$0x80]
        %v1143 = vld [vmem:[#allocation2 + $0x20] sm:$0xff]
        %v1144 = vld [vmem:[#allocation2 + $0x30] sm:$0x80]
        %v1145 = vld [vmem:[#allocation2 + $0x38] sm:$0xff]
        %v1146 = vld [vmem:[#allocation2 + $0x48] sm:$0x80]
        %v1147 = vld [vmem:[#allocation2 + $0x50] sm:$0xff]
        %v1148 = vld [vmem:[#allocation2 + $0x60] sm:$0x80]
        %v1149 = vld [vmem:[#allocation2 + $0x68] sm:$0xff]
        %v1150 = vld [vmem:[#allocation2 + $0x78] sm:$0x80]
        %v1151 = vld [vmem:[#allocation2 + $0x80] sm:$0xff]
        %v1152 = vld [vmem:[#allocation2 + $0x90] sm:$0x80]
        %v1153 = vld [vmem:[#allocation2 + $0x98] sm:$0xff]
        %v1154 = vld [vmem:[#allocation2 + $0xa8] sm:$0x80]
        %v1155 = vld [vmem:[#allocation2 + $0xb0] sm:$0xff]
        %v1156 = vld [vmem:[#allocation2 + $0xc0] sm:$0x80]
        %v1157 = vld [vmem:[#allocation2 + $0xc8] sm:$0xff]
        %v1158 = vld [vmem:[#allocation2 + $0xd8] sm:$0x80]
        %v1159 = vld [vmem:[#allocation2 + $0xe0] sm:$0xff]
        %v1160 = vld [vmem:[#allocation2 + $0xf0] sm:$0x80]
        %v1161 = vld [vmem:[#allocation2 + $0xf8] sm:$0xff]
        %v1162 = vld [vmem:[#allocation2 + $0x108] sm:$0x80]
        %v1163 = vld [vmem:[#allocation2 + $0x110] sm:$0xff]
        %v1164 = vld [vmem:[#allocation2 + $0x120] sm:$0x80]
        %v1165 = vld [vmem:[#allocation2 + $0x128] sm:$0xff]
        %v1166 = vld [vmem:[#allocation2 + $0x138] sm:$0x80]
        %v1167 = vld [vmem:[#allocation2 + $0x140] sm:$0xff]
        %v1168 = vld [vmem:[#allocation2 + $0x150] sm:$0x80]
        %v1169 = vld [vmem:[#allocation2 + $0x158] sm:$0xff]
        %v1170 = vld [vmem:[#allocation2 + $0x168] sm:$0x80]
        %v1171 = vld [vmem:[#allocation2 + $0x170] sm:$0xff]
        %v1172 = vld [vmem:[#allocation9] sm:$0xf]
        %v1173 = vld [vmem:[#allocation9 + $0x4] sm:$0xf]
        %v1174 = vld [vmem:[#allocation9 + $0x8] sm:$0xf]
        %v1175 = vld [vmem:[#allocation9 + $0xc] sm:$0xf]
        %v1176 = vld [vmem:[#allocation9 + $0x10] sm:$0xf]
        %v1177 = vld [vmem:[#allocation9 + $0x14] sm:$0xf]
        %v1178 = vld [vmem:[#allocation9 + $0x18] sm:$0xf]
        %v1179 = vld [vmem:[#allocation9 + $0x1c] sm:$0xf]
        %v1180 = vld [vmem:[#allocation9 + $0x20] sm:$0xf]
        %v1181 = vld [vmem:[#allocation9 + $0x24] sm:$0xf]
        %v1182 = vld [vmem:[#allocation9 + $0x28] sm:$0xf]
        %v1183 = vld [vmem:[#allocation9 + $0x2c] sm:$0xf]
        %v1184 = vld [vmem:[#allocation9 + $0x30] sm:$0xf]
        %v1185 = vld [vmem:[#allocation9 + $0x34] sm:$0xf]
        %v1186 = vld [vmem:[#allocation9 + $0x38] sm:$0xf]
        %v1187 = vld [vmem:[#allocation9 + $0x3c] sm:$0xf]
        %vm1188 = vsmask.f32 256
        %v1190 = vshrl.u32 %v1140, 16
        %v1192 = vrot.slane %v1190, 7
        %v1194 = vshrl.u32 %v1141, 16
        %v1196 = vrot.slane %v1194, 7
        %v1197 = vshll.u32 %v1141, 16
        %v1199 = vor.u32 %v1196, %v1197
        %v1200 = vsel %vm1188, %v1192, %v1199
        %v1202 = vshrl.u32 %v1142, 16
        %v1204 = vrot.slane %v1202, 7
        %v1206 = vshrl.u32 %v1143, 16
        %v1208 = vrot.slane %v1206, 7
        %v1209 = vshll.u32 %v1143, 16
        %v1211 = vor.u32 %v1208, %v1209
        %v1212 = vsel %vm1188, %v1204, %v1211
        %v1214 = vshrl.u32 %v1144, 16
        %v1216 = vrot.slane %v1214, 7
        %v1218 = vshrl.u32 %v1145, 16
        %v1220 = vrot.slane %v1218, 7
        %v1221 = vshll.u32 %v1145, 16
        %v1223 = vor.u32 %v1220, %v1221
        %v1224 = vsel %vm1188, %v1216, %v1223
        %v1226 = vshrl.u32 %v1146, 16
        %v1228 = vrot.slane %v1226, 7
        %v1230 = vshrl.u32 %v1147, 16
        %v1232 = vrot.slane %v1230, 7
        %v1233 = vshll.u32 %v1147, 16
        %v1235 = vor.u32 %v1232, %v1233
        %v1236 = vsel %vm1188, %v1228, %v1235
        %v1238 = vshrl.u32 %v1148, 16
        %v1240 = vrot.slane %v1238, 7
        %v1242 = vshrl.u32 %v1149, 16
        %v1244 = vrot.slane %v1242, 7
        %v1245 = vshll.u32 %v1149, 16
        %v1247 = vor.u32 %v1244, %v1245
        %v1248 = vsel %vm1188, %v1240, %v1247
        %v1250 = vshrl.u32 %v1150, 16
        %v1252 = vrot.slane %v1250, 7
        %v1254 = vshrl.u32 %v1151, 16
        %v1256 = vrot.slane %v1254, 7
        %v1257 = vshll.u32 %v1151, 16
        %v1259 = vor.u32 %v1256, %v1257
        %v1260 = vsel %vm1188, %v1252, %v1259
        %v1262 = vshrl.u32 %v1152, 16
        %v1264 = vrot.slane %v1262, 7
        %v1266 = vshrl.u32 %v1153, 16
        %v1268 = vrot.slane %v1266, 7
        %v1269 = vshll.u32 %v1153, 16
        %v1271 = vor.u32 %v1268, %v1269
        %v1272 = vsel %vm1188, %v1264, %v1271
        %v1274 = vshrl.u32 %v1154, 16
        %v1276 = vrot.slane %v1274, 7
        %v1278 = vshrl.u32 %v1155, 16
        %v1280 = vrot.slane %v1278, 7
        %v1281 = vshll.u32 %v1155, 16
        %v1283 = vor.u32 %v1280, %v1281
        %v1284 = vsel %vm1188, %v1276, %v1283
        %v1286 = vshrl.u32 %v1156, 16
        %v1288 = vrot.slane %v1286, 7
        %v1290 = vshrl.u32 %v1157, 16
        %v1292 = vrot.slane %v1290, 7
        %v1293 = vshll.u32 %v1157, 16
        %v1295 = vor.u32 %v1292, %v1293
        %v1296 = vsel %vm1188, %v1288, %v1295
        %v1298 = vshrl.u32 %v1158, 16
        %v1300 = vrot.slane %v1298, 7
        %v1302 = vshrl.u32 %v1159, 16
        %v1304 = vrot.slane %v1302, 7
        %v1305 = vshll.u32 %v1159, 16
        %v1307 = vor.u32 %v1304, %v1305
        %v1308 = vsel %vm1188, %v1300, %v1307
        %v1310 = vshrl.u32 %v1160, 16
        %v1312 = vrot.slane %v1310, 7
        %v1314 = vshrl.u32 %v1161, 16
        %v1316 = vrot.slane %v1314, 7
        %v1317 = vshll.u32 %v1161, 16
        %v1319 = vor.u32 %v1316, %v1317
        %v1320 = vsel %vm1188, %v1312, %v1319
        %v1322 = vshrl.u32 %v1162, 16
        %v1324 = vrot.slane %v1322, 7
        %v1326 = vshrl.u32 %v1163, 16
        %v1328 = vrot.slane %v1326, 7
        %v1329 = vshll.u32 %v1163, 16
        %v1331 = vor.u32 %v1328, %v1329
        %v1332 = vsel %vm1188, %v1324, %v1331
        %v1334 = vshrl.u32 %v1164, 16
        %v1336 = vrot.slane %v1334, 7
        %v1338 = vshrl.u32 %v1165, 16
        %v1340 = vrot.slane %v1338, 7
        %v1341 = vshll.u32 %v1165, 16
        %v1343 = vor.u32 %v1340, %v1341
        %v1344 = vsel %vm1188, %v1336, %v1343
        %v1346 = vshrl.u32 %v1166, 16
        %v1348 = vrot.slane %v1346, 7
        %v1350 = vshrl.u32 %v1167, 16
        %v1352 = vrot.slane %v1350, 7
        %v1353 = vshll.u32 %v1167, 16
        %v1355 = vor.u32 %v1352, %v1353
        %v1356 = vsel %vm1188, %v1348, %v1355
        %v1358 = vshrl.u32 %v1168, 16
        %v1360 = vrot.slane %v1358, 7
        %v1362 = vshrl.u32 %v1169, 16
        %v1364 = vrot.slane %v1362, 7
        %v1365 = vshll.u32 %v1169, 16
        %v1367 = vor.u32 %v1364, %v1365
        %v1368 = vsel %vm1188, %v1360, %v1367
        %v1370 = vshrl.u32 %v1170, 16
        %v1372 = vrot.slane %v1370, 7
        %v1374 = vshrl.u32 %v1171, 16
        %v1376 = vrot.slane %v1374, 7
        %v1377 = vshll.u32 %v1171, 16
        %v1379 = vor.u32 %v1376, %v1377
        %v1380 = vsel %vm1188, %v1372, %v1379
        %v1397 = vld [vmem:[#allocation9 + $0x40] sm:$0xf]
        %v1398 = vld [vmem:[#allocation9 + $0x44] sm:$0xf]
        %v1399 = vld [vmem:[#allocation9 + $0x48] sm:$0xf]
        %v1400 = vld [vmem:[#allocation9 + $0x4c] sm:$0xf]
        %v1401 = vld [vmem:[#allocation9 + $0x50] sm:$0xf]
        %v1402 = vld [vmem:[#allocation9 + $0x54] sm:$0xf]
        %v1403 = vld [vmem:[#allocation9 + $0x58] sm:$0xf]
        %v1404 = vld [vmem:[#allocation9 + $0x5c] sm:$0xf]
        %v1405 = vld [vmem:[#allocation9 + $0x60] sm:$0xf]
        %v1406 = vld [vmem:[#allocation9 + $0x64] sm:$0xf]
        %v1407 = vld [vmem:[#allocation9 + $0x68] sm:$0xf]
        %v1408 = vld [vmem:[#allocation9 + $0x6c] sm:$0xf]
        %v1409 = vld [vmem:[#allocation9 + $0x70] sm:$0xf]
        %v1410 = vld [vmem:[#allocation9 + $0x74] sm:$0xf]
        %v1411 = vld [vmem:[#allocation9 + $0x78] sm:$0xf]
        %v1412 = vld [vmem:[#allocation9 + $0x7c] sm:$0xf]
        %v1429 = vunpack.c.l.b16 %v1397
        %v1430 = vunpack.c.l.b16 %v1398
        %v1431 = vunpack.c.l.b16 %v1399
        %v1432 = vunpack.c.l.b16 %v1400
        %v1433 = vunpack.c.l.b16 %v1401
        %v1434 = vunpack.c.l.b16 %v1402
        %v1435 = vunpack.c.l.b16 %v1403
        %v1436 = vunpack.c.l.b16 %v1404
        %v1437 = vunpack.c.l.b16 %v1405
        %v1438 = vunpack.c.l.b16 %v1406
        %v1439 = vunpack.c.l.b16 %v1407
        %v1440 = vunpack.c.l.b16 %v1408
        %v1441 = vunpack.c.l.b16 %v1409
        %v1442 = vunpack.c.l.b16 %v1410
        %v1443 = vunpack.c.l.b16 %v1411
        %v1444 = vunpack.c.l.b16 %v1412
        %v1445 = vpack.c.b16 %v1430, %v1429
        %v1446 = vpack.c.b16 %v1432, %v1431
        %v1447 = vpack.c.b16 %v1434, %v1433
        %v1448 = vpack.c.b16 %v1436, %v1435
        %v1449 = vpack.c.b16 %v1438, %v1437
        %v1450 = vpack.c.b16 %v1440, %v1439
        %v1451 = vpack.c.b16 %v1442, %v1441
        %v1452 = vpack.c.b16 %v1444, %v1443
        %1461 = vmatprep.subr.bf16.mxu0 0
        %1462 = vmatpush1.bf16.msra.mxu0 %v1445
        %1463 = vmatprep.subr.bf16.mxu0 0
        %1464 = vmatpush1.bf16.msra.mxu0 %v1446
        %1465 = vmatprep.subr.bf16.mxu0 0
        %1466 = vmatpush1.bf16.msra.mxu0 %v1447
        %1467 = vmatprep.subr.bf16.mxu0 0
        %1468 = vmatpush1.bf16.msra.mxu0 %v1448
        %1469 = vmatprep.subr.bf16.mxu0 0
        %1470 = vmatpush1.bf16.msra.mxu0 %v1449
        %1471 = vmatprep.subr.bf16.mxu0 0
        %1472 = vmatpush1.bf16.msra.mxu0 %v1450
        %1473 = vmatprep.subr.bf16.mxu0 0
        %1474 = vmatpush1.bf16.msra.mxu0 %v1451
        %1475 = vmatprep.subr.bf16.mxu0 0
        %1476 = vmatpush1.bf16.msra.mxu0 %v1452
        %1477 = vmatprep.subr.bf16.mxu0 0
        %1478 = vmatpush1.bf16.msra.mxu0 0
        %1479 = vmatprep.subr.bf16.mxu0 0
        %1480 = vmatpush1.bf16.msra.mxu0 0
        %1481 = vmatprep.subr.bf16.mxu0 0
        %1482 = vmatpush1.bf16.msra.mxu0 0
        %1483 = vmatprep.subr.bf16.mxu0 0
        %1484 = vmatpush1.bf16.msra.mxu0 0
        %1485 = vmatprep.subr.bf16.mxu0 0
        %1486 = vmatpush1.bf16.msra.mxu0 0
        %1487 = vmatprep.subr.bf16.mxu0 0
        %1488 = vmatpush1.bf16.msra.mxu0 0
        %1489 = vmatprep.subr.bf16.mxu0 0
        %1490 = vmatpush1.bf16.msra.mxu0 0
        %1491 = vmatprep.subr.bf16.mxu0 0
        %1492 = vmatpush1.bf16.msra.mxu0 0
        %1493 = vmatprep.mubr.bf16.mxu0 0
        %1494 = vmatmul.mubr.bf16.gmra.mrb[0].mxu0 %v1141
        %v1495 = vpop.f32.mrb[0].mxu0
        %v1496 = vadd.f32 0.0, %v1495
        %v1497 = vpop.f32.mrb[0].mxu0
        %v1498 = vpop.f32.mrb[0].mxu0
        %v1499 = vadd.f32 0.0, %v1498
        %v1500 = vpop.f32.mrb[0].mxu0
        %1501 = vmatprep.mubr.bf16.mxu0 0
        %1502 = vmatmul.mubr.bf16.gmra.mrb[0].mxu0 %v1143
        %v1503 = vpop.f32.mrb[0].mxu0
        %v1504 = vadd.f32 0.0, %v1503
        %v1505 = vpop.f32.mrb[0].mxu0
        %v1506 = vpop.f32.mrb[0].mxu0
        %v1507 = vadd.f32 0.0, %v1506
        %v1508 = vpop.f32.mrb[0].mxu0
        %1509 = vmatprep.mubr.bf16.mxu0 0
        %1510 = vmatmul.mubr.bf16.gmra.mrb[0].mxu0 %v1145
        %v1511 = vpop.f32.mrb[0].mxu0
        %v1512 = vadd.f32 0.0, %v1511
        %v1513 = vpop.f32.mrb[0].mxu0
        %v1514 = vpop.f32.mrb[0].mxu0
        %v1515 = vadd.f32 0.0, %v1514
        %v1516 = vpop.f32.mrb[0].mxu0
        %1517 = vmatprep.mubr.bf16.mxu0 0
        %1518 = vmatmul.mubr.bf16.gmra.mrb[0].mxu0 %v1147
        %v1519 = vpop.f32.mrb[0].mxu0
        %v1520 = vadd.f32 0.0, %v1519
        %v1521 = vpop.f32.mrb[0].mxu0
        %v1522 = vpop.f32.mrb[0].mxu0
        %v1523 = vadd.f32 0.0, %v1522
        %v1524 = vpop.f32.mrb[0].mxu0
        %1525 = vmatprep.mubr.bf16.mxu0 0
        %1526 = vmatmul.mubr.bf16.gmra.mrb[0].mxu0 %v1149
        %v1527 = vpop.f32.mrb[0].mxu0
        %v1528 = vadd.f32 0.0, %v1527
        %v1529 = vpop.f32.mrb[0].mxu0
        %v1530 = vpop.f32.mrb[0].mxu0
        %v1531 = vadd.f32 0.0, %v1530
        %v1532 = vpop.f32.mrb[0].mxu0
        %1533 = vmatprep.mubr.bf16.mxu0 0
        %1534 = vmatmul.mubr.bf16.gmra.mrb[0].mxu0 %v1151
        %v1535 = vpop.f32.mrb[0].mxu0
        %v1536 = vadd.f32 0.0, %v1535
        %v1537 = vpop.f32.mrb[0].mxu0
        %v1538 = vpop.f32.mrb[0].mxu0
        %v1539 = vadd.f32 0.0, %v1538
        %v1540 = vpop.f32.mrb[0].mxu0
        %1541 = vmatprep.mubr.bf16.mxu0 0
        %1542 = vmatmul.mubr.bf16.gmra.mrb[0].mxu0 %v1153
        %v1543 = vpop.f32.mrb[0].mxu0
        %v1544 = vadd.f32 0.0, %v1543
        %v1545 = vpop.f32.mrb[0].mxu0
        %v1546 = vpop.f32.mrb[0].mxu0
        %v1547 = vadd.f32 0.0, %v1546
        %v1548 = vpop.f32.mrb[0].mxu0
        %1549 = vmatprep.mubr.bf16.mxu0 0
        %1550 = vmatmul.mubr.bf16.gmra.mrb[0].mxu0 %v1155
        %v1551 = vpop.f32.mrb[0].mxu0
        %v1552 = vadd.f32 0.0, %v1551
        %v1553 = vpop.f32.mrb[0].mxu0
        %v1554 = vpop.f32.mrb[0].mxu0
        %v1555 = vadd.f32 0.0, %v1554
        %v1556 = vpop.f32.mrb[0].mxu0
        %1557 = vmatprep.mubr.bf16.mxu0 0
        %1558 = vmatmul.mubr.bf16.gmra.mrb[0].mxu0 %v1157
        %v1559 = vpop.f32.mrb[0].mxu0
        %v1560 = vadd.f32 0.0, %v1559
        %v1561 = vpop.f32.mrb[0].mxu0
        %v1562 = vpop.f32.mrb[0].mxu0
        %v1563 = vadd.f32 0.0, %v1562
        %v1564 = vpop.f32.mrb[0].mxu0
        %1565 = vmatprep.mubr.bf16.mxu0 0
        %1566 = vmatmul.mubr.bf16.gmra.mrb[0].mxu0 %v1159
        %v1567 = vpop.f32.mrb[0].mxu0
        %v1568 = vadd.f32 0.0, %v1567
        %v1569 = vpop.f32.mrb[0].mxu0
        %v1570 = vpop.f32.mrb[0].mxu0
        %v1571 = vadd.f32 0.0, %v1570
        %v1572 = vpop.f32.mrb[0].mxu0
        %1573 = vmatprep.mubr.bf16.mxu0 0
        %1574 = vmatmul.mubr.bf16.gmra.mrb[0].mxu0 %v1161
        %v1575 = vpop.f32.mrb[0].mxu0
        %v1576 = vadd.f32 0.0, %v1575
        %v1577 = vpop.f32.mrb[0].mxu0
        %v1578 = vpop.f32.mrb[0].mxu0
        %v1579 = vadd.f32 0.0, %v1578
        %v1580 = vpop.f32.mrb[0].mxu0
        %1581 = vmatprep.mubr.bf16.mxu0 0
        %1582 = vmatmul.mubr.bf16.gmra.mrb[0].mxu0 %v1163
        %v1583 = vpop.f32.mrb[0].mxu0
        %v1584 = vadd.f32 0.0, %v1583
        %v1585 = vpop.f32.mrb[0].mxu0
        %v1586 = vpop.f32.mrb[0].mxu0
        %v1587 = vadd.f32 0.0, %v1586
        %v1588 = vpop.f32.mrb[0].mxu0
        %1589 = vmatprep.mubr.bf16.mxu0 0
        %1590 = vmatmul.mubr.bf16.gmra.mrb[0].mxu0 %v1165
        %v1591 = vpop.f32.mrb[0].mxu0
        %v1592 = vadd.f32 0.0, %v1591
        %v1593 = vpop.f32.mrb[0].mxu0
        %v1594 = vpop.f32.mrb[0].mxu0
        %v1595 = vadd.f32 0.0, %v1594
        %v1596 = vpop.f32.mrb[0].mxu0
        %1597 = vmatprep.mubr.bf16.mxu0 0
        %1598 = vmatmul.mubr.bf16.gmra.mrb[0].mxu0 %v1167
        %v1599 = vpop.f32.mrb[0].mxu0
        %v1600 = vadd.f32 0.0, %v1599
        %v1601 = vpop.f32.mrb[0].mxu0
        %v1602 = vpop.f32.mrb[0].mxu0
        %v1603 = vadd.f32 0.0, %v1602
        %v1604 = vpop.f32.mrb[0].mxu0
        %1605 = vmatprep.mubr.bf16.mxu0 0
        %1606 = vmatmul.mubr.bf16.gmra.mrb[0].mxu0 %v1169
        %v1607 = vpop.f32.mrb[0].mxu0
        %v1608 = vadd.f32 0.0, %v1607
        %v1609 = vpop.f32.mrb[0].mxu0
        %v1610 = vpop.f32.mrb[0].mxu0
        %v1611 = vadd.f32 0.0, %v1610
        %v1612 = vpop.f32.mrb[0].mxu0
        %1613 = vmatprep.mubr.bf16.mxu0 0
        %1614 = vmatmul.mubr.bf16.gmra.mrb[0].mxu0 %v1171
        %v1615 = vpop.f32.mrb[0].mxu0
        %v1616 = vadd.f32 0.0, %v1615
        %v1617 = vpop.f32.mrb[0].mxu0
        %v1618 = vpop.f32.mrb[0].mxu0
        %v1619 = vadd.f32 0.0, %v1618
        %v1620 = vpop.f32.mrb[0].mxu0
        %1621 = vdwg.mxu0
        %v1638 = vunpack.c.l.b16 %v1172
        %v1639 = vunpack.c.l.b16 %v1173
        %v1640 = vunpack.c.l.b16 %v1174
        %v1641 = vunpack.c.l.b16 %v1175
        %v1642 = vunpack.c.l.b16 %v1176
        %v1643 = vunpack.c.l.b16 %v1177
        %v1644 = vunpack.c.l.b16 %v1178
        %v1645 = vunpack.c.l.b16 %v1179
        %v1646 = vunpack.c.l.b16 %v1180
        %v1647 = vunpack.c.l.b16 %v1181
        %v1648 = vunpack.c.l.b16 %v1182
        %v1649 = vunpack.c.l.b16 %v1183
        %v1650 = vunpack.c.l.b16 %v1184
        %v1651 = vunpack.c.l.b16 %v1185
        %v1652 = vunpack.c.l.b16 %v1186
        %v1653 = vunpack.c.l.b16 %v1187
        %v1654 = vpack.c.b16 %v1639, %v1638
        %v1655 = vpack.c.b16 %v1641, %v1640
        %v1656 = vpack.c.b16 %v1643, %v1642
        %v1657 = vpack.c.b16 %v1645, %v1644
        %v1658 = vpack.c.b16 %v1647, %v1646
        %v1659 = vpack.c.b16 %v1649, %v1648
        %v1660 = vpack.c.b16 %v1651, %v1650
        %v1661 = vpack.c.b16 %v1653, %v1652
        %1670 = vmatprep.subr.bf16.mxu0 0
        %1671 = vmatpush1.bf16.msra.mxu0 %v1654
        %1672 = vmatprep.subr.bf16.mxu0 0
        %1673 = vmatpush1.bf16.msra.mxu0 %v1655
        %1674 = vmatprep.subr.bf16.mxu0 0
        %1675 = vmatpush1.bf16.msra.mxu0 %v1656
        %1676 = vmatprep.subr.bf16.mxu0 0
        %1677 = vmatpush1.bf16.msra.mxu0 %v1657
        %1678 = vmatprep.subr.bf16.mxu0 0
        %1679 = vmatpush1.bf16.msra.mxu0 %v1658
        %1680 = vmatprep.subr.bf16.mxu0 0
        %1681 = vmatpush1.bf16.msra.mxu0 %v1659
        %1682 = vmatprep.subr.bf16.mxu0 0
        %1683 = vmatpush1.bf16.msra.mxu0 %v1660
        %1684 = vmatprep.subr.bf16.mxu0 0
        %1685 = vmatpush1.bf16.msra.mxu0 %v1661
        %1686 = vmatprep.subr.bf16.mxu0 0
        %1687 = vmatpush1.bf16.msra.mxu0 0
        %1688 = vmatprep.subr.bf16.mxu0 0
        %1689 = vmatpush1.bf16.msra.mxu0 0
        %1690 = vmatprep.subr.bf16.mxu0 0
        %1691 = vmatpush1.bf16.msra.mxu0 0
        %1692 = vmatprep.subr.bf16.mxu0 0
        %1693 = vmatpush1.bf16.msra.mxu0 0
        %1694 = vmatprep.subr.bf16.mxu0 0
        %1695 = vmatpush1.bf16.msra.mxu0 0
        %1696 = vmatprep.subr.bf16.mxu0 0
        %1697 = vmatpush1.bf16.msra.mxu0 0
        %1698 = vmatprep.subr.bf16.mxu0 0
        %1699 = vmatpush1.bf16.msra.mxu0 0
        %1700 = vmatprep.subr.bf16.mxu0 0
        %1701 = vmatpush1.bf16.msra.mxu0 0
        %1702 = vmatprep.mubr.bf16.mxu0 0
        %1703 = vmatmul.mubr.bf16.gmra.mrb[0].mxu0 %v1200
        %v1704 = vpop.f32.mrb[0].mxu0
        %v1705 = vadd.f32 %v1496, %v1704
        %v1706 = vpop.f32.mrb[0].mxu0
        %v1707 = vpop.f32.mrb[0].mxu0
        %v1708 = vadd.f32 %v1499, %v1707
        %v1709 = vpop.f32.mrb[0].mxu0
        %1710 = vmatprep.mubr.bf16.mxu0 0
        %1711 = vmatmul.mubr.bf16.gmra.mrb[0].mxu0 %v1212
        %v1712 = vpop.f32.mrb[0].mxu0
        %v1713 = vadd.f32 %v1504, %v1712
        %v1714 = vpop.f32.mrb[0].mxu0
        %v1715 = vpop.f32.mrb[0].mxu0
        %v1716 = vadd.f32 %v1507, %v1715
        %v1717 = vpop.f32.mrb[0].mxu0
        %1718 = vmatprep.mubr.bf16.mxu0 0
        %1719 = vmatmul.mubr.bf16.gmra.mrb[0].mxu0 %v1224
        %v1720 = vpop.f32.mrb[0].mxu0
        %v1721 = vadd.f32 %v1512, %v1720
        %v1722 = vpop.f32.mrb[0].mxu0
        %v1723 = vpop.f32.mrb[0].mxu0
        %v1724 = vadd.f32 %v1515, %v1723
        %v1725 = vpop.f32.mrb[0].mxu0
        %1726 = vmatprep.mubr.bf16.mxu0 0
        %1727 = vmatmul.mubr.bf16.gmra.mrb[0].mxu0 %v1236
        %v1728 = vpop.f32.mrb[0].mxu0
        %v1729 = vadd.f32 %v1520, %v1728
        %v1730 = vpop.f32.mrb[0].mxu0
        %v1731 = vpop.f32.mrb[0].mxu0
        %v1732 = vadd.f32 %v1523, %v1731
        %v1733 = vpop.f32.mrb[0].mxu0
        %1734 = vmatprep.mubr.bf16.mxu0 0
        %1735 = vmatmul.mubr.bf16.gmra.mrb[0].mxu0 %v1248
        %v1736 = vpop.f32.mrb[0].mxu0
        %v1737 = vadd.f32 %v1528, %v1736
        %v1738 = vpop.f32.mrb[0].mxu0
        %v1739 = vpop.f32.mrb[0].mxu0
        %v1740 = vadd.f32 %v1531, %v1739
        %v1741 = vpop.f32.mrb[0].mxu0
        %1742 = vmatprep.mubr.bf16.mxu0 0
        %1743 = vmatmul.mubr.bf16.gmra.mrb[0].mxu0 %v1260
        %v1744 = vpop.f32.mrb[0].mxu0
        %v1745 = vadd.f32 %v1536, %v1744
        %v1746 = vpop.f32.mrb[0].mxu0
        %v1747 = vpop.f32.mrb[0].mxu0
        %v1748 = vadd.f32 %v1539, %v1747
        %v1749 = vpop.f32.mrb[0].mxu0
        %1750 = vmatprep.mubr.bf16.mxu0 0
        %1751 = vmatmul.mubr.bf16.gmra.mrb[0].mxu0 %v1272
        %v1752 = vpop.f32.mrb[0].mxu0
        %v1753 = vadd.f32 %v1544, %v1752
        %v1754 = vpop.f32.mrb[0].mxu0
        %v1755 = vpop.f32.mrb[0].mxu0
        %v1756 = vadd.f32 %v1547, %v1755
        %v1757 = vpop.f32.mrb[0].mxu0
        %1758 = vmatprep.mubr.bf16.mxu0 0
        %1759 = vmatmul.mubr.bf16.gmra.mrb[0].mxu0 %v1284
        %v1760 = vpop.f32.mrb[0].mxu0
        %v1761 = vadd.f32 %v1552, %v1760
        %v1762 = vpop.f32.mrb[0].mxu0
        %v1763 = vpop.f32.mrb[0].mxu0
        %v1764 = vadd.f32 %v1555, %v1763
        %v1765 = vpop.f32.mrb[0].mxu0
        %1766 = vmatprep.mubr.bf16.mxu0 0
        %1767 = vmatmul.mubr.bf16.gmra.mrb[0].mxu0 %v1296
        %v1768 = vpop.f32.mrb[0].mxu0
        %v1769 = vadd.f32 %v1560, %v1768
        %v1770 = vpop.f32.mrb[0].mxu0
        %v1771 = vpop.f32.mrb[0].mxu0
        %v1772 = vadd.f32 %v1563, %v1771
        %v1773 = vpop.f32.mrb[0].mxu0
        %1774 = vmatprep.mubr.bf16.mxu0 0
        %1775 = vmatmul.mubr.bf16.gmra.mrb[0].mxu0 %v1308
        %v1776 = vpop.f32.mrb[0].mxu0
        %v1777 = vadd.f32 %v1568, %v1776
        %v1778 = vpop.f32.mrb[0].mxu0
        %v1779 = vpop.f32.mrb[0].mxu0
        %v1780 = vadd.f32 %v1571, %v1779
        %v1781 = vpop.f32.mrb[0].mxu0
        %1782 = vmatprep.mubr.bf16.mxu0 0
        %1783 = vmatmul.mubr.bf16.gmra.mrb[0].mxu0 %v1320
        %v1784 = vpop.f32.mrb[0].mxu0
        %v1785 = vadd.f32 %v1576, %v1784
        %v1786 = vpop.f32.mrb[0].mxu0
        %v1787 = vpop.f32.mrb[0].mxu0
        %v1788 = vadd.f32 %v1579, %v1787
        %v1789 = vpop.f32.mrb[0].mxu0
        %1790 = vmatprep.mubr.bf16.mxu0 0
        %1791 = vmatmul.mubr.bf16.gmra.mrb[0].mxu0 %v1332
        %v1792 = vpop.f32.mrb[0].mxu0
        %v1793 = vadd.f32 %v1584, %v1792
        %v1794 = vpop.f32.mrb[0].mxu0
        %v1795 = vpop.f32.mrb[0].mxu0
        %v1796 = vadd.f32 %v1587, %v1795
        %v1797 = vpop.f32.mrb[0].mxu0
        %1798 = vmatprep.mubr.bf16.mxu0 0
        %1799 = vmatmul.mubr.bf16.gmra.mrb[0].mxu0 %v1344
        %v1800 = vpop.f32.mrb[0].mxu0
        %v1801 = vadd.f32 %v1592, %v1800
        %v1802 = vpop.f32.mrb[0].mxu0
        %v1803 = vpop.f32.mrb[0].mxu0
        %v1804 = vadd.f32 %v1595, %v1803
        %v1805 = vpop.f32.mrb[0].mxu0
        %1806 = vmatprep.mubr.bf16.mxu0 0
        %1807 = vmatmul.mubr.bf16.gmra.mrb[0].mxu0 %v1356
        %v1808 = vpop.f32.mrb[0].mxu0
        %v1809 = vadd.f32 %v1600, %v1808
        %v1810 = vpop.f32.mrb[0].mxu0
        %v1811 = vpop.f32.mrb[0].mxu0
        %v1812 = vadd.f32 %v1603, %v1811
        %v1813 = vpop.f32.mrb[0].mxu0
        %1814 = vmatprep.mubr.bf16.mxu0 0
        %1815 = vmatmul.mubr.bf16.gmra.mrb[0].mxu0 %v1368
        %v1816 = vpop.f32.mrb[0].mxu0
        %v1817 = vadd.f32 %v1608, %v1816
        %v1818 = vpop.f32.mrb[0].mxu0
        %v1819 = vpop.f32.mrb[0].mxu0
        %v1820 = vadd.f32 %v1611, %v1819
        %v1821 = vpop.f32.mrb[0].mxu0
        %1822 = vmatprep.mubr.bf16.mxu0 0
        %1823 = vmatmul.mubr.bf16.gmra.mrb[0].mxu0 %v1380
        %v1824 = vpop.f32.mrb[0].mxu0
        %v1825 = vadd.f32 %v1616, %v1824
        %v1826 = vpop.f32.mrb[0].mxu0
        %v1827 = vpop.f32.mrb[0].mxu0
        %v1828 = vadd.f32 %v1619, %v1827
        %v1829 = vpop.f32.mrb[0].mxu0
        %1830 = vdwg.mxu0
        %v1831 = vld [vmem:[#allocation2 + $0x8] sm:$0xff]
        %v1832 = vld [vmem:[#allocation2 + $0x10] sm:$0x1]
        %v1833 = vld [vmem:[#allocation2 + $0x20] sm:$0xff]
        %v1834 = vld [vmem:[#allocation2 + $0x28] sm:$0x1]
        %v1835 = vld [vmem:[#allocation2 + $0x38] sm:$0xff]
        %v1836 = vld [vmem:[#allocation2 + $0x40] sm:$0x1]
        %v1837 = vld [vmem:[#allocation2 + $0x50] sm:$0xff]
        %v1838 = vld [vmem:[#allocation2 + $0x58] sm:$0x1]
        %v1839 = vld [vmem:[#allocation2 + $0x68] sm:$0xff]
        %v1840 = vld [vmem:[#allocation2 + $0x70] sm:$0x1]
        %v1841 = vld [vmem:[#allocation2 + $0x80] sm:$0xff]
        %v1842 = vld [vmem:[#allocation2 + $0x88] sm:$0x1]
        %v1843 = vld [vmem:[#allocation2 + $0x98] sm:$0xff]
        %v1844 = vld [vmem:[#allocation2 + $0xa0] sm:$0x1]
        %v1845 = vld [vmem:[#allocation2 + $0xb0] sm:$0xff]
        %v1846 = vld [vmem:[#allocation2 + $0xb8] sm:$0x1]
        %v1847 = vld [vmem:[#allocation2 + $0xc8] sm:$0xff]
        %v1848 = vld [vmem:[#allocation2 + $0xd0] sm:$0x1]
        %v1849 = vld [vmem:[#allocation2 + $0xe0] sm:$0xff]
        %v1850 = vld [vmem:[#allocation2 + $0xe8] sm:$0x1]
        %v1851 = vld [vmem:[#allocation2 + $0xf8] sm:$0xff]
        %v1852 = vld [vmem:[#allocation2 + $0x100] sm:$0x1]
        %v1853 = vld [vmem:[#allocation2 + $0x110] sm:$0xff]
        %v1854 = vld [vmem:[#allocation2 + $0x118] sm:$0x1]
        %v1855 = vld [vmem:[#allocation2 + $0x128] sm:$0xff]
        %v1856 = vld [vmem:[#allocation2 + $0x130] sm:$0x1]
        %v1857 = vld [vmem:[#allocation2 + $0x140] sm:$0xff]
        %v1858 = vld [vmem:[#allocation2 + $0x148] sm:$0x1]
        %v1859 = vld [vmem:[#allocation2 + $0x158] sm:$0xff]
        %v1860 = vld [vmem:[#allocation2 + $0x160] sm:$0x1]
        %v1861 = vld [vmem:[#allocation2 + $0x170] sm:$0xff]
        %v1862 = vld [vmem:[#allocation2 + $0x178] sm:$0x1]
        %v1863 = vld [vmem:[#allocation9 + $0x80] sm:$0xf]
        %v1864 = vld [vmem:[#allocation9 + $0x84] sm:$0xf]
        %v1865 = vld [vmem:[#allocation9 + $0x88] sm:$0xf]
        %v1866 = vld [vmem:[#allocation9 + $0x8c] sm:$0xf]
        %v1867 = vld [vmem:[#allocation9 + $0x90] sm:$0xf]
        %v1868 = vld [vmem:[#allocation9 + $0x94] sm:$0xf]
        %v1869 = vld [vmem:[#allocation9 + $0x98] sm:$0xf]
        %v1870 = vld [vmem:[#allocation9 + $0x9c] sm:$0xf]
        %v1871 = vld [vmem:[#allocation9 + $0xa0] sm:$0xf]
        %v1872 = vld [vmem:[#allocation9 + $0xa4] sm:$0xf]
        %v1873 = vld [vmem:[#allocation9 + $0xa8] sm:$0xf]
        %v1874 = vld [vmem:[#allocation9 + $0xac] sm:$0xf]
        %v1875 = vld [vmem:[#allocation9 + $0xb0] sm:$0xf]
        %v1876 = vld [vmem:[#allocation9 + $0xb4] sm:$0xf]
        %v1877 = vld [vmem:[#allocation9 + $0xb8] sm:$0xf]
        %v1878 = vld [vmem:[#allocation9 + $0xbc] sm:$0xf]
        %vm1879 = vsmask.f32 7424
        %v1881 = vshrl.u32 %v1831, 16
        %v1883 = vshll.u32 %v1831, 16
        %v1885 = vrot.slane %v1883, 1
        %v1886 = vor.u32 %v1881, %v1885
        %v1888 = vshll.u32 %v1832, 16
        %v1890 = vrot.slane %v1888, 1
        %v1891 = vsel %vm1879, %v1886, %v1890
        %v1893 = vshrl.u32 %v1833, 16
        %v1895 = vshll.u32 %v1833, 16
        %v1897 = vrot.slane %v1895, 1
        %v1898 = vor.u32 %v1893, %v1897
        %v1900 = vshll.u32 %v1834, 16
        %v1902 = vrot.slane %v1900, 1
        %v1903 = vsel %vm1879, %v1898, %v1902
        %v1905 = vshrl.u32 %v1835, 16
        %v1907 = vshll.u32 %v1835, 16
        %v1909 = vrot.slane %v1907, 1
        %v1910 = vor.u32 %v1905, %v1909
        %v1912 = vshll.u32 %v1836, 16
        %v1914 = vrot.slane %v1912, 1
        %v1915 = vsel %vm1879, %v1910, %v1914
        %v1917 = vshrl.u32 %v1837, 16
        %v1919 = vshll.u32 %v1837, 16
        %v1921 = vrot.slane %v1919, 1
        %v1922 = vor.u32 %v1917, %v1921
        %v1924 = vshll.u32 %v1838, 16
        %v1926 = vrot.slane %v1924, 1
        %v1927 = vsel %vm1879, %v1922, %v1926
        %v1929 = vshrl.u32 %v1839, 16
        %v1931 = vshll.u32 %v1839, 16
        %v1933 = vrot.slane %v1931, 1
        %v1934 = vor.u32 %v1929, %v1933
        %v1936 = vshll.u32 %v1840, 16
        %v1938 = vrot.slane %v1936, 1
        %v1939 = vsel %vm1879, %v1934, %v1938
        %v1941 = vshrl.u32 %v1841, 16
        %v1943 = vshll.u32 %v1841, 16
        %v1945 = vrot.slane %v1943, 1
        %v1946 = vor.u32 %v1941, %v1945
        %v1948 = vshll.u32 %v1842, 16
        %v1950 = vrot.slane %v1948, 1
        %v1951 = vsel %vm1879, %v1946, %v1950
        %v1953 = vshrl.u32 %v1843, 16
        %v1955 = vshll.u32 %v1843, 16
        %v1957 = vrot.slane %v1955, 1
        %v1958 = vor.u32 %v1953, %v1957
        %v1960 = vshll.u32 %v1844, 16
        %v1962 = vrot.slane %v1960, 1
        %v1963 = vsel %vm1879, %v1958, %v1962
        %v1965 = vshrl.u32 %v1845, 16
        %v1967 = vshll.u32 %v1845, 16
        %v1969 = vrot.slane %v1967, 1
        %v1970 = vor.u32 %v1965, %v1969
        %v1972 = vshll.u32 %v1846, 16
        %v1974 = vrot.slane %v1972, 1
        %v1975 = vsel %vm1879, %v1970, %v1974
        %v1977 = vshrl.u32 %v1847, 16
        %v1979 = vshll.u32 %v1847, 16
        %v1981 = vrot.slane %v1979, 1
        %v1982 = vor.u32 %v1977, %v1981
        %v1984 = vshll.u32 %v1848, 16
        %v1986 = vrot.slane %v1984, 1
        %v1987 = vsel %vm1879, %v1982, %v1986
        %v1989 = vshrl.u32 %v1849, 16
        %v1991 = vshll.u32 %v1849, 16
        %v1993 = vrot.slane %v1991, 1
        %v1994 = vor.u32 %v1989, %v1993
        %v1996 = vshll.u32 %v1850, 16
        %v1998 = vrot.slane %v1996, 1
        %v1999 = vsel %vm1879, %v1994, %v1998
        %v2001 = vshrl.u32 %v1851, 16
        %v2003 = vshll.u32 %v1851, 16
        %v2005 = vrot.slane %v2003, 1
        %v2006 = vor.u32 %v2001, %v2005
        %v2008 = vshll.u32 %v1852, 16
        %v2010 = vrot.slane %v2008, 1
        %v2011 = vsel %vm1879, %v2006, %v2010
        %v2013 = vshrl.u32 %v1853, 16
        %v2015 = vshll.u32 %v1853, 16
        %v2017 = vrot.slane %v2015, 1
        %v2018 = vor.u32 %v2013, %v2017
        %v2020 = vshll.u32 %v1854, 16
        %v2022 = vrot.slane %v2020, 1
        %v2023 = vsel %vm1879, %v2018, %v2022
        %v2025 = vshrl.u32 %v1855, 16
        %v2027 = vshll.u32 %v1855, 16
        %v2029 = vrot.slane %v2027, 1
        %v2030 = vor.u32 %v2025, %v2029
        %v2032 = vshll.u32 %v1856, 16
        %v2034 = vrot.slane %v2032, 1
        %v2035 = vsel %vm1879, %v2030, %v2034
        %v2037 = vshrl.u32 %v1857, 16
        %v2039 = vshll.u32 %v1857, 16
        %v2041 = vrot.slane %v2039, 1
        %v2042 = vor.u32 %v2037, %v2041
        %v2044 = vshll.u32 %v1858, 16
        %v2046 = vrot.slane %v2044, 1
        %v2047 = vsel %vm1879, %v2042, %v2046
        %v2049 = vshrl.u32 %v1859, 16
        %v2051 = vshll.u32 %v1859, 16
        %v2053 = vrot.slane %v2051, 1
        %v2054 = vor.u32 %v2049, %v2053
        %v2056 = vshll.u32 %v1860, 16
        %v2058 = vrot.slane %v2056, 1
        %v2059 = vsel %vm1879, %v2054, %v2058
        %v2061 = vshrl.u32 %v1861, 16
        %v2063 = vshll.u32 %v1861, 16
        %v2065 = vrot.slane %v2063, 1
        %v2066 = vor.u32 %v2061, %v2065
        %v2068 = vshll.u32 %v1862, 16
        %v2070 = vrot.slane %v2068, 1
        %v2071 = vsel %vm1879, %v2066, %v2070
        %v2104 = vunpack.c.l.b16 %v1863
        %v2105 = vunpack.c.l.b16 %v1864
        %v2106 = vunpack.c.l.b16 %v1865
        %v2107 = vunpack.c.l.b16 %v1866
        %v2108 = vunpack.c.l.b16 %v1867
        %v2109 = vunpack.c.l.b16 %v1868
        %v2110 = vunpack.c.l.b16 %v1869
        %v2111 = vunpack.c.l.b16 %v1870
        %v2112 = vunpack.c.l.b16 %v1871
        %v2113 = vunpack.c.l.b16 %v1872
        %v2114 = vunpack.c.l.b16 %v1873
        %v2115 = vunpack.c.l.b16 %v1874
        %v2116 = vunpack.c.l.b16 %v1875
        %v2117 = vunpack.c.l.b16 %v1876
        %v2118 = vunpack.c.l.b16 %v1877
        %v2119 = vunpack.c.l.b16 %v1878
        %v2120 = vpack.c.b16 %v2105, %v2104
        %v2121 = vpack.c.b16 %v2107, %v2106
        %v2122 = vpack.c.b16 %v2109, %v2108
        %v2123 = vpack.c.b16 %v2111, %v2110
        %v2124 = vpack.c.b16 %v2113, %v2112
        %v2125 = vpack.c.b16 %v2115, %v2114
        %v2126 = vpack.c.b16 %v2117, %v2116
        %v2127 = vpack.c.b16 %v2119, %v2118
        %2136 = vmatprep.subr.bf16.mxu0 0
        %2137 = vmatpush1.bf16.msra.mxu0 %v2120
        %2138 = vmatprep.subr.bf16.mxu0 0
        %2139 = vmatpush1.bf16.msra.mxu0 %v2121
        %2140 = vmatprep.subr.bf16.mxu0 0
        %2141 = vmatpush1.bf16.msra.mxu0 %v2122
        %2142 = vmatprep.subr.bf16.mxu0 0
        %2143 = vmatpush1.bf16.msra.mxu0 %v2123
        %2144 = vmatprep.subr.bf16.mxu0 0
        %2145 = vmatpush1.bf16.msra.mxu0 %v2124
        %2146 = vmatprep.subr.bf16.mxu0 0
        %2147 = vmatpush1.bf16.msra.mxu0 %v2125
        %2148 = vmatprep.subr.bf16.mxu0 0
        %2149 = vmatpush1.bf16.msra.mxu0 %v2126
        %2150 = vmatprep.subr.bf16.mxu0 0
        %2151 = vmatpush1.bf16.msra.mxu0 %v2127
        %2152 = vmatprep.subr.bf16.mxu0 0
        %2153 = vmatpush1.bf16.msra.mxu0 0
        %2154 = vmatprep.subr.bf16.mxu0 0
        %2155 = vmatpush1.bf16.msra.mxu0 0
        %2156 = vmatprep.subr.bf16.mxu0 0
        %2157 = vmatpush1.bf16.msra.mxu0 0
        %2158 = vmatprep.subr.bf16.mxu0 0
        %2159 = vmatpush1.bf16.msra.mxu0 0
        %2160 = vmatprep.subr.bf16.mxu0 0
        %2161 = vmatpush1.bf16.msra.mxu0 0
        %2162 = vmatprep.subr.bf16.mxu0 0
        %2163 = vmatpush1.bf16.msra.mxu0 0
        %2164 = vmatprep.subr.bf16.mxu0 0
        %2165 = vmatpush1.bf16.msra.mxu0 0
        %2166 = vmatprep.subr.bf16.mxu0 0
        %2167 = vmatpush1.bf16.msra.mxu0 0
        %2168 = vmatprep.mubr.bf16.mxu0 0
        %2169 = vmatmul.mubr.bf16.gmra.mrb[0].mxu0 %v1891
        %v2170 = vpop.f32.mrb[0].mxu0
        %v2171 = vadd.f32 0.0, %v2170
        %v2172 = vpop.f32.mrb[0].mxu0
        %v2173 = vpop.f32.mrb[0].mxu0
        %v2174 = vadd.f32 0.0, %v2173
        %v2175 = vpop.f32.mrb[0].mxu0
        %2176 = vmatprep.mubr.bf16.mxu0 0
        %2177 = vmatmul.mubr.bf16.gmra.mrb[0].mxu0 %v1903
        %v2178 = vpop.f32.mrb[0].mxu0
        %v2179 = vadd.f32 0.0, %v2178
        %v2180 = vpop.f32.mrb[0].mxu0
        %v2181 = vpop.f32.mrb[0].mxu0
        %v2182 = vadd.f32 0.0, %v2181
        %v2183 = vpop.f32.mrb[0].mxu0
        %2184 = vmatprep.mubr.bf16.mxu0 0
        %2185 = vmatmul.mubr.bf16.gmra.mrb[0].mxu0 %v1915
        %v2186 = vpop.f32.mrb[0].mxu0
        %v2187 = vadd.f32 0.0, %v2186
        %v2188 = vpop.f32.mrb[0].mxu0
        %v2189 = vpop.f32.mrb[0].mxu0
        %v2190 = vadd.f32 0.0, %v2189
        %v2191 = vpop.f32.mrb[0].mxu0
        %2192 = vmatprep.mubr.bf16.mxu0 0
        %2193 = vmatmul.mubr.bf16.gmra.mrb[0].mxu0 %v1927
        %v2194 = vpop.f32.mrb[0].mxu0
        %v2195 = vadd.f32 0.0, %v2194
        %v2196 = vpop.f32.mrb[0].mxu0
        %v2197 = vpop.f32.mrb[0].mxu0
        %v2198 = vadd.f32 0.0, %v2197
        %v2199 = vpop.f32.mrb[0].mxu0
        %2200 = vmatprep.mubr.bf16.mxu0 0
        %2201 = vmatmul.mubr.bf16.gmra.mrb[0].mxu0 %v1939
        %v2202 = vpop.f32.mrb[0].mxu0
        %v2203 = vadd.f32 0.0, %v2202
        %v2204 = vpop.f32.mrb[0].mxu0
        %v2205 = vpop.f32.mrb[0].mxu0
        %v2206 = vadd.f32 0.0, %v2205
        %v2207 = vpop.f32.mrb[0].mxu0
        %2208 = vmatprep.mubr.bf16.mxu0 0
        %2209 = vmatmul.mubr.bf16.gmra.mrb[0].mxu0 %v1951
        %v2210 = vpop.f32.mrb[0].mxu0
        %v2211 = vadd.f32 0.0, %v2210
        %v2212 = vpop.f32.mrb[0].mxu0
        %v2213 = vpop.f32.mrb[0].mxu0
        %v2214 = vadd.f32 0.0, %v2213
        %v2215 = vpop.f32.mrb[0].mxu0
        %2216 = vmatprep.mubr.bf16.mxu0 0
        %2217 = vmatmul.mubr.bf16.gmra.mrb[0].mxu0 %v1963
        %v2218 = vpop.f32.mrb[0].mxu0
        %v2219 = vadd.f32 0.0, %v2218
        %v2220 = vpop.f32.mrb[0].mxu0
        %v2221 = vpop.f32.mrb[0].mxu0
        %v2222 = vadd.f32 0.0, %v2221
        %v2223 = vpop.f32.mrb[0].mxu0
        %2224 = vmatprep.mubr.bf16.mxu0 0
        %2225 = vmatmul.mubr.bf16.gmra.mrb[0].mxu0 %v1975
        %v2226 = vpop.f32.mrb[0].mxu0
        %v2227 = vadd.f32 0.0, %v2226
        %v2228 = vpop.f32.mrb[0].mxu0
        %v2229 = vpop.f32.mrb[0].mxu0
        %v2230 = vadd.f32 0.0, %v2229
        %v2231 = vpop.f32.mrb[0].mxu0
        %2232 = vmatprep.mubr.bf16.mxu0 0
        %2233 = vmatmul.mubr.bf16.gmra.mrb[0].mxu0 %v1987
        %v2234 = vpop.f32.mrb[0].mxu0
        %v2235 = vadd.f32 0.0, %v2234
        %v2236 = vpop.f32.mrb[0].mxu0
        %v2237 = vpop.f32.mrb[0].mxu0
        %v2238 = vadd.f32 0.0, %v2237
        %v2239 = vpop.f32.mrb[0].mxu0
        %2240 = vmatprep.mubr.bf16.mxu0 0
        %2241 = vmatmul.mubr.bf16.gmra.mrb[0].mxu0 %v1999
        %v2242 = vpop.f32.mrb[0].mxu0
        %v2243 = vadd.f32 0.0, %v2242
        %v2244 = vpop.f32.mrb[0].mxu0
        %v2245 = vpop.f32.mrb[0].mxu0
        %v2246 = vadd.f32 0.0, %v2245
        %v2247 = vpop.f32.mrb[0].mxu0
        %2248 = vmatprep.mubr.bf16.mxu0 0
        %2249 = vmatmul.mubr.bf16.gmra.mrb[0].mxu0 %v2011
        %v2250 = vpop.f32.mrb[0].mxu0
        %v2251 = vadd.f32 0.0, %v2250
        %v2252 = vpop.f32.mrb[0].mxu0
        %v2253 = vpop.f32.mrb[0].mxu0
        %v2254 = vadd.f32 0.0, %v2253
        %v2255 = vpop.f32.mrb[0].mxu0
        %2256 = vmatprep.mubr.bf16.mxu0 0
        %2257 = vmatmul.mubr.bf16.gmra.mrb[0].mxu0 %v2023
        %v2258 = vpop.f32.mrb[0].mxu0
        %v2259 = vadd.f32 0.0, %v2258
        %v2260 = vpop.f32.mrb[0].mxu0
        %v2261 = vpop.f32.mrb[0].mxu0
        %v2262 = vadd.f32 0.0, %v2261
        %v2263 = vpop.f32.mrb[0].mxu0
        %2264 = vmatprep.mubr.bf16.mxu0 0
        %2265 = vmatmul.mubr.bf16.gmra.mrb[0].mxu0 %v2035
        %v2266 = vpop.f32.mrb[0].mxu0
        %v2267 = vadd.f32 0.0, %v2266
        %v2268 = vpop.f32.mrb[0].mxu0
        %v2269 = vpop.f32.mrb[0].mxu0
        %v2270 = vadd.f32 0.0, %v2269
        %v2271 = vpop.f32.mrb[0].mxu0
        %2272 = vmatprep.mubr.bf16.mxu0 0
        %2273 = vmatmul.mubr.bf16.gmra.mrb[0].mxu0 %v2047
        %v2274 = vpop.f32.mrb[0].mxu0
        %v2275 = vadd.f32 0.0, %v2274
        %v2276 = vpop.f32.mrb[0].mxu0
        %v2277 = vpop.f32.mrb[0].mxu0
        %v2278 = vadd.f32 0.0, %v2277
        %v2279 = vpop.f32.mrb[0].mxu0
        %2280 = vmatprep.mubr.bf16.mxu0 0
        %2281 = vmatmul.mubr.bf16.gmra.mrb[0].mxu0 %v2059
        %v2282 = vpop.f32.mrb[0].mxu0
        %v2283 = vadd.f32 0.0, %v2282
        %v2284 = vpop.f32.mrb[0].mxu0
        %v2285 = vpop.f32.mrb[0].mxu0
        %v2286 = vadd.f32 0.0, %v2285
        %v2287 = vpop.f32.mrb[0].mxu0
        %2288 = vmatprep.mubr.bf16.mxu0 0
        %2289 = vmatmul.mubr.bf16.gmra.mrb[0].mxu0 %v2071
        %v2290 = vpop.f32.mrb[0].mxu0
        %v2291 = vadd.f32 0.0, %v2290
        %v2292 = vpop.f32.mrb[0].mxu0
        %v2293 = vpop.f32.mrb[0].mxu0
        %v2294 = vadd.f32 0.0, %v2293
        %v2295 = vpop.f32.mrb[0].mxu0
        %2296 = vdwg.mxu0
        %v2297 = vadd.f32 %v1705, %v2171
        %v2298 = vadd.f32 %v1708, %v2174
        %v2299 = vadd.f32 %v1713, %v2179
        %v2300 = vadd.f32 %v1716, %v2182
        %v2301 = vadd.f32 %v1721, %v2187
        %v2302 = vadd.f32 %v1724, %v2190
        %v2303 = vadd.f32 %v1729, %v2195
        %v2304 = vadd.f32 %v1732, %v2198
        %v2305 = vadd.f32 %v1737, %v2203
        %v2306 = vadd.f32 %v1740, %v2206
        %v2307 = vadd.f32 %v1745, %v2211
        %v2308 = vadd.f32 %v1748, %v2214
        %v2309 = vadd.f32 %v1753, %v2219
        %v2310 = vadd.f32 %v1756, %v2222
        %v2311 = vadd.f32 %v1761, %v2227
        %v2312 = vadd.f32 %v1764, %v2230
        %v2313 = vadd.f32 %v1769, %v2235
        %v2314 = vadd.f32 %v1772, %v2238
        %v2315 = vadd.f32 %v1777, %v2243
        %v2316 = vadd.f32 %v1780, %v2246
        %v2317 = vadd.f32 %v1785, %v2251
        %v2318 = vadd.f32 %v1788, %v2254
        %v2319 = vadd.f32 %v1793, %v2259
        %v2320 = vadd.f32 %v1796, %v2262
        %v2321 = vadd.f32 %v1801, %v2267
        %v2322 = vadd.f32 %v1804, %v2270
        %v2323 = vadd.f32 %v1809, %v2275
        %v2324 = vadd.f32 %v1812, %v2278
        %v2325 = vadd.f32 %v1817, %v2283
        %v2326 = vadd.f32 %v1820, %v2286
        %v2327 = vadd.f32 %v1825, %v2291
        %v2328 = vadd.f32 %v1828, %v2294
        %v2329 = vld [vmem:[%s1120] sm:$0x80]
        %v2330 = vld [vmem:[%s1120 + $0x8] sm:$0xff]
        %v2331 = vld [vmem:[%s1120 + $0x18] sm:$0x80]
        %v2332 = vld [vmem:[%s1120 + $0x20] sm:$0xff]
        %v2333 = vld [vmem:[%s1120 + $0x30] sm:$0x80]
        %v2334 = vld [vmem:[%s1120 + $0x38] sm:$0xff]
        %v2335 = vld [vmem:[%s1120 + $0x48] sm:$0x80]
        %v2336 = vld [vmem:[%s1120 + $0x50] sm:$0xff]
        %v2337 = vld [vmem:[%s1120 + $0x60] sm:$0x80]
        %v2338 = vld [vmem:[%s1120 + $0x68] sm:$0xff]
        %v2339 = vld [vmem:[%s1120 + $0x78] sm:$0x80]
        %v2340 = vld [vmem:[%s1120 + $0x80] sm:$0xff]
        %v2341 = vld [vmem:[%s1120 + $0x90] sm:$0x80]
        %v2342 = vld [vmem:[%s1120 + $0x98] sm:$0xff]
        %v2343 = vld [vmem:[%s1120 + $0xa8] sm:$0x80]
        %v2344 = vld [vmem:[%s1120 + $0xb0] sm:$0xff]
        %v2345 = vld [vmem:[%s1120 + $0xc0] sm:$0x80]
        %v2346 = vld [vmem:[%s1120 + $0xc8] sm:$0xff]
        %v2347 = vld [vmem:[%s1120 + $0xd8] sm:$0x80]
        %v2348 = vld [vmem:[%s1120 + $0xe0] sm:$0xff]
        %v2349 = vld [vmem:[%s1120 + $0xf0] sm:$0x80]
        %v2350 = vld [vmem:[%s1120 + $0xf8] sm:$0xff]
        %v2351 = vld [vmem:[%s1120 + $0x108] sm:$0x80]
        %v2352 = vld [vmem:[%s1120 + $0x110] sm:$0xff]
        %v2353 = vld [vmem:[%s1120 + $0x120] sm:$0x80]
        %v2354 = vld [vmem:[%s1120 + $0x128] sm:$0xff]
        %v2355 = vld [vmem:[%s1120 + $0x138] sm:$0x80]
        %v2356 = vld [vmem:[%s1120 + $0x140] sm:$0xff]
        %v2357 = vld [vmem:[%s1120 + $0x150] sm:$0x80]
        %v2358 = vld [vmem:[%s1120 + $0x158] sm:$0xff]
        %v2359 = vld [vmem:[%s1120 + $0x168] sm:$0x80]
        %v2360 = vld [vmem:[%s1120 + $0x170] sm:$0xff]
        %v2361 = vld [vmem:[#allocation9 + $0xc0] sm:$0xf]
        %v2362 = vld [vmem:[#allocation9 + $0xc4] sm:$0xf]
        %v2363 = vld [vmem:[#allocation9 + $0xc8] sm:$0xf]
        %v2364 = vld [vmem:[#allocation9 + $0xcc] sm:$0xf]
        %v2365 = vld [vmem:[#allocation9 + $0xd0] sm:$0xf]
        %v2366 = vld [vmem:[#allocation9 + $0xd4] sm:$0xf]
        %v2367 = vld [vmem:[#allocation9 + $0xd8] sm:$0xf]
        %v2368 = vld [vmem:[#allocation9 + $0xdc] sm:$0xf]
        %v2369 = vld [vmem:[#allocation9 + $0xe0] sm:$0xf]
        %v2370 = vld [vmem:[#allocation9 + $0xe4] sm:$0xf]
        %v2371 = vld [vmem:[#allocation9 + $0xe8] sm:$0xf]
        %v2372 = vld [vmem:[#allocation9 + $0xec] sm:$0xf]
        %v2373 = vld [vmem:[#allocation9 + $0xf0] sm:$0xf]
        %v2374 = vld [vmem:[#allocation9 + $0xf4] sm:$0xf]
        %v2375 = vld [vmem:[#allocation9 + $0xf8] sm:$0xf]
        %v2376 = vld [vmem:[#allocation9 + $0xfc] sm:$0xf]
        %v2378 = vshrl.u32 %v2329, 16
        %v2380 = vrot.slane %v2378, 7
        %v2382 = vshrl.u32 %v2330, 16
        %v2384 = vrot.slane %v2382, 7
        %v2385 = vshll.u32 %v2330, 16
        %v2387 = vor.u32 %v2384, %v2385
        %v2388 = vsel %vm1188, %v2380, %v2387
        %v2390 = vshrl.u32 %v2331, 16
        %v2392 = vrot.slane %v2390, 7
        %v2394 = vshrl.u32 %v2332, 16
        %v2396 = vrot.slane %v2394, 7
        %v2397 = vshll.u32 %v2332, 16
        %v2399 = vor.u32 %v2396, %v2397
        %v2400 = vsel %vm1188, %v2392, %v2399
        %v2402 = vshrl.u32 %v2333, 16
        %v2404 = vrot.slane %v2402, 7
        %v2406 = vshrl.u32 %v2334, 16
        %v2408 = vrot.slane %v2406, 7
        %v2409 = vshll.u32 %v2334, 16
        %v2411 = vor.u32 %v2408, %v2409
        %v2412 = vsel %vm1188, %v2404, %v2411
        %v2414 = vshrl.u32 %v2335, 16
        %v2416 = vrot.slane %v2414, 7
        %v2418 = vshrl.u32 %v2336, 16
        %v2420 = vrot.slane %v2418, 7
        %v2421 = vshll.u32 %v2336, 16
        %v2423 = vor.u32 %v2420, %v2421
        %v2424 = vsel %vm1188, %v2416, %v2423
        %v2426 = vshrl.u32 %v2337, 16
        %v2428 = vrot.slane %v2426, 7
        %v2430 = vshrl.u32 %v2338, 16
        %v2432 = vrot.slane %v2430, 7
        %v2433 = vshll.u32 %v2338, 16
        %v2435 = vor.u32 %v2432, %v2433
        %v2436 = vsel %vm1188, %v2428, %v2435
        %v2438 = vshrl.u32 %v2339, 16
        %v2440 = vrot.slane %v2438, 7
        %v2442 = vshrl.u32 %v2340, 16
        %v2444 = vrot.slane %v2442, 7
        %v2445 = vshll.u32 %v2340, 16
        %v2447 = vor.u32 %v2444, %v2445
        %v2448 = vsel %vm1188, %v2440, %v2447
        %v2450 = vshrl.u32 %v2341, 16
        %v2452 = vrot.slane %v2450, 7
        %v2454 = vshrl.u32 %v2342, 16
        %v2456 = vrot.slane %v2454, 7
        %v2457 = vshll.u32 %v2342, 16
        %v2459 = vor.u32 %v2456, %v2457
        %v2460 = vsel %vm1188, %v2452, %v2459
        %v2462 = vshrl.u32 %v2343, 16
        %v2464 = vrot.slane %v2462, 7
        %v2466 = vshrl.u32 %v2344, 16
        %v2468 = vrot.slane %v2466, 7
        %v2469 = vshll.u32 %v2344, 16
        %v2471 = vor.u32 %v2468, %v2469
        %v2472 = vsel %vm1188, %v2464, %v2471
        %v2474 = vshrl.u32 %v2345, 16
        %v2476 = vrot.slane %v2474, 7
        %v2478 = vshrl.u32 %v2346, 16
        %v2480 = vrot.slane %v2478, 7
        %v2481 = vshll.u32 %v2346, 16
        %v2483 = vor.u32 %v2480, %v2481
        %v2484 = vsel %vm1188, %v2476, %v2483
        %v2486 = vshrl.u32 %v2347, 16
        %v2488 = vrot.slane %v2486, 7
        %v2490 = vshrl.u32 %v2348, 16
        %v2492 = vrot.slane %v2490, 7
        %v2493 = vshll.u32 %v2348, 16
        %v2495 = vor.u32 %v2492, %v2493
        %v2496 = vsel %vm1188, %v2488, %v2495
        %v2498 = vshrl.u32 %v2349, 16
        %v2500 = vrot.slane %v2498, 7
        %v2502 = vshrl.u32 %v2350, 16
        %v2504 = vrot.slane %v2502, 7
        %v2505 = vshll.u32 %v2350, 16
        %v2507 = vor.u32 %v2504, %v2505
        %v2508 = vsel %vm1188, %v2500, %v2507
        %v2510 = vshrl.u32 %v2351, 16
        %v2512 = vrot.slane %v2510, 7
        %v2514 = vshrl.u32 %v2352, 16
        %v2516 = vrot.slane %v2514, 7
        %v2517 = vshll.u32 %v2352, 16
        %v2519 = vor.u32 %v2516, %v2517
        %v2520 = vsel %vm1188, %v2512, %v2519
        %v2522 = vshrl.u32 %v2353, 16
        %v2524 = vrot.slane %v2522, 7
        %v2526 = vshrl.u32 %v2354, 16
        %v2528 = vrot.slane %v2526, 7
        %v2529 = vshll.u32 %v2354, 16
        %v2531 = vor.u32 %v2528, %v2529
        %v2532 = vsel %vm1188, %v2524, %v2531
        %v2534 = vshrl.u32 %v2355, 16
        %v2536 = vrot.slane %v2534, 7
        %v2538 = vshrl.u32 %v2356, 16
        %v2540 = vrot.slane %v2538, 7
        %v2541 = vshll.u32 %v2356, 16
        %v2543 = vor.u32 %v2540, %v2541
        %v2544 = vsel %vm1188, %v2536, %v2543
        %v2546 = vshrl.u32 %v2357, 16
        %v2548 = vrot.slane %v2546, 7
        %v2550 = vshrl.u32 %v2358, 16
        %v2552 = vrot.slane %v2550, 7
        %v2553 = vshll.u32 %v2358, 16
        %v2555 = vor.u32 %v2552, %v2553
        %v2556 = vsel %vm1188, %v2548, %v2555
        %v2558 = vshrl.u32 %v2359, 16
        %v2560 = vrot.slane %v2558, 7
        %v2562 = vshrl.u32 %v2360, 16
        %v2564 = vrot.slane %v2562, 7
        %v2565 = vshll.u32 %v2360, 16
        %v2567 = vor.u32 %v2564, %v2565
        %v2568 = vsel %vm1188, %v2560, %v2567
        %v2601 = vunpack.c.l.b16 %v2361
        %v2602 = vunpack.c.l.b16 %v2362
        %v2603 = vunpack.c.l.b16 %v2363
        %v2604 = vunpack.c.l.b16 %v2364
        %v2605 = vunpack.c.l.b16 %v2365
        %v2606 = vunpack.c.l.b16 %v2366
        %v2607 = vunpack.c.l.b16 %v2367
        %v2608 = vunpack.c.l.b16 %v2368
        %v2609 = vunpack.c.l.b16 %v2369
        %v2610 = vunpack.c.l.b16 %v2370
        %v2611 = vunpack.c.l.b16 %v2371
        %v2612 = vunpack.c.l.b16 %v2372
        %v2613 = vunpack.c.l.b16 %v2373
        %v2614 = vunpack.c.l.b16 %v2374
        %v2615 = vunpack.c.l.b16 %v2375
        %v2616 = vunpack.c.l.b16 %v2376
        %v2617 = vpack.c.b16 %v2602, %v2601
        %v2618 = vpack.c.b16 %v2604, %v2603
        %v2619 = vpack.c.b16 %v2606, %v2605
        %v2620 = vpack.c.b16 %v2608, %v2607
        %v2621 = vpack.c.b16 %v2610, %v2609
        %v2622 = vpack.c.b16 %v2612, %v2611
        %v2623 = vpack.c.b16 %v2614, %v2613
        %v2624 = vpack.c.b16 %v2616, %v2615
        %2633 = vmatprep.subr.bf16.mxu0 0
        %2634 = vmatpush1.bf16.msra.mxu0 %v2617
        %2635 = vmatprep.subr.bf16.mxu0 0
        %2636 = vmatpush1.bf16.msra.mxu0 %v2618
        %2637 = vmatprep.subr.bf16.mxu0 0
        %2638 = vmatpush1.bf16.msra.mxu0 %v2619
        %2639 = vmatprep.subr.bf16.mxu0 0
        %2640 = vmatpush1.bf16.msra.mxu0 %v2620
        %2641 = vmatprep.subr.bf16.mxu0 0
        %2642 = vmatpush1.bf16.msra.mxu0 %v2621
        %2643 = vmatprep.subr.bf16.mxu0 0
        %2644 = vmatpush1.bf16.msra.mxu0 %v2622
        %2645 = vmatprep.subr.bf16.mxu0 0
        %2646 = vmatpush1.bf16.msra.mxu0 %v2623
        %2647 = vmatprep.subr.bf16.mxu0 0
        %2648 = vmatpush1.bf16.msra.mxu0 %v2624
        %2649 = vmatprep.subr.bf16.mxu0 0
        %2650 = vmatpush1.bf16.msra.mxu0 0
        %2651 = vmatprep.subr.bf16.mxu0 0
        %2652 = vmatpush1.bf16.msra.mxu0 0
        %2653 = vmatprep.subr.bf16.mxu0 0
        %2654 = vmatpush1.bf16.msra.mxu0 0
        %2655 = vmatprep.subr.bf16.mxu0 0
        %2656 = vmatpush1.bf16.msra.mxu0 0
        %2657 = vmatprep.subr.bf16.mxu0 0
        %2658 = vmatpush1.bf16.msra.mxu0 0
        %2659 = vmatprep.subr.bf16.mxu0 0
        %2660 = vmatpush1.bf16.msra.mxu0 0
        %2661 = vmatprep.subr.bf16.mxu0 0
        %2662 = vmatpush1.bf16.msra.mxu0 0
        %2663 = vmatprep.subr.bf16.mxu0 0
        %2664 = vmatpush1.bf16.msra.mxu0 0
        %2665 = vmatprep.mubr.bf16.mxu0 0
        %2666 = vmatmul.mubr.bf16.gmra.mrb[0].mxu0 %v2388
        %v2667 = vpop.f32.mrb[0].mxu0
        %v2668 = vadd.f32 0.0, %v2667
        %v2669 = vpop.f32.mrb[0].mxu0
        %v2670 = vpop.f32.mrb[0].mxu0
        %v2671 = vadd.f32 0.0, %v2670
        %v2672 = vpop.f32.mrb[0].mxu0
        %2673 = vmatprep.mubr.bf16.mxu0 0
        %2674 = vmatmul.mubr.bf16.gmra.mrb[0].mxu0 %v2400
        %v2675 = vpop.f32.mrb[0].mxu0
        %v2676 = vadd.f32 0.0, %v2675
        %v2677 = vpop.f32.mrb[0].mxu0
        %v2678 = vpop.f32.mrb[0].mxu0
        %v2679 = vadd.f32 0.0, %v2678
        %v2680 = vpop.f32.mrb[0].mxu0
        %2681 = vmatprep.mubr.bf16.mxu0 0
        %2682 = vmatmul.mubr.bf16.gmra.mrb[0].mxu0 %v2412
        %v2683 = vpop.f32.mrb[0].mxu0
        %v2684 = vadd.f32 0.0, %v2683
        %v2685 = vpop.f32.mrb[0].mxu0
        %v2686 = vpop.f32.mrb[0].mxu0
        %v2687 = vadd.f32 0.0, %v2686
        %v2688 = vpop.f32.mrb[0].mxu0
        %2689 = vmatprep.mubr.bf16.mxu0 0
        %2690 = vmatmul.mubr.bf16.gmra.mrb[0].mxu0 %v2424
        %v2691 = vpop.f32.mrb[0].mxu0
        %v2692 = vadd.f32 0.0, %v2691
        %v2693 = vpop.f32.mrb[0].mxu0
        %v2694 = vpop.f32.mrb[0].mxu0
        %v2695 = vadd.f32 0.0, %v2694
        %v2696 = vpop.f32.mrb[0].mxu0
        %2697 = vmatprep.mubr.bf16.mxu0 0
        %2698 = vmatmul.mubr.bf16.gmra.mrb[0].mxu0 %v2436
        %v2699 = vpop.f32.mrb[0].mxu0
        %v2700 = vadd.f32 0.0, %v2699
        %v2701 = vpop.f32.mrb[0].mxu0
        %v2702 = vpop.f32.mrb[0].mxu0
        %v2703 = vadd.f32 0.0, %v2702
        %v2704 = vpop.f32.mrb[0].mxu0
        %2705 = vmatprep.mubr.bf16.mxu0 0
        %2706 = vmatmul.mubr.bf16.gmra.mrb[0].mxu0 %v2448
        %v2707 = vpop.f32.mrb[0].mxu0
        %v2708 = vadd.f32 0.0, %v2707
        %v2709 = vpop.f32.mrb[0].mxu0
        %v2710 = vpop.f32.mrb[0].mxu0
        %v2711 = vadd.f32 0.0, %v2710
        %v2712 = vpop.f32.mrb[0].mxu0
        %2713 = vmatprep.mubr.bf16.mxu0 0
        %2714 = vmatmul.mubr.bf16.gmra.mrb[0].mxu0 %v2460
        %v2715 = vpop.f32.mrb[0].mxu0
        %v2716 = vadd.f32 0.0, %v2715
        %v2717 = vpop.f32.mrb[0].mxu0
        %v2718 = vpop.f32.mrb[0].mxu0
        %v2719 = vadd.f32 0.0, %v2718
        %v2720 = vpop.f32.mrb[0].mxu0
        %2721 = vmatprep.mubr.bf16.mxu0 0
        %2722 = vmatmul.mubr.bf16.gmra.mrb[0].mxu0 %v2472
        %v2723 = vpop.f32.mrb[0].mxu0
        %v2724 = vadd.f32 0.0, %v2723
        %v2725 = vpop.f32.mrb[0].mxu0
        %v2726 = vpop.f32.mrb[0].mxu0
        %v2727 = vadd.f32 0.0, %v2726
        %v2728 = vpop.f32.mrb[0].mxu0
        %2729 = vmatprep.mubr.bf16.mxu0 0
        %2730 = vmatmul.mubr.bf16.gmra.mrb[0].mxu0 %v2484
        %v2731 = vpop.f32.mrb[0].mxu0
        %v2732 = vadd.f32 0.0, %v2731
        %v2733 = vpop.f32.mrb[0].mxu0
        %v2734 = vpop.f32.mrb[0].mxu0
        %v2735 = vadd.f32 0.0, %v2734
        %v2736 = vpop.f32.mrb[0].mxu0
        %2737 = vmatprep.mubr.bf16.mxu0 0
        %2738 = vmatmul.mubr.bf16.gmra.mrb[0].mxu0 %v2496
        %v2739 = vpop.f32.mrb[0].mxu0
        %v2740 = vadd.f32 0.0, %v2739
        %v2741 = vpop.f32.mrb[0].mxu0
        %v2742 = vpop.f32.mrb[0].mxu0
        %v2743 = vadd.f32 0.0, %v2742
        %v2744 = vpop.f32.mrb[0].mxu0
        %2745 = vmatprep.mubr.bf16.mxu0 0
        %2746 = vmatmul.mubr.bf16.gmra.mrb[0].mxu0 %v2508
        %v2747 = vpop.f32.mrb[0].mxu0
        %v2748 = vadd.f32 0.0, %v2747
        %v2749 = vpop.f32.mrb[0].mxu0
        %v2750 = vpop.f32.mrb[0].mxu0
        %v2751 = vadd.f32 0.0, %v2750
        %v2752 = vpop.f32.mrb[0].mxu0
        %2753 = vmatprep.mubr.bf16.mxu0 0
        %2754 = vmatmul.mubr.bf16.gmra.mrb[0].mxu0 %v2520
        %v2755 = vpop.f32.mrb[0].mxu0
        %v2756 = vadd.f32 0.0, %v2755
        %v2757 = vpop.f32.mrb[0].mxu0
        %v2758 = vpop.f32.mrb[0].mxu0
        %v2759 = vadd.f32 0.0, %v2758
        %v2760 = vpop.f32.mrb[0].mxu0
        %2761 = vmatprep.mubr.bf16.mxu0 0
        %2762 = vmatmul.mubr.bf16.gmra.mrb[0].mxu0 %v2532
        %v2763 = vpop.f32.mrb[0].mxu0
        %v2764 = vadd.f32 0.0, %v2763
        %v2765 = vpop.f32.mrb[0].mxu0
        %v2766 = vpop.f32.mrb[0].mxu0
        %v2767 = vadd.f32 0.0, %v2766
        %v2768 = vpop.f32.mrb[0].mxu0
        %2769 = vmatprep.mubr.bf16.mxu0 0
        %2770 = vmatmul.mubr.bf16.gmra.mrb[0].mxu0 %v2544
        %v2771 = vpop.f32.mrb[0].mxu0
        %v2772 = vadd.f32 0.0, %v2771
        %v2773 = vpop.f32.mrb[0].mxu0
        %v2774 = vpop.f32.mrb[0].mxu0
        %v2775 = vadd.f32 0.0, %v2774
        %v2776 = vpop.f32.mrb[0].mxu0
        %2777 = vmatprep.mubr.bf16.mxu0 0
        %2778 = vmatmul.mubr.bf16.gmra.mrb[0].mxu0 %v2556
        %v2779 = vpop.f32.mrb[0].mxu0
        %v2780 = vadd.f32 0.0, %v2779
        %v2781 = vpop.f32.mrb[0].mxu0
        %v2782 = vpop.f32.mrb[0].mxu0
        %v2783 = vadd.f32 0.0, %v2782
        %v2784 = vpop.f32.mrb[0].mxu0
        %2785 = vmatprep.mubr.bf16.mxu0 0
        %2786 = vmatmul.mubr.bf16.gmra.mrb[0].mxu0 %v2568
        %v2787 = vpop.f32.mrb[0].mxu0
        %v2788 = vadd.f32 0.0, %v2787
        %v2789 = vpop.f32.mrb[0].mxu0
        %v2790 = vpop.f32.mrb[0].mxu0
        %v2791 = vadd.f32 0.0, %v2790
        %v2792 = vpop.f32.mrb[0].mxu0
        %2793 = vdwg.mxu0
        %v2794 = vadd.f32 %v2297, %v2668
        %v2795 = vadd.f32 %v2298, %v2671
        %v2796 = vadd.f32 %v2299, %v2676
        %v2797 = vadd.f32 %v2300, %v2679
        %v2798 = vadd.f32 %v2301, %v2684
        %v2799 = vadd.f32 %v2302, %v2687
        %v2800 = vadd.f32 %v2303, %v2692
        %v2801 = vadd.f32 %v2304, %v2695
        %v2802 = vadd.f32 %v2305, %v2700
        %v2803 = vadd.f32 %v2306, %v2703
        %v2804 = vadd.f32 %v2307, %v2708
        %v2805 = vadd.f32 %v2308, %v2711
        %v2806 = vadd.f32 %v2309, %v2716
        %v2807 = vadd.f32 %v2310, %v2719
        %v2808 = vadd.f32 %v2311, %v2724
        %v2809 = vadd.f32 %v2312, %v2727
        %v2810 = vadd.f32 %v2313, %v2732
        %v2811 = vadd.f32 %v2314, %v2735
        %v2812 = vadd.f32 %v2315, %v2740
        %v2813 = vadd.f32 %v2316, %v2743
        %v2814 = vadd.f32 %v2317, %v2748
        %v2815 = vadd.f32 %v2318, %v2751
        %v2816 = vadd.f32 %v2319, %v2756
        %v2817 = vadd.f32 %v2320, %v2759
        %v2818 = vadd.f32 %v2321, %v2764
        %v2819 = vadd.f32 %v2322, %v2767
        %v2820 = vadd.f32 %v2323, %v2772
        %v2821 = vadd.f32 %v2324, %v2775
        %v2822 = vadd.f32 %v2325, %v2780
        %v2823 = vadd.f32 %v2326, %v2783
        %v2824 = vadd.f32 %v2327, %v2788
        %v2825 = vadd.f32 %v2328, %v2791
        %v2826 = vld [vmem:[#allocation9 + $0x100] sm:$0xf]
        %v2827 = vld [vmem:[#allocation9 + $0x104] sm:$0xf]
        %v2828 = vld [vmem:[#allocation9 + $0x108] sm:$0xf]
        %v2829 = vld [vmem:[#allocation9 + $0x10c] sm:$0xf]
        %v2830 = vld [vmem:[#allocation9 + $0x110] sm:$0xf]
        %v2831 = vld [vmem:[#allocation9 + $0x114] sm:$0xf]
        %v2832 = vld [vmem:[#allocation9 + $0x118] sm:$0xf]
        %v2833 = vld [vmem:[#allocation9 + $0x11c] sm:$0xf]
        %v2834 = vld [vmem:[#allocation9 + $0x120] sm:$0xf]
        %v2835 = vld [vmem:[#allocation9 + $0x124] sm:$0xf]
        %v2836 = vld [vmem:[#allocation9 + $0x128] sm:$0xf]
        %v2837 = vld [vmem:[#allocation9 + $0x12c] sm:$0xf]
        %v2838 = vld [vmem:[#allocation9 + $0x130] sm:$0xf]
        %v2839 = vld [vmem:[#allocation9 + $0x134] sm:$0xf]
        %v2840 = vld [vmem:[#allocation9 + $0x138] sm:$0xf]
        %v2841 = vld [vmem:[#allocation9 + $0x13c] sm:$0xf]
        %v2858 = vunpack.c.l.b16 %v2826
        %v2859 = vunpack.c.l.b16 %v2827
        %v2860 = vunpack.c.l.b16 %v2828
        %v2861 = vunpack.c.l.b16 %v2829
        %v2862 = vunpack.c.l.b16 %v2830
        %v2863 = vunpack.c.l.b16 %v2831
        %v2864 = vunpack.c.l.b16 %v2832
        %v2865 = vunpack.c.l.b16 %v2833
        %v2866 = vunpack.c.l.b16 %v2834
        %v2867 = vunpack.c.l.b16 %v2835
        %v2868 = vunpack.c.l.b16 %v2836
        %v2869 = vunpack.c.l.b16 %v2837
        %v2870 = vunpack.c.l.b16 %v2838
        %v2871 = vunpack.c.l.b16 %v2839
        %v2872 = vunpack.c.l.b16 %v2840
        %v2873 = vunpack.c.l.b16 %v2841
        %v2874 = vpack.c.b16 %v2859, %v2858
        %v2875 = vpack.c.b16 %v2861, %v2860
        %v2876 = vpack.c.b16 %v2863, %v2862
        %v2877 = vpack.c.b16 %v2865, %v2864
        %v2878 = vpack.c.b16 %v2867, %v2866
        %v2879 = vpack.c.b16 %v2869, %v2868
        %v2880 = vpack.c.b16 %v2871, %v2870
        %v2881 = vpack.c.b16 %v2873, %v2872
        %2890 = vmatprep.subr.bf16.mxu0 0
        %2891 = vmatpush1.bf16.msra.mxu0 %v2874
        %2892 = vmatprep.subr.bf16.mxu0 0
        %2893 = vmatpush1.bf16.msra.mxu0 %v2875
        %2894 = vmatprep.subr.bf16.mxu0 0
        %2895 = vmatpush1.bf16.msra.mxu0 %v2876
        %2896 = vmatprep.subr.bf16.mxu0 0
        %2897 = vmatpush1.bf16.msra.mxu0 %v2877
        %2898 = vmatprep.subr.bf16.mxu0 0
        %2899 = vmatpush1.bf16.msra.mxu0 %v2878
        %2900 = vmatprep.subr.bf16.mxu0 0
        %2901 = vmatpush1.bf16.msra.mxu0 %v2879
        %2902 = vmatprep.subr.bf16.mxu0 0
        %2903 = vmatpush1.bf16.msra.mxu0 %v2880
        %2904 = vmatprep.subr.bf16.mxu0 0
        %2905 = vmatpush1.bf16.msra.mxu0 %v2881
        %2906 = vmatprep.subr.bf16.mxu0 0
        %2907 = vmatpush1.bf16.msra.mxu0 0
        %2908 = vmatprep.subr.bf16.mxu0 0
        %2909 = vmatpush1.bf16.msra.mxu0 0
        %2910 = vmatprep.subr.bf16.mxu0 0
        %2911 = vmatpush1.bf16.msra.mxu0 0
        %2912 = vmatprep.subr.bf16.mxu0 0
        %2913 = vmatpush1.bf16.msra.mxu0 0
        %2914 = vmatprep.subr.bf16.mxu0 0
        %2915 = vmatpush1.bf16.msra.mxu0 0
        %2916 = vmatprep.subr.bf16.mxu0 0
        %2917 = vmatpush1.bf16.msra.mxu0 0
        %2918 = vmatprep.subr.bf16.mxu0 0
        %2919 = vmatpush1.bf16.msra.mxu0 0
        %2920 = vmatprep.subr.bf16.mxu0 0
        %2921 = vmatpush1.bf16.msra.mxu0 0
        %2922 = vmatprep.mubr.bf16.mxu0 0
        %2923 = vmatmul.mubr.bf16.gmra.mrb[0].mxu0 %v2330
        %v2924 = vpop.f32.mrb[0].mxu0
        %v2925 = vadd.f32 0.0, %v2924
        %v2926 = vpop.f32.mrb[0].mxu0
        %v2927 = vpop.f32.mrb[0].mxu0
        %v2928 = vadd.f32 0.0, %v2927
        %v2929 = vpop.f32.mrb[0].mxu0
        %2930 = vmatprep.mubr.bf16.mxu0 0
        %2931 = vmatmul.mubr.bf16.gmra.mrb[0].mxu0 %v2332
        %v2932 = vpop.f32.mrb[0].mxu0
        %v2933 = vadd.f32 0.0, %v2932
        %v2934 = vpop.f32.mrb[0].mxu0
        %v2935 = vpop.f32.mrb[0].mxu0
        %v2936 = vadd.f32 0.0, %v2935
        %v2937 = vpop.f32.mrb[0].mxu0
        %2938 = vmatprep.mubr.bf16.mxu0 0
        %2939 = vmatmul.mubr.bf16.gmra.mrb[0].mxu0 %v2334
        %v2940 = vpop.f32.mrb[0].mxu0
        %v2941 = vadd.f32 0.0, %v2940
        %v2942 = vpop.f32.mrb[0].mxu0
        %v2943 = vpop.f32.mrb[0].mxu0
        %v2944 = vadd.f32 0.0, %v2943
        %v2945 = vpop.f32.mrb[0].mxu0
        %2946 = vmatprep.mubr.bf16.mxu0 0
        %2947 = vmatmul.mubr.bf16.gmra.mrb[0].mxu0 %v2336
        %v2948 = vpop.f32.mrb[0].mxu0
        %v2949 = vadd.f32 0.0, %v2948
        %v2950 = vpop.f32.mrb[0].mxu0
        %v2951 = vpop.f32.mrb[0].mxu0
        %v2952 = vadd.f32 0.0, %v2951
        %v2953 = vpop.f32.mrb[0].mxu0
        %2954 = vmatprep.mubr.bf16.mxu0 0
        %2955 = vmatmul.mubr.bf16.gmra.mrb[0].mxu0 %v2338
        %v2956 = vpop.f32.mrb[0].mxu0
        %v2957 = vadd.f32 0.0, %v2956
        %v2958 = vpop.f32.mrb[0].mxu0
        %v2959 = vpop.f32.mrb[0].mxu0
        %v2960 = vadd.f32 0.0, %v2959
        %v2961 = vpop.f32.mrb[0].mxu0
        %2962 = vmatprep.mubr.bf16.mxu0 0
        %2963 = vmatmul.mubr.bf16.gmra.mrb[0].mxu0 %v2340
        %v2964 = vpop.f32.mrb[0].mxu0
        %v2965 = vadd.f32 0.0, %v2964
        %v2966 = vpop.f32.mrb[0].mxu0
        %v2967 = vpop.f32.mrb[0].mxu0
        %v2968 = vadd.f32 0.0, %v2967
        %v2969 = vpop.f32.mrb[0].mxu0
        %2970 = vmatprep.mubr.bf16.mxu0 0
        %2971 = vmatmul.mubr.bf16.gmra.mrb[0].mxu0 %v2342
        %v2972 = vpop.f32.mrb[0].mxu0
        %v2973 = vadd.f32 0.0, %v2972
        %v2974 = vpop.f32.mrb[0].mxu0
        %v2975 = vpop.f32.mrb[0].mxu0
        %v2976 = vadd.f32 0.0, %v2975
        %v2977 = vpop.f32.mrb[0].mxu0
        %2978 = vmatprep.mubr.bf16.mxu0 0
        %2979 = vmatmul.mubr.bf16.gmra.mrb[0].mxu0 %v2344
        %v2980 = vpop.f32.mrb[0].mxu0
        %v2981 = vadd.f32 0.0, %v2980
        %v2982 = vpop.f32.mrb[0].mxu0
        %v2983 = vpop.f32.mrb[0].mxu0
        %v2984 = vadd.f32 0.0, %v2983
        %v2985 = vpop.f32.mrb[0].mxu0
        %2986 = vmatprep.mubr.bf16.mxu0 0
        %2987 = vmatmul.mubr.bf16.gmra.mrb[0].mxu0 %v2346
        %v2988 = vpop.f32.mrb[0].mxu0
        %v2989 = vadd.f32 0.0, %v2988
        %v2990 = vpop.f32.mrb[0].mxu0
        %v2991 = vpop.f32.mrb[0].mxu0
        %v2992 = vadd.f32 0.0, %v2991
        %v2993 = vpop.f32.mrb[0].mxu0
        %2994 = vmatprep.mubr.bf16.mxu0 0
        %2995 = vmatmul.mubr.bf16.gmra.mrb[0].mxu0 %v2348
        %v2996 = vpop.f32.mrb[0].mxu0
        %v2997 = vadd.f32 0.0, %v2996
        %v2998 = vpop.f32.mrb[0].mxu0
        %v2999 = vpop.f32.mrb[0].mxu0
        %v3000 = vadd.f32 0.0, %v2999
        %v3001 = vpop.f32.mrb[0].mxu0
        %3002 = vmatprep.mubr.bf16.mxu0 0
        %3003 = vmatmul.mubr.bf16.gmra.mrb[0].mxu0 %v2350
        %v3004 = vpop.f32.mrb[0].mxu0
        %v3005 = vadd.f32 0.0, %v3004
        %v3006 = vpop.f32.mrb[0].mxu0
        %v3007 = vpop.f32.mrb[0].mxu0
        %v3008 = vadd.f32 0.0, %v3007
        %v3009 = vpop.f32.mrb[0].mxu0
        %3010 = vmatprep.mubr.bf16.mxu0 0
        %3011 = vmatmul.mubr.bf16.gmra.mrb[0].mxu0 %v2352
        %v3012 = vpop.f32.mrb[0].mxu0
        %v3013 = vadd.f32 0.0, %v3012
        %v3014 = vpop.f32.mrb[0].mxu0
        %v3015 = vpop.f32.mrb[0].mxu0
        %v3016 = vadd.f32 0.0, %v3015
        %v3017 = vpop.f32.mrb[0].mxu0
        %3018 = vmatprep.mubr.bf16.mxu0 0
        %3019 = vmatmul.mubr.bf16.gmra.mrb[0].mxu0 %v2354
        %v3020 = vpop.f32.mrb[0].mxu0
        %v3021 = vadd.f32 0.0, %v3020
        %v3022 = vpop.f32.mrb[0].mxu0
        %v3023 = vpop.f32.mrb[0].mxu0
        %v3024 = vadd.f32 0.0, %v3023
        %v3025 = vpop.f32.mrb[0].mxu0
        %3026 = vmatprep.mubr.bf16.mxu0 0
        %3027 = vmatmul.mubr.bf16.gmra.mrb[0].mxu0 %v2356
        %v3028 = vpop.f32.mrb[0].mxu0
        %v3029 = vadd.f32 0.0, %v3028
        %v3030 = vpop.f32.mrb[0].mxu0
        %v3031 = vpop.f32.mrb[0].mxu0
        %v3032 = vadd.f32 0.0, %v3031
        %v3033 = vpop.f32.mrb[0].mxu0
        %3034 = vmatprep.mubr.bf16.mxu0 0
        %3035 = vmatmul.mubr.bf16.gmra.mrb[0].mxu0 %v2358
        %v3036 = vpop.f32.mrb[0].mxu0
        %v3037 = vadd.f32 0.0, %v3036
        %v3038 = vpop.f32.mrb[0].mxu0
        %v3039 = vpop.f32.mrb[0].mxu0
        %v3040 = vadd.f32 0.0, %v3039
        %v3041 = vpop.f32.mrb[0].mxu0
        %3042 = vmatprep.mubr.bf16.mxu0 0
        %3043 = vmatmul.mubr.bf16.gmra.mrb[0].mxu0 %v2360
        %v3044 = vpop.f32.mrb[0].mxu0
        %v3045 = vadd.f32 0.0, %v3044
        %v3046 = vpop.f32.mrb[0].mxu0
        %v3047 = vpop.f32.mrb[0].mxu0
        %v3048 = vadd.f32 0.0, %v3047
        %v3049 = vpop.f32.mrb[0].mxu0
        %3050 = vdwg.mxu0
        %v3051 = vadd.f32 %v2794, %v2925
        %v3052 = vadd.f32 %v2795, %v2928
        %v3053 = vadd.f32 %v2796, %v2933
        %v3054 = vadd.f32 %v2797, %v2936
        %v3055 = vadd.f32 %v2798, %v2941
        %v3056 = vadd.f32 %v2799, %v2944
        %v3057 = vadd.f32 %v2800, %v2949
        %v3058 = vadd.f32 %v2801, %v2952
        %v3059 = vadd.f32 %v2802, %v2957
        %v3060 = vadd.f32 %v2803, %v2960
        %v3061 = vadd.f32 %v2804, %v2965
        %v3062 = vadd.f32 %v2805, %v2968
        %v3063 = vadd.f32 %v2806, %v2973
        %v3064 = vadd.f32 %v2807, %v2976
        %v3065 = vadd.f32 %v2808, %v2981
        %v3066 = vadd.f32 %v2809, %v2984
        %v3067 = vadd.f32 %v2810, %v2989
        %v3068 = vadd.f32 %v2811, %v2992
        %v3069 = vadd.f32 %v2812, %v2997
        %v3070 = vadd.f32 %v2813, %v3000
        %v3071 = vadd.f32 %v2814, %v3005
        %v3072 = vadd.f32 %v2815, %v3008
        %v3073 = vadd.f32 %v2816, %v3013
        %v3074 = vadd.f32 %v2817, %v3016
        %v3075 = vadd.f32 %v2818, %v3021
        %v3076 = vadd.f32 %v2819, %v3024
        %v3077 = vadd.f32 %v2820, %v3029
        %v3078 = vadd.f32 %v2821, %v3032
        %v3079 = vadd.f32 %v2822, %v3037
        %v3080 = vadd.f32 %v2823, %v3040
        %v3081 = vadd.f32 %v2824, %v3045
        %v3082 = vadd.f32 %v2825, %v3048
        %v3083 = vld [vmem:[%s1120 + $0x8] sm:$0xff]
        %v3084 = vld [vmem:[%s1120 + $0x10] sm:$0x1]
        %v3085 = vld [vmem:[%s1120 + $0x20] sm:$0xff]
        %v3086 = vld [vmem:[%s1120 + $0x28] sm:$0x1]
        %v3087 = vld [vmem:[%s1120 + $0x38] sm:$0xff]
        %v3088 = vld [vmem:[%s1120 + $0x40] sm:$0x1]
        %v3089 = vld [vmem:[%s1120 + $0x50] sm:$0xff]
        %v3090 = vld [vmem:[%s1120 + $0x58] sm:$0x1]
        %v3091 = vld [vmem:[%s1120 + $0x68] sm:$0xff]
        %v3092 = vld [vmem:[%s1120 + $0x70] sm:$0x1]
        %v3093 = vld [vmem:[%s1120 + $0x80] sm:$0xff]
        %v3094 = vld [vmem:[%s1120 + $0x88] sm:$0x1]
        %v3095 = vld [vmem:[%s1120 + $0x98] sm:$0xff]
        %v3096 = vld [vmem:[%s1120 + $0xa0] sm:$0x1]
        %v3097 = vld [vmem:[%s1120 + $0xb0] sm:$0xff]
        %v3098 = vld [vmem:[%s1120 + $0xb8] sm:$0x1]
        %v3099 = vld [vmem:[%s1120 + $0xc8] sm:$0xff]
        %v3100 = vld [vmem:[%s1120 + $0xd0] sm:$0x1]
        %v3101 = vld [vmem:[%s1120 + $0xe0] sm:$0xff]
        %v3102 = vld [vmem:[%s1120 + $0xe8] sm:$0x1]
        %v3103 = vld [vmem:[%s1120 + $0xf8] sm:$0xff]
        %v3104 = vld [vmem:[%s1120 + $0x100] sm:$0x1]
        %v3105 = vld [vmem:[%s1120 + $0x110] sm:$0xff]
        %v3106 = vld [vmem:[%s1120 + $0x118] sm:$0x1]
        %v3107 = vld [vmem:[%s1120 + $0x128] sm:$0xff]
        %v3108 = vld [vmem:[%s1120 + $0x130] sm:$0x1]
        %v3109 = vld [vmem:[%s1120 + $0x140] sm:$0xff]
        %v3110 = vld [vmem:[%s1120 + $0x148] sm:$0x1]
        %v3111 = vld [vmem:[%s1120 + $0x158] sm:$0xff]
        %v3112 = vld [vmem:[%s1120 + $0x160] sm:$0x1]
        %v3113 = vld [vmem:[%s1120 + $0x170] sm:$0xff]
        %v3114 = vld [vmem:[%s1120 + $0x178] sm:$0x1]
        %v3115 = vld [vmem:[#allocation9 + $0x140] sm:$0xf]
        %v3116 = vld [vmem:[#allocation9 + $0x144] sm:$0xf]
        %v3117 = vld [vmem:[#allocation9 + $0x148] sm:$0xf]
        %v3118 = vld [vmem:[#allocation9 + $0x14c] sm:$0xf]
        %v3119 = vld [vmem:[#allocation9 + $0x150] sm:$0xf]
        %v3120 = vld [vmem:[#allocation9 + $0x154] sm:$0xf]
        %v3121 = vld [vmem:[#allocation9 + $0x158] sm:$0xf]
        %v3122 = vld [vmem:[#allocation9 + $0x15c] sm:$0xf]
        %v3123 = vld [vmem:[#allocation9 + $0x160] sm:$0xf]
        %v3124 = vld [vmem:[#allocation9 + $0x164] sm:$0xf]
        %v3125 = vld [vmem:[#allocation9 + $0x168] sm:$0xf]
        %v3126 = vld [vmem:[#allocation9 + $0x16c] sm:$0xf]
        %v3127 = vld [vmem:[#allocation9 + $0x170] sm:$0xf]
        %v3128 = vld [vmem:[#allocation9 + $0x174] sm:$0xf]
        %v3129 = vld [vmem:[#allocation9 + $0x178] sm:$0xf]
        %v3130 = vld [vmem:[#allocation9 + $0x17c] sm:$0xf]
        %v3132 = vshrl.u32 %v3083, 16
        %v3134 = vshll.u32 %v3083, 16
        %v3136 = vrot.slane %v3134, 1
        %v3137 = vor.u32 %v3132, %v3136
        %v3139 = vshll.u32 %v3084, 16
        %v3141 = vrot.slane %v3139, 1
        %v3142 = vsel %vm1879, %v3137, %v3141
        %v3144 = vshrl.u32 %v3085, 16
        %v3146 = vshll.u32 %v3085, 16
        %v3148 = vrot.slane %v3146, 1
        %v3149 = vor.u32 %v3144, %v3148
        %v3151 = vshll.u32 %v3086, 16
        %v3153 = vrot.slane %v3151, 1
        %v3154 = vsel %vm1879, %v3149, %v3153
        %v3156 = vshrl.u32 %v3087, 16
        %v3158 = vshll.u32 %v3087, 16
        %v3160 = vrot.slane %v3158, 1
        %v3161 = vor.u32 %v3156, %v3160
        %v3163 = vshll.u32 %v3088, 16
        %v3165 = vrot.slane %v3163, 1
        %v3166 = vsel %vm1879, %v3161, %v3165
        %v3168 = vshrl.u32 %v3089, 16
        %v3170 = vshll.u32 %v3089, 16
        %v3172 = vrot.slane %v3170, 1
        %v3173 = vor.u32 %v3168, %v3172
        %v3175 = vshll.u32 %v3090, 16
        %v3177 = vrot.slane %v3175, 1
        %v3178 = vsel %vm1879, %v3173, %v3177
        %v3180 = vshrl.u32 %v3091, 16
        %v3182 = vshll.u32 %v3091, 16
        %v3184 = vrot.slane %v3182, 1
        %v3185 = vor.u32 %v3180, %v3184
        %v3187 = vshll.u32 %v3092, 16
        %v3189 = vrot.slane %v3187, 1
        %v3190 = vsel %vm1879, %v3185, %v3189
        %v3192 = vshrl.u32 %v3093, 16
        %v3194 = vshll.u32 %v3093, 16
        %v3196 = vrot.slane %v3194, 1
        %v3197 = vor.u32 %v3192, %v3196
        %v3199 = vshll.u32 %v3094, 16
        %v3201 = vrot.slane %v3199, 1
        %v3202 = vsel %vm1879, %v3197, %v3201
        %v3204 = vshrl.u32 %v3095, 16
        %v3206 = vshll.u32 %v3095, 16
        %v3208 = vrot.slane %v3206, 1
        %v3209 = vor.u32 %v3204, %v3208
        %v3211 = vshll.u32 %v3096, 16
        %v3213 = vrot.slane %v3211, 1
        %v3214 = vsel %vm1879, %v3209, %v3213
        %v3216 = vshrl.u32 %v3097, 16
        %v3218 = vshll.u32 %v3097, 16
        %v3220 = vrot.slane %v3218, 1
        %v3221 = vor.u32 %v3216, %v3220
        %v3223 = vshll.u32 %v3098, 16
        %v3225 = vrot.slane %v3223, 1
        %v3226 = vsel %vm1879, %v3221, %v3225
        %v3228 = vshrl.u32 %v3099, 16
        %v3230 = vshll.u32 %v3099, 16
        %v3232 = vrot.slane %v3230, 1
        %v3233 = vor.u32 %v3228, %v3232
        %v3235 = vshll.u32 %v3100, 16
        %v3237 = vrot.slane %v3235, 1
        %v3238 = vsel %vm1879, %v3233, %v3237
        %v3240 = vshrl.u32 %v3101, 16
        %v3242 = vshll.u32 %v3101, 16
        %v3244 = vrot.slane %v3242, 1
        %v3245 = vor.u32 %v3240, %v3244
        %v3247 = vshll.u32 %v3102, 16
        %v3249 = vrot.slane %v3247, 1
        %v3250 = vsel %vm1879, %v3245, %v3249
        %v3252 = vshrl.u32 %v3103, 16
        %v3254 = vshll.u32 %v3103, 16
        %v3256 = vrot.slane %v3254, 1
        %v3257 = vor.u32 %v3252, %v3256
        %v3259 = vshll.u32 %v3104, 16
        %v3261 = vrot.slane %v3259, 1
        %v3262 = vsel %vm1879, %v3257, %v3261
        %v3264 = vshrl.u32 %v3105, 16
        %v3266 = vshll.u32 %v3105, 16
        %v3268 = vrot.slane %v3266, 1
        %v3269 = vor.u32 %v3264, %v3268
        %v3271 = vshll.u32 %v3106, 16
        %v3273 = vrot.slane %v3271, 1
        %v3274 = vsel %vm1879, %v3269, %v3273
        %v3276 = vshrl.u32 %v3107, 16
        %v3278 = vshll.u32 %v3107, 16
        %v3280 = vrot.slane %v3278, 1
        %v3281 = vor.u32 %v3276, %v3280
        %v3283 = vshll.u32 %v3108, 16
        %v3285 = vrot.slane %v3283, 1
        %v3286 = vsel %vm1879, %v3281, %v3285
        %v3288 = vshrl.u32 %v3109, 16
        %v3290 = vshll.u32 %v3109, 16
        %v3292 = vrot.slane %v3290, 1
        %v3293 = vor.u32 %v3288, %v3292
        %v3295 = vshll.u32 %v3110, 16
        %v3297 = vrot.slane %v3295, 1
        %v3298 = vsel %vm1879, %v3293, %v3297
        %v3300 = vshrl.u32 %v3111, 16
        %v3302 = vshll.u32 %v3111, 16
        %v3304 = vrot.slane %v3302, 1
        %v3305 = vor.u32 %v3300, %v3304
        %v3307 = vshll.u32 %v3112, 16
        %v3309 = vrot.slane %v3307, 1
        %v3310 = vsel %vm1879, %v3305, %v3309
        %v3312 = vshrl.u32 %v3113, 16
        %v3314 = vshll.u32 %v3113, 16
        %v3316 = vrot.slane %v3314, 1
        %v3317 = vor.u32 %v3312, %v3316
        %v3319 = vshll.u32 %v3114, 16
        %v3321 = vrot.slane %v3319, 1
        %v3322 = vsel %vm1879, %v3317, %v3321
        %v3355 = vunpack.c.l.b16 %v3115
        %v3356 = vunpack.c.l.b16 %v3116
        %v3357 = vunpack.c.l.b16 %v3117
        %v3358 = vunpack.c.l.b16 %v3118
        %v3359 = vunpack.c.l.b16 %v3119
        %v3360 = vunpack.c.l.b16 %v3120
        %v3361 = vunpack.c.l.b16 %v3121
        %v3362 = vunpack.c.l.b16 %v3122
        %v3363 = vunpack.c.l.b16 %v3123
        %v3364 = vunpack.c.l.b16 %v3124
        %v3365 = vunpack.c.l.b16 %v3125
        %v3366 = vunpack.c.l.b16 %v3126
        %v3367 = vunpack.c.l.b16 %v3127
        %v3368 = vunpack.c.l.b16 %v3128
        %v3369 = vunpack.c.l.b16 %v3129
        %v3370 = vunpack.c.l.b16 %v3130
        %v3371 = vpack.c.b16 %v3356, %v3355
        %v3372 = vpack.c.b16 %v3358, %v3357
        %v3373 = vpack.c.b16 %v3360, %v3359
        %v3374 = vpack.c.b16 %v3362, %v3361
        %v3375 = vpack.c.b16 %v3364, %v3363
        %v3376 = vpack.c.b16 %v3366, %v3365
        %v3377 = vpack.c.b16 %v3368, %v3367
        %v3378 = vpack.c.b16 %v3370, %v3369
        %3387 = vmatprep.subr.bf16.mxu0 0
        %3388 = vmatpush1.bf16.msra.mxu0 %v3371
        %3389 = vmatprep.subr.bf16.mxu0 0
        %3390 = vmatpush1.bf16.msra.mxu0 %v3372
        %3391 = vmatprep.subr.bf16.mxu0 0
        %3392 = vmatpush1.bf16.msra.mxu0 %v3373
        %3393 = vmatprep.subr.bf16.mxu0 0
        %3394 = vmatpush1.bf16.msra.mxu0 %v3374
        %3395 = vmatprep.subr.bf16.mxu0 0
        %3396 = vmatpush1.bf16.msra.mxu0 %v3375
        %3397 = vmatprep.subr.bf16.mxu0 0
        %3398 = vmatpush1.bf16.msra.mxu0 %v3376
        %3399 = vmatprep.subr.bf16.mxu0 0
        %3400 = vmatpush1.bf16.msra.mxu0 %v3377
        %3401 = vmatprep.subr.bf16.mxu0 0
        %3402 = vmatpush1.bf16.msra.mxu0 %v3378
        %3403 = vmatprep.subr.bf16.mxu0 0
        %3404 = vmatpush1.bf16.msra.mxu0 0
        %3405 = vmatprep.subr.bf16.mxu0 0
        %3406 = vmatpush1.bf16.msra.mxu0 0
        %3407 = vmatprep.subr.bf16.mxu0 0
        %3408 = vmatpush1.bf16.msra.mxu0 0
        %3409 = vmatprep.subr.bf16.mxu0 0
        %3410 = vmatpush1.bf16.msra.mxu0 0
        %3411 = vmatprep.subr.bf16.mxu0 0
        %3412 = vmatpush1.bf16.msra.mxu0 0
        %3413 = vmatprep.subr.bf16.mxu0 0
        %3414 = vmatpush1.bf16.msra.mxu0 0
        %3415 = vmatprep.subr.bf16.mxu0 0
        %3416 = vmatpush1.bf16.msra.mxu0 0
        %3417 = vmatprep.subr.bf16.mxu0 0
        %3418 = vmatpush1.bf16.msra.mxu0 0
        %3419 = vmatprep.mubr.bf16.mxu0 0
        %3420 = vmatmul.mubr.bf16.gmra.mrb[0].mxu0 %v3142
        %v3421 = vpop.f32.mrb[0].mxu0
        %v3422 = vadd.f32 0.0, %v3421
        %v3423 = vpop.f32.mrb[0].mxu0
        %v3424 = vpop.f32.mrb[0].mxu0
        %v3425 = vadd.f32 0.0, %v3424
        %v3426 = vpop.f32.mrb[0].mxu0
        %3427 = vmatprep.mubr.bf16.mxu0 0
        %3428 = vmatmul.mubr.bf16.gmra.mrb[0].mxu0 %v3154
        %v3429 = vpop.f32.mrb[0].mxu0
        %v3430 = vadd.f32 0.0, %v3429
        %v3431 = vpop.f32.mrb[0].mxu0
        %v3432 = vpop.f32.mrb[0].mxu0
        %v3433 = vadd.f32 0.0, %v3432
        %v3434 = vpop.f32.mrb[0].mxu0
        %3435 = vmatprep.mubr.bf16.mxu0 0
        %3436 = vmatmul.mubr.bf16.gmra.mrb[0].mxu0 %v3166
        %v3437 = vpop.f32.mrb[0].mxu0
        %v3438 = vadd.f32 0.0, %v3437
        %v3439 = vpop.f32.mrb[0].mxu0
        %v3440 = vpop.f32.mrb[0].mxu0
        %v3441 = vadd.f32 0.0, %v3440
        %v3442 = vpop.f32.mrb[0].mxu0
        %3443 = vmatprep.mubr.bf16.mxu0 0
        %3444 = vmatmul.mubr.bf16.gmra.mrb[0].mxu0 %v3178
        %v3445 = vpop.f32.mrb[0].mxu0
        %v3446 = vadd.f32 0.0, %v3445
        %v3447 = vpop.f32.mrb[0].mxu0
        %v3448 = vpop.f32.mrb[0].mxu0
        %v3449 = vadd.f32 0.0, %v3448
        %v3450 = vpop.f32.mrb[0].mxu0
        %3451 = vmatprep.mubr.bf16.mxu0 0
        %3452 = vmatmul.mubr.bf16.gmra.mrb[0].mxu0 %v3190
        %v3453 = vpop.f32.mrb[0].mxu0
        %v3454 = vadd.f32 0.0, %v3453
        %v3455 = vpop.f32.mrb[0].mxu0
        %v3456 = vpop.f32.mrb[0].mxu0
        %v3457 = vadd.f32 0.0, %v3456
        %v3458 = vpop.f32.mrb[0].mxu0
        %3459 = vmatprep.mubr.bf16.mxu0 0
        %3460 = vmatmul.mubr.bf16.gmra.mrb[0].mxu0 %v3202
        %v3461 = vpop.f32.mrb[0].mxu0
        %v3462 = vadd.f32 0.0, %v3461
        %v3463 = vpop.f32.mrb[0].mxu0
        %v3464 = vpop.f32.mrb[0].mxu0
        %v3465 = vadd.f32 0.0, %v3464
        %v3466 = vpop.f32.mrb[0].mxu0
        %3467 = vmatprep.mubr.bf16.mxu0 0
        %3468 = vmatmul.mubr.bf16.gmra.mrb[0].mxu0 %v3214
        %v3469 = vpop.f32.mrb[0].mxu0
        %v3470 = vadd.f32 0.0, %v3469
        %v3471 = vpop.f32.mrb[0].mxu0
        %v3472 = vpop.f32.mrb[0].mxu0
        %v3473 = vadd.f32 0.0, %v3472
        %v3474 = vpop.f32.mrb[0].mxu0
        %3475 = vmatprep.mubr.bf16.mxu0 0
        %3476 = vmatmul.mubr.bf16.gmra.mrb[0].mxu0 %v3226
        %v3477 = vpop.f32.mrb[0].mxu0
        %v3478 = vadd.f32 0.0, %v3477
        %v3479 = vpop.f32.mrb[0].mxu0
        %v3480 = vpop.f32.mrb[0].mxu0
        %v3481 = vadd.f32 0.0, %v3480
        %v3482 = vpop.f32.mrb[0].mxu0
        %3483 = vmatprep.mubr.bf16.mxu0 0
        %3484 = vmatmul.mubr.bf16.gmra.mrb[0].mxu0 %v3238
        %v3485 = vpop.f32.mrb[0].mxu0
        %v3486 = vadd.f32 0.0, %v3485
        %v3487 = vpop.f32.mrb[0].mxu0
        %v3488 = vpop.f32.mrb[0].mxu0
        %v3489 = vadd.f32 0.0, %v3488
        %v3490 = vpop.f32.mrb[0].mxu0
        %3491 = vmatprep.mubr.bf16.mxu0 0
        %3492 = vmatmul.mubr.bf16.gmra.mrb[0].mxu0 %v3250
        %v3493 = vpop.f32.mrb[0].mxu0
        %v3494 = vadd.f32 0.0, %v3493
        %v3495 = vpop.f32.mrb[0].mxu0
        %v3496 = vpop.f32.mrb[0].mxu0
        %v3497 = vadd.f32 0.0, %v3496
        %v3498 = vpop.f32.mrb[0].mxu0
        %3499 = vmatprep.mubr.bf16.mxu0 0
        %3500 = vmatmul.mubr.bf16.gmra.mrb[0].mxu0 %v3262
        %v3501 = vpop.f32.mrb[0].mxu0
        %v3502 = vadd.f32 0.0, %v3501
        %v3503 = vpop.f32.mrb[0].mxu0
        %v3504 = vpop.f32.mrb[0].mxu0
        %v3505 = vadd.f32 0.0, %v3504
        %v3506 = vpop.f32.mrb[0].mxu0
        %3507 = vmatprep.mubr.bf16.mxu0 0
        %3508 = vmatmul.mubr.bf16.gmra.mrb[0].mxu0 %v3274
        %v3509 = vpop.f32.mrb[0].mxu0
        %v3510 = vadd.f32 0.0, %v3509
        %v3511 = vpop.f32.mrb[0].mxu0
        %v3512 = vpop.f32.mrb[0].mxu0
        %v3513 = vadd.f32 0.0, %v3512
        %v3514 = vpop.f32.mrb[0].mxu0
        %3515 = vmatprep.mubr.bf16.mxu0 0
        %3516 = vmatmul.mubr.bf16.gmra.mrb[0].mxu0 %v3286
        %v3517 = vpop.f32.mrb[0].mxu0
        %v3518 = vadd.f32 0.0, %v3517
        %v3519 = vpop.f32.mrb[0].mxu0
        %v3520 = vpop.f32.mrb[0].mxu0
        %v3521 = vadd.f32 0.0, %v3520
        %v3522 = vpop.f32.mrb[0].mxu0
        %3523 = vmatprep.mubr.bf16.mxu0 0
        %3524 = vmatmul.mubr.bf16.gmra.mrb[0].mxu0 %v3298
        %v3525 = vpop.f32.mrb[0].mxu0
        %v3526 = vadd.f32 0.0, %v3525
        %v3527 = vpop.f32.mrb[0].mxu0
        %v3528 = vpop.f32.mrb[0].mxu0
        %v3529 = vadd.f32 0.0, %v3528
        %v3530 = vpop.f32.mrb[0].mxu0
        %3531 = vmatprep.mubr.bf16.mxu0 0
        %3532 = vmatmul.mubr.bf16.gmra.mrb[0].mxu0 %v3310
        %v3533 = vpop.f32.mrb[0].mxu0
        %v3534 = vadd.f32 0.0, %v3533
        %v3535 = vpop.f32.mrb[0].mxu0
        %v3536 = vpop.f32.mrb[0].mxu0
        %v3537 = vadd.f32 0.0, %v3536
        %v3538 = vpop.f32.mrb[0].mxu0
        %3539 = vmatprep.mubr.bf16.mxu0 0
        %3540 = vmatmul.mubr.bf16.gmra.mrb[0].mxu0 %v3322
        %v3541 = vpop.f32.mrb[0].mxu0
        %v3542 = vadd.f32 0.0, %v3541
        %v3543 = vpop.f32.mrb[0].mxu0
        %v3544 = vpop.f32.mrb[0].mxu0
        %v3545 = vadd.f32 0.0, %v3544
        %v3546 = vpop.f32.mrb[0].mxu0
        %3547 = vdwg.mxu0
        %v3548 = vadd.f32 %v3051, %v3422
        %v3549 = vadd.f32 %v3052, %v3425
        %v3550 = vadd.f32 %v3053, %v3430
        %v3551 = vadd.f32 %v3054, %v3433
        %v3552 = vadd.f32 %v3055, %v3438
        %v3553 = vadd.f32 %v3056, %v3441
        %v3554 = vadd.f32 %v3057, %v3446
        %v3555 = vadd.f32 %v3058, %v3449
        %v3556 = vadd.f32 %v3059, %v3454
        %v3557 = vadd.f32 %v3060, %v3457
        %v3558 = vadd.f32 %v3061, %v3462
        %v3559 = vadd.f32 %v3062, %v3465
        %v3560 = vadd.f32 %v3063, %v3470
        %v3561 = vadd.f32 %v3064, %v3473
        %v3562 = vadd.f32 %v3065, %v3478
        %v3563 = vadd.f32 %v3066, %v3481
        %v3564 = vadd.f32 %v3067, %v3486
        %v3565 = vadd.f32 %v3068, %v3489
        %v3566 = vadd.f32 %v3069, %v3494
        %v3567 = vadd.f32 %v3070, %v3497
        %v3568 = vadd.f32 %v3071, %v3502
        %v3569 = vadd.f32 %v3072, %v3505
        %v3570 = vadd.f32 %v3073, %v3510
        %v3571 = vadd.f32 %v3074, %v3513
        %v3572 = vadd.f32 %v3075, %v3518
        %v3573 = vadd.f32 %v3076, %v3521
        %v3574 = vadd.f32 %v3077, %v3526
        %v3575 = vadd.f32 %v3078, %v3529
        %v3576 = vadd.f32 %v3079, %v3534
        %v3577 = vadd.f32 %v3080, %v3537
        %v3578 = vadd.f32 %v3081, %v3542
        %v3579 = vadd.f32 %v3082, %v3545
        %s3580 = scalar_lea.vmem [#allocation2], 48
        %v3581 = vld [vmem:[%s3580] sm:$0x80]
        %v3582 = vld [vmem:[%s3580 + $0x8] sm:$0xff]
        %v3583 = vld [vmem:[%s3580 + $0x18] sm:$0x80]
        %v3584 = vld [vmem:[%s3580 + $0x20] sm:$0xff]
        %v3585 = vld [vmem:[%s3580 + $0x30] sm:$0x80]
        %v3586 = vld [vmem:[%s3580 + $0x38] sm:$0xff]
        %v3587 = vld [vmem:[%s3580 + $0x48] sm:$0x80]
        %v3588 = vld [vmem:[%s3580 + $0x50] sm:$0xff]
        %v3589 = vld [vmem:[%s3580 + $0x60] sm:$0x80]
        %v3590 = vld [vmem:[%s3580 + $0x68] sm:$0xff]
        %v3591 = vld [vmem:[%s3580 + $0x78] sm:$0x80]
        %v3592 = vld [vmem:[%s3580 + $0x80] sm:$0xff]
        %v3593 = vld [vmem:[%s3580 + $0x90] sm:$0x80]
        %v3594 = vld [vmem:[%s3580 + $0x98] sm:$0xff]
        %v3595 = vld [vmem:[%s3580 + $0xa8] sm:$0x80]
        %v3596 = vld [vmem:[%s3580 + $0xb0] sm:$0xff]
        %v3597 = vld [vmem:[%s3580 + $0xc0] sm:$0x80]
        %v3598 = vld [vmem:[%s3580 + $0xc8] sm:$0xff]
        %v3599 = vld [vmem:[%s3580 + $0xd8] sm:$0x80]
        %v3600 = vld [vmem:[%s3580 + $0xe0] sm:$0xff]
        %v3601 = vld [vmem:[%s3580 + $0xf0] sm:$0x80]
        %v3602 = vld [vmem:[%s3580 + $0xf8] sm:$0xff]
        %v3603 = vld [vmem:[%s3580 + $0x108] sm:$0x80]
        %v3604 = vld [vmem:[%s3580 + $0x110] sm:$0xff]
        %v3605 = vld [vmem:[%s3580 + $0x120] sm:$0x80]
        %v3606 = vld [vmem:[%s3580 + $0x128] sm:$0xff]
        %v3607 = vld [vmem:[%s3580 + $0x138] sm:$0x80]
        %v3608 = vld [vmem:[%s3580 + $0x140] sm:$0xff]
        %v3609 = vld [vmem:[%s3580 + $0x150] sm:$0x80]
        %v3610 = vld [vmem:[%s3580 + $0x158] sm:$0xff]
        %v3611 = vld [vmem:[%s3580 + $0x168] sm:$0x80]
        %v3612 = vld [vmem:[%s3580 + $0x170] sm:$0xff]
        %v3613 = vld [vmem:[#allocation9 + $0x180] sm:$0xf]
        %v3614 = vld [vmem:[#allocation9 + $0x184] sm:$0xf]
        %v3615 = vld [vmem:[#allocation9 + $0x188] sm:$0xf]
        %v3616 = vld [vmem:[#allocation9 + $0x18c] sm:$0xf]
        %v3617 = vld [vmem:[#allocation9 + $0x190] sm:$0xf]
        %v3618 = vld [vmem:[#allocation9 + $0x194] sm:$0xf]
        %v3619 = vld [vmem:[#allocation9 + $0x198] sm:$0xf]
        %v3620 = vld [vmem:[#allocation9 + $0x19c] sm:$0xf]
        %v3621 = vld [vmem:[#allocation9 + $0x1a0] sm:$0xf]
        %v3622 = vld [vmem:[#allocation9 + $0x1a4] sm:$0xf]
        %v3623 = vld [vmem:[#allocation9 + $0x1a8] sm:$0xf]
        %v3624 = vld [vmem:[#allocation9 + $0x1ac] sm:$0xf]
        %v3625 = vld [vmem:[#allocation9 + $0x1b0] sm:$0xf]
        %v3626 = vld [vmem:[#allocation9 + $0x1b4] sm:$0xf]
        %v3627 = vld [vmem:[#allocation9 + $0x1b8] sm:$0xf]
        %v3628 = vld [vmem:[#allocation9 + $0x1bc] sm:$0xf]
        %v3630 = vshrl.u32 %v3581, 16
        %v3632 = vrot.slane %v3630, 7
        %v3634 = vshrl.u32 %v3582, 16
        %v3636 = vrot.slane %v3634, 7
        %v3637 = vshll.u32 %v3582, 16
        %v3639 = vor.u32 %v3636, %v3637
        %v3640 = vsel %vm1188, %v3632, %v3639
        %v3642 = vshrl.u32 %v3583, 16
        %v3644 = vrot.slane %v3642, 7
        %v3646 = vshrl.u32 %v3584, 16
        %v3648 = vrot.slane %v3646, 7
        %v3649 = vshll.u32 %v3584, 16
        %v3651 = vor.u32 %v3648, %v3649
        %v3652 = vsel %vm1188, %v3644, %v3651
        %v3654 = vshrl.u32 %v3585, 16
        %v3656 = vrot.slane %v3654, 7
        %v3658 = vshrl.u32 %v3586, 16
        %v3660 = vrot.slane %v3658, 7
        %v3661 = vshll.u32 %v3586, 16
        %v3663 = vor.u32 %v3660, %v3661
        %v3664 = vsel %vm1188, %v3656, %v3663
        %v3666 = vshrl.u32 %v3587, 16
        %v3668 = vrot.slane %v3666, 7
        %v3670 = vshrl.u32 %v3588, 16
        %v3672 = vrot.slane %v3670, 7
        %v3673 = vshll.u32 %v3588, 16
        %v3675 = vor.u32 %v3672, %v3673
        %v3676 = vsel %vm1188, %v3668, %v3675
        %v3678 = vshrl.u32 %v3589, 16
        %v3680 = vrot.slane %v3678, 7
        %v3682 = vshrl.u32 %v3590, 16
        %v3684 = vrot.slane %v3682, 7
        %v3685 = vshll.u32 %v3590, 16
        %v3687 = vor.u32 %v3684, %v3685
        %v3688 = vsel %vm1188, %v3680, %v3687
        %v3690 = vshrl.u32 %v3591, 16
        %v3692 = vrot.slane %v3690, 7
        %v3694 = vshrl.u32 %v3592, 16
        %v3696 = vrot.slane %v3694, 7
        %v3697 = vshll.u32 %v3592, 16
        %v3699 = vor.u32 %v3696, %v3697
        %v3700 = vsel %vm1188, %v3692, %v3699
        %v3702 = vshrl.u32 %v3593, 16
        %v3704 = vrot.slane %v3702, 7
        %v3706 = vshrl.u32 %v3594, 16
        %v3708 = vrot.slane %v3706, 7
        %v3709 = vshll.u32 %v3594, 16
        %v3711 = vor.u32 %v3708, %v3709
        %v3712 = vsel %vm1188, %v3704, %v3711
        %v3714 = vshrl.u32 %v3595, 16
        %v3716 = vrot.slane %v3714, 7
        %v3718 = vshrl.u32 %v3596, 16
        %v3720 = vrot.slane %v3718, 7
        %v3721 = vshll.u32 %v3596, 16
        %v3723 = vor.u32 %v3720, %v3721
        %v3724 = vsel %vm1188, %v3716, %v3723
        %v3726 = vshrl.u32 %v3597, 16
        %v3728 = vrot.slane %v3726, 7
        %v3730 = vshrl.u32 %v3598, 16
        %v3732 = vrot.slane %v3730, 7
        %v3733 = vshll.u32 %v3598, 16
        %v3735 = vor.u32 %v3732, %v3733
        %v3736 = vsel %vm1188, %v3728, %v3735
        %v3738 = vshrl.u32 %v3599, 16
        %v3740 = vrot.slane %v3738, 7
        %v3742 = vshrl.u32 %v3600, 16
        %v3744 = vrot.slane %v3742, 7
        %v3745 = vshll.u32 %v3600, 16
        %v3747 = vor.u32 %v3744, %v3745
        %v3748 = vsel %vm1188, %v3740, %v3747
        %v3750 = vshrl.u32 %v3601, 16
        %v3752 = vrot.slane %v3750, 7
        %v3754 = vshrl.u32 %v3602, 16
        %v3756 = vrot.slane %v3754, 7
        %v3757 = vshll.u32 %v3602, 16
        %v3759 = vor.u32 %v3756, %v3757
        %v3760 = vsel %vm1188, %v3752, %v3759
        %v3762 = vshrl.u32 %v3603, 16
        %v3764 = vrot.slane %v3762, 7
        %v3766 = vshrl.u32 %v3604, 16
        %v3768 = vrot.slane %v3766, 7
        %v3769 = vshll.u32 %v3604, 16
        %v3771 = vor.u32 %v3768, %v3769
        %v3772 = vsel %vm1188, %v3764, %v3771
        %v3774 = vshrl.u32 %v3605, 16
        %v3776 = vrot.slane %v3774, 7
        %v3778 = vshrl.u32 %v3606, 16
        %v3780 = vrot.slane %v3778, 7
        %v3781 = vshll.u32 %v3606, 16
        %v3783 = vor.u32 %v3780, %v3781
        %v3784 = vsel %vm1188, %v3776, %v3783
        %v3786 = vshrl.u32 %v3607, 16
        %v3788 = vrot.slane %v3786, 7
        %v3790 = vshrl.u32 %v3608, 16
        %v3792 = vrot.slane %v3790, 7
        %v3793 = vshll.u32 %v3608, 16
        %v3795 = vor.u32 %v3792, %v3793
        %v3796 = vsel %vm1188, %v3788, %v3795
        %v3798 = vshrl.u32 %v3609, 16
        %v3800 = vrot.slane %v3798, 7
        %v3802 = vshrl.u32 %v3610, 16
        %v3804 = vrot.slane %v3802, 7
        %v3805 = vshll.u32 %v3610, 16
        %v3807 = vor.u32 %v3804, %v3805
        %v3808 = vsel %vm1188, %v3800, %v3807
        %v3810 = vshrl.u32 %v3611, 16
        %v3812 = vrot.slane %v3810, 7
        %v3814 = vshrl.u32 %v3612, 16
        %v3816 = vrot.slane %v3814, 7
        %v3817 = vshll.u32 %v3612, 16
        %v3819 = vor.u32 %v3816, %v3817
        %v3820 = vsel %vm1188, %v3812, %v3819
        %v3853 = vunpack.c.l.b16 %v3613
        %v3854 = vunpack.c.l.b16 %v3614
        %v3855 = vunpack.c.l.b16 %v3615
        %v3856 = vunpack.c.l.b16 %v3616
        %v3857 = vunpack.c.l.b16 %v3617
        %v3858 = vunpack.c.l.b16 %v3618
        %v3859 = vunpack.c.l.b16 %v3619
        %v3860 = vunpack.c.l.b16 %v3620
        %v3861 = vunpack.c.l.b16 %v3621
        %v3862 = vunpack.c.l.b16 %v3622
        %v3863 = vunpack.c.l.b16 %v3623
        %v3864 = vunpack.c.l.b16 %v3624
        %v3865 = vunpack.c.l.b16 %v3625
        %v3866 = vunpack.c.l.b16 %v3626
        %v3867 = vunpack.c.l.b16 %v3627
        %v3868 = vunpack.c.l.b16 %v3628
        %v3869 = vpack.c.b16 %v3854, %v3853
        %v3870 = vpack.c.b16 %v3856, %v3855
        %v3871 = vpack.c.b16 %v3858, %v3857
        %v3872 = vpack.c.b16 %v3860, %v3859
        %v3873 = vpack.c.b16 %v3862, %v3861
        %v3874 = vpack.c.b16 %v3864, %v3863
        %v3875 = vpack.c.b16 %v3866, %v3865
        %v3876 = vpack.c.b16 %v3868, %v3867
        %3885 = vmatprep.subr.bf16.mxu0 0
        %3886 = vmatpush1.bf16.msra.mxu0 %v3869
        %3887 = vmatprep.subr.bf16.mxu0 0
        %3888 = vmatpush1.bf16.msra.mxu0 %v3870
        %3889 = vmatprep.subr.bf16.mxu0 0
        %3890 = vmatpush1.bf16.msra.mxu0 %v3871
        %3891 = vmatprep.subr.bf16.mxu0 0
        %3892 = vmatpush1.bf16.msra.mxu0 %v3872
        %3893 = vmatprep.subr.bf16.mxu0 0
        %3894 = vmatpush1.bf16.msra.mxu0 %v3873
        %3895 = vmatprep.subr.bf16.mxu0 0
        %3896 = vmatpush1.bf16.msra.mxu0 %v3874
        %3897 = vmatprep.subr.bf16.mxu0 0
        %3898 = vmatpush1.bf16.msra.mxu0 %v3875
        %3899 = vmatprep.subr.bf16.mxu0 0
        %3900 = vmatpush1.bf16.msra.mxu0 %v3876
        %3901 = vmatprep.subr.bf16.mxu0 0
        %3902 = vmatpush1.bf16.msra.mxu0 0
        %3903 = vmatprep.subr.bf16.mxu0 0
        %3904 = vmatpush1.bf16.msra.mxu0 0
        %3905 = vmatprep.subr.bf16.mxu0 0
        %3906 = vmatpush1.bf16.msra.mxu0 0
        %3907 = vmatprep.subr.bf16.mxu0 0
        %3908 = vmatpush1.bf16.msra.mxu0 0
        %3909 = vmatprep.subr.bf16.mxu0 0
        %3910 = vmatpush1.bf16.msra.mxu0 0
        %3911 = vmatprep.subr.bf16.mxu0 0
        %3912 = vmatpush1.bf16.msra.mxu0 0
        %3913 = vmatprep.subr.bf16.mxu0 0
        %3914 = vmatpush1.bf16.msra.mxu0 0
        %3915 = vmatprep.subr.bf16.mxu0 0
        %3916 = vmatpush1.bf16.msra.mxu0 0
        %3917 = vmatprep.mubr.bf16.mxu0 0
        %3918 = vmatmul.mubr.bf16.gmra.mrb[0].mxu0 %v3640
        %v3919 = vpop.f32.mrb[0].mxu0
        %v3920 = vadd.f32 0.0, %v3919
        %v3921 = vpop.f32.mrb[0].mxu0
        %v3922 = vpop.f32.mrb[0].mxu0
        %v3923 = vadd.f32 0.0, %v3922
        %v3924 = vpop.f32.mrb[0].mxu0
        %3925 = vmatprep.mubr.bf16.mxu0 0
        %3926 = vmatmul.mubr.bf16.gmra.mrb[0].mxu0 %v3652
        %v3927 = vpop.f32.mrb[0].mxu0
        %v3928 = vadd.f32 0.0, %v3927
        %v3929 = vpop.f32.mrb[0].mxu0
        %v3930 = vpop.f32.mrb[0].mxu0
        %v3931 = vadd.f32 0.0, %v3930
        %v3932 = vpop.f32.mrb[0].mxu0
        %3933 = vmatprep.mubr.bf16.mxu0 0
        %3934 = vmatmul.mubr.bf16.gmra.mrb[0].mxu0 %v3664
        %v3935 = vpop.f32.mrb[0].mxu0
        %v3936 = vadd.f32 0.0, %v3935
        %v3937 = vpop.f32.mrb[0].mxu0
        %v3938 = vpop.f32.mrb[0].mxu0
        %v3939 = vadd.f32 0.0, %v3938
        %v3940 = vpop.f32.mrb[0].mxu0
        %3941 = vmatprep.mubr.bf16.mxu0 0
        %3942 = vmatmul.mubr.bf16.gmra.mrb[0].mxu0 %v3676
        %v3943 = vpop.f32.mrb[0].mxu0
        %v3944 = vadd.f32 0.0, %v3943
        %v3945 = vpop.f32.mrb[0].mxu0
        %v3946 = vpop.f32.mrb[0].mxu0
        %v3947 = vadd.f32 0.0, %v3946
        %v3948 = vpop.f32.mrb[0].mxu0
        %3949 = vmatprep.mubr.bf16.mxu0 0
        %3950 = vmatmul.mubr.bf16.gmra.mrb[0].mxu0 %v3688
        %v3951 = vpop.f32.mrb[0].mxu0
        %v3952 = vadd.f32 0.0, %v3951
        %v3953 = vpop.f32.mrb[0].mxu0
        %v3954 = vpop.f32.mrb[0].mxu0
        %v3955 = vadd.f32 0.0, %v3954
        %v3956 = vpop.f32.mrb[0].mxu0
        %3957 = vmatprep.mubr.bf16.mxu0 0
        %3958 = vmatmul.mubr.bf16.gmra.mrb[0].mxu0 %v3700
        %v3959 = vpop.f32.mrb[0].mxu0
        %v3960 = vadd.f32 0.0, %v3959
        %v3961 = vpop.f32.mrb[0].mxu0
        %v3962 = vpop.f32.mrb[0].mxu0
        %v3963 = vadd.f32 0.0, %v3962
        %v3964 = vpop.f32.mrb[0].mxu0
        %3965 = vmatprep.mubr.bf16.mxu0 0
        %3966 = vmatmul.mubr.bf16.gmra.mrb[0].mxu0 %v3712
        %v3967 = vpop.f32.mrb[0].mxu0
        %v3968 = vadd.f32 0.0, %v3967
        %v3969 = vpop.f32.mrb[0].mxu0
        %v3970 = vpop.f32.mrb[0].mxu0
        %v3971 = vadd.f32 0.0, %v3970
        %v3972 = vpop.f32.mrb[0].mxu0
        %3973 = vmatprep.mubr.bf16.mxu0 0
        %3974 = vmatmul.mubr.bf16.gmra.mrb[0].mxu0 %v3724
        %v3975 = vpop.f32.mrb[0].mxu0
        %v3976 = vadd.f32 0.0, %v3975
        %v3977 = vpop.f32.mrb[0].mxu0
        %v3978 = vpop.f32.mrb[0].mxu0
        %v3979 = vadd.f32 0.0, %v3978
        %v3980 = vpop.f32.mrb[0].mxu0
        %3981 = vmatprep.mubr.bf16.mxu0 0
        %3982 = vmatmul.mubr.bf16.gmra.mrb[0].mxu0 %v3736
        %v3983 = vpop.f32.mrb[0].mxu0
        %v3984 = vadd.f32 0.0, %v3983
        %v3985 = vpop.f32.mrb[0].mxu0
        %v3986 = vpop.f32.mrb[0].mxu0
        %v3987 = vadd.f32 0.0, %v3986
        %v3988 = vpop.f32.mrb[0].mxu0
        %3989 = vmatprep.mubr.bf16.mxu0 0
        %3990 = vmatmul.mubr.bf16.gmra.mrb[0].mxu0 %v3748
        %v3991 = vpop.f32.mrb[0].mxu0
        %v3992 = vadd.f32 0.0, %v3991
        %v3993 = vpop.f32.mrb[0].mxu0
        %v3994 = vpop.f32.mrb[0].mxu0
        %v3995 = vadd.f32 0.0, %v3994
        %v3996 = vpop.f32.mrb[0].mxu0
        %3997 = vmatprep.mubr.bf16.mxu0 0
        %3998 = vmatmul.mubr.bf16.gmra.mrb[0].mxu0 %v3760
        %v3999 = vpop.f32.mrb[0].mxu0
        %v4000 = vadd.f32 0.0, %v3999
        %v4001 = vpop.f32.mrb[0].mxu0
        %v4002 = vpop.f32.mrb[0].mxu0
        %v4003 = vadd.f32 0.0, %v4002
        %v4004 = vpop.f32.mrb[0].mxu0
        %4005 = vmatprep.mubr.bf16.mxu0 0
        %4006 = vmatmul.mubr.bf16.gmra.mrb[0].mxu0 %v3772
        %v4007 = vpop.f32.mrb[0].mxu0
        %v4008 = vadd.f32 0.0, %v4007
        %v4009 = vpop.f32.mrb[0].mxu0
        %v4010 = vpop.f32.mrb[0].mxu0
        %v4011 = vadd.f32 0.0, %v4010
        %v4012 = vpop.f32.mrb[0].mxu0
        %4013 = vmatprep.mubr.bf16.mxu0 0
        %4014 = vmatmul.mubr.bf16.gmra.mrb[0].mxu0 %v3784
        %v4015 = vpop.f32.mrb[0].mxu0
        %v4016 = vadd.f32 0.0, %v4015
        %v4017 = vpop.f32.mrb[0].mxu0
        %v4018 = vpop.f32.mrb[0].mxu0
        %v4019 = vadd.f32 0.0, %v4018
        %v4020 = vpop.f32.mrb[0].mxu0
        %4021 = vmatprep.mubr.bf16.mxu0 0
        %4022 = vmatmul.mubr.bf16.gmra.mrb[0].mxu0 %v3796
        %v4023 = vpop.f32.mrb[0].mxu0
        %v4024 = vadd.f32 0.0, %v4023
        %v4025 = vpop.f32.mrb[0].mxu0
        %v4026 = vpop.f32.mrb[0].mxu0
        %v4027 = vadd.f32 0.0, %v4026
        %v4028 = vpop.f32.mrb[0].mxu0
        %4029 = vmatprep.mubr.bf16.mxu0 0
        %4030 = vmatmul.mubr.bf16.gmra.mrb[0].mxu0 %v3808
        %v4031 = vpop.f32.mrb[0].mxu0
        %v4032 = vadd.f32 0.0, %v4031
        %v4033 = vpop.f32.mrb[0].mxu0
        %v4034 = vpop.f32.mrb[0].mxu0
        %v4035 = vadd.f32 0.0, %v4034
        %v4036 = vpop.f32.mrb[0].mxu0
        %4037 = vmatprep.mubr.bf16.mxu0 0
        %4038 = vmatmul.mubr.bf16.gmra.mrb[0].mxu0 %v3820
        %v4039 = vpop.f32.mrb[0].mxu0
        %v4040 = vadd.f32 0.0, %v4039
        %v4041 = vpop.f32.mrb[0].mxu0
        %v4042 = vpop.f32.mrb[0].mxu0
        %v4043 = vadd.f32 0.0, %v4042
        %v4044 = vpop.f32.mrb[0].mxu0
        %4045 = vdwg.mxu0
        %v4046 = vadd.f32 %v3548, %v3920
        %v4047 = vadd.f32 %v3549, %v3923
        %v4048 = vadd.f32 %v3550, %v3928
        %v4049 = vadd.f32 %v3551, %v3931
        %v4050 = vadd.f32 %v3552, %v3936
        %v4051 = vadd.f32 %v3553, %v3939
        %v4052 = vadd.f32 %v3554, %v3944
        %v4053 = vadd.f32 %v3555, %v3947
        %v4054 = vadd.f32 %v3556, %v3952
        %v4055 = vadd.f32 %v3557, %v3955
        %v4056 = vadd.f32 %v3558, %v3960
        %v4057 = vadd.f32 %v3559, %v3963
        %v4058 = vadd.f32 %v3560, %v3968
        %v4059 = vadd.f32 %v3561, %v3971
        %v4060 = vadd.f32 %v3562, %v3976
        %v4061 = vadd.f32 %v3563, %v3979
        %v4062 = vadd.f32 %v3564, %v3984
        %v4063 = vadd.f32 %v3565, %v3987
        %v4064 = vadd.f32 %v3566, %v3992
        %v4065 = vadd.f32 %v3567, %v3995
        %v4066 = vadd.f32 %v3568, %v4000
        %v4067 = vadd.f32 %v3569, %v4003
        %v4068 = vadd.f32 %v3570, %v4008
        %v4069 = vadd.f32 %v3571, %v4011
        %v4070 = vadd.f32 %v3572, %v4016
        %v4071 = vadd.f32 %v3573, %v4019
        %v4072 = vadd.f32 %v3574, %v4024
        %v4073 = vadd.f32 %v3575, %v4027
        %v4074 = vadd.f32 %v3576, %v4032
        %v4075 = vadd.f32 %v3577, %v4035
        %v4076 = vadd.f32 %v3578, %v4040
        %v4077 = vadd.f32 %v3579, %v4043
        %v4078 = vld [vmem:[#allocation9 + $0x1c0] sm:$0xf]
        %v4079 = vld [vmem:[#allocation9 + $0x1c4] sm:$0xf]
        %v4080 = vld [vmem:[#allocation9 + $0x1c8] sm:$0xf]
        %v4081 = vld [vmem:[#allocation9 + $0x1cc] sm:$0xf]
        %v4082 = vld [vmem:[#allocation9 + $0x1d0] sm:$0xf]
        %v4083 = vld [vmem:[#allocation9 + $0x1d4] sm:$0xf]
        %v4084 = vld [vmem:[#allocation9 + $0x1d8] sm:$0xf]
        %v4085 = vld [vmem:[#allocation9 + $0x1dc] sm:$0xf]
        %v4086 = vld [vmem:[#allocation9 + $0x1e0] sm:$0xf]
        %v4087 = vld [vmem:[#allocation9 + $0x1e4] sm:$0xf]
        %v4088 = vld [vmem:[#allocation9 + $0x1e8] sm:$0xf]
        %v4089 = vld [vmem:[#allocation9 + $0x1ec] sm:$0xf]
        %v4090 = vld [vmem:[#allocation9 + $0x1f0] sm:$0xf]
        %v4091 = vld [vmem:[#allocation9 + $0x1f4] sm:$0xf]
        %v4092 = vld [vmem:[#allocation9 + $0x1f8] sm:$0xf]
        %v4093 = vld [vmem:[#allocation9 + $0x1fc] sm:$0xf]
        %v4110 = vunpack.c.l.b16 %v4078
        %v4111 = vunpack.c.l.b16 %v4079
        %v4112 = vunpack.c.l.b16 %v4080
        %v4113 = vunpack.c.l.b16 %v4081
        %v4114 = vunpack.c.l.b16 %v4082
        %v4115 = vunpack.c.l.b16 %v4083
        %v4116 = vunpack.c.l.b16 %v4084
        %v4117 = vunpack.c.l.b16 %v4085
        %v4118 = vunpack.c.l.b16 %v4086
        %v4119 = vunpack.c.l.b16 %v4087
        %v4120 = vunpack.c.l.b16 %v4088
        %v4121 = vunpack.c.l.b16 %v4089
        %v4122 = vunpack.c.l.b16 %v4090
        %v4123 = vunpack.c.l.b16 %v4091
        %v4124 = vunpack.c.l.b16 %v4092
        %v4125 = vunpack.c.l.b16 %v4093
        %v4126 = vpack.c.b16 %v4111, %v4110
        %v4127 = vpack.c.b16 %v4113, %v4112
        %v4128 = vpack.c.b16 %v4115, %v4114
        %v4129 = vpack.c.b16 %v4117, %v4116
        %v4130 = vpack.c.b16 %v4119, %v4118
        %v4131 = vpack.c.b16 %v4121, %v4120
        %v4132 = vpack.c.b16 %v4123, %v4122
        %v4133 = vpack.c.b16 %v4125, %v4124
        %4142 = vmatprep.subr.bf16.mxu0 0
        %4143 = vmatpush1.bf16.msra.mxu0 %v4126
        %4144 = vmatprep.subr.bf16.mxu0 0
        %4145 = vmatpush1.bf16.msra.mxu0 %v4127
        %4146 = vmatprep.subr.bf16.mxu0 0
        %4147 = vmatpush1.bf16.msra.mxu0 %v4128
        %4148 = vmatprep.subr.bf16.mxu0 0
        %4149 = vmatpush1.bf16.msra.mxu0 %v4129
        %4150 = vmatprep.subr.bf16.mxu0 0
        %4151 = vmatpush1.bf16.msra.mxu0 %v4130
        %4152 = vmatprep.subr.bf16.mxu0 0
        %4153 = vmatpush1.bf16.msra.mxu0 %v4131
        %4154 = vmatprep.subr.bf16.mxu0 0
        %4155 = vmatpush1.bf16.msra.mxu0 %v4132
        %4156 = vmatprep.subr.bf16.mxu0 0
        %4157 = vmatpush1.bf16.msra.mxu0 %v4133
        %4158 = vmatprep.subr.bf16.mxu0 0
        %4159 = vmatpush1.bf16.msra.mxu0 0
        %4160 = vmatprep.subr.bf16.mxu0 0
        %4161 = vmatpush1.bf16.msra.mxu0 0
        %4162 = vmatprep.subr.bf16.mxu0 0
        %4163 = vmatpush1.bf16.msra.mxu0 0
        %4164 = vmatprep.subr.bf16.mxu0 0
        %4165 = vmatpush1.bf16.msra.mxu0 0
        %4166 = vmatprep.subr.bf16.mxu0 0
        %4167 = vmatpush1.bf16.msra.mxu0 0
        %4168 = vmatprep.subr.bf16.mxu0 0
        %4169 = vmatpush1.bf16.msra.mxu0 0
        %4170 = vmatprep.subr.bf16.mxu0 0
        %4171 = vmatpush1.bf16.msra.mxu0 0
        %4172 = vmatprep.subr.bf16.mxu0 0
        %4173 = vmatpush1.bf16.msra.mxu0 0
        %4174 = vmatprep.mubr.bf16.mxu0 0
        %4175 = vmatmul.mubr.bf16.gmra.mrb[0].mxu0 %v3582
        %v4176 = vpop.f32.mrb[0].mxu0
        %v4177 = vadd.f32 0.0, %v4176
        %v4178 = vpop.f32.mrb[0].mxu0
        %v4179 = vpop.f32.mrb[0].mxu0
        %v4180 = vadd.f32 0.0, %v4179
        %v4181 = vpop.f32.mrb[0].mxu0
        %4182 = vmatprep.mubr.bf16.mxu0 0
        %4183 = vmatmul.mubr.bf16.gmra.mrb[0].mxu0 %v3584
        %v4184 = vpop.f32.mrb[0].mxu0
        %v4185 = vadd.f32 0.0, %v4184
        %v4186 = vpop.f32.mrb[0].mxu0
        %v4187 = vpop.f32.mrb[0].mxu0
        %v4188 = vadd.f32 0.0, %v4187
        %v4189 = vpop.f32.mrb[0].mxu0
        %4190 = vmatprep.mubr.bf16.mxu0 0
        %4191 = vmatmul.mubr.bf16.gmra.mrb[0].mxu0 %v3586
        %v4192 = vpop.f32.mrb[0].mxu0
        %v4193 = vadd.f32 0.0, %v4192
        %v4194 = vpop.f32.mrb[0].mxu0
        %v4195 = vpop.f32.mrb[0].mxu0
        %v4196 = vadd.f32 0.0, %v4195
        %v4197 = vpop.f32.mrb[0].mxu0
        %4198 = vmatprep.mubr.bf16.mxu0 0
        %4199 = vmatmul.mubr.bf16.gmra.mrb[0].mxu0 %v3588
        %v4200 = vpop.f32.mrb[0].mxu0
        %v4201 = vadd.f32 0.0, %v4200
        %v4202 = vpop.f32.mrb[0].mxu0
        %v4203 = vpop.f32.mrb[0].mxu0
        %v4204 = vadd.f32 0.0, %v4203
        %v4205 = vpop.f32.mrb[0].mxu0
        %4206 = vmatprep.mubr.bf16.mxu0 0
        %4207 = vmatmul.mubr.bf16.gmra.mrb[0].mxu0 %v3590
        %v4208 = vpop.f32.mrb[0].mxu0
        %v4209 = vadd.f32 0.0, %v4208
        %v4210 = vpop.f32.mrb[0].mxu0
        %v4211 = vpop.f32.mrb[0].mxu0
        %v4212 = vadd.f32 0.0, %v4211
        %v4213 = vpop.f32.mrb[0].mxu0
        %4214 = vmatprep.mubr.bf16.mxu0 0
        %4215 = vmatmul.mubr.bf16.gmra.mrb[0].mxu0 %v3592
        %v4216 = vpop.f32.mrb[0].mxu0
        %v4217 = vadd.f32 0.0, %v4216
        %v4218 = vpop.f32.mrb[0].mxu0
        %v4219 = vpop.f32.mrb[0].mxu0
        %v4220 = vadd.f32 0.0, %v4219
        %v4221 = vpop.f32.mrb[0].mxu0
        %4222 = vmatprep.mubr.bf16.mxu0 0
        %4223 = vmatmul.mubr.bf16.gmra.mrb[0].mxu0 %v3594
        %v4224 = vpop.f32.mrb[0].mxu0
        %v4225 = vadd.f32 0.0, %v4224
        %v4226 = vpop.f32.mrb[0].mxu0
        %v4227 = vpop.f32.mrb[0].mxu0
        %v4228 = vadd.f32 0.0, %v4227
        %v4229 = vpop.f32.mrb[0].mxu0
        %4230 = vmatprep.mubr.bf16.mxu0 0
        %4231 = vmatmul.mubr.bf16.gmra.mrb[0].mxu0 %v3596
        %v4232 = vpop.f32.mrb[0].mxu0
        %v4233 = vadd.f32 0.0, %v4232
        %v4234 = vpop.f32.mrb[0].mxu0
        %v4235 = vpop.f32.mrb[0].mxu0
        %v4236 = vadd.f32 0.0, %v4235
        %v4237 = vpop.f32.mrb[0].mxu0
        %4238 = vmatprep.mubr.bf16.mxu0 0
        %4239 = vmatmul.mubr.bf16.gmra.mrb[0].mxu0 %v3598
        %v4240 = vpop.f32.mrb[0].mxu0
        %v4241 = vadd.f32 0.0, %v4240
        %v4242 = vpop.f32.mrb[0].mxu0
        %v4243 = vpop.f32.mrb[0].mxu0
        %v4244 = vadd.f32 0.0, %v4243
        %v4245 = vpop.f32.mrb[0].mxu0
        %4246 = vmatprep.mubr.bf16.mxu0 0
        %4247 = vmatmul.mubr.bf16.gmra.mrb[0].mxu0 %v3600
        %v4248 = vpop.f32.mrb[0].mxu0
        %v4249 = vadd.f32 0.0, %v4248
        %v4250 = vpop.f32.mrb[0].mxu0
        %v4251 = vpop.f32.mrb[0].mxu0
        %v4252 = vadd.f32 0.0, %v4251
        %v4253 = vpop.f32.mrb[0].mxu0
        %4254 = vmatprep.mubr.bf16.mxu0 0
        %4255 = vmatmul.mubr.bf16.gmra.mrb[0].mxu0 %v3602
        %v4256 = vpop.f32.mrb[0].mxu0
        %v4257 = vadd.f32 0.0, %v4256
        %v4258 = vpop.f32.mrb[0].mxu0
        %v4259 = vpop.f32.mrb[0].mxu0
        %v4260 = vadd.f32 0.0, %v4259
        %v4261 = vpop.f32.mrb[0].mxu0
        %4262 = vmatprep.mubr.bf16.mxu0 0
        %4263 = vmatmul.mubr.bf16.gmra.mrb[0].mxu0 %v3604
        %v4264 = vpop.f32.mrb[0].mxu0
        %v4265 = vadd.f32 0.0, %v4264
        %v4266 = vpop.f32.mrb[0].mxu0
        %v4267 = vpop.f32.mrb[0].mxu0
        %v4268 = vadd.f32 0.0, %v4267
        %v4269 = vpop.f32.mrb[0].mxu0
        %4270 = vmatprep.mubr.bf16.mxu0 0
        %4271 = vmatmul.mubr.bf16.gmra.mrb[0].mxu0 %v3606
        %v4272 = vpop.f32.mrb[0].mxu0
        %v4273 = vadd.f32 0.0, %v4272
        %v4274 = vpop.f32.mrb[0].mxu0
        %v4275 = vpop.f32.mrb[0].mxu0
        %v4276 = vadd.f32 0.0, %v4275
        %v4277 = vpop.f32.mrb[0].mxu0
        %4278 = vmatprep.mubr.bf16.mxu0 0
        %4279 = vmatmul.mubr.bf16.gmra.mrb[0].mxu0 %v3608
        %v4280 = vpop.f32.mrb[0].mxu0
        %v4281 = vadd.f32 0.0, %v4280
        %v4282 = vpop.f32.mrb[0].mxu0
        %v4283 = vpop.f32.mrb[0].mxu0
        %v4284 = vadd.f32 0.0, %v4283
        %v4285 = vpop.f32.mrb[0].mxu0
        %4286 = vmatprep.mubr.bf16.mxu0 0
        %4287 = vmatmul.mubr.bf16.gmra.mrb[0].mxu0 %v3610
        %v4288 = vpop.f32.mrb[0].mxu0
        %v4289 = vadd.f32 0.0, %v4288
        %v4290 = vpop.f32.mrb[0].mxu0
        %v4291 = vpop.f32.mrb[0].mxu0
        %v4292 = vadd.f32 0.0, %v4291
        %v4293 = vpop.f32.mrb[0].mxu0
        %4294 = vmatprep.mubr.bf16.mxu0 0
        %4295 = vmatmul.mubr.bf16.gmra.mrb[0].mxu0 %v3612
        %v4296 = vpop.f32.mrb[0].mxu0
        %v4297 = vadd.f32 0.0, %v4296
        %v4298 = vpop.f32.mrb[0].mxu0
        %v4299 = vpop.f32.mrb[0].mxu0
        %v4300 = vadd.f32 0.0, %v4299
        %v4301 = vpop.f32.mrb[0].mxu0
        %4302 = vdwg.mxu0
        %v4303 = vadd.f32 %v4046, %v4177
        %v4304 = vadd.f32 %v4047, %v4180
        %v4305 = vadd.f32 %v4048, %v4185
        %v4306 = vadd.f32 %v4049, %v4188
        %v4307 = vadd.f32 %v4050, %v4193
        %v4308 = vadd.f32 %v4051, %v4196
        %v4309 = vadd.f32 %v4052, %v4201
        %v4310 = vadd.f32 %v4053, %v4204
        %v4311 = vadd.f32 %v4054, %v4209
        %v4312 = vadd.f32 %v4055, %v4212
        %v4313 = vadd.f32 %v4056, %v4217
        %v4314 = vadd.f32 %v4057, %v4220
        %v4315 = vadd.f32 %v4058, %v4225
        %v4316 = vadd.f32 %v4059, %v4228
        %v4317 = vadd.f32 %v4060, %v4233
        %v4318 = vadd.f32 %v4061, %v4236
        %v4319 = vadd.f32 %v4062, %v4241
        %v4320 = vadd.f32 %v4063, %v4244
        %v4321 = vadd.f32 %v4064, %v4249
        %v4322 = vadd.f32 %v4065, %v4252
        %v4323 = vadd.f32 %v4066, %v4257
        %v4324 = vadd.f32 %v4067, %v4260
        %v4325 = vadd.f32 %v4068, %v4265
        %v4326 = vadd.f32 %v4069, %v4268
        %v4327 = vadd.f32 %v4070, %v4273
        %v4328 = vadd.f32 %v4071, %v4276
        %v4329 = vadd.f32 %v4072, %v4281
        %v4330 = vadd.f32 %v4073, %v4284
        %v4331 = vadd.f32 %v4074, %v4289
        %v4332 = vadd.f32 %v4075, %v4292
        %v4333 = vadd.f32 %v4076, %v4297
        %v4334 = vadd.f32 %v4077, %v4300
        %v4335 = vld [vmem:[%s3580 + $0x8] sm:$0xff]
        %v4336 = vld [vmem:[%s3580 + $0x10] sm:$0x1]
        %v4337 = vld [vmem:[%s3580 + $0x20] sm:$0xff]
        %v4338 = vld [vmem:[%s3580 + $0x28] sm:$0x1]
        %v4339 = vld [vmem:[%s3580 + $0x38] sm:$0xff]
        %v4340 = vld [vmem:[%s3580 + $0x40] sm:$0x1]
        %v4341 = vld [vmem:[%s3580 + $0x50] sm:$0xff]
        %v4342 = vld [vmem:[%s3580 + $0x58] sm:$0x1]
        %v4343 = vld [vmem:[%s3580 + $0x68] sm:$0xff]
        %v4344 = vld [vmem:[%s3580 + $0x70] sm:$0x1]
        %v4345 = vld [vmem:[%s3580 + $0x80] sm:$0xff]
        %v4346 = vld [vmem:[%s3580 + $0x88] sm:$0x1]
        %v4347 = vld [vmem:[%s3580 + $0x98] sm:$0xff]
        %v4348 = vld [vmem:[%s3580 + $0xa0] sm:$0x1]
        %v4349 = vld [vmem:[%s3580 + $0xb0] sm:$0xff]
        %v4350 = vld [vmem:[%s3580 + $0xb8] sm:$0x1]
        %v4351 = vld [vmem:[%s3580 + $0xc8] sm:$0xff]
        %v4352 = vld [vmem:[%s3580 + $0xd0] sm:$0x1]
        %v4353 = vld [vmem:[%s3580 + $0xe0] sm:$0xff]
        %v4354 = vld [vmem:[%s3580 + $0xe8] sm:$0x1]
        %v4355 = vld [vmem:[%s3580 + $0xf8] sm:$0xff]
        %v4356 = vld [vmem:[%s3580 + $0x100] sm:$0x1]
        %v4357 = vld [vmem:[%s3580 + $0x110] sm:$0xff]
        %v4358 = vld [vmem:[%s3580 + $0x118] sm:$0x1]
        %v4359 = vld [vmem:[%s3580 + $0x128] sm:$0xff]
        %v4360 = vld [vmem:[%s3580 + $0x130] sm:$0x1]
        %v4361 = vld [vmem:[%s3580 + $0x140] sm:$0xff]
        %v4362 = vld [vmem:[%s3580 + $0x148] sm:$0x1]
        %v4363 = vld [vmem:[%s3580 + $0x158] sm:$0xff]
        %v4364 = vld [vmem:[%s3580 + $0x160] sm:$0x1]
        %v4365 = vld [vmem:[%s3580 + $0x170] sm:$0xff]
        %v4366 = vld [vmem:[%s3580 + $0x178] sm:$0x1]
        %v4367 = vld [vmem:[#allocation9 + $0x200] sm:$0xf]
        %v4368 = vld [vmem:[#allocation9 + $0x204] sm:$0xf]
        %v4369 = vld [vmem:[#allocation9 + $0x208] sm:$0xf]
        %v4370 = vld [vmem:[#allocation9 + $0x20c] sm:$0xf]
        %v4371 = vld [vmem:[#allocation9 + $0x210] sm:$0xf]
        %v4372 = vld [vmem:[#allocation9 + $0x214] sm:$0xf]
        %v4373 = vld [vmem:[#allocation9 + $0x218] sm:$0xf]
        %v4374 = vld [vmem:[#allocation9 + $0x21c] sm:$0xf]
        %v4375 = vld [vmem:[#allocation9 + $0x220] sm:$0xf]
        %v4376 = vld [vmem:[#allocation9 + $0x224] sm:$0xf]
        %v4377 = vld [vmem:[#allocation9 + $0x228] sm:$0xf]
        %v4378 = vld [vmem:[#allocation9 + $0x22c] sm:$0xf]
        %v4379 = vld [vmem:[#allocation9 + $0x230] sm:$0xf]
        %v4380 = vld [vmem:[#allocation9 + $0x234] sm:$0xf]
        %v4381 = vld [vmem:[#allocation9 + $0x238] sm:$0xf]
        %v4382 = vld [vmem:[#allocation9 + $0x23c] sm:$0xf]
        %v4384 = vshrl.u32 %v4335, 16
        %v4386 = vshll.u32 %v4335, 16
        %v4388 = vrot.slane %v4386, 1
        %v4389 = vor.u32 %v4384, %v4388
        %v4391 = vshll.u32 %v4336, 16
        %v4393 = vrot.slane %v4391, 1
        %v4394 = vsel %vm1879, %v4389, %v4393
        %v4396 = vshrl.u32 %v4337, 16
        %v4398 = vshll.u32 %v4337, 16
        %v4400 = vrot.slane %v4398, 1
        %v4401 = vor.u32 %v4396, %v4400
        %v4403 = vshll.u32 %v4338, 16
        %v4405 = vrot.slane %v4403, 1
        %v4406 = vsel %vm1879, %v4401, %v4405
        %v4408 = vshrl.u32 %v4339, 16
        %v4410 = vshll.u32 %v4339, 16
        %v4412 = vrot.slane %v4410, 1
        %v4413 = vor.u32 %v4408, %v4412
        %v4415 = vshll.u32 %v4340, 16
        %v4417 = vrot.slane %v4415, 1
        %v4418 = vsel %vm1879, %v4413, %v4417
        %v4420 = vshrl.u32 %v4341, 16
        %v4422 = vshll.u32 %v4341, 16
        %v4424 = vrot.slane %v4422, 1
        %v4425 = vor.u32 %v4420, %v4424
        %v4427 = vshll.u32 %v4342, 16
        %v4429 = vrot.slane %v4427, 1
        %v4430 = vsel %vm1879, %v4425, %v4429
        %v4432 = vshrl.u32 %v4343, 16
        %v4434 = vshll.u32 %v4343, 16
        %v4436 = vrot.slane %v4434, 1
        %v4437 = vor.u32 %v4432, %v4436
        %v4439 = vshll.u32 %v4344, 16
        %v4441 = vrot.slane %v4439, 1
        %v4442 = vsel %vm1879, %v4437, %v4441
        %v4444 = vshrl.u32 %v4345, 16
        %v4446 = vshll.u32 %v4345, 16
        %v4448 = vrot.slane %v4446, 1
        %v4449 = vor.u32 %v4444, %v4448
        %v4451 = vshll.u32 %v4346, 16
        %v4453 = vrot.slane %v4451, 1
        %v4454 = vsel %vm1879, %v4449, %v4453
        %v4456 = vshrl.u32 %v4347, 16
        %v4458 = vshll.u32 %v4347, 16
        %v4460 = vrot.slane %v4458, 1
        %v4461 = vor.u32 %v4456, %v4460
        %v4463 = vshll.u32 %v4348, 16
        %v4465 = vrot.slane %v4463, 1
        %v4466 = vsel %vm1879, %v4461, %v4465
        %v4468 = vshrl.u32 %v4349, 16
        %v4470 = vshll.u32 %v4349, 16
        %v4472 = vrot.slane %v4470, 1
        %v4473 = vor.u32 %v4468, %v4472
        %v4475 = vshll.u32 %v4350, 16
        %v4477 = vrot.slane %v4475, 1
        %v4478 = vsel %vm1879, %v4473, %v4477
        %v4480 = vshrl.u32 %v4351, 16
        %v4482 = vshll.u32 %v4351, 16
        %v4484 = vrot.slane %v4482, 1
        %v4485 = vor.u32 %v4480, %v4484
        %v4487 = vshll.u32 %v4352, 16
        %v4489 = vrot.slane %v4487, 1
        %v4490 = vsel %vm1879, %v4485, %v4489
        %v4492 = vshrl.u32 %v4353, 16
        %v4494 = vshll.u32 %v4353, 16
        %v4496 = vrot.slane %v4494, 1
        %v4497 = vor.u32 %v4492, %v4496
        %v4499 = vshll.u32 %v4354, 16
        %v4501 = vrot.slane %v4499, 1
        %v4502 = vsel %vm1879, %v4497, %v4501
        %v4504 = vshrl.u32 %v4355, 16
        %v4506 = vshll.u32 %v4355, 16
        %v4508 = vrot.slane %v4506, 1
        %v4509 = vor.u32 %v4504, %v4508
        %v4511 = vshll.u32 %v4356, 16
        %v4513 = vrot.slane %v4511, 1
        %v4514 = vsel %vm1879, %v4509, %v4513
        %v4516 = vshrl.u32 %v4357, 16
        %v4518 = vshll.u32 %v4357, 16
        %v4520 = vrot.slane %v4518, 1
        %v4521 = vor.u32 %v4516, %v4520
        %v4523 = vshll.u32 %v4358, 16
        %v4525 = vrot.slane %v4523, 1
        %v4526 = vsel %vm1879, %v4521, %v4525
        %v4528 = vshrl.u32 %v4359, 16
        %v4530 = vshll.u32 %v4359, 16
        %v4532 = vrot.slane %v4530, 1
        %v4533 = vor.u32 %v4528, %v4532
        %v4535 = vshll.u32 %v4360, 16
        %v4537 = vrot.slane %v4535, 1
        %v4538 = vsel %vm1879, %v4533, %v4537
        %v4540 = vshrl.u32 %v4361, 16
        %v4542 = vshll.u32 %v4361, 16
        %v4544 = vrot.slane %v4542, 1
        %v4545 = vor.u32 %v4540, %v4544
        %v4547 = vshll.u32 %v4362, 16
        %v4549 = vrot.slane %v4547, 1
        %v4550 = vsel %vm1879, %v4545, %v4549
        %v4552 = vshrl.u32 %v4363, 16
        %v4554 = vshll.u32 %v4363, 16
        %v4556 = vrot.slane %v4554, 1
        %v4557 = vor.u32 %v4552, %v4556
        %v4559 = vshll.u32 %v4364, 16
        %v4561 = vrot.slane %v4559, 1
        %v4562 = vsel %vm1879, %v4557, %v4561
        %v4564 = vshrl.u32 %v4365, 16
        %v4566 = vshll.u32 %v4365, 16
        %v4568 = vrot.slane %v4566, 1
        %v4569 = vor.u32 %v4564, %v4568
        %v4571 = vshll.u32 %v4366, 16
        %v4573 = vrot.slane %v4571, 1
        %v4574 = vsel %vm1879, %v4569, %v4573
        %v4607 = vunpack.c.l.b16 %v4367
        %v4608 = vunpack.c.l.b16 %v4368
        %v4609 = vunpack.c.l.b16 %v4369
        %v4610 = vunpack.c.l.b16 %v4370
        %v4611 = vunpack.c.l.b16 %v4371
        %v4612 = vunpack.c.l.b16 %v4372
        %v4613 = vunpack.c.l.b16 %v4373
        %v4614 = vunpack.c.l.b16 %v4374
        %v4615 = vunpack.c.l.b16 %v4375
        %v4616 = vunpack.c.l.b16 %v4376
        %v4617 = vunpack.c.l.b16 %v4377
        %v4618 = vunpack.c.l.b16 %v4378
        %v4619 = vunpack.c.l.b16 %v4379
        %v4620 = vunpack.c.l.b16 %v4380
        %v4621 = vunpack.c.l.b16 %v4381
        %v4622 = vunpack.c.l.b16 %v4382
        %v4623 = vpack.c.b16 %v4608, %v4607
        %v4624 = vpack.c.b16 %v4610, %v4609
        %v4625 = vpack.c.b16 %v4612, %v4611
        %v4626 = vpack.c.b16 %v4614, %v4613
        %v4627 = vpack.c.b16 %v4616, %v4615
        %v4628 = vpack.c.b16 %v4618, %v4617
        %v4629 = vpack.c.b16 %v4620, %v4619
        %v4630 = vpack.c.b16 %v4622, %v4621
        %4639 = vmatprep.subr.bf16.mxu0 0
        %4640 = vmatpush1.bf16.msra.mxu0 %v4623
        %4641 = vmatprep.subr.bf16.mxu0 0
        %4642 = vmatpush1.bf16.msra.mxu0 %v4624
        %4643 = vmatprep.subr.bf16.mxu0 0
        %4644 = vmatpush1.bf16.msra.mxu0 %v4625
        %4645 = vmatprep.subr.bf16.mxu0 0
        %4646 = vmatpush1.bf16.msra.mxu0 %v4626
        %4647 = vmatprep.subr.bf16.mxu0 0
        %4648 = vmatpush1.bf16.msra.mxu0 %v4627
        %4649 = vmatprep.subr.bf16.mxu0 0
        %4650 = vmatpush1.bf16.msra.mxu0 %v4628
        %4651 = vmatprep.subr.bf16.mxu0 0
        %4652 = vmatpush1.bf16.msra.mxu0 %v4629
        %4653 = vmatprep.subr.bf16.mxu0 0
        %4654 = vmatpush1.bf16.msra.mxu0 %v4630
        %4655 = vmatprep.subr.bf16.mxu0 0
        %4656 = vmatpush1.bf16.msra.mxu0 0
        %4657 = vmatprep.subr.bf16.mxu0 0
        %4658 = vmatpush1.bf16.msra.mxu0 0
        %4659 = vmatprep.subr.bf16.mxu0 0
        %4660 = vmatpush1.bf16.msra.mxu0 0
        %4661 = vmatprep.subr.bf16.mxu0 0
        %4662 = vmatpush1.bf16.msra.mxu0 0
        %4663 = vmatprep.subr.bf16.mxu0 0
        %4664 = vmatpush1.bf16.msra.mxu0 0
        %4665 = vmatprep.subr.bf16.mxu0 0
        %4666 = vmatpush1.bf16.msra.mxu0 0
        %4667 = vmatprep.subr.bf16.mxu0 0
        %4668 = vmatpush1.bf16.msra.mxu0 0
        %4669 = vmatprep.subr.bf16.mxu0 0
        %4670 = vmatpush1.bf16.msra.mxu0 0
        %4671 = vmatprep.mubr.bf16.mxu0 0
        %4672 = vmatmul.mubr.bf16.gmra.mrb[0].mxu0 %v4394
        %v4673 = vpop.f32.mrb[0].mxu0
        %v4674 = vadd.f32 0.0, %v4673
        %v4675 = vpop.f32.mrb[0].mxu0
        %v4676 = vpop.f32.mrb[0].mxu0
        %v4677 = vadd.f32 0.0, %v4676
        %v4678 = vpop.f32.mrb[0].mxu0
        %4679 = vmatprep.mubr.bf16.mxu0 0
        %4680 = vmatmul.mubr.bf16.gmra.mrb[0].mxu0 %v4406
        %v4681 = vpop.f32.mrb[0].mxu0
        %v4682 = vadd.f32 0.0, %v4681
        %v4683 = vpop.f32.mrb[0].mxu0
        %v4684 = vpop.f32.mrb[0].mxu0
        %v4685 = vadd.f32 0.0, %v4684
        %v4686 = vpop.f32.mrb[0].mxu0
        %4687 = vmatprep.mubr.bf16.mxu0 0
        %4688 = vmatmul.mubr.bf16.gmra.mrb[0].mxu0 %v4418
        %v4689 = vpop.f32.mrb[0].mxu0
        %v4690 = vadd.f32 0.0, %v4689
        %v4691 = vpop.f32.mrb[0].mxu0
        %v4692 = vpop.f32.mrb[0].mxu0
        %v4693 = vadd.f32 0.0, %v4692
        %v4694 = vpop.f32.mrb[0].mxu0
        %4695 = vmatprep.mubr.bf16.mxu0 0
        %4696 = vmatmul.mubr.bf16.gmra.mrb[0].mxu0 %v4430
        %v4697 = vpop.f32.mrb[0].mxu0
        %v4698 = vadd.f32 0.0, %v4697
        %v4699 = vpop.f32.mrb[0].mxu0
        %v4700 = vpop.f32.mrb[0].mxu0
        %v4701 = vadd.f32 0.0, %v4700
        %v4702 = vpop.f32.mrb[0].mxu0
        %4703 = vmatprep.mubr.bf16.mxu0 0
        %4704 = vmatmul.mubr.bf16.gmra.mrb[0].mxu0 %v4442
        %v4705 = vpop.f32.mrb[0].mxu0
        %v4706 = vadd.f32 0.0, %v4705
        %v4707 = vpop.f32.mrb[0].mxu0
        %v4708 = vpop.f32.mrb[0].mxu0
        %v4709 = vadd.f32 0.0, %v4708
        %v4710 = vpop.f32.mrb[0].mxu0
        %4711 = vmatprep.mubr.bf16.mxu0 0
        %4712 = vmatmul.mubr.bf16.gmra.mrb[0].mxu0 %v4454
        %v4713 = vpop.f32.mrb[0].mxu0
        %v4714 = vadd.f32 0.0, %v4713
        %v4715 = vpop.f32.mrb[0].mxu0
        %v4716 = vpop.f32.mrb[0].mxu0
        %v4717 = vadd.f32 0.0, %v4716
        %v4718 = vpop.f32.mrb[0].mxu0
        %4719 = vmatprep.mubr.bf16.mxu0 0
        %4720 = vmatmul.mubr.bf16.gmra.mrb[0].mxu0 %v4466
        %v4721 = vpop.f32.mrb[0].mxu0
        %v4722 = vadd.f32 0.0, %v4721
        %v4723 = vpop.f32.mrb[0].mxu0
        %v4724 = vpop.f32.mrb[0].mxu0
        %v4725 = vadd.f32 0.0, %v4724
        %v4726 = vpop.f32.mrb[0].mxu0
        %4727 = vmatprep.mubr.bf16.mxu0 0
        %4728 = vmatmul.mubr.bf16.gmra.mrb[0].mxu0 %v4478
        %v4729 = vpop.f32.mrb[0].mxu0
        %v4730 = vadd.f32 0.0, %v4729
        %v4731 = vpop.f32.mrb[0].mxu0
        %v4732 = vpop.f32.mrb[0].mxu0
        %v4733 = vadd.f32 0.0, %v4732
        %v4734 = vpop.f32.mrb[0].mxu0
        %4735 = vmatprep.mubr.bf16.mxu0 0
        %4736 = vmatmul.mubr.bf16.gmra.mrb[0].mxu0 %v4490
        %v4737 = vpop.f32.mrb[0].mxu0
        %v4738 = vadd.f32 0.0, %v4737
        %v4739 = vpop.f32.mrb[0].mxu0
        %v4740 = vpop.f32.mrb[0].mxu0
        %v4741 = vadd.f32 0.0, %v4740
        %v4742 = vpop.f32.mrb[0].mxu0
        %4743 = vmatprep.mubr.bf16.mxu0 0
        %4744 = vmatmul.mubr.bf16.gmra.mrb[0].mxu0 %v4502
        %v4745 = vpop.f32.mrb[0].mxu0
        %v4746 = vadd.f32 0.0, %v4745
        %v4747 = vpop.f32.mrb[0].mxu0
        %v4748 = vpop.f32.mrb[0].mxu0
        %v4749 = vadd.f32 0.0, %v4748
        %v4750 = vpop.f32.mrb[0].mxu0
        %4751 = vmatprep.mubr.bf16.mxu0 0
        %4752 = vmatmul.mubr.bf16.gmra.mrb[0].mxu0 %v4514
        %v4753 = vpop.f32.mrb[0].mxu0
        %v4754 = vadd.f32 0.0, %v4753
        %v4755 = vpop.f32.mrb[0].mxu0
        %v4756 = vpop.f32.mrb[0].mxu0
        %v4757 = vadd.f32 0.0, %v4756
        %v4758 = vpop.f32.mrb[0].mxu0
        %4759 = vmatprep.mubr.bf16.mxu0 0
        %4760 = vmatmul.mubr.bf16.gmra.mrb[0].mxu0 %v4526
        %v4761 = vpop.f32.mrb[0].mxu0
        %v4762 = vadd.f32 0.0, %v4761
        %v4763 = vpop.f32.mrb[0].mxu0
        %v4764 = vpop.f32.mrb[0].mxu0
        %v4765 = vadd.f32 0.0, %v4764
        %v4766 = vpop.f32.mrb[0].mxu0
        %4767 = vmatprep.mubr.bf16.mxu0 0
        %4768 = vmatmul.mubr.bf16.gmra.mrb[0].mxu0 %v4538
        %v4769 = vpop.f32.mrb[0].mxu0
        %v4770 = vadd.f32 0.0, %v4769
        %v4771 = vpop.f32.mrb[0].mxu0
        %v4772 = vpop.f32.mrb[0].mxu0
        %v4773 = vadd.f32 0.0, %v4772
        %v4774 = vpop.f32.mrb[0].mxu0
        %4775 = vmatprep.mubr.bf16.mxu0 0
        %4776 = vmatmul.mubr.bf16.gmra.mrb[0].mxu0 %v4550
        %v4777 = vpop.f32.mrb[0].mxu0
        %v4778 = vadd.f32 0.0, %v4777
        %v4779 = vpop.f32.mrb[0].mxu0
        %v4780 = vpop.f32.mrb[0].mxu0
        %v4781 = vadd.f32 0.0, %v4780
        %v4782 = vpop.f32.mrb[0].mxu0
        %4783 = vmatprep.mubr.bf16.mxu0 0
        %4784 = vmatmul.mubr.bf16.gmra.mrb[0].mxu0 %v4562
        %v4785 = vpop.f32.mrb[0].mxu0
        %v4786 = vadd.f32 0.0, %v4785
        %v4787 = vpop.f32.mrb[0].mxu0
        %v4788 = vpop.f32.mrb[0].mxu0
        %v4789 = vadd.f32 0.0, %v4788
        %v4790 = vpop.f32.mrb[0].mxu0
        %4791 = vmatprep.mubr.bf16.mxu0 0
        %4792 = vmatmul.mubr.bf16.gmra.mrb[0].mxu0 %v4574
        %v4793 = vpop.f32.mrb[0].mxu0
        %v4794 = vadd.f32 0.0, %v4793
        %v4795 = vpop.f32.mrb[0].mxu0
        %v4796 = vpop.f32.mrb[0].mxu0
        %v4797 = vadd.f32 0.0, %v4796
        %v4798 = vpop.f32.mrb[0].mxu0
        %4799 = vdwg.mxu0
        %v4800 = vadd.f32 %v4303, %v4674
        %v4801 = vadd.f32 %v4304, %v4677
        %v4802 = vadd.f32 %v4305, %v4682
        %v4803 = vadd.f32 %v4306, %v4685
        %v4804 = vadd.f32 %v4307, %v4690
        %v4805 = vadd.f32 %v4308, %v4693
        %v4806 = vadd.f32 %v4309, %v4698
        %v4807 = vadd.f32 %v4310, %v4701
        %v4808 = vadd.f32 %v4311, %v4706
        %v4809 = vadd.f32 %v4312, %v4709
        %v4810 = vadd.f32 %v4313, %v4714
        %v4811 = vadd.f32 %v4314, %v4717
        %v4812 = vadd.f32 %v4315, %v4722
        %v4813 = vadd.f32 %v4316, %v4725
        %v4814 = vadd.f32 %v4317, %v4730
        %v4815 = vadd.f32 %v4318, %v4733
        %v4816 = vadd.f32 %v4319, %v4738
        %v4817 = vadd.f32 %v4320, %v4741
        %v4818 = vadd.f32 %v4321, %v4746
        %v4819 = vadd.f32 %v4322, %v4749
        %v4820 = vadd.f32 %v4323, %v4754
        %v4821 = vadd.f32 %v4324, %v4757
        %v4822 = vadd.f32 %v4325, %v4762
        %v4823 = vadd.f32 %v4326, %v4765
        %v4824 = vadd.f32 %v4327, %v4770
        %v4825 = vadd.f32 %v4328, %v4773
        %v4826 = vadd.f32 %v4329, %v4778
        %v4827 = vadd.f32 %v4330, %v4781
        %v4828 = vadd.f32 %v4331, %v4786
        %v4829 = vadd.f32 %v4332, %v4789
        %v4830 = vadd.f32 %v4333, %v4794
        %v4831 = vadd.f32 %v4334, %v4797
        %v4832 = vld [vmem:[%s6] sm:$0x1]
        %v4834 = vlaneseq
        %v4835 = vshrl.u32 %v4834, 7
        %v4836 = vsub.s32 0, %v4835
        %v4837 = vrot.slane %v4832, %v4836
        %v4839 = vmul.f32 %v4800, %v4837
        %v4840 = vmul.f32 %v4801, %v4837
        %v4841 = vmul.f32 %v4802, %v4837
        %v4842 = vmul.f32 %v4803, %v4837
        %v4843 = vmul.f32 %v4804, %v4837
        %v4844 = vmul.f32 %v4805, %v4837
        %v4845 = vmul.f32 %v4806, %v4837
        %v4846 = vmul.f32 %v4807, %v4837
        %v4847 = vmul.f32 %v4808, %v4837
        %v4848 = vmul.f32 %v4809, %v4837
        %v4849 = vmul.f32 %v4810, %v4837
        %v4850 = vmul.f32 %v4811, %v4837
        %v4851 = vmul.f32 %v4812, %v4837
        %v4852 = vmul.f32 %v4813, %v4837
        %v4853 = vmul.f32 %v4814, %v4837
        %v4854 = vmul.f32 %v4815, %v4837
        %v4855 = vmul.f32 %v4816, %v4837
        %v4856 = vmul.f32 %v4817, %v4837
        %v4857 = vmul.f32 %v4818, %v4837
        %v4858 = vmul.f32 %v4819, %v4837
        %v4859 = vmul.f32 %v4820, %v4837
        %v4860 = vmul.f32 %v4821, %v4837
        %v4861 = vmul.f32 %v4822, %v4837
        %v4862 = vmul.f32 %v4823, %v4837
        %v4863 = vmul.f32 %v4824, %v4837
        %v4864 = vmul.f32 %v4825, %v4837
        %v4865 = vmul.f32 %v4826, %v4837
        %v4866 = vmul.f32 %v4827, %v4837
        %v4867 = vmul.f32 %v4828, %v4837
        %v4868 = vmul.f32 %v4829, %v4837
        %v4869 = vmul.f32 %v4830, %v4837
        %v4870 = vmul.f32 %v4831, %v4837
        %v4871 = vld [vmem:[%s7] sm:$0x1]
        %v4873 = vlaneseq
        %v4874 = vshrl.u32 %v4873, 7
        %v4875 = vsub.s32 0, %v4874
        %v4876 = vrot.slane %v4871, %v4875
        %v4878 = vadd.f32 %v4839, %v4876
        %v4879 = vadd.f32 %v4840, %v4876
        %v4880 = vadd.f32 %v4841, %v4876
        %v4881 = vadd.f32 %v4842, %v4876
        %v4882 = vadd.f32 %v4843, %v4876
        %v4883 = vadd.f32 %v4844, %v4876
        %v4884 = vadd.f32 %v4845, %v4876
        %v4885 = vadd.f32 %v4846, %v4876
        %v4886 = vadd.f32 %v4847, %v4876
        %v4887 = vadd.f32 %v4848, %v4876
        %v4888 = vadd.f32 %v4849, %v4876
        %v4889 = vadd.f32 %v4850, %v4876
        %v4890 = vadd.f32 %v4851, %v4876
        %v4891 = vadd.f32 %v4852, %v4876
        %v4892 = vadd.f32 %v4853, %v4876
        %v4893 = vadd.f32 %v4854, %v4876
        %v4894 = vadd.f32 %v4855, %v4876
        %v4895 = vadd.f32 %v4856, %v4876
        %v4896 = vadd.f32 %v4857, %v4876
        %v4897 = vadd.f32 %v4858, %v4876
        %v4898 = vadd.f32 %v4859, %v4876
        %v4899 = vadd.f32 %v4860, %v4876
        %v4900 = vadd.f32 %v4861, %v4876
        %v4901 = vadd.f32 %v4862, %v4876
        %v4902 = vadd.f32 %v4863, %v4876
        %v4903 = vadd.f32 %v4864, %v4876
        %v4904 = vadd.f32 %v4865, %v4876
        %v4905 = vadd.f32 %v4866, %v4876
        %v4906 = vadd.f32 %v4867, %v4876
        %v4907 = vadd.f32 %v4868, %v4876
        %v4908 = vadd.f32 %v4869, %v4876
        %v4909 = vadd.f32 %v4870, %v4876
        %v4910 = vmax.f32 %v4878, 0.0
        %v4911 = vmax.f32 %v4879, 0.0
        %v4912 = vmax.f32 %v4880, 0.0
        %v4913 = vmax.f32 %v4881, 0.0
        %v4914 = vmax.f32 %v4882, 0.0
        %v4915 = vmax.f32 %v4883, 0.0
        %v4916 = vmax.f32 %v4884, 0.0
        %v4917 = vmax.f32 %v4885, 0.0
        %v4918 = vmax.f32 %v4886, 0.0
        %v4919 = vmax.f32 %v4887, 0.0
        %v4920 = vmax.f32 %v4888, 0.0
        %v4921 = vmax.f32 %v4889, 0.0
        %v4922 = vmax.f32 %v4890, 0.0
        %v4923 = vmax.f32 %v4891, 0.0
        %v4924 = vmax.f32 %v4892, 0.0
        %v4925 = vmax.f32 %v4893, 0.0
        %v4926 = vmax.f32 %v4894, 0.0
        %v4927 = vmax.f32 %v4895, 0.0
        %v4928 = vmax.f32 %v4896, 0.0
        %v4929 = vmax.f32 %v4897, 0.0
        %v4930 = vmax.f32 %v4898, 0.0
        %v4931 = vmax.f32 %v4899, 0.0
        %v4932 = vmax.f32 %v4900, 0.0
        %v4933 = vmax.f32 %v4901, 0.0
        %v4934 = vmax.f32 %v4902, 0.0
        %v4935 = vmax.f32 %v4903, 0.0
        %v4936 = vmax.f32 %v4904, 0.0
        %v4937 = vmax.f32 %v4905, 0.0
        %v4938 = vmax.f32 %v4906, 0.0
        %v4939 = vmax.f32 %v4907, 0.0
        %v4940 = vmax.f32 %v4908, 0.0
        %v4941 = vmax.f32 %v4909, 0.0
        %v4942 = vpack.c.bf16 %v4911, %v4910
        %v4943 = vpack.c.bf16 %v4913, %v4912
        %v4944 = vpack.c.bf16 %v4915, %v4914
        %v4945 = vpack.c.bf16 %v4917, %v4916
        %v4946 = vpack.c.bf16 %v4919, %v4918
        %v4947 = vpack.c.bf16 %v4921, %v4920
        %v4948 = vpack.c.bf16 %v4923, %v4922
        %v4949 = vpack.c.bf16 %v4925, %v4924
        %v4950 = vpack.c.bf16 %v4927, %v4926
        %v4951 = vpack.c.bf16 %v4929, %v4928
        %v4952 = vpack.c.bf16 %v4931, %v4930
        %v4953 = vpack.c.bf16 %v4933, %v4932
        %v4954 = vpack.c.bf16 %v4935, %v4934
        %v4955 = vpack.c.bf16 %v4937, %v4936
        %v4956 = vpack.c.bf16 %v4939, %v4938
        %v4957 = vpack.c.bf16 %v4941, %v4940
        %v4958 = vld [vmem:[#allocation11] sm:$0xf]
        %v4959 = vld [vmem:[#allocation11 + $0x4] sm:$0xf]
        %v4960 = vld [vmem:[#allocation11 + $0x8] sm:$0xf]
        %v4961 = vld [vmem:[#allocation11 + $0xc] sm:$0xf]
        %v4962 = vld [vmem:[#allocation11 + $0x10] sm:$0xf]
        %v4963 = vld [vmem:[#allocation11 + $0x14] sm:$0xf]
        %v4964 = vld [vmem:[#allocation11 + $0x18] sm:$0xf]
        %v4965 = vld [vmem:[#allocation11 + $0x1c] sm:$0xf]
        %v4966 = vld [vmem:[#allocation11 + $0x20] sm:$0xf]
        %v4967 = vld [vmem:[#allocation11 + $0x24] sm:$0xf]
        %v4968 = vld [vmem:[#allocation11 + $0x28] sm:$0xf]
        %v4969 = vld [vmem:[#allocation11 + $0x2c] sm:$0xf]
        %v4970 = vld [vmem:[#allocation11 + $0x30] sm:$0xf]
        %v4971 = vld [vmem:[#allocation11 + $0x34] sm:$0xf]
        %v4972 = vld [vmem:[#allocation11 + $0x38] sm:$0xf]
        %v4973 = vld [vmem:[#allocation11 + $0x3c] sm:$0xf]
        %v4990 = vunpack.c.l.b16 %v4958
        %v4991 = vunpack.c.l.b16 %v4959
        %v4992 = vunpack.c.l.b16 %v4960
        %v4993 = vunpack.c.l.b16 %v4961
        %v4994 = vunpack.c.l.b16 %v4962
        %v4995 = vunpack.c.l.b16 %v4963
        %v4996 = vunpack.c.l.b16 %v4964
        %v4997 = vunpack.c.l.b16 %v4965
        %v4998 = vunpack.c.l.b16 %v4966
        %v4999 = vunpack.c.l.b16 %v4967
        %v5000 = vunpack.c.l.b16 %v4968
        %v5001 = vunpack.c.l.b16 %v4969
        %v5002 = vunpack.c.l.b16 %v4970
        %v5003 = vunpack.c.l.b16 %v4971
        %v5004 = vunpack.c.l.b16 %v4972
        %v5005 = vunpack.c.l.b16 %v4973
        %v5006 = vpack.c.b16 %v4991, %v4990
        %v5007 = vpack.c.b16 %v4993, %v4992
        %v5008 = vpack.c.b16 %v4995, %v4994
        %v5009 = vpack.c.b16 %v4997, %v4996
        %v5010 = vpack.c.b16 %v4999, %v4998
        %v5011 = vpack.c.b16 %v5001, %v5000
        %v5012 = vpack.c.b16 %v5003, %v5002
        %v5013 = vpack.c.b16 %v5005, %v5004
        %5022 = vmatprep.subr.bf16.mxu0 0
        %5023 = vmatpush1.bf16.msra.mxu0 %v5006
        %5024 = vmatprep.subr.bf16.mxu0 0
        %5025 = vmatpush1.bf16.msra.mxu0 %v5007
        %5026 = vmatprep.subr.bf16.mxu0 0
        %5027 = vmatpush1.bf16.msra.mxu0 %v5008
        %5028 = vmatprep.subr.bf16.mxu0 0
        %5029 = vmatpush1.bf16.msra.mxu0 %v5009
        %5030 = vmatprep.subr.bf16.mxu0 0
        %5031 = vmatpush1.bf16.msra.mxu0 %v5010
        %5032 = vmatprep.subr.bf16.mxu0 0
        %5033 = vmatpush1.bf16.msra.mxu0 %v5011
        %5034 = vmatprep.subr.bf16.mxu0 0
        %5035 = vmatpush1.bf16.msra.mxu0 %v5012
        %5036 = vmatprep.subr.bf16.mxu0 0
        %5037 = vmatpush1.bf16.msra.mxu0 %v5013
        %5038 = vmatprep.subr.bf16.mxu0 0
        %5039 = vmatpush1.bf16.msra.mxu0 0
        %5040 = vmatprep.subr.bf16.mxu0 0
        %5041 = vmatpush1.bf16.msra.mxu0 0
        %5042 = vmatprep.subr.bf16.mxu0 0
        %5043 = vmatpush1.bf16.msra.mxu0 0
        %5044 = vmatprep.subr.bf16.mxu0 0
        %5045 = vmatpush1.bf16.msra.mxu0 0
        %5046 = vmatprep.subr.bf16.mxu0 0
        %5047 = vmatpush1.bf16.msra.mxu0 0
        %5048 = vmatprep.subr.bf16.mxu0 0
        %5049 = vmatpush1.bf16.msra.mxu0 0
        %5050 = vmatprep.subr.bf16.mxu0 0
        %5051 = vmatpush1.bf16.msra.mxu0 0
        %5052 = vmatprep.subr.bf16.mxu0 0
        %5053 = vmatpush1.bf16.msra.mxu0 0
        %5054 = vmatprep.mubr.bf16.mxu0 0
        %5055 = vmatmul.mubr.bf16.gmra.mrb[0].mxu0 %v4942
        %v5056 = vpop.f32.mrb[0].mxu0
        %v5057 = vadd.f32 0.0, %v5056
        %v5058 = vpop.f32.mrb[0].mxu0
        %v5059 = vpop.f32.mrb[0].mxu0
        %v5060 = vadd.f32 0.0, %v5059
        %v5061 = vpop.f32.mrb[0].mxu0
        %5062 = vmatprep.mubr.bf16.mxu0 0
        %5063 = vmatmul.mubr.bf16.gmra.mrb[0].mxu0 %v4943
        %v5064 = vpop.f32.mrb[0].mxu0
        %v5065 = vadd.f32 0.0, %v5064
        %v5066 = vpop.f32.mrb[0].mxu0
        %v5067 = vpop.f32.mrb[0].mxu0
        %v5068 = vadd.f32 0.0, %v5067
        %v5069 = vpop.f32.mrb[0].mxu0
        %5070 = vmatprep.mubr.bf16.mxu0 0
        %5071 = vmatmul.mubr.bf16.gmra.mrb[0].mxu0 %v4944
        %v5072 = vpop.f32.mrb[0].mxu0
        %v5073 = vadd.f32 0.0, %v5072
        %v5074 = vpop.f32.mrb[0].mxu0
        %v5075 = vpop.f32.mrb[0].mxu0
        %v5076 = vadd.f32 0.0, %v5075
        %v5077 = vpop.f32.mrb[0].mxu0
        %5078 = vmatprep.mubr.bf16.mxu0 0
        %5079 = vmatmul.mubr.bf16.gmra.mrb[0].mxu0 %v4945
        %v5080 = vpop.f32.mrb[0].mxu0
        %v5081 = vadd.f32 0.0, %v5080
        %v5082 = vpop.f32.mrb[0].mxu0
        %v5083 = vpop.f32.mrb[0].mxu0
        %v5084 = vadd.f32 0.0, %v5083
        %v5085 = vpop.f32.mrb[0].mxu0
        %5086 = vmatprep.mubr.bf16.mxu0 0
        %5087 = vmatmul.mubr.bf16.gmra.mrb[0].mxu0 %v4946
        %v5088 = vpop.f32.mrb[0].mxu0
        %v5089 = vadd.f32 0.0, %v5088
        %v5090 = vpop.f32.mrb[0].mxu0
        %v5091 = vpop.f32.mrb[0].mxu0
        %v5092 = vadd.f32 0.0, %v5091
        %v5093 = vpop.f32.mrb[0].mxu0
        %5094 = vmatprep.mubr.bf16.mxu0 0
        %5095 = vmatmul.mubr.bf16.gmra.mrb[0].mxu0 %v4947
        %v5096 = vpop.f32.mrb[0].mxu0
        %v5097 = vadd.f32 0.0, %v5096
        %v5098 = vpop.f32.mrb[0].mxu0
        %v5099 = vpop.f32.mrb[0].mxu0
        %v5100 = vadd.f32 0.0, %v5099
        %v5101 = vpop.f32.mrb[0].mxu0
        %5102 = vmatprep.mubr.bf16.mxu0 0
        %5103 = vmatmul.mubr.bf16.gmra.mrb[0].mxu0 %v4948
        %v5104 = vpop.f32.mrb[0].mxu0
        %v5105 = vadd.f32 0.0, %v5104
        %v5106 = vpop.f32.mrb[0].mxu0
        %v5107 = vpop.f32.mrb[0].mxu0
        %v5108 = vadd.f32 0.0, %v5107
        %v5109 = vpop.f32.mrb[0].mxu0
        %5110 = vmatprep.mubr.bf16.mxu0 0
        %5111 = vmatmul.mubr.bf16.gmra.mrb[0].mxu0 %v4949
        %v5112 = vpop.f32.mrb[0].mxu0
        %v5113 = vadd.f32 0.0, %v5112
        %v5114 = vpop.f32.mrb[0].mxu0
        %v5115 = vpop.f32.mrb[0].mxu0
        %v5116 = vadd.f32 0.0, %v5115
        %v5117 = vpop.f32.mrb[0].mxu0
        %5118 = vmatprep.mubr.bf16.mxu0 0
        %5119 = vmatmul.mubr.bf16.gmra.mrb[0].mxu0 %v4950
        %v5120 = vpop.f32.mrb[0].mxu0
        %v5121 = vadd.f32 0.0, %v5120
        %v5122 = vpop.f32.mrb[0].mxu0
        %v5123 = vpop.f32.mrb[0].mxu0
        %v5124 = vadd.f32 0.0, %v5123
        %v5125 = vpop.f32.mrb[0].mxu0
        %5126 = vmatprep.mubr.bf16.mxu0 0
        %5127 = vmatmul.mubr.bf16.gmra.mrb[0].mxu0 %v4951
        %v5128 = vpop.f32.mrb[0].mxu0
        %v5129 = vadd.f32 0.0, %v5128
        %v5130 = vpop.f32.mrb[0].mxu0
        %v5131 = vpop.f32.mrb[0].mxu0
        %v5132 = vadd.f32 0.0, %v5131
        %v5133 = vpop.f32.mrb[0].mxu0
        %5134 = vmatprep.mubr.bf16.mxu0 0
        %5135 = vmatmul.mubr.bf16.gmra.mrb[0].mxu0 %v4952
        %v5136 = vpop.f32.mrb[0].mxu0
        %v5137 = vadd.f32 0.0, %v5136
        %v5138 = vpop.f32.mrb[0].mxu0
        %v5139 = vpop.f32.mrb[0].mxu0
        %v5140 = vadd.f32 0.0, %v5139
        %v5141 = vpop.f32.mrb[0].mxu0
        %5142 = vmatprep.mubr.bf16.mxu0 0
        %5143 = vmatmul.mubr.bf16.gmra.mrb[0].mxu0 %v4953
        %v5144 = vpop.f32.mrb[0].mxu0
        %v5145 = vadd.f32 0.0, %v5144
        %v5146 = vpop.f32.mrb[0].mxu0
        %v5147 = vpop.f32.mrb[0].mxu0
        %v5148 = vadd.f32 0.0, %v5147
        %v5149 = vpop.f32.mrb[0].mxu0
        %5150 = vmatprep.mubr.bf16.mxu0 0
        %5151 = vmatmul.mubr.bf16.gmra.mrb[0].mxu0 %v4954
        %v5152 = vpop.f32.mrb[0].mxu0
        %v5153 = vadd.f32 0.0, %v5152
        %v5154 = vpop.f32.mrb[0].mxu0
        %v5155 = vpop.f32.mrb[0].mxu0
        %v5156 = vadd.f32 0.0, %v5155
        %v5157 = vpop.f32.mrb[0].mxu0
        %5158 = vmatprep.mubr.bf16.mxu0 0
        %5159 = vmatmul.mubr.bf16.gmra.mrb[0].mxu0 %v4955
        %v5160 = vpop.f32.mrb[0].mxu0
        %v5161 = vadd.f32 0.0, %v5160
        %v5162 = vpop.f32.mrb[0].mxu0
        %v5163 = vpop.f32.mrb[0].mxu0
        %v5164 = vadd.f32 0.0, %v5163
        %v5165 = vpop.f32.mrb[0].mxu0
        %5166 = vmatprep.mubr.bf16.mxu0 0
        %5167 = vmatmul.mubr.bf16.gmra.mrb[0].mxu0 %v4956
        %v5168 = vpop.f32.mrb[0].mxu0
        %v5169 = vadd.f32 0.0, %v5168
        %v5170 = vpop.f32.mrb[0].mxu0
        %v5171 = vpop.f32.mrb[0].mxu0
        %v5172 = vadd.f32 0.0, %v5171
        %v5173 = vpop.f32.mrb[0].mxu0
        %5174 = vmatprep.mubr.bf16.mxu0 0
        %5175 = vmatmul.mubr.bf16.gmra.mrb[0].mxu0 %v4957
        %v5176 = vpop.f32.mrb[0].mxu0
        %v5177 = vadd.f32 0.0, %v5176
        %v5178 = vpop.f32.mrb[0].mxu0
        %v5179 = vpop.f32.mrb[0].mxu0
        %v5180 = vadd.f32 0.0, %v5179
        %v5181 = vpop.f32.mrb[0].mxu0
        %5182 = vdwg.mxu0
        %v5183 = vld [vmem:[%s9] sm:$0x1]
        %v5185 = vlaneseq
        %v5186 = vshrl.u32 %v5185, 7
        %v5187 = vsub.s32 0, %v5186
        %v5188 = vrot.slane %v5183, %v5187
        %v5190 = vmul.f32 %v5057, %v5188
        %v5191 = vmul.f32 %v5060, %v5188
        %v5192 = vmul.f32 %v5065, %v5188
        %v5193 = vmul.f32 %v5068, %v5188
        %v5194 = vmul.f32 %v5073, %v5188
        %v5195 = vmul.f32 %v5076, %v5188
        %v5196 = vmul.f32 %v5081, %v5188
        %v5197 = vmul.f32 %v5084, %v5188
        %v5198 = vmul.f32 %v5089, %v5188
        %v5199 = vmul.f32 %v5092, %v5188
        %v5200 = vmul.f32 %v5097, %v5188
        %v5201 = vmul.f32 %v5100, %v5188
        %v5202 = vmul.f32 %v5105, %v5188
        %v5203 = vmul.f32 %v5108, %v5188
        %v5204 = vmul.f32 %v5113, %v5188
        %v5205 = vmul.f32 %v5116, %v5188
        %v5206 = vmul.f32 %v5121, %v5188
        %v5207 = vmul.f32 %v5124, %v5188
        %v5208 = vmul.f32 %v5129, %v5188
        %v5209 = vmul.f32 %v5132, %v5188
        %v5210 = vmul.f32 %v5137, %v5188
        %v5211 = vmul.f32 %v5140, %v5188
        %v5212 = vmul.f32 %v5145, %v5188
        %v5213 = vmul.f32 %v5148, %v5188
        %v5214 = vmul.f32 %v5153, %v5188
        %v5215 = vmul.f32 %v5156, %v5188
        %v5216 = vmul.f32 %v5161, %v5188
        %v5217 = vmul.f32 %v5164, %v5188
        %v5218 = vmul.f32 %v5169, %v5188
        %v5219 = vmul.f32 %v5172, %v5188
        %v5220 = vmul.f32 %v5177, %v5188
        %v5221 = vmul.f32 %v5180, %v5188
        %v5222 = vld [vmem:[%s10] sm:$0x1]
        %v5224 = vlaneseq
        %v5225 = vshrl.u32 %v5224, 7
        %v5226 = vsub.s32 0, %v5225
        %v5227 = vrot.slane %v5222, %v5226
        %v5229 = vadd.f32 %v5190, %v5227
        %v5230 = vadd.f32 %v5191, %v5227
        %v5231 = vadd.f32 %v5192, %v5227
        %v5232 = vadd.f32 %v5193, %v5227
        %v5233 = vadd.f32 %v5194, %v5227
        %v5234 = vadd.f32 %v5195, %v5227
        %v5235 = vadd.f32 %v5196, %v5227
        %v5236 = vadd.f32 %v5197, %v5227
        %v5237 = vadd.f32 %v5198, %v5227
        %v5238 = vadd.f32 %v5199, %v5227
        %v5239 = vadd.f32 %v5200, %v5227
        %v5240 = vadd.f32 %v5201, %v5227
        %v5241 = vadd.f32 %v5202, %v5227
        %v5242 = vadd.f32 %v5203, %v5227
        %v5243 = vadd.f32 %v5204, %v5227
        %v5244 = vadd.f32 %v5205, %v5227
        %v5245 = vadd.f32 %v5206, %v5227
        %v5246 = vadd.f32 %v5207, %v5227
        %v5247 = vadd.f32 %v5208, %v5227
        %v5248 = vadd.f32 %v5209, %v5227
        %v5249 = vadd.f32 %v5210, %v5227
        %v5250 = vadd.f32 %v5211, %v5227
        %v5251 = vadd.f32 %v5212, %v5227
        %v5252 = vadd.f32 %v5213, %v5227
        %v5253 = vadd.f32 %v5214, %v5227
        %v5254 = vadd.f32 %v5215, %v5227
        %v5255 = vadd.f32 %v5216, %v5227
        %v5256 = vadd.f32 %v5217, %v5227
        %v5257 = vadd.f32 %v5218, %v5227
        %v5258 = vadd.f32 %v5219, %v5227
        %v5259 = vadd.f32 %v5220, %v5227
        %v5260 = vadd.f32 %v5221, %v5227
        %v5261 = vld [vmem:[%s446] sm:$0xf]
        %v5262 = vld [vmem:[%s446 + $0x4] sm:$0xf]
        %v5263 = vld [vmem:[%s446 + $0x8] sm:$0xf]
        %v5264 = vld [vmem:[%s446 + $0xc] sm:$0xf]
        %v5265 = vld [vmem:[%s446 + $0x10] sm:$0xf]
        %v5266 = vld [vmem:[%s446 + $0x14] sm:$0xf]
        %v5267 = vld [vmem:[%s446 + $0x18] sm:$0xf]
        %v5268 = vld [vmem:[%s446 + $0x1c] sm:$0xf]
        %v5269 = vld [vmem:[%s446 + $0x20] sm:$0xf]
        %v5270 = vld [vmem:[%s446 + $0x24] sm:$0xf]
        %v5271 = vld [vmem:[%s446 + $0x28] sm:$0xf]
        %v5272 = vld [vmem:[%s446 + $0x2c] sm:$0xf]
        %v5273 = vld [vmem:[%s446 + $0x30] sm:$0xf]
        %v5274 = vld [vmem:[%s446 + $0x34] sm:$0xf]
        %v5275 = vld [vmem:[%s446 + $0x38] sm:$0xf]
        %v5276 = vld [vmem:[%s446 + $0x3c] sm:$0xf]
        %v5277 = vld [vmem:[%s446 + $0x40] sm:$0xf]
        %v5278 = vld [vmem:[%s446 + $0x44] sm:$0xf]
        %v5279 = vld [vmem:[%s446 + $0x48] sm:$0xf]
        %v5280 = vld [vmem:[%s446 + $0x4c] sm:$0xf]
        %v5281 = vld [vmem:[%s446 + $0x50] sm:$0xf]
        %v5282 = vld [vmem:[%s446 + $0x54] sm:$0xf]
        %v5283 = vld [vmem:[%s446 + $0x58] sm:$0xf]
        %v5284 = vld [vmem:[%s446 + $0x5c] sm:$0xf]
        %v5285 = vld [vmem:[%s446 + $0x60] sm:$0xf]
        %v5286 = vld [vmem:[%s446 + $0x64] sm:$0xf]
        %v5287 = vld [vmem:[%s446 + $0x68] sm:$0xf]
        %v5288 = vld [vmem:[%s446 + $0x6c] sm:$0xf]
        %v5289 = vld [vmem:[%s446 + $0x70] sm:$0xf]
        %v5290 = vld [vmem:[%s446 + $0x74] sm:$0xf]
        %v5291 = vld [vmem:[%s446 + $0x78] sm:$0xf]
        %v5292 = vld [vmem:[%s446 + $0x7c] sm:$0xf]
        %v5293 = vunpack.c.l.bf16 %v5261
        %v5294 = vunpack.c.l.bf16 %v5262
        %v5295 = vunpack.c.l.bf16 %v5263
        %v5296 = vunpack.c.l.bf16 %v5264
        %v5297 = vunpack.c.l.bf16 %v5265
        %v5298 = vunpack.c.l.bf16 %v5266
        %v5299 = vunpack.c.l.bf16 %v5267
        %v5300 = vunpack.c.l.bf16 %v5268
        %v5301 = vunpack.c.l.bf16 %v5269
        %v5302 = vunpack.c.l.bf16 %v5270
        %v5303 = vunpack.c.l.bf16 %v5271
        %v5304 = vunpack.c.l.bf16 %v5272
        %v5305 = vunpack.c.l.bf16 %v5273
        %v5306 = vunpack.c.l.bf16 %v5274
        %v5307 = vunpack.c.l.bf16 %v5275
        %v5308 = vunpack.c.l.bf16 %v5276
        %v5309 = vunpack.c.l.bf16 %v5277
        %v5310 = vunpack.c.l.bf16 %v5278
        %v5311 = vunpack.c.l.bf16 %v5279
        %v5312 = vunpack.c.l.bf16 %v5280
        %v5313 = vunpack.c.l.bf16 %v5281
        %v5314 = vunpack.c.l.bf16 %v5282
        %v5315 = vunpack.c.l.bf16 %v5283
        %v5316 = vunpack.c.l.bf16 %v5284
        %v5317 = vunpack.c.l.bf16 %v5285
        %v5318 = vunpack.c.l.bf16 %v5286
        %v5319 = vunpack.c.l.bf16 %v5287
        %v5320 = vunpack.c.l.bf16 %v5288
        %v5321 = vunpack.c.l.bf16 %v5289
        %v5322 = vunpack.c.l.bf16 %v5290
        %v5323 = vunpack.c.l.bf16 %v5291
        %v5324 = vunpack.c.l.bf16 %v5292
        %v5325 = vadd.f32 %v5229, %v5293
        %v5326 = vadd.f32 %v5230, %v5294
        %v5327 = vadd.f32 %v5231, %v5295
        %v5328 = vadd.f32 %v5232, %v5296
        %v5329 = vadd.f32 %v5233, %v5297
        %v5330 = vadd.f32 %v5234, %v5298
        %v5331 = vadd.f32 %v5235, %v5299
        %v5332 = vadd.f32 %v5236, %v5300
        %v5333 = vadd.f32 %v5237, %v5301
        %v5334 = vadd.f32 %v5238, %v5302
        %v5335 = vadd.f32 %v5239, %v5303
        %v5336 = vadd.f32 %v5240, %v5304
        %v5337 = vadd.f32 %v5241, %v5305
        %v5338 = vadd.f32 %v5242, %v5306
        %v5339 = vadd.f32 %v5243, %v5307
        %v5340 = vadd.f32 %v5244, %v5308
        %v5341 = vadd.f32 %v5245, %v5309
        %v5342 = vadd.f32 %v5246, %v5310
        %v5343 = vadd.f32 %v5247, %v5311
        %v5344 = vadd.f32 %v5248, %v5312
        %v5345 = vadd.f32 %v5249, %v5313
        %v5346 = vadd.f32 %v5250, %v5314
        %v5347 = vadd.f32 %v5251, %v5315
        %v5348 = vadd.f32 %v5252, %v5316
        %v5349 = vadd.f32 %v5253, %v5317
        %v5350 = vadd.f32 %v5254, %v5318
        %v5351 = vadd.f32 %v5255, %v5319
        %v5352 = vadd.f32 %v5256, %v5320
        %v5353 = vadd.f32 %v5257, %v5321
        %v5354 = vadd.f32 %v5258, %v5322
        %v5355 = vadd.f32 %v5259, %v5323
        %v5356 = vadd.f32 %v5260, %v5324
        %v5357 = vmax.f32 %v5325, 0.0
        %v5358 = vmax.f32 %v5326, 0.0
        %v5359 = vmax.f32 %v5327, 0.0
        %v5360 = vmax.f32 %v5328, 0.0
        %v5361 = vmax.f32 %v5329, 0.0
        %v5362 = vmax.f32 %v5330, 0.0
        %v5363 = vmax.f32 %v5331, 0.0
        %v5364 = vmax.f32 %v5332, 0.0
        %v5365 = vmax.f32 %v5333, 0.0
        %v5366 = vmax.f32 %v5334, 0.0
        %v5367 = vmax.f32 %v5335, 0.0
        %v5368 = vmax.f32 %v5336, 0.0
        %v5369 = vmax.f32 %v5337, 0.0
        %v5370 = vmax.f32 %v5338, 0.0
        %v5371 = vmax.f32 %v5339, 0.0
        %v5372 = vmax.f32 %v5340, 0.0
        %v5373 = vmax.f32 %v5341, 0.0
        %v5374 = vmax.f32 %v5342, 0.0
        %v5375 = vmax.f32 %v5343, 0.0
        %v5376 = vmax.f32 %v5344, 0.0
        %v5377 = vmax.f32 %v5345, 0.0
        %v5378 = vmax.f32 %v5346, 0.0
        %v5379 = vmax.f32 %v5347, 0.0
        %v5380 = vmax.f32 %v5348, 0.0
        %v5381 = vmax.f32 %v5349, 0.0
        %v5382 = vmax.f32 %v5350, 0.0
        %v5383 = vmax.f32 %v5351, 0.0
        %v5384 = vmax.f32 %v5352, 0.0
        %v5385 = vmax.f32 %v5353, 0.0
        %v5386 = vmax.f32 %v5354, 0.0
        %v5387 = vmax.f32 %v5355, 0.0
        %v5388 = vmax.f32 %v5356, 0.0
        %v5389 = vpack.c.bf16 %v5358, %v5357
        %v5390 = vpack.c.bf16 %v5360, %v5359
        %v5391 = vpack.c.bf16 %v5362, %v5361
        %v5392 = vpack.c.bf16 %v5364, %v5363
        %v5393 = vpack.c.bf16 %v5366, %v5365
        %v5394 = vpack.c.bf16 %v5368, %v5367
        %v5395 = vpack.c.bf16 %v5370, %v5369
        %v5396 = vpack.c.bf16 %v5372, %v5371
        %v5397 = vpack.c.bf16 %v5374, %v5373
        %v5398 = vpack.c.bf16 %v5376, %v5375
        %v5399 = vpack.c.bf16 %v5378, %v5377
        %v5400 = vpack.c.bf16 %v5380, %v5379
        %v5401 = vpack.c.bf16 %v5382, %v5381
        %v5402 = vpack.c.bf16 %v5384, %v5383
        %v5403 = vpack.c.bf16 %v5386, %v5385
        %v5404 = vpack.c.bf16 %v5388, %v5387
        %v5421 = vunpack.c.l.b16 %v5389
        %v5422 = vunpack.c.h.b16 %v5389
        %v5423 = vunpack.c.l.b16 %v5390
        %v5424 = vunpack.c.h.b16 %v5390
        %v5425 = vunpack.c.l.b16 %v5391
        %v5426 = vunpack.c.h.b16 %v5391
        %v5427 = vunpack.c.l.b16 %v5392
        %v5428 = vunpack.c.h.b16 %v5392
        %v5429 = vunpack.c.l.b16 %v5393
        %v5430 = vunpack.c.h.b16 %v5393
        %v5431 = vunpack.c.l.b16 %v5394
        %v5432 = vunpack.c.h.b16 %v5394
        %v5433 = vunpack.c.l.b16 %v5395
        %v5434 = vunpack.c.h.b16 %v5395
        %v5435 = vunpack.c.l.b16 %v5396
        %v5436 = vunpack.c.h.b16 %v5396
        %v5437 = vunpack.c.l.b16 %v5397
        %v5438 = vunpack.c.h.b16 %v5397
        %v5439 = vunpack.c.l.b16 %v5398
        %v5440 = vunpack.c.h.b16 %v5398
        %v5441 = vunpack.c.l.b16 %v5399
        %v5442 = vunpack.c.h.b16 %v5399
        %v5443 = vunpack.c.l.b16 %v5400
        %v5444 = vunpack.c.h.b16 %v5400
        %v5445 = vunpack.c.l.b16 %v5401
        %v5446 = vunpack.c.h.b16 %v5401
        %v5447 = vunpack.c.l.b16 %v5402
        %v5448 = vunpack.c.h.b16 %v5402
        %v5449 = vunpack.c.l.b16 %v5403
        %v5450 = vunpack.c.h.b16 %v5403
        %v5451 = vunpack.c.l.b16 %v5404
        %v5452 = vunpack.c.h.b16 %v5404
        %v5453 = vpack.c.b16 %v5421, %v5421
        %v5454 = vpack.c.b16 %v5422, %v5422
        %v5455 = vpack.c.b16 %v5423, %v5423
        %v5456 = vpack.c.b16 %v5424, %v5424
        %v5457 = vpack.c.b16 %v5425, %v5425
        %v5458 = vpack.c.b16 %v5426, %v5426
        %v5459 = vpack.c.b16 %v5427, %v5427
        %v5460 = vpack.c.b16 %v5428, %v5428
        %v5461 = vpack.c.b16 %v5429, %v5429
        %v5462 = vpack.c.b16 %v5430, %v5430
        %v5463 = vpack.c.b16 %v5431, %v5431
        %v5464 = vpack.c.b16 %v5432, %v5432
        %v5465 = vpack.c.b16 %v5433, %v5433
        %v5466 = vpack.c.b16 %v5434, %v5434
        %v5467 = vpack.c.b16 %v5435, %v5435
        %v5468 = vpack.c.b16 %v5436, %v5436
        %v5469 = vpack.c.b16 %v5437, %v5437
        %v5470 = vpack.c.b16 %v5438, %v5438
        %v5471 = vpack.c.b16 %v5439, %v5439
        %v5472 = vpack.c.b16 %v5440, %v5440
        %v5473 = vpack.c.b16 %v5441, %v5441
        %v5474 = vpack.c.b16 %v5442, %v5442
        %v5475 = vpack.c.b16 %v5443, %v5443
        %v5476 = vpack.c.b16 %v5444, %v5444
        %v5477 = vpack.c.b16 %v5445, %v5445
        %v5478 = vpack.c.b16 %v5446, %v5446
        %v5479 = vpack.c.b16 %v5447, %v5447
        %v5480 = vpack.c.b16 %v5448, %v5448
        %v5481 = vpack.c.b16 %v5449, %v5449
        %v5482 = vpack.c.b16 %v5450, %v5450
        %v5483 = vpack.c.b16 %v5451, %v5451
        %v5484 = vpack.c.b16 %v5452, %v5452
        %5517 = vst [vmem:[%s510] sm:$0xf] %v5453
        %5518 = vst [vmem:[%s510 + $0x4] sm:$0xf] %v5454
        %5519 = vst [vmem:[%s510 + $0x8] sm:$0xf] %v5455
        %5520 = vst [vmem:[%s510 + $0xc] sm:$0xf] %v5456
        %5521 = vst [vmem:[%s510 + $0x10] sm:$0xf] %v5457
        %5522 = vst [vmem:[%s510 + $0x14] sm:$0xf] %v5458
        %5523 = vst [vmem:[%s510 + $0x18] sm:$0xf] %v5459
        %5524 = vst [vmem:[%s510 + $0x1c] sm:$0xf] %v5460
        %5525 = vst [vmem:[%s510 + $0x20] sm:$0xf] %v5461
        %5526 = vst [vmem:[%s510 + $0x24] sm:$0xf] %v5462
        %5527 = vst [vmem:[%s510 + $0x28] sm:$0xf] %v5463
        %5528 = vst [vmem:[%s510 + $0x2c] sm:$0xf] %v5464
        %5529 = vst [vmem:[%s510 + $0x30] sm:$0xf] %v5465
        %5530 = vst [vmem:[%s510 + $0x34] sm:$0xf] %v5466
        %5531 = vst [vmem:[%s510 + $0x38] sm:$0xf] %v5467
        %5532 = vst [vmem:[%s510 + $0x3c] sm:$0xf] %v5468
        %5533 = vst [vmem:[%s510 + $0x40] sm:$0xf] %v5469
        %5534 = vst [vmem:[%s510 + $0x44] sm:$0xf] %v5470
        %5535 = vst [vmem:[%s510 + $0x48] sm:$0xf] %v5471
        %5536 = vst [vmem:[%s510 + $0x4c] sm:$0xf] %v5472
        %5537 = vst [vmem:[%s510 + $0x50] sm:$0xf] %v5473
        %5538 = vst [vmem:[%s510 + $0x54] sm:$0xf] %v5474
        %5539 = vst [vmem:[%s510 + $0x58] sm:$0xf] %v5475
        %5540 = vst [vmem:[%s510 + $0x5c] sm:$0xf] %v5476
        %5541 = vst [vmem:[%s510 + $0x60] sm:$0xf] %v5477
        %5542 = vst [vmem:[%s510 + $0x64] sm:$0xf] %v5478
        %5543 = vst [vmem:[%s510 + $0x68] sm:$0xf] %v5479
        %5544 = vst [vmem:[%s510 + $0x6c] sm:$0xf] %v5480
        %5545 = vst [vmem:[%s510 + $0x70] sm:$0xf] %v5481
        %5546 = vst [vmem:[%s510 + $0x74] sm:$0xf] %v5482
        %5547 = vst [vmem:[%s510 + $0x78] sm:$0xf] %v5483
        %5548 = vst [vmem:[%s510 + $0x7c] sm:$0xf] %v5484
        %s5549 = sand.u32 %s299, 1
        %s5550 = scalar_lea.sflag [#allocation5], %s5549
        %s5551 = sand.u32 %s299, 1
        %s5552 = smul.addr %s5551, 128
        %s5553 = scalar_lea.vmem [#allocation12], %s5552
        // Predicated region
        $region85: #{tpu_custom_call.1} parent=63 // pred_check
          %p5554 = pneg %p309
        $region86: #{tpu_custom_call.1} parent=63 // pred_check_branch
          %5556 = sbr.rel (%p5554) target = $region88
        $region87: #{tpu_custom_call.1} parent=63 // pred_region
          %s5557 = smul.u32 16, %s37
          %s5559 = ssub.s32 2048, 2048
          %5560 = vsyncadd %s5550, %s5559
          %s5561 = smul.addr %s5557, 2
          %s5562 = smul.addr %s36, 32
          %s5563 = sadd.s32 %s5561, %s5562
          %s5564 = smul.addr %s5563, 64
          %s5565 = scalar_lea.hbm %s11, %s5564
          %s5566 = sshll.u32 %s5553, 4
          %s5567 = int_to_ptr.vmem [resolvable:$true] %s5566
          %5572 = dma.vmem_to_hbm [thread:$0]  %s5567, 2048, %s5565, %s5550, 64, 64, 4
        $region88: #{tpu_custom_call.1} parent=63 // pred_fallthru
          _
      $region64: #{tpu_custom_call.1} parent=5 // pred_fallthru
        _
      %p5573 = scmp.le.s32.totalorder 2, %s27
      // Predicated region
      $region89: #{tpu_custom_call.1} parent=5 // pred_check
        %p5574 = pneg %p5573
      $region90: #{tpu_custom_call.1} parent=5 // pred_check_branch
        %5576 = sbr.rel (%p5574) target = $region92
      $region91: #{tpu_custom_call.1} parent=5 // pred_region
        %s5577 = ssub.s32 %s27, 2
        // Predicated region
        $region93: #{tpu_custom_call.1} parent=91 // pred_check
          %p5578 = pneg %p315
        $region94: #{tpu_custom_call.1} parent=91 // pred_check_branch
          %5580 = sbr.rel (%p5578) target = $region96
        $region95: #{tpu_custom_call.1} parent=91 // pred_region
          %s5581 = sand.u32 %s300, 1
          %s5582 = scalar_lea.sflag [#allocation5], %s5581
          %s5583 = sand.u32 %s300, 1
          %s5584 = smul.addr %s5583, 128
          %s5585 = scalar_lea.vmem [#allocation12], %s5584
          %5586 = dma.done %s5582, 2048
        $region96: #{tpu_custom_call.1} parent=91 // pred_fallthru
          _
      $region92: #{tpu_custom_call.1} parent=5 // pred_fallthru
        _
    $region6: #{tpu_custom_call.1} parent=1 // loop_footer
      %s31 = sadd.s32 1, %s27
    $region7: #{tpu_custom_call.1} parent=1 // loop_footer_branch
      %26 = sbr.rel target = $region3
    $region8: #{tpu_custom_call.1} parent=1 // loop_exit
      _
    %5587 = vsyncpa [#allocation4], 1
    %s5588 = scalar_lea.sflag [#allocation4], 1
    %5589 = vsyncpa %s5588, 1
    %5590 = vsyncpa [#allocation7], 1
    %s5591 = scalar_lea.sflag [#allocation7], 1
    %5592 = vsyncpa %s5591, 1
    %5593 = vsyncpa [#allocation10], 1
    %5594 = vsyncpa [#allocation5], 1
    %s5595 = scalar_lea.sflag [#allocation5], 1
    %5596 = vsyncpa %s5595, 1

</llo_original>
